<compile_context>
chip_gen: v7x
topology: tpu7x:2x2x1
jax: 0.10.0
libtpu: 0.0.40
codegen_flags: <defaults>
</compile_context>

<pallas_src>
import functools

import jax
import jax.numpy as jnp
from jax import lax
from jax.experimental import pallas as pl
from jax.experimental.pallas import tpu as pltpu


def encoder_kernel(tok_ref, len_ref, wxf_ref, wxb_ref, bf_ref, bb_ref,
                   whhTf_ref, whhTb_ref, h0_ref, c0_ref,
                   out_ref, hN_ref, cN_ref,
                   gxf_sc, gxb_sc):
    """Bidirectional LSTM encoder over a padded batch, whole sequence in one kernel.

    tok_ref : (T*B, 1) int32   padded token ids, row t*B + b
    len_ref : (B, 1)   int32   sequence lengths (packed-sequence semantics)
    wxf_ref : (V, 4H)  f32     emb @ W_ih_fwd^T  (embedding fused into input weights)
    wxb_ref : (V, 4H)  f32     emb @ W_ih_bwd^T
    bf_ref  : (1, 4H)  f32     b_ih_fwd + b_hh_fwd
    bb_ref  : (1, 4H)  f32     b_ih_bwd + b_hh_bwd
    whhTf_ref, whhTb_ref : (H, 4H) f32  recurrent weights, transposed
    h0_ref, c0_ref : (2, B, H) f32      initial state (dir 0 = fwd, dir 1 = bwd)
    out_ref : (T, B, 2H) f32   outputs (fwd | bwd), zero at padded positions
    hN_ref, cN_ref : (2, B, H) f32 final state per direction
    gxf_sc, gxb_sc : (T*B, 4H) VMEM scratch for precomputed input-gate terms
    """
    T, B, H2 = out_ref.shape
    H = H2 // 2
    TB = tok_ref.shape[0]
    V = wxf_ref.shape[0]

    dotf = functools.partial(jnp.dot, preferred_element_type=jnp.float32)

    # Embedding lookup as one-hot matmul, fused with W_ih: one big MXU matmul per
    # direction yields the input-gate contribution of all timesteps up front, so
    # the serial recurrence below has a single dependent matmul per step.
    lane = lax.broadcasted_iota(jnp.int32, (TB, V), 1)
    onehot = (lane == tok_ref[...]).astype(jnp.float32)            # (TB, V)
    gxf_sc[...] = dotf(onehot, wxf_ref[...]) + bf_ref[...]         # (TB, 4H)
    gxb_sc[...] = dotf(onehot, wxb_ref[...]) + bb_ref[...]

    lens = len_ref[...]                                            # (B, 1) int32

    def cell(gx, h, c, whhT_ref):
        # PyTorch gate order (i, f, g, o); H = 128 -> each slice is a full vreg.
        gates = gx + dotf(h, whhT_ref[...])                        # (B, 4H)
        i_g = jax.nn.sigmoid(gates[:, 0 * H:1 * H])
        f_g = jax.nn.sigmoid(gates[:, 1 * H:2 * H])
        g_g = jnp.tanh(gates[:, 2 * H:3 * H])
        o_g = jax.nn.sigmoid(gates[:, 3 * H:4 * H])
        c_new = f_g * c + i_g * g_g
        h_new = o_g * jnp.tanh(c_new)
        return h_new, c_new

    h_f = h0_ref[0]
    c_f = c0_ref[0]
    h_b = h0_ref[1]
    c_b = c0_ref[1]

    # Fully unrolled (T is small & static).  Forward processes t while backward
    # processes T-1-t in the same iteration -> two independent MXU chains.
    for t in range(T):
        tb = T - 1 - t
        m_f = lens > t                                             # (B, 1) bool
        m_b = lens > tb

        # forward direction, timestep t
        hf_new, cf_new = cell(gxf_sc[t * B:(t + 1) * B, :], h_f, c_f, whhTf_ref)
        h_f = jnp.where(m_f, hf_new, h_f)
        c_f = jnp.where(m_f, cf_new, c_f)
        out_ref[t, :, 0:H] = jnp.where(m_f, hf_new, 0.0)

        # backward direction, timestep tb
        hb_new, cb_new = cell(gxb_sc[tb * B:(tb + 1) * B, :], h_b, c_b, whhTb_ref)
        h_b = jnp.where(m_b, hb_new, h_b)
        c_b = jnp.where(m_b, cb_new, c_b)
        out_ref[tb, :, H:2 * H] = jnp.where(m_b, hb_new, 0.0)

    hN_ref[0] = h_f
    hN_ref[1] = h_b
    cN_ref[0] = c_f
    cN_ref[1] = c_b


def encoder_forward(params, pad_seqs, seq_lengths, hidden):
    """JAX wrapper equivalent to Encoder.forward(pad_seqs, seq_lengths, hidden).

    pad_seqs    : (T, B, 1) int32 padded token ids (T == max(seq_lengths))
    seq_lengths : (B,) int32, sorted descending (pack_padded_sequence requirement)
    hidden      : (h0, c0), each (2, B, H)
    returns (outputs (T, B, 2H), (h_n (2, B, H), c_n (2, B, H)))
    """
    emb, wih_f, whh_f, bih_f, bhh_f, wih_b, whh_b, bih_b, bhh_b = params
    h0, c0 = hidden
    T, B = pad_seqs.shape[0], pad_seqs.shape[1]
    V, H = emb.shape

    # One-time parameter prep (outside the serial recurrence -> HIGHEST is fine here).
    hi = lax.Precision.HIGHEST
    wx_f = jnp.dot(emb, wih_f.T, precision=hi)                     # (V, 4H)
    wx_b = jnp.dot(emb, wih_b.T, precision=hi)
    b_f = (bih_f + bhh_f).reshape(1, 4 * H)
    b_b = (bih_b + bhh_b).reshape(1, 4 * H)
    whhT_f = whh_f.T                                               # (H, 4H)
    whhT_b = whh_b.T

    tok = pad_seqs.reshape(T * B, 1).astype(jnp.int32)             # row t*B + b
    lens = seq_lengths.reshape(B, 1).astype(jnp.int32)

    vmem = pl.BlockSpec(memory_space=pltpu.MemorySpace.VMEM)
    out_shapes = (jax.ShapeDtypeStruct((T, B, 2 * H), jnp.float32),
                  jax.ShapeDtypeStruct((2, B, H), jnp.float32),
                  jax.ShapeDtypeStruct((2, B, H), jnp.float32))

    out, hN, cN = pl.pallas_call(
        encoder_kernel,
        out_shape=out_shapes,
        in_specs=[vmem] * 10,
        out_specs=(vmem, vmem, vmem),
        scratch_shapes=[pltpu.VMEM((T * B, 4 * H), jnp.float32),
                        pltpu.VMEM((T * B, 4 * H), jnp.float32)],
    )(tok, lens, wx_f, wx_b, b_f, b_b, whhT_f, whhT_b, h0, c0)

    return out, (hN, cN)


def encoder_reference(params, pad_seqs, seq_lengths, hidden):
    """Pure-JAX reference mirroring PyTorch's packed bidirectional LSTM."""
    emb, wih_f, whh_f, bih_f, bhh_f, wih_b, whh_b, bih_b, bhh_b = params
    T, B = pad_seqs.shape[0], pad_seqs.shape[1]
    H = emb.shape[1]
    x = emb[pad_seqs[:, :, 0]]                                     # (T, B, H)
    h0, c0 = hidden
    lens = seq_lengths

    def cell(xt, h, c, wih, whh, bih, bhh):
        gates = xt @ wih.T + h @ whh.T + bih + bhh
        i_g = jax.nn.sigmoid(gates[:, :H])
        f_g = jax.nn.sigmoid(gates[:, H:2 * H])
        g_g = jnp.tanh(gates[:, 2 * H:3 * H])
        o_g = jax.nn.sigmoid(gates[:, 3 * H:])
        c_new = f_g * c + i_g * g_g
        return o_g * jnp.tanh(c_new), c_new

    # forward direction
    h, c = h0[0], c0[0]
    outs_f = []
    for t in range(T):
        h_new, c_new = cell(x[t], h, c, wih_f, whh_f, bih_f, bhh_f)
        m = (t < lens)[:, None]
        h = jnp.where(m, h_new, h)
        c = jnp.where(m, c_new, c)
        outs_f.append(jnp.where(m, h_new, 0.0))
    hf, cf = h, c

    # backward direction (packed: starts at t = len[b]-1 for each b)
    h, c = h0[1], c0[1]
    outs_b = [None] * T
    for t in range(T - 1, -1, -1):
        h_new, c_new = cell(x[t], h, c, wih_b, whh_b, bih_b, bhh_b)
        m = (t < lens)[:, None]
        h = jnp.where(m, h_new, h)
        c = jnp.where(m, c_new, c)
        outs_b[t] = jnp.where(m, h_new, 0.0)
    hb, cb = h, c

    out = jnp.concatenate([jnp.stack(outs_f), jnp.stack(outs_b)], axis=-1)
    return out, (jnp.stack([hf, hb]), jnp.stack([cf, cb]))


if __name__ == "__main__":
    # Small, module-consistent shapes (lane-dense: H=128, V=128, 2H=256, 4H=512).
    T = 8      # max sequence length
    B = 8      # batch
    H = 128    # hidden_size
    V = 128    # dictionary_size

    key = jax.random.PRNGKey(0)
    ks = jax.random.split(key, 12)
    scale = 1.0 / jnp.sqrt(H)

    def unif(k, shape):
        return jax.random.uniform(k, shape, jnp.float32, -scale, scale)

    emb = jax.random.normal(ks[0], (V, H), jnp.float32)            # nn.Embedding(V, H)
    wih_f = unif(ks[1], (4 * H, H))                                # LSTM weight_ih_l0
    whh_f = unif(ks[2], (4 * H, H))                                # LSTM weight_hh_l0
    bih_f = unif(ks[3], (4 * H,))
    bhh_f = unif(ks[4], (4 * H,))
    wih_b = unif(ks[5], (4 * H, H))                                # *_l0_reverse
    whh_b = unif(ks[6], (4 * H, H))
    bih_b = unif(ks[7], (4 * H,))
    bhh_b = unif(ks[8], (4 * H,))
    params = (emb, wih_f, whh_f, bih_f, bhh_f, wih_b, whh_b, bih_b, bhh_b)

    # Padded sequences (T, B, 1), lengths sorted descending, max length == T.
    seq_lengths = jnp.array([8, 8, 7, 6, 5, 4, 3, 2], jnp.int32)
    tokens = jax.random.randint(ks[9], (T, B), 0, V, jnp.int32)
    t_idx = jnp.arange(T)[:, None]
    tokens = jnp.where(t_idx < seq_lengths[None, :], tokens, 0)    # pad positions -> 0
    pad_seqs = tokens[:, :, None]

    h0 = 0.1 * jax.random.normal(ks[10], (2, B, H), jnp.float32)
    c0 = 0.1 * jax.random.normal(ks[11], (2, B, H), jnp.float32)

    out, (hN, cN) = encoder_forward(params, pad_seqs, seq_lengths, (h0, c0))
    out = jax.block_until_ready(out)
    hN = jax.block_until_ready(hN)
    cN = jax.block_until_ready(cN)

    ref_out, (ref_h, ref_c) = encoder_reference(params, pad_seqs, seq_lengths, (h0, c0))

    assert out.shape == (T, B, 2 * H)
    assert hN.shape == (2, B, H) and cN.shape == (2, B, H)
    assert jnp.allclose(out, ref_out, atol=3e-2, rtol=3e-2), "output mismatch"
    assert jnp.allclose(hN, ref_h, atol=3e-2, rtol=3e-2), "h_n mismatch"
    assert jnp.allclose(cN, ref_c, atol=3e-2, rtol=3e-2), "c_n mismatch"

    print("KERNEL_OK")
</pallas_src>

<mosaic_0001>
module attributes {stable_mosaic.version = 11 : i64} {
  func.func @encoder_kernel(%arg0: memref<64x1xi32, #tpu.memory_space<vmem>>, %arg1: memref<8x1xi32, #tpu.memory_space<vmem>>, %arg2: memref<128x512xf32, #tpu.memory_space<vmem>>, %arg3: memref<128x512xf32, #tpu.memory_space<vmem>>, %arg4: memref<1x512xf32, #tpu.memory_space<vmem>>, %arg5: memref<1x512xf32, #tpu.memory_space<vmem>>, %arg6: memref<128x512xf32, #tpu.memory_space<vmem>>, %arg7: memref<128x512xf32, #tpu.memory_space<vmem>>, %arg8: memref<2x8x128xf32, #tpu.memory_space<vmem>>, %arg9: memref<2x8x128xf32, #tpu.memory_space<vmem>>, %arg10: memref<8x8x256xf32, #tpu.memory_space<vmem>>, %arg11: memref<2x8x128xf32, #tpu.memory_space<vmem>>, %arg12: memref<2x8x128xf32, #tpu.memory_space<vmem>>, %arg13: memref<64x512xf32, #tpu.memory_space<vmem>>, %arg14: memref<64x512xf32, #tpu.memory_space<vmem>>) attributes {dimension_semantics = [], scalar_prefetch = 0 : i64, scratch_operands = 2 : i64, tpu.core_type = #tpu.core_type<tc>} {
    %0 = tpu.iota {dimensions = array<i32: 1>} : vector<64x128xi32>
    %c0 = arith.constant 0 : index
    %c0_0 = arith.constant 0 : index
    %1 = vector.load %arg0[%c0, %c0_0] : memref<64x1xi32, #tpu.memory_space<vmem>>, vector<64x1xi32>
    %2 = vector.broadcast %1 : vector<64x1xi32> to vector<64x128xi32>
    %3 = arith.cmpi eq, %0, %2 : vector<64x128xi32>
    %4 = arith.extui %3 : vector<64x128xi1> to vector<64x128xi32>
    %5 = arith.sitofp %4 : vector<64x128xi32> to vector<64x128xf32>
    %c0_1 = arith.constant 0 : index
    %c0_2 = arith.constant 0 : index
    %6 = vector.load %arg2[%c0_1, %c0_2] : memref<128x512xf32, #tpu.memory_space<vmem>>, vector<128x512xf32>
    %cst = arith.constant dense<0.000000e+00> : vector<64x512xf32>
    %7 = tpu.matmul %5, %6, %cst {dimension_numbers = #tpu.dot_dimension_numbers<[1], [0], [0], [1], [0, 0, 1, 1], [], []>} : vector<64x128xf32>, vector<128x512xf32>, vector<64x512xf32> -> vector<64x512xf32>
    %c0_3 = arith.constant 0 : index
    %c0_4 = arith.constant 0 : index
    %8 = vector.load %arg4[%c0_3, %c0_4] : memref<1x512xf32, #tpu.memory_space<vmem>>, vector<1x512xf32>
    %9 = vector.broadcast %8 : vector<1x512xf32> to vector<64x512xf32>
    %10 = arith.addf %7, %9 : vector<64x512xf32>
    %c0_5 = arith.constant 0 : index
    %c0_6 = arith.constant 0 : index
    %11 = vector.load %arg13[%c0_5, %c0_6] : memref<64x512xf32, #tpu.memory_space<vmem>>, vector<64x512xf32>
    tpu.vector_store %arg13[%c0_5, %c0_6], %10 {strides = array<i32>} : memref<64x512xf32, #tpu.memory_space<vmem>>, vector<64x512xf32>,
    %c0_7 = arith.constant 0 : index
    %c0_8 = arith.constant 0 : index
    %12 = vector.load %arg3[%c0_7, %c0_8] : memref<128x512xf32, #tpu.memory_space<vmem>>, vector<128x512xf32>
    %cst_9 = arith.constant dense<0.000000e+00> : vector<64x512xf32>
    %13 = tpu.matmul %5, %12, %cst_9 {dimension_numbers = #tpu.dot_dimension_numbers<[1], [0], [0], [1], [0, 0, 1, 1], [], []>} : vector<64x128xf32>, vector<128x512xf32>, vector<64x512xf32> -> vector<64x512xf32>
    %c0_10 = arith.constant 0 : index
    %c0_11 = arith.constant 0 : index
    %14 = vector.load %arg5[%c0_10, %c0_11] : memref<1x512xf32, #tpu.memory_space<vmem>>, vector<1x512xf32>
    %15 = vector.broadcast %14 : vector<1x512xf32> to vector<64x512xf32>
    %16 = arith.addf %13, %15 : vector<64x512xf32>
    %c0_12 = arith.constant 0 : index
    %c0_13 = arith.constant 0 : index
    %17 = vector.load %arg14[%c0_12, %c0_13] : memref<64x512xf32, #tpu.memory_space<vmem>>, vector<64x512xf32>
    tpu.vector_store %arg14[%c0_12, %c0_13], %16 {strides = array<i32>} : memref<64x512xf32, #tpu.memory_space<vmem>>, vector<64x512xf32>,
    %c0_14 = arith.constant 0 : index
    %c0_15 = arith.constant 0 : index
    %18 = vector.load %arg1[%c0_14, %c0_15] : memref<8x1xi32, #tpu.memory_space<vmem>>, vector<8x1xi32>
    %c0_16 = arith.constant 0 : index
    %c0_17 = arith.constant 0 : index
    %c0_18 = arith.constant 0 : index
    %19 = vector.load %arg8[%c0_16, %c0_17, %c0_18] : memref<2x8x128xf32, #tpu.memory_space<vmem>>, vector<1x8x128xf32>
    %20 = vector.shape_cast %19 : vector<1x8x128xf32> to vector<8x128xf32>
    %c0_19 = arith.constant 0 : index
    %c0_20 = arith.constant 0 : index
    %c0_21 = arith.constant 0 : index
    %21 = vector.load %arg9[%c0_19, %c0_20, %c0_21] : memref<2x8x128xf32, #tpu.memory_space<vmem>>, vector<1x8x128xf32>
    %22 = vector.shape_cast %21 : vector<1x8x128xf32> to vector<8x128xf32>
    %c1 = arith.constant 1 : index
    %c0_22 = arith.constant 0 : index
    %c0_23 = arith.constant 0 : index
    %23 = vector.load %arg8[%c1, %c0_22, %c0_23] : memref<2x8x128xf32, #tpu.memory_space<vmem>>, vector<1x8x128xf32>
    %24 = vector.shape_cast %23 : vector<1x8x128xf32> to vector<8x128xf32>
    %c1_24 = arith.constant 1 : index
    %c0_25 = arith.constant 0 : index
    %c0_26 = arith.constant 0 : index
    %25 = vector.load %arg9[%c1_24, %c0_25, %c0_26] : memref<2x8x128xf32, #tpu.memory_space<vmem>>, vector<1x8x128xf32>
    %26 = vector.shape_cast %25 : vector<1x8x128xf32> to vector<8x128xf32>
    %c0_i32 = arith.constant 0 : i32
    %27 = vector.broadcast %c0_i32 : i32 to vector<8x1xi32>
    %28 = arith.cmpi sgt, %18, %27 : vector<8x1xi32>
    %c7_i32 = arith.constant 7 : i32
    %29 = vector.broadcast %c7_i32 : i32 to vector<8x1xi32>
    %30 = arith.cmpi sgt, %18, %29 : vector<8x1xi32>
    %c0_27 = arith.constant 0 : index
    %c0_28 = arith.constant 0 : index
    %31 = vector.load %arg13[%c0_27, %c0_28] : memref<64x512xf32, #tpu.memory_space<vmem>>, vector<8x512xf32>
    %c0_29 = arith.constant 0 : index
    %c0_30 = arith.constant 0 : index
    %32 = vector.load %arg6[%c0_29, %c0_30] : memref<128x512xf32, #tpu.memory_space<vmem>>, vector<128x512xf32>
    %cst_31 = arith.constant dense<0.000000e+00> : vector<8x512xf32>
    %33 = tpu.matmul %20, %32, %cst_31 {dimension_numbers = #tpu.dot_dimension_numbers<[1], [0], [0], [1], [0, 0, 1, 1], [], []>} : vector<8x128xf32>, vector<128x512xf32>, vector<8x512xf32> -> vector<8x512xf32>
    %34 = arith.addf %31, %33 : vector<8x512xf32>
    %35 = vector.extract_strided_slice %34 {offsets = [0, 0], sizes = [8, 128], strides = [1, 1]} : vector<8x512xf32> to vector<8x128xf32>
    %36 = arith.negf %35 : vector<8x128xf32>
    %37 = math.exp %36 : vector<8x128xf32>
    %cst_32 = arith.constant 1.000000e+00 : f32
    %38 = vector.broadcast %cst_32 : f32 to vector<8x128xf32>
    %39 = arith.addf %38, %37 : vector<8x128xf32>
    %40 = arith.divf %38, %39 : vector<8x128xf32>
    %41 = vector.extract_strided_slice %34 {offsets = [0, 128], sizes = [8, 128], strides = [1, 1]} : vector<8x512xf32> to vector<8x128xf32>
    %42 = arith.negf %41 : vector<8x128xf32>
    %43 = math.exp %42 : vector<8x128xf32>
    %cst_33 = arith.constant 1.000000e+00 : f32
    %44 = vector.broadcast %cst_33 : f32 to vector<8x128xf32>
    %45 = arith.addf %44, %43 : vector<8x128xf32>
    %46 = arith.divf %44, %45 : vector<8x128xf32>
    %47 = vector.extract_strided_slice %34 {offsets = [0, 256], sizes = [8, 128], strides = [1, 1]} : vector<8x512xf32> to vector<8x128xf32>
    %48 = math.tanh %47 : vector<8x128xf32>
    %49 = vector.extract_strided_slice %34 {offsets = [0, 384], sizes = [8, 128], strides = [1, 1]} : vector<8x512xf32> to vector<8x128xf32>
    %50 = arith.negf %49 : vector<8x128xf32>
    %51 = math.exp %50 : vector<8x128xf32>
    %cst_34 = arith.constant 1.000000e+00 : f32
    %52 = vector.broadcast %cst_34 : f32 to vector<8x128xf32>
    %53 = arith.addf %52, %51 : vector<8x128xf32>
    %54 = arith.divf %52, %53 : vector<8x128xf32>
    %55 = arith.mulf %46, %22 : vector<8x128xf32>
    %56 = arith.mulf %40, %48 : vector<8x128xf32>
    %57 = arith.addf %55, %56 : vector<8x128xf32>
    %58 = math.tanh %57 : vector<8x128xf32>
    %59 = arith.mulf %54, %58 : vector<8x128xf32>
    %60 = vector.shape_cast %28 : vector<8x1xi1> to vector<8x1xi1>
    %61 = vector.broadcast %60 : vector<8x1xi1> to vector<8x128xi1>
    %62 = arith.select %61, %59, %20 : vector<8x128xi1>, vector<8x128xf32>
    %63 = vector.shape_cast %28 : vector<8x1xi1> to vector<8x1xi1>
    %64 = vector.broadcast %63 : vector<8x1xi1> to vector<8x128xi1>
    %65 = arith.select %64, %57, %22 : vector<8x128xi1>, vector<8x128xf32>
    %cst_35 = arith.constant 0.000000e+00 : f32
    %66 = vector.shape_cast %28 : vector<8x1xi1> to vector<8x1xi1>
    %67 = vector.broadcast %66 : vector<8x1xi1> to vector<8x128xi1>
    %68 = vector.broadcast %cst_35 : f32 to vector<8x128xf32>
    %69 = arith.select %67, %59, %68 : vector<8x128xi1>, vector<8x128xf32>
    %c0_36 = arith.constant 0 : index
    %c0_37 = arith.constant 0 : index
    %c0_38 = arith.constant 0 : index
    %70 = vector.load %arg10[%c0_36, %c0_37, %c0_38] : memref<8x8x256xf32, #tpu.memory_space<vmem>>, vector<1x8x128xf32>
    %71 = vector.shape_cast %70 : vector<1x8x128xf32> to vector<8x128xf32>
    %72 = vector.shape_cast %69 : vector<8x128xf32> to vector<1x8x128xf32>
    tpu.vector_store %arg10[%c0_36, %c0_37, %c0_38], %72 {strides = array<i32>} : memref<8x8x256xf32, #tpu.memory_space<vmem>>, vector<1x8x128xf32>,
    %c56 = arith.constant 56 : index
    %c0_39 = arith.constant 0 : index
    %73 = vector.load %arg14[%c56, %c0_39] : memref<64x512xf32, #tpu.memory_space<vmem>>, vector<8x512xf32>
    %c0_40 = arith.constant 0 : index
    %c0_41 = arith.constant 0 : index
    %74 = vector.load %arg7[%c0_40, %c0_41] : memref<128x512xf32, #tpu.memory_space<vmem>>, vector<128x512xf32>
    %cst_42 = arith.constant dense<0.000000e+00> : vector<8x512xf32>
    %75 = tpu.matmul %24, %74, %cst_42 {dimension_numbers = #tpu.dot_dimension_numbers<[1], [0], [0], [1], [0, 0, 1, 1], [], []>} : vector<8x128xf32>, vector<128x512xf32>, vector<8x512xf32> -> vector<8x512xf32>
    %76 = arith.addf %73, %75 : vector<8x512xf32>
    %77 = vector.extract_strided_slice %76 {offsets = [0, 0], sizes = [8, 128], strides = [1, 1]} : vector<8x512xf32> to vector<8x128xf32>
    %78 = arith.negf %77 : vector<8x128xf32>
    %79 = math.exp %78 : vector<8x128xf32>
    %cst_43 = arith.constant 1.000000e+00 : f32
    %80 = vector.broadcast %cst_43 : f32 to vector<8x128xf32>
    %81 = arith.addf %80, %79 : vector<8x128xf32>
    %82 = arith.divf %80, %81 : vector<8x128xf32>
    %83 = vector.extract_strided_slice %76 {offsets = [0, 128], sizes = [8, 128], strides = [1, 1]} : vector<8x512xf32> to vector<8x128xf32>
    %84 = arith.negf %83 : vector<8x128xf32>
    %85 = math.exp %84 : vector<8x128xf32>
    %cst_44 = arith.constant 1.000000e+00 : f32
    %86 = vector.broadcast %cst_44 : f32 to vector<8x128xf32>
    %87 = arith.addf %86, %85 : vector<8x128xf32>
    %88 = arith.divf %86, %87 : vector<8x128xf32>
    %89 = vector.extract_strided_slice %76 {offsets = [0, 256], sizes = [8, 128], strides = [1, 1]} : vector<8x512xf32> to vector<8x128xf32>
    %90 = math.tanh %89 : vector<8x128xf32>
    %91 = vector.extract_strided_slice %76 {offsets = [0, 384], sizes = [8, 128], strides = [1, 1]} : vector<8x512xf32> to vector<8x128xf32>
    %92 = arith.negf %91 : vector<8x128xf32>
    %93 = math.exp %92 : vector<8x128xf32>
    %cst_45 = arith.constant 1.000000e+00 : f32
    %94 = vector.broadcast %cst_45 : f32 to vector<8x128xf32>
    %95 = arith.addf %94, %93 : vector<8x128xf32>
    %96 = arith.divf %94, %95 : vector<8x128xf32>
    %97 = arith.mulf %88, %26 : vector<8x128xf32>
    %98 = arith.mulf %82, %90 : vector<8x128xf32>
    %99 = arith.addf %97, %98 : vector<8x128xf32>
    %100 = math.tanh %99 : vector<8x128xf32>
    %101 = arith.mulf %96, %100 : vector<8x128xf32>
    %102 = vector.shape_cast %30 : vector<8x1xi1> to vector<8x1xi1>
    %103 = vector.broadcast %102 : vector<8x1xi1> to vector<8x128xi1>
    %104 = arith.select %103, %101, %24 : vector<8x128xi1>, vector<8x128xf32>
    %105 = vector.shape_cast %30 : vector<8x1xi1> to vector<8x1xi1>
    %106 = vector.broadcast %105 : vector<8x1xi1> to vector<8x128xi1>
    %107 = arith.select %106, %99, %26 : vector<8x128xi1>, vector<8x128xf32>
    %cst_46 = arith.constant 0.000000e+00 : f32
    %108 = vector.shape_cast %30 : vector<8x1xi1> to vector<8x1xi1>
    %109 = vector.broadcast %108 : vector<8x1xi1> to vector<8x128xi1>
    %110 = vector.broadcast %cst_46 : f32 to vector<8x128xf32>
    %111 = arith.select %109, %101, %110 : vector<8x128xi1>, vector<8x128xf32>
    %c7 = arith.constant 7 : index
    %c0_47 = arith.constant 0 : index
    %c128 = arith.constant 128 : index
    %112 = vector.load %arg10[%c7, %c0_47, %c128] : memref<8x8x256xf32, #tpu.memory_space<vmem>>, vector<1x8x128xf32>
    %113 = vector.shape_cast %112 : vector<1x8x128xf32> to vector<8x128xf32>
    %114 = vector.shape_cast %111 : vector<8x128xf32> to vector<1x8x128xf32>
    tpu.vector_store %arg10[%c7, %c0_47, %c128], %114 {strides = array<i32>} : memref<8x8x256xf32, #tpu.memory_space<vmem>>, vector<1x8x128xf32>,
    %c1_i32 = arith.constant 1 : i32
    %115 = vector.broadcast %c1_i32 : i32 to vector<8x1xi32>
    %116 = arith.cmpi sgt, %18, %115 : vector<8x1xi32>
    %c6_i32 = arith.constant 6 : i32
    %117 = vector.broadcast %c6_i32 : i32 to vector<8x1xi32>
    %118 = arith.cmpi sgt, %18, %117 : vector<8x1xi32>
    %c8 = arith.constant 8 : index
    %c0_48 = arith.constant 0 : index
    %119 = vector.load %arg13[%c8, %c0_48] : memref<64x512xf32, #tpu.memory_space<vmem>>, vector<8x512xf32>
    %c0_49 = arith.constant 0 : index
    %c0_50 = arith.constant 0 : index
    %120 = vector.load %arg6[%c0_49, %c0_50] : memref<128x512xf32, #tpu.memory_space<vmem>>, vector<128x512xf32>
    %cst_51 = arith.constant dense<0.000000e+00> : vector<8x512xf32>
    %121 = tpu.matmul %62, %120, %cst_51 {dimension_numbers = #tpu.dot_dimension_numbers<[1], [0], [0], [1], [0, 0, 1, 1], [], []>} : vector<8x128xf32>, vector<128x512xf32>, vector<8x512xf32> -> vector<8x512xf32>
    %122 = arith.addf %119, %121 : vector<8x512xf32>
    %123 = vector.extract_strided_slice %122 {offsets = [0, 0], sizes = [8, 128], strides = [1, 1]} : vector<8x512xf32> to vector<8x128xf32>
    %124 = arith.negf %123 : vector<8x128xf32>
    %125 = math.exp %124 : vector<8x128xf32>
    %cst_52 = arith.constant 1.000000e+00 : f32
    %126 = vector.broadcast %cst_52 : f32 to vector<8x128xf32>
    %127 = arith.addf %126, %125 : vector<8x128xf32>
    %128 = arith.divf %126, %127 : vector<8x128xf32>
    %129 = vector.extract_strided_slice %122 {offsets = [0, 128], sizes = [8, 128], strides = [1, 1]} : vector<8x512xf32> to vector<8x128xf32>
    %130 = arith.negf %129 : vector<8x128xf32>
    %131 = math.exp %130 : vector<8x128xf32>
    %cst_53 = arith.constant 1.000000e+00 : f32
    %132 = vector.broadcast %cst_53 : f32 to vector<8x128xf32>
    %133 = arith.addf %132, %131 : vector<8x128xf32>
    %134 = arith.divf %132, %133 : vector<8x128xf32>
    %135 = vector.extract_strided_slice %122 {offsets = [0, 256], sizes = [8, 128], strides = [1, 1]} : vector<8x512xf32> to vector<8x128xf32>
    %136 = math.tanh %135 : vector<8x128xf32>
    %137 = vector.extract_strided_slice %122 {offsets = [0, 384], sizes = [8, 128], strides = [1, 1]} : vector<8x512xf32> to vector<8x128xf32>
    %138 = arith.negf %137 : vector<8x128xf32>
    %139 = math.exp %138 : vector<8x128xf32>
    %cst_54 = arith.constant 1.000000e+00 : f32
    %140 = vector.broadcast %cst_54 : f32 to vector<8x128xf32>
    %141 = arith.addf %140, %139 : vector<8x128xf32>
    %142 = arith.divf %140, %141 : vector<8x128xf32>
    %143 = arith.mulf %134, %65 : vector<8x128xf32>
    %144 = arith.mulf %128, %136 : vector<8x128xf32>
    %145 = arith.addf %143, %144 : vector<8x128xf32>
    %146 = math.tanh %145 : vector<8x128xf32>
    %147 = arith.mulf %142, %146 : vector<8x128xf32>
    %148 = vector.shape_cast %116 : vector<8x1xi1> to vector<8x1xi1>
    %149 = vector.broadcast %148 : vector<8x1xi1> to vector<8x128xi1>
    %150 = arith.select %149, %147, %62 : vector<8x128xi1>, vector<8x128xf32>
    %151 = vector.shape_cast %116 : vector<8x1xi1> to vector<8x1xi1>
    %152 = vector.broadcast %151 : vector<8x1xi1> to vector<8x128xi1>
    %153 = arith.select %152, %145, %65 : vector<8x128xi1>, vector<8x128xf32>
    %cst_55 = arith.constant 0.000000e+00 : f32
    %154 = vector.shape_cast %116 : vector<8x1xi1> to vector<8x1xi1>
    %155 = vector.broadcast %154 : vector<8x1xi1> to vector<8x128xi1>
    %156 = vector.broadcast %cst_55 : f32 to vector<8x128xf32>
    %157 = arith.select %155, %147, %156 : vector<8x128xi1>, vector<8x128xf32>
    %c1_56 = arith.constant 1 : index
    %c0_57 = arith.constant 0 : index
    %c0_58 = arith.constant 0 : index
    %158 = vector.load %arg10[%c1_56, %c0_57, %c0_58] : memref<8x8x256xf32, #tpu.memory_space<vmem>>, vector<1x8x128xf32>
    %159 = vector.shape_cast %158 : vector<1x8x128xf32> to vector<8x128xf32>
    %160 = vector.shape_cast %157 : vector<8x128xf32> to vector<1x8x128xf32>
    tpu.vector_store %arg10[%c1_56, %c0_57, %c0_58], %160 {strides = array<i32>} : memref<8x8x256xf32, #tpu.memory_space<vmem>>, vector<1x8x128xf32>,
    %c48 = arith.constant 48 : index
    %c0_59 = arith.constant 0 : index
    %161 = vector.load %arg14[%c48, %c0_59] : memref<64x512xf32, #tpu.memory_space<vmem>>, vector<8x512xf32>
    %c0_60 = arith.constant 0 : index
    %c0_61 = arith.constant 0 : index
    %162 = vector.load %arg7[%c0_60, %c0_61] : memref<128x512xf32, #tpu.memory_space<vmem>>, vector<128x512xf32>
    %cst_62 = arith.constant dense<0.000000e+00> : vector<8x512xf32>
    %163 = tpu.matmul %104, %162, %cst_62 {dimension_numbers = #tpu.dot_dimension_numbers<[1], [0], [0], [1], [0, 0, 1, 1], [], []>} : vector<8x128xf32>, vector<128x512xf32>, vector<8x512xf32> -> vector<8x512xf32>
    %164 = arith.addf %161, %163 : vector<8x512xf32>
    %165 = vector.extract_strided_slice %164 {offsets = [0, 0], sizes = [8, 128], strides = [1, 1]} : vector<8x512xf32> to vector<8x128xf32>
    %166 = arith.negf %165 : vector<8x128xf32>
    %167 = math.exp %166 : vector<8x128xf32>
    %cst_63 = arith.constant 1.000000e+00 : f32
    %168 = vector.broadcast %cst_63 : f32 to vector<8x128xf32>
    %169 = arith.addf %168, %167 : vector<8x128xf32>
    %170 = arith.divf %168, %169 : vector<8x128xf32>
    %171 = vector.extract_strided_slice %164 {offsets = [0, 128], sizes = [8, 128], strides = [1, 1]} : vector<8x512xf32> to vector<8x128xf32>
    %172 = arith.negf %171 : vector<8x128xf32>
    %173 = math.exp %172 : vector<8x128xf32>
    %cst_64 = arith.constant 1.000000e+00 : f32
    %174 = vector.broadcast %cst_64 : f32 to vector<8x128xf32>
    %175 = arith.addf %174, %173 : vector<8x128xf32>
    %176 = arith.divf %174, %175 : vector<8x128xf32>
    %177 = vector.extract_strided_slice %164 {offsets = [0, 256], sizes = [8, 128], strides = [1, 1]} : vector<8x512xf32> to vector<8x128xf32>
    %178 = math.tanh %177 : vector<8x128xf32>
    %179 = vector.extract_strided_slice %164 {offsets = [0, 384], sizes = [8, 128], strides = [1, 1]} : vector<8x512xf32> to vector<8x128xf32>
    %180 = arith.negf %179 : vector<8x128xf32>
    %181 = math.exp %180 : vector<8x128xf32>
    %cst_65 = arith.constant 1.000000e+00 : f32
    %182 = vector.broadcast %cst_65 : f32 to vector<8x128xf32>
    %183 = arith.addf %182, %181 : vector<8x128xf32>
    %184 = arith.divf %182, %183 : vector<8x128xf32>
    %185 = arith.mulf %176, %107 : vector<8x128xf32>
    %186 = arith.mulf %170, %178 : vector<8x128xf32>
    %187 = arith.addf %185, %186 : vector<8x128xf32>
    %188 = math.tanh %187 : vector<8x128xf32>
    %189 = arith.mulf %184, %188 : vector<8x128xf32>
    %190 = vector.shape_cast %118 : vector<8x1xi1> to vector<8x1xi1>
    %191 = vector.broadcast %190 : vector<8x1xi1> to vector<8x128xi1>
    %192 = arith.select %191, %189, %104 : vector<8x128xi1>, vector<8x128xf32>
    %193 = vector.shape_cast %118 : vector<8x1xi1> to vector<8x1xi1>
    %194 = vector.broadcast %193 : vector<8x1xi1> to vector<8x128xi1>
    %195 = arith.select %194, %187, %107 : vector<8x128xi1>, vector<8x128xf32>
    %cst_66 = arith.constant 0.000000e+00 : f32
    %196 = vector.shape_cast %118 : vector<8x1xi1> to vector<8x1xi1>
    %197 = vector.broadcast %196 : vector<8x1xi1> to vector<8x128xi1>
    %198 = vector.broadcast %cst_66 : f32 to vector<8x128xf32>
    %199 = arith.select %197, %189, %198 : vector<8x128xi1>, vector<8x128xf32>
    %c6 = arith.constant 6 : index
    %c0_67 = arith.constant 0 : index
    %c128_68 = arith.constant 128 : index
    %200 = vector.load %arg10[%c6, %c0_67, %c128_68] : memref<8x8x256xf32, #tpu.memory_space<vmem>>, vector<1x8x128xf32>
    %201 = vector.shape_cast %200 : vector<1x8x128xf32> to vector<8x128xf32>
    %202 = vector.shape_cast %199 : vector<8x128xf32> to vector<1x8x128xf32>
    tpu.vector_store %arg10[%c6, %c0_67, %c128_68], %202 {strides = array<i32>} : memref<8x8x256xf32, #tpu.memory_space<vmem>>, vector<1x8x128xf32>,
    %c2_i32 = arith.constant 2 : i32
    %203 = vector.broadcast %c2_i32 : i32 to vector<8x1xi32>
    %204 = arith.cmpi sgt, %18, %203 : vector<8x1xi32>
    %c5_i32 = arith.constant 5 : i32
    %205 = vector.broadcast %c5_i32 : i32 to vector<8x1xi32>
    %206 = arith.cmpi sgt, %18, %205 : vector<8x1xi32>
    %c16 = arith.constant 16 : index
    %c0_69 = arith.constant 0 : index
    %207 = vector.load %arg13[%c16, %c0_69] : memref<64x512xf32, #tpu.memory_space<vmem>>, vector<8x512xf32>
    %c0_70 = arith.constant 0 : index
    %c0_71 = arith.constant 0 : index
    %208 = vector.load %arg6[%c0_70, %c0_71] : memref<128x512xf32, #tpu.memory_space<vmem>>, vector<128x512xf32>
    %cst_72 = arith.constant dense<0.000000e+00> : vector<8x512xf32>
    %209 = tpu.matmul %150, %208, %cst_72 {dimension_numbers = #tpu.dot_dimension_numbers<[1], [0], [0], [1], [0, 0, 1, 1], [], []>} : vector<8x128xf32>, vector<128x512xf32>, vector<8x512xf32> -> vector<8x512xf32>
    %210 = arith.addf %207, %209 : vector<8x512xf32>
    %211 = vector.extract_strided_slice %210 {offsets = [0, 0], sizes = [8, 128], strides = [1, 1]} : vector<8x512xf32> to vector<8x128xf32>
    %212 = arith.negf %211 : vector<8x128xf32>
    %213 = math.exp %212 : vector<8x128xf32>
    %cst_73 = arith.constant 1.000000e+00 : f32
    %214 = vector.broadcast %cst_73 : f32 to vector<8x128xf32>
    %215 = arith.addf %214, %213 : vector<8x128xf32>
    %216 = arith.divf %214, %215 : vector<8x128xf32>
    %217 = vector.extract_strided_slice %210 {offsets = [0, 128], sizes = [8, 128], strides = [1, 1]} : vector<8x512xf32> to vector<8x128xf32>
    %218 = arith.negf %217 : vector<8x128xf32>
    %219 = math.exp %218 : vector<8x128xf32>
    %cst_74 = arith.constant 1.000000e+00 : f32
    %220 = vector.broadcast %cst_74 : f32 to vector<8x128xf32>
    %221 = arith.addf %220, %219 : vector<8x128xf32>
    %222 = arith.divf %220, %221 : vector<8x128xf32>
    %223 = vector.extract_strided_slice %210 {offsets = [0, 256], sizes = [8, 128], strides = [1, 1]} : vector<8x512xf32> to vector<8x128xf32>
    %224 = math.tanh %223 : vector<8x128xf32>
    %225 = vector.extract_strided_slice %210 {offsets = [0, 384], sizes = [8, 128], strides = [1, 1]} : vector<8x512xf32> to vector<8x128xf32>
    %226 = arith.negf %225 : vector<8x128xf32>
    %227 = math.exp %226 : vector<8x128xf32>
    %cst_75 = arith.constant 1.000000e+00 : f32
    %228 = vector.broadcast %cst_75 : f32 to vector<8x128xf32>
    %229 = arith.addf %228, %227 : vector<8x128xf32>
    %230 = arith.divf %228, %229 : vector<8x128xf32>
    %231 = arith.mulf %222, %153 : vector<8x128xf32>
    %232 = arith.mulf %216, %224 : vector<8x128xf32>
    %233 = arith.addf %231, %232 : vector<8x128xf32>
    %234 = math.tanh %233 : vector<8x128xf32>
    %235 = arith.mulf %230, %234 : vector<8x128xf32>
    %236 = vector.shape_cast %204 : vector<8x1xi1> to vector<8x1xi1>
    %237 = vector.broadcast %236 : vector<8x1xi1> to vector<8x128xi1>
    %238 = arith.select %237, %235, %150 : vector<8x128xi1>, vector<8x128xf32>
    %239 = vector.shape_cast %204 : vector<8x1xi1> to vector<8x1xi1>
    %240 = vector.broadcast %239 : vector<8x1xi1> to vector<8x128xi1>
    %241 = arith.select %240, %233, %153 : vector<8x128xi1>, vector<8x128xf32>
    %cst_76 = arith.constant 0.000000e+00 : f32
    %242 = vector.shape_cast %204 : vector<8x1xi1> to vector<8x1xi1>
    %243 = vector.broadcast %242 : vector<8x1xi1> to vector<8x128xi1>
    %244 = vector.broadcast %cst_76 : f32 to vector<8x128xf32>
    %245 = arith.select %243, %235, %244 : vector<8x128xi1>, vector<8x128xf32>
    %c2 = arith.constant 2 : index
    %c0_77 = arith.constant 0 : index
    %c0_78 = arith.constant 0 : index
    %246 = vector.load %arg10[%c2, %c0_77, %c0_78] : memref<8x8x256xf32, #tpu.memory_space<vmem>>, vector<1x8x128xf32>
    %247 = vector.shape_cast %246 : vector<1x8x128xf32> to vector<8x128xf32>
    %248 = vector.shape_cast %245 : vector<8x128xf32> to vector<1x8x128xf32>
    tpu.vector_store %arg10[%c2, %c0_77, %c0_78], %248 {strides = array<i32>} : memref<8x8x256xf32, #tpu.memory_space<vmem>>, vector<1x8x128xf32>,
    %c40 = arith.constant 40 : index
    %c0_79 = arith.constant 0 : index
    %249 = vector.load %arg14[%c40, %c0_79] : memref<64x512xf32, #tpu.memory_space<vmem>>, vector<8x512xf32>
    %c0_80 = arith.constant 0 : index
    %c0_81 = arith.constant 0 : index
    %250 = vector.load %arg7[%c0_80, %c0_81] : memref<128x512xf32, #tpu.memory_space<vmem>>, vector<128x512xf32>
    %cst_82 = arith.constant dense<0.000000e+00> : vector<8x512xf32>
    %251 = tpu.matmul %192, %250, %cst_82 {dimension_numbers = #tpu.dot_dimension_numbers<[1], [0], [0], [1], [0, 0, 1, 1], [], []>} : vector<8x128xf32>, vector<128x512xf32>, vector<8x512xf32> -> vector<8x512xf32>
    %252 = arith.addf %249, %251 : vector<8x512xf32>
    %253 = vector.extract_strided_slice %252 {offsets = [0, 0], sizes = [8, 128], strides = [1, 1]} : vector<8x512xf32> to vector<8x128xf32>
    %254 = arith.negf %253 : vector<8x128xf32>
    %255 = math.exp %254 : vector<8x128xf32>
    %cst_83 = arith.constant 1.000000e+00 : f32
    %256 = vector.broadcast %cst_83 : f32 to vector<8x128xf32>
    %257 = arith.addf %256, %255 : vector<8x128xf32>
    %258 = arith.divf %256, %257 : vector<8x128xf32>
    %259 = vector.extract_strided_slice %252 {offsets = [0, 128], sizes = [8, 128], strides = [1, 1]} : vector<8x512xf32> to vector<8x128xf32>
    %260 = arith.negf %259 : vector<8x128xf32>
    %261 = math.exp %260 : vector<8x128xf32>
    %cst_84 = arith.constant 1.000000e+00 : f32
    %262 = vector.broadcast %cst_84 : f32 to vector<8x128xf32>
    %263 = arith.addf %262, %261 : vector<8x128xf32>
    %264 = arith.divf %262, %263 : vector<8x128xf32>
    %265 = vector.extract_strided_slice %252 {offsets = [0, 256], sizes = [8, 128], strides = [1, 1]} : vector<8x512xf32> to vector<8x128xf32>
    %266 = math.tanh %265 : vector<8x128xf32>
    %267 = vector.extract_strided_slice %252 {offsets = [0, 384], sizes = [8, 128], strides = [1, 1]} : vector<8x512xf32> to vector<8x128xf32>
    %268 = arith.negf %267 : vector<8x128xf32>
    %269 = math.exp %268 : vector<8x128xf32>
    %cst_85 = arith.constant 1.000000e+00 : f32
    %270 = vector.broadcast %cst_85 : f32 to vector<8x128xf32>
    %271 = arith.addf %270, %269 : vector<8x128xf32>
    %272 = arith.divf %270, %271 : vector<8x128xf32>
    %273 = arith.mulf %264, %195 : vector<8x128xf32>
    %274 = arith.mulf %258, %266 : vector<8x128xf32>
    %275 = arith.addf %273, %274 : vector<8x128xf32>
    %276 = math.tanh %275 : vector<8x128xf32>
    %277 = arith.mulf %272, %276 : vector<8x128xf32>
    %278 = vector.shape_cast %206 : vector<8x1xi1> to vector<8x1xi1>
    %279 = vector.broadcast %278 : vector<8x1xi1> to vector<8x128xi1>
    %280 = arith.select %279, %277, %192 : vector<8x128xi1>, vector<8x128xf32>
    %281 = vector.shape_cast %206 : vector<8x1xi1> to vector<8x1xi1>
    %282 = vector.broadcast %281 : vector<8x1xi1> to vector<8x128xi1>
    %283 = arith.select %282, %275, %195 : vector<8x128xi1>, vector<8x128xf32>
    %cst_86 = arith.constant 0.000000e+00 : f32
    %284 = vector.shape_cast %206 : vector<8x1xi1> to vector<8x1xi1>
    %285 = vector.broadcast %284 : vector<8x1xi1> to vector<8x128xi1>
    %286 = vector.broadcast %cst_86 : f32 to vector<8x128xf32>
    %287 = arith.select %285, %277, %286 : vector<8x128xi1>, vector<8x128xf32>
    %c5 = arith.constant 5 : index
    %c0_87 = arith.constant 0 : index
    %c128_88 = arith.constant 128 : index
    %288 = vector.load %arg10[%c5, %c0_87, %c128_88] : memref<8x8x256xf32, #tpu.memory_space<vmem>>, vector<1x8x128xf32>
    %289 = vector.shape_cast %288 : vector<1x8x128xf32> to vector<8x128xf32>
    %290 = vector.shape_cast %287 : vector<8x128xf32> to vector<1x8x128xf32>
    tpu.vector_store %arg10[%c5, %c0_87, %c128_88], %290 {strides = array<i32>} : memref<8x8x256xf32, #tpu.memory_space<vmem>>, vector<1x8x128xf32>,
    %c3_i32 = arith.constant 3 : i32
    %291 = vector.broadcast %c3_i32 : i32 to vector<8x1xi32>
    %292 = arith.cmpi sgt, %18, %291 : vector<8x1xi32>
    %c4_i32 = arith.constant 4 : i32
    %293 = vector.broadcast %c4_i32 : i32 to vector<8x1xi32>
    %294 = arith.cmpi sgt, %18, %293 : vector<8x1xi32>
    %c24 = arith.constant 24 : index
    %c0_89 = arith.constant 0 : index
    %295 = vector.load %arg13[%c24, %c0_89] : memref<64x512xf32, #tpu.memory_space<vmem>>, vector<8x512xf32>
    %c0_90 = arith.constant 0 : index
    %c0_91 = arith.constant 0 : index
    %296 = vector.load %arg6[%c0_90, %c0_91] : memref<128x512xf32, #tpu.memory_space<vmem>>, vector<128x512xf32>
    %cst_92 = arith.constant dense<0.000000e+00> : vector<8x512xf32>
    %297 = tpu.matmul %238, %296, %cst_92 {dimension_numbers = #tpu.dot_dimension_numbers<[1], [0], [0], [1], [0, 0, 1, 1], [], []>} : vector<8x128xf32>, vector<128x512xf32>, vector<8x512xf32> -> vector<8x512xf32>
    %298 = arith.addf %295, %297 : vector<8x512xf32>
    %299 = vector.extract_strided_slice %298 {offsets = [0, 0], sizes = [8, 128], strides = [1, 1]} : vector<8x512xf32> to vector<8x128xf32>
    %300 = arith.negf %299 : vector<8x128xf32>
    %301 = math.exp %300 : vector<8x128xf32>
    %cst_93 = arith.constant 1.000000e+00 : f32
    %302 = vector.broadcast %cst_93 : f32 to vector<8x128xf32>
    %303 = arith.addf %302, %301 : vector<8x128xf32>
    %304 = arith.divf %302, %303 : vector<8x128xf32>
    %305 = vector.extract_strided_slice %298 {offsets = [0, 128], sizes = [8, 128], strides = [1, 1]} : vector<8x512xf32> to vector<8x128xf32>
    %306 = arith.negf %305 : vector<8x128xf32>
    %307 = math.exp %306 : vector<8x128xf32>
    %cst_94 = arith.constant 1.000000e+00 : f32
    %308 = vector.broadcast %cst_94 : f32 to vector<8x128xf32>
    %309 = arith.addf %308, %307 : vector<8x128xf32>
    %310 = arith.divf %308, %309 : vector<8x128xf32>
    %311 = vector.extract_strided_slice %298 {offsets = [0, 256], sizes = [8, 128], strides = [1, 1]} : vector<8x512xf32> to vector<8x128xf32>
    %312 = math.tanh %311 : vector<8x128xf32>
    %313 = vector.extract_strided_slice %298 {offsets = [0, 384], sizes = [8, 128], strides = [1, 1]} : vector<8x512xf32> to vector<8x128xf32>
    %314 = arith.negf %313 : vector<8x128xf32>
    %315 = math.exp %314 : vector<8x128xf32>
    %cst_95 = arith.constant 1.000000e+00 : f32
    %316 = vector.broadcast %cst_95 : f32 to vector<8x128xf32>
    %317 = arith.addf %316, %315 : vector<8x128xf32>
    %318 = arith.divf %316, %317 : vector<8x128xf32>
    %319 = arith.mulf %310, %241 : vector<8x128xf32>
    %320 = arith.mulf %304, %312 : vector<8x128xf32>
    %321 = arith.addf %319, %320 : vector<8x128xf32>
    %322 = math.tanh %321 : vector<8x128xf32>
    %323 = arith.mulf %318, %322 : vector<8x128xf32>
    %324 = vector.shape_cast %292 : vector<8x1xi1> to vector<8x1xi1>
    %325 = vector.broadcast %324 : vector<8x1xi1> to vector<8x128xi1>
    %326 = arith.select %325, %323, %238 : vector<8x128xi1>, vector<8x128xf32>
    %327 = vector.shape_cast %292 : vector<8x1xi1> to vector<8x1xi1>
    %328 = vector.broadcast %327 : vector<8x1xi1> to vector<8x128xi1>
    %329 = arith.select %328, %321, %241 : vector<8x128xi1>, vector<8x128xf32>
    %cst_96 = arith.constant 0.000000e+00 : f32
    %330 = vector.shape_cast %292 : vector<8x1xi1> to vector<8x1xi1>
    %331 = vector.broadcast %330 : vector<8x1xi1> to vector<8x128xi1>
    %332 = vector.broadcast %cst_96 : f32 to vector<8x128xf32>
    %333 = arith.select %331, %323, %332 : vector<8x128xi1>, vector<8x128xf32>
    %c3 = arith.constant 3 : index
    %c0_97 = arith.constant 0 : index
    %c0_98 = arith.constant 0 : index
    %334 = vector.load %arg10[%c3, %c0_97, %c0_98] : memref<8x8x256xf32, #tpu.memory_space<vmem>>, vector<1x8x128xf32>
    %335 = vector.shape_cast %334 : vector<1x8x128xf32> to vector<8x128xf32>
    %336 = vector.shape_cast %333 : vector<8x128xf32> to vector<1x8x128xf32>
    tpu.vector_store %arg10[%c3, %c0_97, %c0_98], %336 {strides = array<i32>} : memref<8x8x256xf32, #tpu.memory_space<vmem>>, vector<1x8x128xf32>,
    %c32 = arith.constant 32 : index
    %c0_99 = arith.constant 0 : index
    %337 = vector.load %arg14[%c32, %c0_99] : memref<64x512xf32, #tpu.memory_space<vmem>>, vector<8x512xf32>
    %c0_100 = arith.constant 0 : index
    %c0_101 = arith.constant 0 : index
    %338 = vector.load %arg7[%c0_100, %c0_101] : memref<128x512xf32, #tpu.memory_space<vmem>>, vector<128x512xf32>
    %cst_102 = arith.constant dense<0.000000e+00> : vector<8x512xf32>
    %339 = tpu.matmul %280, %338, %cst_102 {dimension_numbers = #tpu.dot_dimension_numbers<[1], [0], [0], [1], [0, 0, 1, 1], [], []>} : vector<8x128xf32>, vector<128x512xf32>, vector<8x512xf32> -> vector<8x512xf32>
    %340 = arith.addf %337, %339 : vector<8x512xf32>
    %341 = vector.extract_strided_slice %340 {offsets = [0, 0], sizes = [8, 128], strides = [1, 1]} : vector<8x512xf32> to vector<8x128xf32>
    %342 = arith.negf %341 : vector<8x128xf32>
    %343 = math.exp %342 : vector<8x128xf32>
    %cst_103 = arith.constant 1.000000e+00 : f32
    %344 = vector.broadcast %cst_103 : f32 to vector<8x128xf32>
    %345 = arith.addf %344, %343 : vector<8x128xf32>
    %346 = arith.divf %344, %345 : vector<8x128xf32>
    %347 = vector.extract_strided_slice %340 {offsets = [0, 128], sizes = [8, 128], strides = [1, 1]} : vector<8x512xf32> to vector<8x128xf32>
    %348 = arith.negf %347 : vector<8x128xf32>
    %349 = math.exp %348 : vector<8x128xf32>
    %cst_104 = arith.constant 1.000000e+00 : f32
    %350 = vector.broadcast %cst_104 : f32 to vector<8x128xf32>
    %351 = arith.addf %350, %349 : vector<8x128xf32>
    %352 = arith.divf %350, %351 : vector<8x128xf32>
    %353 = vector.extract_strided_slice %340 {offsets = [0, 256], sizes = [8, 128], strides = [1, 1]} : vector<8x512xf32> to vector<8x128xf32>
    %354 = math.tanh %353 : vector<8x128xf32>
    %355 = vector.extract_strided_slice %340 {offsets = [0, 384], sizes = [8, 128], strides = [1, 1]} : vector<8x512xf32> to vector<8x128xf32>
    %356 = arith.negf %355 : vector<8x128xf32>
    %357 = math.exp %356 : vector<8x128xf32>
    %cst_105 = arith.constant 1.000000e+00 : f32
    %358 = vector.broadcast %cst_105 : f32 to vector<8x128xf32>
    %359 = arith.addf %358, %357 : vector<8x128xf32>
    %360 = arith.divf %358, %359 : vector<8x128xf32>
    %361 = arith.mulf %352, %283 : vector<8x128xf32>
    %362 = arith.mulf %346, %354 : vector<8x128xf32>
    %363 = arith.addf %361, %362 : vector<8x128xf32>
    %364 = math.tanh %363 : vector<8x128xf32>
    %365 = arith.mulf %360, %364 : vector<8x128xf32>
    %366 = vector.shape_cast %294 : vector<8x1xi1> to vector<8x1xi1>
    %367 = vector.broadcast %366 : vector<8x1xi1> to vector<8x128xi1>
    %368 = arith.select %367, %365, %280 : vector<8x128xi1>, vector<8x128xf32>
    %369 = vector.shape_cast %294 : vector<8x1xi1> to vector<8x1xi1>
    %370 = vector.broadcast %369 : vector<8x1xi1> to vector<8x128xi1>
    %371 = arith.select %370, %363, %283 : vector<8x128xi1>, vector<8x128xf32>
    %cst_106 = arith.constant 0.000000e+00 : f32
    %372 = vector.shape_cast %294 : vector<8x1xi1> to vector<8x1xi1>
    %373 = vector.broadcast %372 : vector<8x1xi1> to vector<8x128xi1>
    %374 = vector.broadcast %cst_106 : f32 to vector<8x128xf32>
    %375 = arith.select %373, %365, %374 : vector<8x128xi1>, vector<8x128xf32>
    %c4 = arith.constant 4 : index
    %c0_107 = arith.constant 0 : index
    %c128_108 = arith.constant 128 : index
    %376 = vector.load %arg10[%c4, %c0_107, %c128_108] : memref<8x8x256xf32, #tpu.memory_space<vmem>>, vector<1x8x128xf32>
    %377 = vector.shape_cast %376 : vector<1x8x128xf32> to vector<8x128xf32>
    %378 = vector.shape_cast %375 : vector<8x128xf32> to vector<1x8x128xf32>
    tpu.vector_store %arg10[%c4, %c0_107, %c128_108], %378 {strides = array<i32>} : memref<8x8x256xf32, #tpu.memory_space<vmem>>, vector<1x8x128xf32>,
    %c4_i32_109 = arith.constant 4 : i32
    %379 = vector.broadcast %c4_i32_109 : i32 to vector<8x1xi32>
    %380 = arith.cmpi sgt, %18, %379 : vector<8x1xi32>
    %c3_i32_110 = arith.constant 3 : i32
    %381 = vector.broadcast %c3_i32_110 : i32 to vector<8x1xi32>
    %382 = arith.cmpi sgt, %18, %381 : vector<8x1xi32>
    %c32_111 = arith.constant 32 : index
    %c0_112 = arith.constant 0 : index
    %383 = vector.load %arg13[%c32_111, %c0_112] : memref<64x512xf32, #tpu.memory_space<vmem>>, vector<8x512xf32>
    %c0_113 = arith.constant 0 : index
    %c0_114 = arith.constant 0 : index
    %384 = vector.load %arg6[%c0_113, %c0_114] : memref<128x512xf32, #tpu.memory_space<vmem>>, vector<128x512xf32>
    %cst_115 = arith.constant dense<0.000000e+00> : vector<8x512xf32>
    %385 = tpu.matmul %326, %384, %cst_115 {dimension_numbers = #tpu.dot_dimension_numbers<[1], [0], [0], [1], [0, 0, 1, 1], [], []>} : vector<8x128xf32>, vector<128x512xf32>, vector<8x512xf32> -> vector<8x512xf32>
    %386 = arith.addf %383, %385 : vector<8x512xf32>
    %387 = vector.extract_strided_slice %386 {offsets = [0, 0], sizes = [8, 128], strides = [1, 1]} : vector<8x512xf32> to vector<8x128xf32>
    %388 = arith.negf %387 : vector<8x128xf32>
    %389 = math.exp %388 : vector<8x128xf32>
    %cst_116 = arith.constant 1.000000e+00 : f32
    %390 = vector.broadcast %cst_116 : f32 to vector<8x128xf32>
    %391 = arith.addf %390, %389 : vector<8x128xf32>
    %392 = arith.divf %390, %391 : vector<8x128xf32>
    %393 = vector.extract_strided_slice %386 {offsets = [0, 128], sizes = [8, 128], strides = [1, 1]} : vector<8x512xf32> to vector<8x128xf32>
    %394 = arith.negf %393 : vector<8x128xf32>
    %395 = math.exp %394 : vector<8x128xf32>
    %cst_117 = arith.constant 1.000000e+00 : f32
    %396 = vector.broadcast %cst_117 : f32 to vector<8x128xf32>
    %397 = arith.addf %396, %395 : vector<8x128xf32>
    %398 = arith.divf %396, %397 : vector<8x128xf32>
    %399 = vector.extract_strided_slice %386 {offsets = [0, 256], sizes = [8, 128], strides = [1, 1]} : vector<8x512xf32> to vector<8x128xf32>
    %400 = math.tanh %399 : vector<8x128xf32>
    %401 = vector.extract_strided_slice %386 {offsets = [0, 384], sizes = [8, 128], strides = [1, 1]} : vector<8x512xf32> to vector<8x128xf32>
    %402 = arith.negf %401 : vector<8x128xf32>
    %403 = math.exp %402 : vector<8x128xf32>
    %cst_118 = arith.constant 1.000000e+00 : f32
    %404 = vector.broadcast %cst_118 : f32 to vector<8x128xf32>
    %405 = arith.addf %404, %403 : vector<8x128xf32>
    %406 = arith.divf %404, %405 : vector<8x128xf32>
    %407 = arith.mulf %398, %329 : vector<8x128xf32>
    %408 = arith.mulf %392, %400 : vector<8x128xf32>
    %409 = arith.addf %407, %408 : vector<8x128xf32>
    %410 = math.tanh %409 : vector<8x128xf32>
    %411 = arith.mulf %406, %410 : vector<8x128xf32>
    %412 = vector.shape_cast %380 : vector<8x1xi1> to vector<8x1xi1>
    %413 = vector.broadcast %412 : vector<8x1xi1> to vector<8x128xi1>
    %414 = arith.select %413, %411, %326 : vector<8x128xi1>, vector<8x128xf32>
    %415 = vector.shape_cast %380 : vector<8x1xi1> to vector<8x1xi1>
    %416 = vector.broadcast %415 : vector<8x1xi1> to vector<8x128xi1>
    %417 = arith.select %416, %409, %329 : vector<8x128xi1>, vector<8x128xf32>
    %cst_119 = arith.constant 0.000000e+00 : f32
    %418 = vector.shape_cast %380 : vector<8x1xi1> to vector<8x1xi1>
    %419 = vector.broadcast %418 : vector<8x1xi1> to vector<8x128xi1>
    %420 = vector.broadcast %cst_119 : f32 to vector<8x128xf32>
    %421 = arith.select %419, %411, %420 : vector<8x128xi1>, vector<8x128xf32>
    %c4_120 = arith.constant 4 : index
    %c0_121 = arith.constant 0 : index
    %c0_122 = arith.constant 0 : index
    %422 = vector.load %arg10[%c4_120, %c0_121, %c0_122] : memref<8x8x256xf32, #tpu.memory_space<vmem>>, vector<1x8x128xf32>
    %423 = vector.shape_cast %422 : vector<1x8x128xf32> to vector<8x128xf32>
    %424 = vector.shape_cast %421 : vector<8x128xf32> to vector<1x8x128xf32>
    tpu.vector_store %arg10[%c4_120, %c0_121, %c0_122], %424 {strides = array<i32>} : memref<8x8x256xf32, #tpu.memory_space<vmem>>, vector<1x8x128xf32>,
    %c24_123 = arith.constant 24 : index
    %c0_124 = arith.constant 0 : index
    %425 = vector.load %arg14[%c24_123, %c0_124] : memref<64x512xf32, #tpu.memory_space<vmem>>, vector<8x512xf32>
    %c0_125 = arith.constant 0 : index
    %c0_126 = arith.constant 0 : index
    %426 = vector.load %arg7[%c0_125, %c0_126] : memref<128x512xf32, #tpu.memory_space<vmem>>, vector<128x512xf32>
    %cst_127 = arith.constant dense<0.000000e+00> : vector<8x512xf32>
    %427 = tpu.matmul %368, %426, %cst_127 {dimension_numbers = #tpu.dot_dimension_numbers<[1], [0], [0], [1], [0, 0, 1, 1], [], []>} : vector<8x128xf32>, vector<128x512xf32>, vector<8x512xf32> -> vector<8x512xf32>
    %428 = arith.addf %425, %427 : vector<8x512xf32>
    %429 = vector.extract_strided_slice %428 {offsets = [0, 0], sizes = [8, 128], strides = [1, 1]} : vector<8x512xf32> to vector<8x128xf32>
    %430 = arith.negf %429 : vector<8x128xf32>
    %431 = math.exp %430 : vector<8x128xf32>
    %cst_128 = arith.constant 1.000000e+00 : f32
    %432 = vector.broadcast %cst_128 : f32 to vector<8x128xf32>
    %433 = arith.addf %432, %431 : vector<8x128xf32>
    %434 = arith.divf %432, %433 : vector<8x128xf32>
    %435 = vector.extract_strided_slice %428 {offsets = [0, 128], sizes = [8, 128], strides = [1, 1]} : vector<8x512xf32> to vector<8x128xf32>
    %436 = arith.negf %435 : vector<8x128xf32>
    %437 = math.exp %436 : vector<8x128xf32>
    %cst_129 = arith.constant 1.000000e+00 : f32
    %438 = vector.broadcast %cst_129 : f32 to vector<8x128xf32>
    %439 = arith.addf %438, %437 : vector<8x128xf32>
    %440 = arith.divf %438, %439 : vector<8x128xf32>
    %441 = vector.extract_strided_slice %428 {offsets = [0, 256], sizes = [8, 128], strides = [1, 1]} : vector<8x512xf32> to vector<8x128xf32>
    %442 = math.tanh %441 : vector<8x128xf32>
    %443 = vector.extract_strided_slice %428 {offsets = [0, 384], sizes = [8, 128], strides = [1, 1]} : vector<8x512xf32> to vector<8x128xf32>
    %444 = arith.negf %443 : vector<8x128xf32>
    %445 = math.exp %444 : vector<8x128xf32>
    %cst_130 = arith.constant 1.000000e+00 : f32
    %446 = vector.broadcast %cst_130 : f32 to vector<8x128xf32>
    %447 = arith.addf %446, %445 : vector<8x128xf32>
    %448 = arith.divf %446, %447 : vector<8x128xf32>
    %449 = arith.mulf %440, %371 : vector<8x128xf32>
    %450 = arith.mulf %434, %442 : vector<8x128xf32>
    %451 = arith.addf %449, %450 : vector<8x128xf32>
    %452 = math.tanh %451 : vector<8x128xf32>
    %453 = arith.mulf %448, %452 : vector<8x128xf32>
    %454 = vector.shape_cast %382 : vector<8x1xi1> to vector<8x1xi1>
    %455 = vector.broadcast %454 : vector<8x1xi1> to vector<8x128xi1>
    %456 = arith.select %455, %453, %368 : vector<8x128xi1>, vector<8x128xf32>
    %457 = vector.shape_cast %382 : vector<8x1xi1> to vector<8x1xi1>
    %458 = vector.broadcast %457 : vector<8x1xi1> to vector<8x128xi1>
    %459 = arith.select %458, %451, %371 : vector<8x128xi1>, vector<8x128xf32>
    %cst_131 = arith.constant 0.000000e+00 : f32
    %460 = vector.shape_cast %382 : vector<8x1xi1> to vector<8x1xi1>
    %461 = vector.broadcast %460 : vector<8x1xi1> to vector<8x128xi1>
    %462 = vector.broadcast %cst_131 : f32 to vector<8x128xf32>
    %463 = arith.select %461, %453, %462 : vector<8x128xi1>, vector<8x128xf32>
    %c3_132 = arith.constant 3 : index
    %c0_133 = arith.constant 0 : index
    %c128_134 = arith.constant 128 : index
    %464 = vector.load %arg10[%c3_132, %c0_133, %c128_134] : memref<8x8x256xf32, #tpu.memory_space<vmem>>, vector<1x8x128xf32>
    %465 = vector.shape_cast %464 : vector<1x8x128xf32> to vector<8x128xf32>
    %466 = vector.shape_cast %463 : vector<8x128xf32> to vector<1x8x128xf32>
    tpu.vector_store %arg10[%c3_132, %c0_133, %c128_134], %466 {strides = array<i32>} : memref<8x8x256xf32, #tpu.memory_space<vmem>>, vector<1x8x128xf32>,
    %c5_i32_135 = arith.constant 5 : i32
    %467 = vector.broadcast %c5_i32_135 : i32 to vector<8x1xi32>
    %468 = arith.cmpi sgt, %18, %467 : vector<8x1xi32>
    %c2_i32_136 = arith.constant 2 : i32
    %469 = vector.broadcast %c2_i32_136 : i32 to vector<8x1xi32>
    %470 = arith.cmpi sgt, %18, %469 : vector<8x1xi32>
    %c40_137 = arith.constant 40 : index
    %c0_138 = arith.constant 0 : index
    %471 = vector.load %arg13[%c40_137, %c0_138] : memref<64x512xf32, #tpu.memory_space<vmem>>, vector<8x512xf32>
    %c0_139 = arith.constant 0 : index
    %c0_140 = arith.constant 0 : index
    %472 = vector.load %arg6[%c0_139, %c0_140] : memref<128x512xf32, #tpu.memory_space<vmem>>, vector<128x512xf32>
    %cst_141 = arith.constant dense<0.000000e+00> : vector<8x512xf32>
    %473 = tpu.matmul %414, %472, %cst_141 {dimension_numbers = #tpu.dot_dimension_numbers<[1], [0], [0], [1], [0, 0, 1, 1], [], []>} : vector<8x128xf32>, vector<128x512xf32>, vector<8x512xf32> -> vector<8x512xf32>
    %474 = arith.addf %471, %473 : vector<8x512xf32>
    %475 = vector.extract_strided_slice %474 {offsets = [0, 0], sizes = [8, 128], strides = [1, 1]} : vector<8x512xf32> to vector<8x128xf32>
    %476 = arith.negf %475 : vector<8x128xf32>
    %477 = math.exp %476 : vector<8x128xf32>
    %cst_142 = arith.constant 1.000000e+00 : f32
    %478 = vector.broadcast %cst_142 : f32 to vector<8x128xf32>
    %479 = arith.addf %478, %477 : vector<8x128xf32>
    %480 = arith.divf %478, %479 : vector<8x128xf32>
    %481 = vector.extract_strided_slice %474 {offsets = [0, 128], sizes = [8, 128], strides = [1, 1]} : vector<8x512xf32> to vector<8x128xf32>
    %482 = arith.negf %481 : vector<8x128xf32>
    %483 = math.exp %482 : vector<8x128xf32>
    %cst_143 = arith.constant 1.000000e+00 : f32
    %484 = vector.broadcast %cst_143 : f32 to vector<8x128xf32>
    %485 = arith.addf %484, %483 : vector<8x128xf32>
    %486 = arith.divf %484, %485 : vector<8x128xf32>
    %487 = vector.extract_strided_slice %474 {offsets = [0, 256], sizes = [8, 128], strides = [1, 1]} : vector<8x512xf32> to vector<8x128xf32>
    %488 = math.tanh %487 : vector<8x128xf32>
    %489 = vector.extract_strided_slice %474 {offsets = [0, 384], sizes = [8, 128], strides = [1, 1]} : vector<8x512xf32> to vector<8x128xf32>
    %490 = arith.negf %489 : vector<8x128xf32>
    %491 = math.exp %490 : vector<8x128xf32>
    %cst_144 = arith.constant 1.000000e+00 : f32
    %492 = vector.broadcast %cst_144 : f32 to vector<8x128xf32>
    %493 = arith.addf %492, %491 : vector<8x128xf32>
    %494 = arith.divf %492, %493 : vector<8x128xf32>
    %495 = arith.mulf %486, %417 : vector<8x128xf32>
    %496 = arith.mulf %480, %488 : vector<8x128xf32>
    %497 = arith.addf %495, %496 : vector<8x128xf32>
    %498 = math.tanh %497 : vector<8x128xf32>
    %499 = arith.mulf %494, %498 : vector<8x128xf32>
    %500 = vector.shape_cast %468 : vector<8x1xi1> to vector<8x1xi1>
    %501 = vector.broadcast %500 : vector<8x1xi1> to vector<8x128xi1>
    %502 = arith.select %501, %499, %414 : vector<8x128xi1>, vector<8x128xf32>
    %503 = vector.shape_cast %468 : vector<8x1xi1> to vector<8x1xi1>
    %504 = vector.broadcast %503 : vector<8x1xi1> to vector<8x128xi1>
    %505 = arith.select %504, %497, %417 : vector<8x128xi1>, vector<8x128xf32>
    %cst_145 = arith.constant 0.000000e+00 : f32
    %506 = vector.shape_cast %468 : vector<8x1xi1> to vector<8x1xi1>
    %507 = vector.broadcast %506 : vector<8x1xi1> to vector<8x128xi1>
    %508 = vector.broadcast %cst_145 : f32 to vector<8x128xf32>
    %509 = arith.select %507, %499, %508 : vector<8x128xi1>, vector<8x128xf32>
    %c5_146 = arith.constant 5 : index
    %c0_147 = arith.constant 0 : index
    %c0_148 = arith.constant 0 : index
    %510 = vector.load %arg10[%c5_146, %c0_147, %c0_148] : memref<8x8x256xf32, #tpu.memory_space<vmem>>, vector<1x8x128xf32>
    %511 = vector.shape_cast %510 : vector<1x8x128xf32> to vector<8x128xf32>
    %512 = vector.shape_cast %509 : vector<8x128xf32> to vector<1x8x128xf32>
    tpu.vector_store %arg10[%c5_146, %c0_147, %c0_148], %512 {strides = array<i32>} : memref<8x8x256xf32, #tpu.memory_space<vmem>>, vector<1x8x128xf32>,
    %c16_149 = arith.constant 16 : index
    %c0_150 = arith.constant 0 : index
    %513 = vector.load %arg14[%c16_149, %c0_150] : memref<64x512xf32, #tpu.memory_space<vmem>>, vector<8x512xf32>
    %c0_151 = arith.constant 0 : index
    %c0_152 = arith.constant 0 : index
    %514 = vector.load %arg7[%c0_151, %c0_152] : memref<128x512xf32, #tpu.memory_space<vmem>>, vector<128x512xf32>
    %cst_153 = arith.constant dense<0.000000e+00> : vector<8x512xf32>
    %515 = tpu.matmul %456, %514, %cst_153 {dimension_numbers = #tpu.dot_dimension_numbers<[1], [0], [0], [1], [0, 0, 1, 1], [], []>} : vector<8x128xf32>, vector<128x512xf32>, vector<8x512xf32> -> vector<8x512xf32>
    %516 = arith.addf %513, %515 : vector<8x512xf32>
    %517 = vector.extract_strided_slice %516 {offsets = [0, 0], sizes = [8, 128], strides = [1, 1]} : vector<8x512xf32> to vector<8x128xf32>
    %518 = arith.negf %517 : vector<8x128xf32>
    %519 = math.exp %518 : vector<8x128xf32>
    %cst_154 = arith.constant 1.000000e+00 : f32
    %520 = vector.broadcast %cst_154 : f32 to vector<8x128xf32>
    %521 = arith.addf %520, %519 : vector<8x128xf32>
    %522 = arith.divf %520, %521 : vector<8x128xf32>
    %523 = vector.extract_strided_slice %516 {offsets = [0, 128], sizes = [8, 128], strides = [1, 1]} : vector<8x512xf32> to vector<8x128xf32>
    %524 = arith.negf %523 : vector<8x128xf32>
    %525 = math.exp %524 : vector<8x128xf32>
    %cst_155 = arith.constant 1.000000e+00 : f32
    %526 = vector.broadcast %cst_155 : f32 to vector<8x128xf32>
    %527 = arith.addf %526, %525 : vector<8x128xf32>
    %528 = arith.divf %526, %527 : vector<8x128xf32>
    %529 = vector.extract_strided_slice %516 {offsets = [0, 256], sizes = [8, 128], strides = [1, 1]} : vector<8x512xf32> to vector<8x128xf32>
    %530 = math.tanh %529 : vector<8x128xf32>
    %531 = vector.extract_strided_slice %516 {offsets = [0, 384], sizes = [8, 128], strides = [1, 1]} : vector<8x512xf32> to vector<8x128xf32>
    %532 = arith.negf %531 : vector<8x128xf32>
    %533 = math.exp %532 : vector<8x128xf32>
    %cst_156 = arith.constant 1.000000e+00 : f32
    %534 = vector.broadcast %cst_156 : f32 to vector<8x128xf32>
    %535 = arith.addf %534, %533 : vector<8x128xf32>
    %536 = arith.divf %534, %535 : vector<8x128xf32>
    %537 = arith.mulf %528, %459 : vector<8x128xf32>
    %538 = arith.mulf %522, %530 : vector<8x128xf32>
    %539 = arith.addf %537, %538 : vector<8x128xf32>
    %540 = math.tanh %539 : vector<8x128xf32>
    %541 = arith.mulf %536, %540 : vector<8x128xf32>
    %542 = vector.shape_cast %470 : vector<8x1xi1> to vector<8x1xi1>
    %543 = vector.broadcast %542 : vector<8x1xi1> to vector<8x128xi1>
    %544 = arith.select %543, %541, %456 : vector<8x128xi1>, vector<8x128xf32>
    %545 = vector.shape_cast %470 : vector<8x1xi1> to vector<8x1xi1>
    %546 = vector.broadcast %545 : vector<8x1xi1> to vector<8x128xi1>
    %547 = arith.select %546, %539, %459 : vector<8x128xi1>, vector<8x128xf32>
    %cst_157 = arith.constant 0.000000e+00 : f32
    %548 = vector.shape_cast %470 : vector<8x1xi1> to vector<8x1xi1>
    %549 = vector.broadcast %548 : vector<8x1xi1> to vector<8x128xi1>
    %550 = vector.broadcast %cst_157 : f32 to vector<8x128xf32>
    %551 = arith.select %549, %541, %550 : vector<8x128xi1>, vector<8x128xf32>
    %c2_158 = arith.constant 2 : index
    %c0_159 = arith.constant 0 : index
    %c128_160 = arith.constant 128 : index
    %552 = vector.load %arg10[%c2_158, %c0_159, %c128_160] : memref<8x8x256xf32, #tpu.memory_space<vmem>>, vector<1x8x128xf32>
    %553 = vector.shape_cast %552 : vector<1x8x128xf32> to vector<8x128xf32>
    %554 = vector.shape_cast %551 : vector<8x128xf32> to vector<1x8x128xf32>
    tpu.vector_store %arg10[%c2_158, %c0_159, %c128_160], %554 {strides = array<i32>} : memref<8x8x256xf32, #tpu.memory_space<vmem>>, vector<1x8x128xf32>,
    %c6_i32_161 = arith.constant 6 : i32
    %555 = vector.broadcast %c6_i32_161 : i32 to vector<8x1xi32>
    %556 = arith.cmpi sgt, %18, %555 : vector<8x1xi32>
    %c1_i32_162 = arith.constant 1 : i32
    %557 = vector.broadcast %c1_i32_162 : i32 to vector<8x1xi32>
    %558 = arith.cmpi sgt, %18, %557 : vector<8x1xi32>
    %c48_163 = arith.constant 48 : index
    %c0_164 = arith.constant 0 : index
    %559 = vector.load %arg13[%c48_163, %c0_164] : memref<64x512xf32, #tpu.memory_space<vmem>>, vector<8x512xf32>
    %c0_165 = arith.constant 0 : index
    %c0_166 = arith.constant 0 : index
    %560 = vector.load %arg6[%c0_165, %c0_166] : memref<128x512xf32, #tpu.memory_space<vmem>>, vector<128x512xf32>
    %cst_167 = arith.constant dense<0.000000e+00> : vector<8x512xf32>
    %561 = tpu.matmul %502, %560, %cst_167 {dimension_numbers = #tpu.dot_dimension_numbers<[1], [0], [0], [1], [0, 0, 1, 1], [], []>} : vector<8x128xf32>, vector<128x512xf32>, vector<8x512xf32> -> vector<8x512xf32>
    %562 = arith.addf %559, %561 : vector<8x512xf32>
    %563 = vector.extract_strided_slice %562 {offsets = [0, 0], sizes = [8, 128], strides = [1, 1]} : vector<8x512xf32> to vector<8x128xf32>
    %564 = arith.negf %563 : vector<8x128xf32>
    %565 = math.exp %564 : vector<8x128xf32>
    %cst_168 = arith.constant 1.000000e+00 : f32
    %566 = vector.broadcast %cst_168 : f32 to vector<8x128xf32>
    %567 = arith.addf %566, %565 : vector<8x128xf32>
    %568 = arith.divf %566, %567 : vector<8x128xf32>
    %569 = vector.extract_strided_slice %562 {offsets = [0, 128], sizes = [8, 128], strides = [1, 1]} : vector<8x512xf32> to vector<8x128xf32>
    %570 = arith.negf %569 : vector<8x128xf32>
    %571 = math.exp %570 : vector<8x128xf32>
    %cst_169 = arith.constant 1.000000e+00 : f32
    %572 = vector.broadcast %cst_169 : f32 to vector<8x128xf32>
    %573 = arith.addf %572, %571 : vector<8x128xf32>
    %574 = arith.divf %572, %573 : vector<8x128xf32>
    %575 = vector.extract_strided_slice %562 {offsets = [0, 256], sizes = [8, 128], strides = [1, 1]} : vector<8x512xf32> to vector<8x128xf32>
    %576 = math.tanh %575 : vector<8x128xf32>
    %577 = vector.extract_strided_slice %562 {offsets = [0, 384], sizes = [8, 128], strides = [1, 1]} : vector<8x512xf32> to vector<8x128xf32>
    %578 = arith.negf %577 : vector<8x128xf32>
    %579 = math.exp %578 : vector<8x128xf32>
    %cst_170 = arith.constant 1.000000e+00 : f32
    %580 = vector.broadcast %cst_170 : f32 to vector<8x128xf32>
    %581 = arith.addf %580, %579 : vector<8x128xf32>
    %582 = arith.divf %580, %581 : vector<8x128xf32>
    %583 = arith.mulf %574, %505 : vector<8x128xf32>
    %584 = arith.mulf %568, %576 : vector<8x128xf32>
    %585 = arith.addf %583, %584 : vector<8x128xf32>
    %586 = math.tanh %585 : vector<8x128xf32>
    %587 = arith.mulf %582, %586 : vector<8x128xf32>
    %588 = vector.shape_cast %556 : vector<8x1xi1> to vector<8x1xi1>
    %589 = vector.broadcast %588 : vector<8x1xi1> to vector<8x128xi1>
    %590 = arith.select %589, %587, %502 : vector<8x128xi1>, vector<8x128xf32>
    %591 = vector.shape_cast %556 : vector<8x1xi1> to vector<8x1xi1>
    %592 = vector.broadcast %591 : vector<8x1xi1> to vector<8x128xi1>
    %593 = arith.select %592, %585, %505 : vector<8x128xi1>, vector<8x128xf32>
    %cst_171 = arith.constant 0.000000e+00 : f32
    %594 = vector.shape_cast %556 : vector<8x1xi1> to vector<8x1xi1>
    %595 = vector.broadcast %594 : vector<8x1xi1> to vector<8x128xi1>
    %596 = vector.broadcast %cst_171 : f32 to vector<8x128xf32>
    %597 = arith.select %595, %587, %596 : vector<8x128xi1>, vector<8x128xf32>
    %c6_172 = arith.constant 6 : index
    %c0_173 = arith.constant 0 : index
    %c0_174 = arith.constant 0 : index
    %598 = vector.load %arg10[%c6_172, %c0_173, %c0_174] : memref<8x8x256xf32, #tpu.memory_space<vmem>>, vector<1x8x128xf32>
    %599 = vector.shape_cast %598 : vector<1x8x128xf32> to vector<8x128xf32>
    %600 = vector.shape_cast %597 : vector<8x128xf32> to vector<1x8x128xf32>
    tpu.vector_store %arg10[%c6_172, %c0_173, %c0_174], %600 {strides = array<i32>} : memref<8x8x256xf32, #tpu.memory_space<vmem>>, vector<1x8x128xf32>,
    %c8_175 = arith.constant 8 : index
    %c0_176 = arith.constant 0 : index
    %601 = vector.load %arg14[%c8_175, %c0_176] : memref<64x512xf32, #tpu.memory_space<vmem>>, vector<8x512xf32>
    %c0_177 = arith.constant 0 : index
    %c0_178 = arith.constant 0 : index
    %602 = vector.load %arg7[%c0_177, %c0_178] : memref<128x512xf32, #tpu.memory_space<vmem>>, vector<128x512xf32>
    %cst_179 = arith.constant dense<0.000000e+00> : vector<8x512xf32>
    %603 = tpu.matmul %544, %602, %cst_179 {dimension_numbers = #tpu.dot_dimension_numbers<[1], [0], [0], [1], [0, 0, 1, 1], [], []>} : vector<8x128xf32>, vector<128x512xf32>, vector<8x512xf32> -> vector<8x512xf32>
    %604 = arith.addf %601, %603 : vector<8x512xf32>
    %605 = vector.extract_strided_slice %604 {offsets = [0, 0], sizes = [8, 128], strides = [1, 1]} : vector<8x512xf32> to vector<8x128xf32>
    %606 = arith.negf %605 : vector<8x128xf32>
    %607 = math.exp %606 : vector<8x128xf32>
    %cst_180 = arith.constant 1.000000e+00 : f32
    %608 = vector.broadcast %cst_180 : f32 to vector<8x128xf32>
    %609 = arith.addf %608, %607 : vector<8x128xf32>
    %610 = arith.divf %608, %609 : vector<8x128xf32>
    %611 = vector.extract_strided_slice %604 {offsets = [0, 128], sizes = [8, 128], strides = [1, 1]} : vector<8x512xf32> to vector<8x128xf32>
    %612 = arith.negf %611 : vector<8x128xf32>
    %613 = math.exp %612 : vector<8x128xf32>
    %cst_181 = arith.constant 1.000000e+00 : f32
    %614 = vector.broadcast %cst_181 : f32 to vector<8x128xf32>
    %615 = arith.addf %614, %613 : vector<8x128xf32>
    %616 = arith.divf %614, %615 : vector<8x128xf32>
    %617 = vector.extract_strided_slice %604 {offsets = [0, 256], sizes = [8, 128], strides = [1, 1]} : vector<8x512xf32> to vector<8x128xf32>
    %618 = math.tanh %617 : vector<8x128xf32>
    %619 = vector.extract_strided_slice %604 {offsets = [0, 384], sizes = [8, 128], strides = [1, 1]} : vector<8x512xf32> to vector<8x128xf32>
    %620 = arith.negf %619 : vector<8x128xf32>
    %621 = math.exp %620 : vector<8x128xf32>
    %cst_182 = arith.constant 1.000000e+00 : f32
    %622 = vector.broadcast %cst_182 : f32 to vector<8x128xf32>
    %623 = arith.addf %622, %621 : vector<8x128xf32>
    %624 = arith.divf %622, %623 : vector<8x128xf32>
    %625 = arith.mulf %616, %547 : vector<8x128xf32>
    %626 = arith.mulf %610, %618 : vector<8x128xf32>
    %627 = arith.addf %625, %626 : vector<8x128xf32>
    %628 = math.tanh %627 : vector<8x128xf32>
    %629 = arith.mulf %624, %628 : vector<8x128xf32>
    %630 = vector.shape_cast %558 : vector<8x1xi1> to vector<8x1xi1>
    %631 = vector.broadcast %630 : vector<8x1xi1> to vector<8x128xi1>
    %632 = arith.select %631, %629, %544 : vector<8x128xi1>, vector<8x128xf32>
    %633 = vector.shape_cast %558 : vector<8x1xi1> to vector<8x1xi1>
    %634 = vector.broadcast %633 : vector<8x1xi1> to vector<8x128xi1>
    %635 = arith.select %634, %627, %547 : vector<8x128xi1>, vector<8x128xf32>
    %cst_183 = arith.constant 0.000000e+00 : f32
    %636 = vector.shape_cast %558 : vector<8x1xi1> to vector<8x1xi1>
    %637 = vector.broadcast %636 : vector<8x1xi1> to vector<8x128xi1>
    %638 = vector.broadcast %cst_183 : f32 to vector<8x128xf32>
    %639 = arith.select %637, %629, %638 : vector<8x128xi1>, vector<8x128xf32>
    %c1_184 = arith.constant 1 : index
    %c0_185 = arith.constant 0 : index
    %c128_186 = arith.constant 128 : index
    %640 = vector.load %arg10[%c1_184, %c0_185, %c128_186] : memref<8x8x256xf32, #tpu.memory_space<vmem>>, vector<1x8x128xf32>
    %641 = vector.shape_cast %640 : vector<1x8x128xf32> to vector<8x128xf32>
    %642 = vector.shape_cast %639 : vector<8x128xf32> to vector<1x8x128xf32>
    tpu.vector_store %arg10[%c1_184, %c0_185, %c128_186], %642 {strides = array<i32>} : memref<8x8x256xf32, #tpu.memory_space<vmem>>, vector<1x8x128xf32>,
    %c7_i32_187 = arith.constant 7 : i32
    %643 = vector.broadcast %c7_i32_187 : i32 to vector<8x1xi32>
    %644 = arith.cmpi sgt, %18, %643 : vector<8x1xi32>
    %c0_i32_188 = arith.constant 0 : i32
    %645 = vector.broadcast %c0_i32_188 : i32 to vector<8x1xi32>
    %646 = arith.cmpi sgt, %18, %645 : vector<8x1xi32>
    %c56_189 = arith.constant 56 : index
    %c0_190 = arith.constant 0 : index
    %647 = vector.load %arg13[%c56_189, %c0_190] : memref<64x512xf32, #tpu.memory_space<vmem>>, vector<8x512xf32>
    %c0_191 = arith.constant 0 : index
    %c0_192 = arith.constant 0 : index
    %648 = vector.load %arg6[%c0_191, %c0_192] : memref<128x512xf32, #tpu.memory_space<vmem>>, vector<128x512xf32>
    %cst_193 = arith.constant dense<0.000000e+00> : vector<8x512xf32>
    %649 = tpu.matmul %590, %648, %cst_193 {dimension_numbers = #tpu.dot_dimension_numbers<[1], [0], [0], [1], [0, 0, 1, 1], [], []>} : vector<8x128xf32>, vector<128x512xf32>, vector<8x512xf32> -> vector<8x512xf32>
    %650 = arith.addf %647, %649 : vector<8x512xf32>
    %651 = vector.extract_strided_slice %650 {offsets = [0, 0], sizes = [8, 128], strides = [1, 1]} : vector<8x512xf32> to vector<8x128xf32>
    %652 = arith.negf %651 : vector<8x128xf32>
    %653 = math.exp %652 : vector<8x128xf32>
    %cst_194 = arith.constant 1.000000e+00 : f32
    %654 = vector.broadcast %cst_194 : f32 to vector<8x128xf32>
    %655 = arith.addf %654, %653 : vector<8x128xf32>
    %656 = arith.divf %654, %655 : vector<8x128xf32>
    %657 = vector.extract_strided_slice %650 {offsets = [0, 128], sizes = [8, 128], strides = [1, 1]} : vector<8x512xf32> to vector<8x128xf32>
    %658 = arith.negf %657 : vector<8x128xf32>
    %659 = math.exp %658 : vector<8x128xf32>
    %cst_195 = arith.constant 1.000000e+00 : f32
    %660 = vector.broadcast %cst_195 : f32 to vector<8x128xf32>
    %661 = arith.addf %660, %659 : vector<8x128xf32>
    %662 = arith.divf %660, %661 : vector<8x128xf32>
    %663 = vector.extract_strided_slice %650 {offsets = [0, 256], sizes = [8, 128], strides = [1, 1]} : vector<8x512xf32> to vector<8x128xf32>
    %664 = math.tanh %663 : vector<8x128xf32>
    %665 = vector.extract_strided_slice %650 {offsets = [0, 384], sizes = [8, 128], strides = [1, 1]} : vector<8x512xf32> to vector<8x128xf32>
    %666 = arith.negf %665 : vector<8x128xf32>
    %667 = math.exp %666 : vector<8x128xf32>
    %cst_196 = arith.constant 1.000000e+00 : f32
    %668 = vector.broadcast %cst_196 : f32 to vector<8x128xf32>
    %669 = arith.addf %668, %667 : vector<8x128xf32>
    %670 = arith.divf %668, %669 : vector<8x128xf32>
    %671 = arith.mulf %662, %593 : vector<8x128xf32>
    %672 = arith.mulf %656, %664 : vector<8x128xf32>
    %673 = arith.addf %671, %672 : vector<8x128xf32>
    %674 = math.tanh %673 : vector<8x128xf32>
    %675 = arith.mulf %670, %674 : vector<8x128xf32>
    %676 = vector.shape_cast %644 : vector<8x1xi1> to vector<8x1xi1>
    %677 = vector.broadcast %676 : vector<8x1xi1> to vector<8x128xi1>
    %678 = arith.select %677, %675, %590 : vector<8x128xi1>, vector<8x128xf32>
    %679 = vector.shape_cast %644 : vector<8x1xi1> to vector<8x1xi1>
    %680 = vector.broadcast %679 : vector<8x1xi1> to vector<8x128xi1>
    %681 = arith.select %680, %673, %593 : vector<8x128xi1>, vector<8x128xf32>
    %cst_197 = arith.constant 0.000000e+00 : f32
    %682 = vector.shape_cast %644 : vector<8x1xi1> to vector<8x1xi1>
    %683 = vector.broadcast %682 : vector<8x1xi1> to vector<8x128xi1>
    %684 = vector.broadcast %cst_197 : f32 to vector<8x128xf32>
    %685 = arith.select %683, %675, %684 : vector<8x128xi1>, vector<8x128xf32>
    %c7_198 = arith.constant 7 : index
    %c0_199 = arith.constant 0 : index
    %c0_200 = arith.constant 0 : index
    %686 = vector.load %arg10[%c7_198, %c0_199, %c0_200] : memref<8x8x256xf32, #tpu.memory_space<vmem>>, vector<1x8x128xf32>
    %687 = vector.shape_cast %686 : vector<1x8x128xf32> to vector<8x128xf32>
    %688 = vector.shape_cast %685 : vector<8x128xf32> to vector<1x8x128xf32>
    tpu.vector_store %arg10[%c7_198, %c0_199, %c0_200], %688 {strides = array<i32>} : memref<8x8x256xf32, #tpu.memory_space<vmem>>, vector<1x8x128xf32>,
    %c0_201 = arith.constant 0 : index
    %c0_202 = arith.constant 0 : index
    %689 = vector.load %arg14[%c0_201, %c0_202] : memref<64x512xf32, #tpu.memory_space<vmem>>, vector<8x512xf32>
    %c0_203 = arith.constant 0 : index
    %c0_204 = arith.constant 0 : index
    %690 = vector.load %arg7[%c0_203, %c0_204] : memref<128x512xf32, #tpu.memory_space<vmem>>, vector<128x512xf32>
    %cst_205 = arith.constant dense<0.000000e+00> : vector<8x512xf32>
    %691 = tpu.matmul %632, %690, %cst_205 {dimension_numbers = #tpu.dot_dimension_numbers<[1], [0], [0], [1], [0, 0, 1, 1], [], []>} : vector<8x128xf32>, vector<128x512xf32>, vector<8x512xf32> -> vector<8x512xf32>
    %692 = arith.addf %689, %691 : vector<8x512xf32>
    %693 = vector.extract_strided_slice %692 {offsets = [0, 0], sizes = [8, 128], strides = [1, 1]} : vector<8x512xf32> to vector<8x128xf32>
    %694 = arith.negf %693 : vector<8x128xf32>
    %695 = math.exp %694 : vector<8x128xf32>
    %cst_206 = arith.constant 1.000000e+00 : f32
    %696 = vector.broadcast %cst_206 : f32 to vector<8x128xf32>
    %697 = arith.addf %696, %695 : vector<8x128xf32>
    %698 = arith.divf %696, %697 : vector<8x128xf32>
    %699 = vector.extract_strided_slice %692 {offsets = [0, 128], sizes = [8, 128], strides = [1, 1]} : vector<8x512xf32> to vector<8x128xf32>
    %700 = arith.negf %699 : vector<8x128xf32>
    %701 = math.exp %700 : vector<8x128xf32>
    %cst_207 = arith.constant 1.000000e+00 : f32
    %702 = vector.broadcast %cst_207 : f32 to vector<8x128xf32>
    %703 = arith.addf %702, %701 : vector<8x128xf32>
    %704 = arith.divf %702, %703 : vector<8x128xf32>
    %705 = vector.extract_strided_slice %692 {offsets = [0, 256], sizes = [8, 128], strides = [1, 1]} : vector<8x512xf32> to vector<8x128xf32>
    %706 = math.tanh %705 : vector<8x128xf32>
    %707 = vector.extract_strided_slice %692 {offsets = [0, 384], sizes = [8, 128], strides = [1, 1]} : vector<8x512xf32> to vector<8x128xf32>
    %708 = arith.negf %707 : vector<8x128xf32>
    %709 = math.exp %708 : vector<8x128xf32>
    %cst_208 = arith.constant 1.000000e+00 : f32
    %710 = vector.broadcast %cst_208 : f32 to vector<8x128xf32>
    %711 = arith.addf %710, %709 : vector<8x128xf32>
    %712 = arith.divf %710, %711 : vector<8x128xf32>
    %713 = arith.mulf %704, %635 : vector<8x128xf32>
    %714 = arith.mulf %698, %706 : vector<8x128xf32>
    %715 = arith.addf %713, %714 : vector<8x128xf32>
    %716 = math.tanh %715 : vector<8x128xf32>
    %717 = arith.mulf %712, %716 : vector<8x128xf32>
    %718 = vector.shape_cast %646 : vector<8x1xi1> to vector<8x1xi1>
    %719 = vector.broadcast %718 : vector<8x1xi1> to vector<8x128xi1>
    %720 = arith.select %719, %717, %632 : vector<8x128xi1>, vector<8x128xf32>
    %721 = vector.shape_cast %646 : vector<8x1xi1> to vector<8x1xi1>
    %722 = vector.broadcast %721 : vector<8x1xi1> to vector<8x128xi1>
    %723 = arith.select %722, %715, %635 : vector<8x128xi1>, vector<8x128xf32>
    %cst_209 = arith.constant 0.000000e+00 : f32
    %724 = vector.shape_cast %646 : vector<8x1xi1> to vector<8x1xi1>
    %725 = vector.broadcast %724 : vector<8x1xi1> to vector<8x128xi1>
    %726 = vector.broadcast %cst_209 : f32 to vector<8x128xf32>
    %727 = arith.select %725, %717, %726 : vector<8x128xi1>, vector<8x128xf32>
    %c0_210 = arith.constant 0 : index
    %c0_211 = arith.constant 0 : index
    %c128_212 = arith.constant 128 : index
    %728 = vector.load %arg10[%c0_210, %c0_211, %c128_212] : memref<8x8x256xf32, #tpu.memory_space<vmem>>, vector<1x8x128xf32>
    %729 = vector.shape_cast %728 : vector<1x8x128xf32> to vector<8x128xf32>
    %730 = vector.shape_cast %727 : vector<8x128xf32> to vector<1x8x128xf32>
    tpu.vector_store %arg10[%c0_210, %c0_211, %c128_212], %730 {strides = array<i32>} : memref<8x8x256xf32, #tpu.memory_space<vmem>>, vector<1x8x128xf32>,
    %c0_213 = arith.constant 0 : index
    %c0_214 = arith.constant 0 : index
    %c0_215 = arith.constant 0 : index
    %731 = vector.load %arg11[%c0_213, %c0_214, %c0_215] : memref<2x8x128xf32, #tpu.memory_space<vmem>>, vector<1x8x128xf32>
    %732 = vector.shape_cast %731 : vector<1x8x128xf32> to vector<8x128xf32>
    %733 = vector.shape_cast %678 : vector<8x128xf32> to vector<1x8x128xf32>
    tpu.vector_store %arg11[%c0_213, %c0_214, %c0_215], %733 {strides = array<i32>} : memref<2x8x128xf32, #tpu.memory_space<vmem>>, vector<1x8x128xf32>,
    %c1_216 = arith.constant 1 : index
    %c0_217 = arith.constant 0 : index
    %c0_218 = arith.constant 0 : index
    %734 = vector.load %arg11[%c1_216, %c0_217, %c0_218] : memref<2x8x128xf32, #tpu.memory_space<vmem>>, vector<1x8x128xf32>
    %735 = vector.shape_cast %734 : vector<1x8x128xf32> to vector<8x128xf32>
    %736 = vector.shape_cast %720 : vector<8x128xf32> to vector<1x8x128xf32>
    tpu.vector_store %arg11[%c1_216, %c0_217, %c0_218], %736 {strides = array<i32>} : memref<2x8x128xf32, #tpu.memory_space<vmem>>, vector<1x8x128xf32>,
    %c0_219 = arith.constant 0 : index
    %c0_220 = arith.constant 0 : index
    %c0_221 = arith.constant 0 : index
    %737 = vector.load %arg12[%c0_219, %c0_220, %c0_221] : memref<2x8x128xf32, #tpu.memory_space<vmem>>, vector<1x8x128xf32>
    %738 = vector.shape_cast %737 : vector<1x8x128xf32> to vector<8x128xf32>
    %739 = vector.shape_cast %681 : vector<8x128xf32> to vector<1x8x128xf32>
    tpu.vector_store %arg12[%c0_219, %c0_220, %c0_221], %739 {strides = array<i32>} : memref<2x8x128xf32, #tpu.memory_space<vmem>>, vector<1x8x128xf32>,
    %c1_222 = arith.constant 1 : index
    %c0_223 = arith.constant 0 : index
    %c0_224 = arith.constant 0 : index
    %740 = vector.load %arg12[%c1_222, %c0_223, %c0_224] : memref<2x8x128xf32, #tpu.memory_space<vmem>>, vector<1x8x128xf32>
    %741 = vector.shape_cast %740 : vector<1x8x128xf32> to vector<8x128xf32>
    %742 = vector.shape_cast %723 : vector<8x128xf32> to vector<1x8x128xf32>
    tpu.vector_store %arg12[%c1_222, %c0_223, %c0_224], %742 {strides = array<i32>} : memref<2x8x128xf32, #tpu.memory_space<vmem>>, vector<1x8x128xf32>,
    return
  }
}

</mosaic_0001>

<llo_original>
// kernel: tpu_custom_call.1
$region0: #{tpu_custom_call.1}
  #allocation0 [shape = 'u32[]', space=smem, size = 0x4, offset = 0x4, fixed_abs, tag = 'smem constant byte address 0x4 - core index']
  #allocation1 [shape = 'u32[144,128]{1,0:T(1,128)}', space=vmem, size = 0x12000, scoped, tag = 'internal scratch']
  #allocation2 [shape = 'f32[64,512]{1,0:T(8,128)}', space=vmem, size = 0x20000, scoped, tag = 'scratch operand']
  #allocation3 [shape = 'f32[64,512]{1,0:T(8,128)}', space=vmem, size = 0x20000, scoped, tag = 'scratch operand']
  %s0 = inlined_call_operand.vmem [shape: s32[64,1], index: 0, kind: input, shape index: {}]
  %s1 = inlined_call_operand.vmem [shape: s32[8,1], index: 1, kind: input, shape index: {}]
  %s2 = inlined_call_operand.hbm [shape: f32[128,512], index: 2, kind: input, shape index: {}]
  %s3 = inlined_call_operand.hbm [shape: f32[128,512], index: 3, kind: input, shape index: {}]
  %s4 = inlined_call_operand.vmem [shape: f32[1,512], index: 4, kind: input, shape index: {}]
  %s5 = inlined_call_operand.vmem [shape: f32[1,512], index: 5, kind: input, shape index: {}]
  %s6 = inlined_call_operand.hbm [shape: f32[128,512], index: 6, kind: input, shape index: {}]
  %s7 = inlined_call_operand.hbm [shape: f32[128,512], index: 7, kind: input, shape index: {}]
  %s8 = inlined_call_operand.vmem [shape: f32[2,8,128], index: 8, kind: input, shape index: {}]
  %s9 = inlined_call_operand.vmem [shape: f32[2,8,128], index: 9, kind: input, shape index: {}]
  %s10 = inlined_call_operand.hbm [shape: f32[8,8,256], index: 10, kind: output, shape index: {0}]
  %s11 = inlined_call_operand.hbm [shape: f32[2,8,128], index: 11, kind: output, shape index: {1}]
  %s12 = inlined_call_operand.hbm [shape: f32[2,8,128], index: 12, kind: output, shape index: {2}]
  %13 = xla_tuple %s10, %s11, %s12
  %s14 = sld [smem:[#allocation0]]
  $region82: #{tpu_custom_call.1} parent=0
    _
  %s16 = ssub.s32 1, %s14
  %s17 = scalar_select 0, %s16, %s14
  $region1: #{tpu_custom_call.1} parent=0
    #allocation4 [shape = 'u8[262144]{0}', space=vmem, size = 0x40000, scoped, tag = 'input window, operand 2, single buffered']
    #allocation5 [shape = 's32[1]{0}', space=sflag, size = 0x4, scoped, tag = 'scoped memory for tpu_custom_call.1']
    #allocation6 [shape = 's32[1]{0}', space=sflag, size = 0x4, scoped, tag = 'scoped memory for tpu_custom_call.1']
    #allocation7 [shape = 'u8[262144]{0}', space=vmem, size = 0x40000, scoped, tag = 'input window, operand 3, single buffered']
    #allocation8 [shape = 's32[1]{0}', space=sflag, size = 0x4, scoped, tag = 'scoped memory for tpu_custom_call.1']
    #allocation9 [shape = 'u8[262144]{0}', space=vmem, size = 0x40000, scoped, tag = 'input window, operand 6, single buffered']
    #allocation10 [shape = 'u8[262144]{0}', space=vmem, size = 0x40000, scoped, tag = 'input window, operand 7, single buffered']
    #allocation11 [shape = 's32[1]{0}', space=sflag, size = 0x4, scoped, tag = 'scoped memory for tpu_custom_call.1']
    #allocation12 [shape = 'u8[65536]{0}', space=vmem, size = 0x10000, scoped, tag = 'output window, operand 0, single buffered']
    #allocation13 [shape = 'u8[8192]{0}', space=vmem, size = 0x2000, scoped, tag = 'output window, operand 1, single buffered']
    #allocation14 [shape = 's32[1]{0}', space=sflag, size = 0x4, scoped, tag = 'scoped memory for tpu_custom_call.1']
    #allocation15 [shape = 'u8[8192]{0}', space=vmem, size = 0x2000, scoped, tag = 'output window, operand 2, single buffered']
    %18 = vsyncpa [#allocation5], 0
    %19 = vsyncpa [#allocation8], 0
    %20 = vsyncpa [#allocation11], 0
    %21 = vsyncpa [#allocation6], 0
    %22 = vsyncpa [#allocation14], 0
    // Predicated region
    $region2: #{tpu_custom_call.1} parent=1 // pred_check
      _
    $region3: #{tpu_custom_call.1} parent=1 // pred_check_branch
      %24 = sbr.rel (0) target = $region5
    $region4: #{tpu_custom_call.1} parent=1 // pred_region
      _
    $region5: #{tpu_custom_call.1} parent=1 // pred_fallthru
      _
    // Predicated region
    $region6: #{tpu_custom_call.1} parent=1 // pred_check
      _
    $region7: #{tpu_custom_call.1} parent=1 // pred_check_branch
      %26 = sbr.rel (0) target = $region9
    $region8: #{tpu_custom_call.1} parent=1 // pred_region
      _
    $region9: #{tpu_custom_call.1} parent=1 // pred_fallthru
      _
    // Predicated region
    $region10: #{tpu_custom_call.1} parent=1 // pred_check
      _
    $region11: #{tpu_custom_call.1} parent=1 // pred_check_branch
      %28 = sbr.rel (0) target = $region13
    $region12: #{tpu_custom_call.1} parent=1 // pred_region
      %s30 = ssub.s32 8192, 8192
      %31 = vsyncadd [#allocation5], %s30
      %s32 = sshll.u32 [#allocation4], 4
      %s33 = int_to_ptr.vmem [resolvable:$true] %s32
      %38 = dma.hbm_to_vmem [thread:$0]  %s2, 8192, %s33, [#allocation5], 512, 512, 32
    $region13: #{tpu_custom_call.1} parent=1 // pred_fallthru
      _
    // Predicated region
    $region14: #{tpu_custom_call.1} parent=1 // pred_check
      _
    $region15: #{tpu_custom_call.1} parent=1 // pred_check_branch
      %40 = sbr.rel (0) target = $region17
    $region16: #{tpu_custom_call.1} parent=1 // pred_region
      %s42 = ssub.s32 8192, 8192
      %43 = vsyncadd [#allocation8], %s42
      %s44 = sshll.u32 [#allocation7], 4
      %s45 = int_to_ptr.vmem [resolvable:$true] %s44
      %50 = dma.hbm_to_vmem [thread:$0]  %s3, 8192, %s45, [#allocation8], 512, 512, 32
    $region17: #{tpu_custom_call.1} parent=1 // pred_fallthru
      _
    // Predicated region
    $region18: #{tpu_custom_call.1} parent=1 // pred_check
      _
    $region19: #{tpu_custom_call.1} parent=1 // pred_check_branch
      %52 = sbr.rel (0) target = $region21
    $region20: #{tpu_custom_call.1} parent=1 // pred_region
      _
    $region21: #{tpu_custom_call.1} parent=1 // pred_fallthru
      _
    // Predicated region
    $region22: #{tpu_custom_call.1} parent=1 // pred_check
      _
    $region23: #{tpu_custom_call.1} parent=1 // pred_check_branch
      %54 = sbr.rel (0) target = $region25
    $region24: #{tpu_custom_call.1} parent=1 // pred_region
      _
    $region25: #{tpu_custom_call.1} parent=1 // pred_fallthru
      _
    // Predicated region
    $region26: #{tpu_custom_call.1} parent=1 // pred_check
      _
    $region27: #{tpu_custom_call.1} parent=1 // pred_check_branch
      %56 = sbr.rel (0) target = $region29
    $region28: #{tpu_custom_call.1} parent=1 // pred_region
      %s58 = ssub.s32 8192, 8192
      %59 = vsyncadd [#allocation8], %s58
      %s60 = sshll.u32 [#allocation9], 4
      %s61 = int_to_ptr.vmem [resolvable:$true] %s60
      %66 = dma.hbm_to_vmem [thread:$0]  %s6, 8192, %s61, [#allocation8], 512, 512, 32
    $region29: #{tpu_custom_call.1} parent=1 // pred_fallthru
      _
    // Predicated region
    $region30: #{tpu_custom_call.1} parent=1 // pred_check
      _
    $region31: #{tpu_custom_call.1} parent=1 // pred_check_branch
      %68 = sbr.rel (0) target = $region33
    $region32: #{tpu_custom_call.1} parent=1 // pred_region
      %s70 = ssub.s32 8192, 8192
      %71 = vsyncadd [#allocation11], %s70
      %s72 = sshll.u32 [#allocation10], 4
      %s73 = int_to_ptr.vmem [resolvable:$true] %s72
      %78 = dma.hbm_to_vmem [thread:$0]  %s7, 8192, %s73, [#allocation11], 512, 512, 32
    $region33: #{tpu_custom_call.1} parent=1 // pred_fallthru
      _
    // Predicated region
    $region34: #{tpu_custom_call.1} parent=1 // pred_check
      _
    $region35: #{tpu_custom_call.1} parent=1 // pred_check_branch
      %80 = sbr.rel (0) target = $region37
    $region36: #{tpu_custom_call.1} parent=1 // pred_region
      _
    $region37: #{tpu_custom_call.1} parent=1 // pred_fallthru
      _
    // Predicated region
    $region38: #{tpu_custom_call.1} parent=1 // pred_check
      _
    $region39: #{tpu_custom_call.1} parent=1 // pred_check_branch
      %82 = sbr.rel (0) target = $region41
    $region40: #{tpu_custom_call.1} parent=1 // pred_region
      _
    $region41: #{tpu_custom_call.1} parent=1 // pred_fallthru
      _
    // Predicated region
    $region42: #{tpu_custom_call.1} parent=1 // pred_check
      _
    $region43: #{tpu_custom_call.1} parent=1 // pred_check_branch
      %84 = sbr.rel (0) target = $region45
    $region44: #{tpu_custom_call.1} parent=1 // pred_region
      %85 = dma.done [#allocation5], 8192
    $region45: #{tpu_custom_call.1} parent=1 // pred_fallthru
      _
    // Predicated region
    $region46: #{tpu_custom_call.1} parent=1 // pred_check
      _
    $region47: #{tpu_custom_call.1} parent=1 // pred_check_branch
      %87 = sbr.rel (0) target = $region49
    $region48: #{tpu_custom_call.1} parent=1 // pred_region
      %88 = dma.done [#allocation8], 8192
    $region49: #{tpu_custom_call.1} parent=1 // pred_fallthru
      _
    // Predicated region
    $region50: #{tpu_custom_call.1} parent=1 // pred_check
      _
    $region51: #{tpu_custom_call.1} parent=1 // pred_check_branch
      %90 = sbr.rel (0) target = $region53
    $region52: #{tpu_custom_call.1} parent=1 // pred_region
      %91 = dma.done [#allocation8], 8192
    $region53: #{tpu_custom_call.1} parent=1 // pred_fallthru
      _
    // Predicated region
    $region54: #{tpu_custom_call.1} parent=1 // pred_check
      _
    $region55: #{tpu_custom_call.1} parent=1 // pred_check_branch
      %93 = sbr.rel (0) target = $region57
    $region56: #{tpu_custom_call.1} parent=1 // pred_region
      %94 = dma.done [#allocation11], 8192
    $region57: #{tpu_custom_call.1} parent=1 // pred_fallthru
      _
    %v95 = vlaneseq
    %v96 = vand.u32 %v95, 127
    %v97 = vld [vmem:[%s0] sm:$0xff]
    %v98 = vld [vmem:[%s0 + $0x8] sm:$0xff]
    %v99 = vld [vmem:[%s0 + $0x10] sm:$0xff]
    %v100 = vld [vmem:[%s0 + $0x18] sm:$0xff]
    %v101 = vld [vmem:[%s0 + $0x20] sm:$0xff]
    %v102 = vld [vmem:[%s0 + $0x28] sm:$0xff]
    %v103 = vld [vmem:[%s0 + $0x30] sm:$0xff]
    %v104 = vld [vmem:[%s0 + $0x38] sm:$0xff]
    %105 = vset.pattern.permute.xlu0 0
    %106 = vperm.xlu0 %105, %v97
    %v107 = vpop.permute.xlu0 %106
    %108 = vset.pattern.permute.xlu0 0
    %109 = vperm.xlu0 %108, %v98
    %v110 = vpop.permute.xlu0 %109
    %111 = vset.pattern.permute.xlu0 0
    %112 = vperm.xlu0 %111, %v99
    %v113 = vpop.permute.xlu0 %112
    %114 = vset.pattern.permute.xlu0 0
    %115 = vperm.xlu0 %114, %v100
    %v116 = vpop.permute.xlu0 %115
    %117 = vset.pattern.permute.xlu0 0
    %118 = vperm.xlu0 %117, %v101
    %v119 = vpop.permute.xlu0 %118
    %120 = vset.pattern.permute.xlu0 0
    %121 = vperm.xlu0 %120, %v102
    %v122 = vpop.permute.xlu0 %121
    %123 = vset.pattern.permute.xlu0 0
    %124 = vperm.xlu0 %123, %v103
    %v125 = vpop.permute.xlu0 %124
    %126 = vset.pattern.permute.xlu0 0
    %127 = vperm.xlu0 %126, %v104
    %v128 = vpop.permute.xlu0 %127
    %vm129 = vcmp.eq.s32.totalorder %v96, %v107
    %vm130 = vcmp.eq.s32.totalorder %v96, %v110
    %vm131 = vcmp.eq.s32.totalorder %v96, %v113
    %vm132 = vcmp.eq.s32.totalorder %v96, %v116
    %vm133 = vcmp.eq.s32.totalorder %v96, %v119
    %vm134 = vcmp.eq.s32.totalorder %v96, %v122
    %vm135 = vcmp.eq.s32.totalorder %v96, %v125
    %vm136 = vcmp.eq.s32.totalorder %v96, %v128
    %v137 = vsel %vm129, 1, 0
    %v138 = vsel %vm130, 1, 0
    %v139 = vsel %vm131, 1, 0
    %v140 = vsel %vm132, 1, 0
    %v141 = vsel %vm133, 1, 0
    %v142 = vsel %vm134, 1, 0
    %v143 = vsel %vm135, 1, 0
    %v144 = vsel %vm136, 1, 0
    %v145 = vcvt.s32.f32 %v137
    %v146 = vcvt.s32.f32 %v138
    %v147 = vcvt.s32.f32 %v139
    %v148 = vcvt.s32.f32 %v140
    %v149 = vcvt.s32.f32 %v141
    %v150 = vcvt.s32.f32 %v142
    %v151 = vcvt.s32.f32 %v143
    %v152 = vcvt.s32.f32 %v144
    %v153 = vld [vmem:[#allocation4] sm:$0xff]
    %v154 = vld [vmem:[#allocation4 + $0x8] sm:$0xff]
    %v155 = vld [vmem:[#allocation4 + $0x10] sm:$0xff]
    %v156 = vld [vmem:[#allocation4 + $0x18] sm:$0xff]
    %v157 = vld [vmem:[#allocation4 + $0x20] sm:$0xff]
    %v158 = vld [vmem:[#allocation4 + $0x28] sm:$0xff]
    %v159 = vld [vmem:[#allocation4 + $0x30] sm:$0xff]
    %v160 = vld [vmem:[#allocation4 + $0x38] sm:$0xff]
    %v161 = vld [vmem:[#allocation4 + $0x40] sm:$0xff]
    %v162 = vld [vmem:[#allocation4 + $0x48] sm:$0xff]
    %v163 = vld [vmem:[#allocation4 + $0x50] sm:$0xff]
    %v164 = vld [vmem:[#allocation4 + $0x58] sm:$0xff]
    %v165 = vld [vmem:[#allocation4 + $0x60] sm:$0xff]
    %v166 = vld [vmem:[#allocation4 + $0x68] sm:$0xff]
    %v167 = vld [vmem:[#allocation4 + $0x70] sm:$0xff]
    %v168 = vld [vmem:[#allocation4 + $0x78] sm:$0xff]
    %v169 = vld [vmem:[#allocation4 + $0x80] sm:$0xff]
    %v170 = vld [vmem:[#allocation4 + $0x88] sm:$0xff]
    %v171 = vld [vmem:[#allocation4 + $0x90] sm:$0xff]
    %v172 = vld [vmem:[#allocation4 + $0x98] sm:$0xff]
    %v173 = vld [vmem:[#allocation4 + $0xa0] sm:$0xff]
    %v174 = vld [vmem:[#allocation4 + $0xa8] sm:$0xff]
    %v175 = vld [vmem:[#allocation4 + $0xb0] sm:$0xff]
    %v176 = vld [vmem:[#allocation4 + $0xb8] sm:$0xff]
    %v177 = vld [vmem:[#allocation4 + $0xc0] sm:$0xff]
    %v178 = vld [vmem:[#allocation4 + $0xc8] sm:$0xff]
    %v179 = vld [vmem:[#allocation4 + $0xd0] sm:$0xff]
    %v180 = vld [vmem:[#allocation4 + $0xd8] sm:$0xff]
    %v181 = vld [vmem:[#allocation4 + $0xe0] sm:$0xff]
    %v182 = vld [vmem:[#allocation4 + $0xe8] sm:$0xff]
    %v183 = vld [vmem:[#allocation4 + $0xf0] sm:$0xff]
    %v184 = vld [vmem:[#allocation4 + $0xf8] sm:$0xff]
    %v185 = vld [vmem:[#allocation4 + $0x100] sm:$0xff]
    %v186 = vld [vmem:[#allocation4 + $0x108] sm:$0xff]
    %v187 = vld [vmem:[#allocation4 + $0x110] sm:$0xff]
    %v188 = vld [vmem:[#allocation4 + $0x118] sm:$0xff]
    %v189 = vld [vmem:[#allocation4 + $0x120] sm:$0xff]
    %v190 = vld [vmem:[#allocation4 + $0x128] sm:$0xff]
    %v191 = vld [vmem:[#allocation4 + $0x130] sm:$0xff]
    %v192 = vld [vmem:[#allocation4 + $0x138] sm:$0xff]
    %v193 = vld [vmem:[#allocation4 + $0x140] sm:$0xff]
    %v194 = vld [vmem:[#allocation4 + $0x148] sm:$0xff]
    %v195 = vld [vmem:[#allocation4 + $0x150] sm:$0xff]
    %v196 = vld [vmem:[#allocation4 + $0x158] sm:$0xff]
    %v197 = vld [vmem:[#allocation4 + $0x160] sm:$0xff]
    %v198 = vld [vmem:[#allocation4 + $0x168] sm:$0xff]
    %v199 = vld [vmem:[#allocation4 + $0x170] sm:$0xff]
    %v200 = vld [vmem:[#allocation4 + $0x178] sm:$0xff]
    %v201 = vld [vmem:[#allocation4 + $0x180] sm:$0xff]
    %v202 = vld [vmem:[#allocation4 + $0x188] sm:$0xff]
    %v203 = vld [vmem:[#allocation4 + $0x190] sm:$0xff]
    %v204 = vld [vmem:[#allocation4 + $0x198] sm:$0xff]
    %v205 = vld [vmem:[#allocation4 + $0x1a0] sm:$0xff]
    %v206 = vld [vmem:[#allocation4 + $0x1a8] sm:$0xff]
    %v207 = vld [vmem:[#allocation4 + $0x1b0] sm:$0xff]
    %v208 = vld [vmem:[#allocation4 + $0x1b8] sm:$0xff]
    %v209 = vld [vmem:[#allocation4 + $0x1c0] sm:$0xff]
    %v210 = vld [vmem:[#allocation4 + $0x1c8] sm:$0xff]
    %v211 = vld [vmem:[#allocation4 + $0x1d0] sm:$0xff]
    %v212 = vld [vmem:[#allocation4 + $0x1d8] sm:$0xff]
    %v213 = vld [vmem:[#allocation4 + $0x1e0] sm:$0xff]
    %v214 = vld [vmem:[#allocation4 + $0x1e8] sm:$0xff]
    %v215 = vld [vmem:[#allocation4 + $0x1f0] sm:$0xff]
    %v216 = vld [vmem:[#allocation4 + $0x1f8] sm:$0xff]
    %v217 = vld [vmem:[%s4] sm:$0xf]
    %v219 = vlaneseq
    %v220 = vshrl.u32 %v219, 7
    %v221 = vsub.s32 0, %v220
    %v222 = vrot.slane %v217, %v221
    %v223 = vlaneseq
    %v224 = vshrl.u32 %v223, 7
    %v225 = vsub.s32 1, %v224
    %v226 = vrot.slane %v217, %v225
    %v227 = vlaneseq
    %v228 = vshrl.u32 %v227, 7
    %v229 = vsub.s32 2, %v228
    %v230 = vrot.slane %v217, %v229
    %v231 = vlaneseq
    %v232 = vshrl.u32 %v231, 7
    %v233 = vsub.s32 3, %v232
    %v234 = vrot.slane %v217, %v233
    %239 = vmatprep.subr.mxu0 %v154
    %240 = vmatpush1.msra.mxu0 %v153
    %241 = vmatprep.subr.mxu0 %v158
    %242 = vmatpush1.msra.mxu0 %v157
    %243 = vmatprep.subr.mxu0 %v162
    %244 = vmatpush1.msra.mxu0 %v161
    %245 = vmatprep.subr.mxu0 %v166
    %246 = vmatpush1.msra.mxu0 %v165
    %247 = vmatprep.subr.mxu0 %v170
    %248 = vmatpush1.msra.mxu0 %v169
    %249 = vmatprep.subr.mxu0 %v174
    %250 = vmatpush1.msra.mxu0 %v173
    %251 = vmatprep.subr.mxu0 %v178
    %252 = vmatpush1.msra.mxu0 %v177
    %253 = vmatprep.subr.mxu0 %v182
    %254 = vmatpush1.msra.mxu0 %v181
    %255 = vmatprep.subr.mxu0 %v186
    %256 = vmatpush1.msra.mxu0 %v185
    %257 = vmatprep.subr.mxu0 %v190
    %258 = vmatpush1.msra.mxu0 %v189
    %259 = vmatprep.subr.mxu0 %v194
    %260 = vmatpush1.msra.mxu0 %v193
    %261 = vmatprep.subr.mxu0 %v198
    %262 = vmatpush1.msra.mxu0 %v197
    %263 = vmatprep.subr.mxu0 %v202
    %264 = vmatpush1.msra.mxu0 %v201
    %265 = vmatprep.subr.mxu0 %v206
    %266 = vmatpush1.msra.mxu0 %v205
    %267 = vmatprep.subr.mxu0 %v210
    %268 = vmatpush1.msra.mxu0 %v209
    %269 = vmatprep.subr.mxu0 %v214
    %270 = vmatpush1.msra.mxu0 %v213
    %271 = vmatprep.subr.mxu0 0.0
    %272 = vmatpush1.msra.mxu0 0.0
    %273 = vmatprep.subr.mxu0 0.0
    %274 = vmatpush1.msra.mxu0 0.0
    %275 = vmatprep.subr.mxu0 0.0
    %276 = vmatpush1.msra.mxu0 0.0
    %277 = vmatprep.subr.mxu0 0.0
    %278 = vmatpush1.msra.mxu0 0.0
    %279 = vmatprep.subr.mxu0 0.0
    %280 = vmatpush1.msra.mxu0 0.0
    %281 = vmatprep.subr.mxu0 0.0
    %282 = vmatpush1.msra.mxu0 0.0
    %283 = vmatprep.subr.mxu0 0.0
    %284 = vmatpush1.msra.mxu0 0.0
    %285 = vmatprep.subr.mxu0 0.0
    %286 = vmatpush1.msra.mxu0 0.0
    %287 = vmatprep.subr.mxu0 0.0
    %288 = vmatpush1.msra.mxu0 0.0
    %289 = vmatprep.subr.mxu0 0.0
    %290 = vmatpush1.msra.mxu0 0.0
    %291 = vmatprep.subr.mxu0 0.0
    %292 = vmatpush1.msra.mxu0 0.0
    %293 = vmatprep.subr.mxu0 0.0
    %294 = vmatpush1.msra.mxu0 0.0
    %295 = vmatprep.subr.mxu0 0.0
    %296 = vmatpush1.msra.mxu0 0.0
    %297 = vmatprep.subr.mxu0 0.0
    %298 = vmatpush1.msra.mxu0 0.0
    %299 = vmatprep.subr.mxu0 0.0
    %300 = vmatpush1.msra.mxu0 0.0
    %301 = vmatprep.subr.mxu0 0.0
    %302 = vmatpush1.msra.mxu0 0.0
    %303 = vmatprep.mubr.f32.mxu0 0.0
    %304 = vmatmul.mubr.f32.gmra.mrb[0].mxu0 %v145
    %v305 = vpop.f32.mrb[0].mxu0
    %v306 = vadd.f32 %v222, %v305
    %v307 = vpop.f32.mrb[0].mxu0
    %v308 = vadd.f32 %v226, %v307
    %309 = vmatprep.mubr.f32.mxu0 0.0
    %310 = vmatmul.mubr.f32.gmra.mrb[0].mxu0 %v146
    %v311 = vpop.f32.mrb[0].mxu0
    %v312 = vadd.f32 %v222, %v311
    %v313 = vpop.f32.mrb[0].mxu0
    %v314 = vadd.f32 %v226, %v313
    %315 = vmatprep.mubr.f32.mxu0 0.0
    %316 = vmatmul.mubr.f32.gmra.mrb[0].mxu0 %v147
    %v317 = vpop.f32.mrb[0].mxu0
    %v318 = vadd.f32 %v222, %v317
    %v319 = vpop.f32.mrb[0].mxu0
    %v320 = vadd.f32 %v226, %v319
    %321 = vmatprep.mubr.f32.mxu0 0.0
    %322 = vmatmul.mubr.f32.gmra.mrb[0].mxu0 %v148
    %v323 = vpop.f32.mrb[0].mxu0
    %v324 = vadd.f32 %v222, %v323
    %v325 = vpop.f32.mrb[0].mxu0
    %v326 = vadd.f32 %v226, %v325
    %327 = vmatprep.mubr.f32.mxu0 0.0
    %328 = vmatmul.mubr.f32.gmra.mrb[0].mxu0 %v149
    %v329 = vpop.f32.mrb[0].mxu0
    %v330 = vadd.f32 %v222, %v329
    %v331 = vpop.f32.mrb[0].mxu0
    %v332 = vadd.f32 %v226, %v331
    %333 = vmatprep.mubr.f32.mxu0 0.0
    %334 = vmatmul.mubr.f32.gmra.mrb[0].mxu0 %v150
    %v335 = vpop.f32.mrb[0].mxu0
    %v336 = vadd.f32 %v222, %v335
    %v337 = vpop.f32.mrb[0].mxu0
    %v338 = vadd.f32 %v226, %v337
    %339 = vmatprep.mubr.f32.mxu0 0.0
    %340 = vmatmul.mubr.f32.gmra.mrb[0].mxu0 %v151
    %v341 = vpop.f32.mrb[0].mxu0
    %v342 = vadd.f32 %v222, %v341
    %v343 = vpop.f32.mrb[0].mxu0
    %v344 = vadd.f32 %v226, %v343
    %345 = vmatprep.mubr.f32.mxu0 0.0
    %346 = vmatmul.mubr.f32.gmra.mrb[0].mxu0 %v152
    %v347 = vpop.f32.mrb[0].mxu0
    %v348 = vadd.f32 %v222, %v347
    %v349 = vpop.f32.mrb[0].mxu0
    %v350 = vadd.f32 %v226, %v349
    %351 = vdwg.mxu0
    %352 = vmatprep.subr.mxu0 %v156
    %353 = vmatpush1.msra.mxu0 %v155
    %354 = vmatprep.subr.mxu0 %v160
    %355 = vmatpush1.msra.mxu0 %v159
    %356 = vmatprep.subr.mxu0 %v164
    %357 = vmatpush1.msra.mxu0 %v163
    %358 = vmatprep.subr.mxu0 %v168
    %359 = vmatpush1.msra.mxu0 %v167
    %360 = vmatprep.subr.mxu0 %v172
    %361 = vmatpush1.msra.mxu0 %v171
    %362 = vmatprep.subr.mxu0 %v176
    %363 = vmatpush1.msra.mxu0 %v175
    %364 = vmatprep.subr.mxu0 %v180
    %365 = vmatpush1.msra.mxu0 %v179
    %366 = vmatprep.subr.mxu0 %v184
    %367 = vmatpush1.msra.mxu0 %v183
    %368 = vmatprep.subr.mxu0 %v188
    %369 = vmatpush1.msra.mxu0 %v187
    %370 = vmatprep.subr.mxu0 %v192
    %371 = vmatpush1.msra.mxu0 %v191
    %372 = vmatprep.subr.mxu0 %v196
    %373 = vmatpush1.msra.mxu0 %v195
    %374 = vmatprep.subr.mxu0 %v200
    %375 = vmatpush1.msra.mxu0 %v199
    %376 = vmatprep.subr.mxu0 %v204
    %377 = vmatpush1.msra.mxu0 %v203
    %378 = vmatprep.subr.mxu0 %v208
    %379 = vmatpush1.msra.mxu0 %v207
    %380 = vmatprep.subr.mxu0 %v212
    %381 = vmatpush1.msra.mxu0 %v211
    %382 = vmatprep.subr.mxu0 %v216
    %383 = vmatpush1.msra.mxu0 %v215
    %384 = vmatprep.subr.mxu0 0.0
    %385 = vmatpush1.msra.mxu0 0.0
    %386 = vmatprep.subr.mxu0 0.0
    %387 = vmatpush1.msra.mxu0 0.0
    %388 = vmatprep.subr.mxu0 0.0
    %389 = vmatpush1.msra.mxu0 0.0
    %390 = vmatprep.subr.mxu0 0.0
    %391 = vmatpush1.msra.mxu0 0.0
    %392 = vmatprep.subr.mxu0 0.0
    %393 = vmatpush1.msra.mxu0 0.0
    %394 = vmatprep.subr.mxu0 0.0
    %395 = vmatpush1.msra.mxu0 0.0
    %396 = vmatprep.subr.mxu0 0.0
    %397 = vmatpush1.msra.mxu0 0.0
    %398 = vmatprep.subr.mxu0 0.0
    %399 = vmatpush1.msra.mxu0 0.0
    %400 = vmatprep.subr.mxu0 0.0
    %401 = vmatpush1.msra.mxu0 0.0
    %402 = vmatprep.subr.mxu0 0.0
    %403 = vmatpush1.msra.mxu0 0.0
    %404 = vmatprep.subr.mxu0 0.0
    %405 = vmatpush1.msra.mxu0 0.0
    %406 = vmatprep.subr.mxu0 0.0
    %407 = vmatpush1.msra.mxu0 0.0
    %408 = vmatprep.subr.mxu0 0.0
    %409 = vmatpush1.msra.mxu0 0.0
    %410 = vmatprep.subr.mxu0 0.0
    %411 = vmatpush1.msra.mxu0 0.0
    %412 = vmatprep.subr.mxu0 0.0
    %413 = vmatpush1.msra.mxu0 0.0
    %414 = vmatprep.subr.mxu0 0.0
    %415 = vmatpush1.msra.mxu0 0.0
    %416 = vmatprep.mubr.f32.mxu0 0.0
    %417 = vmatmul.mubr.f32.gmra.mrb[0].mxu0 %v145
    %v418 = vpop.f32.mrb[0].mxu0
    %v419 = vadd.f32 %v230, %v418
    %v420 = vpop.f32.mrb[0].mxu0
    %v421 = vadd.f32 %v234, %v420
    %422 = vmatprep.mubr.f32.mxu0 0.0
    %423 = vmatmul.mubr.f32.gmra.mrb[0].mxu0 %v146
    %v424 = vpop.f32.mrb[0].mxu0
    %v425 = vadd.f32 %v230, %v424
    %v426 = vpop.f32.mrb[0].mxu0
    %v427 = vadd.f32 %v234, %v426
    %428 = vmatprep.mubr.f32.mxu0 0.0
    %429 = vmatmul.mubr.f32.gmra.mrb[0].mxu0 %v147
    %v430 = vpop.f32.mrb[0].mxu0
    %v431 = vadd.f32 %v230, %v430
    %v432 = vpop.f32.mrb[0].mxu0
    %v433 = vadd.f32 %v234, %v432
    %434 = vmatprep.mubr.f32.mxu0 0.0
    %435 = vmatmul.mubr.f32.gmra.mrb[0].mxu0 %v148
    %v436 = vpop.f32.mrb[0].mxu0
    %v437 = vadd.f32 %v230, %v436
    %v438 = vpop.f32.mrb[0].mxu0
    %v439 = vadd.f32 %v234, %v438
    %440 = vmatprep.mubr.f32.mxu0 0.0
    %441 = vmatmul.mubr.f32.gmra.mrb[0].mxu0 %v149
    %v442 = vpop.f32.mrb[0].mxu0
    %v443 = vadd.f32 %v230, %v442
    %v444 = vpop.f32.mrb[0].mxu0
    %v445 = vadd.f32 %v234, %v444
    %446 = vmatprep.mubr.f32.mxu0 0.0
    %447 = vmatmul.mubr.f32.gmra.mrb[0].mxu0 %v150
    %v448 = vpop.f32.mrb[0].mxu0
    %v449 = vadd.f32 %v230, %v448
    %v450 = vpop.f32.mrb[0].mxu0
    %v451 = vadd.f32 %v234, %v450
    %452 = vmatprep.mubr.f32.mxu0 0.0
    %453 = vmatmul.mubr.f32.gmra.mrb[0].mxu0 %v151
    %v454 = vpop.f32.mrb[0].mxu0
    %v455 = vadd.f32 %v230, %v454
    %v456 = vpop.f32.mrb[0].mxu0
    %v457 = vadd.f32 %v234, %v456
    %458 = vmatprep.mubr.f32.mxu0 0.0
    %459 = vmatmul.mubr.f32.gmra.mrb[0].mxu0 %v152
    %v460 = vpop.f32.mrb[0].mxu0
    %v461 = vadd.f32 %v230, %v460
    %v462 = vpop.f32.mrb[0].mxu0
    %v463 = vadd.f32 %v234, %v462
    %464 = vdwg.mxu0
    %465 = vst [vmem:[#allocation2] sm:$0xff] %v306
    %466 = vst [vmem:[#allocation2 + $0x8] sm:$0xff] %v308
    %467 = vst [vmem:[#allocation2 + $0x10] sm:$0xff] %v419
    %468 = vst [vmem:[#allocation2 + $0x18] sm:$0xff] %v421
    %469 = vst [vmem:[#allocation2 + $0x20] sm:$0xff] %v312
    %470 = vst [vmem:[#allocation2 + $0x28] sm:$0xff] %v314
    %471 = vst [vmem:[#allocation2 + $0x30] sm:$0xff] %v425
    %472 = vst [vmem:[#allocation2 + $0x38] sm:$0xff] %v427
    %473 = vst [vmem:[#allocation2 + $0x40] sm:$0xff] %v318
    %474 = vst [vmem:[#allocation2 + $0x48] sm:$0xff] %v320
    %475 = vst [vmem:[#allocation2 + $0x50] sm:$0xff] %v431
    %476 = vst [vmem:[#allocation2 + $0x58] sm:$0xff] %v433
    %477 = vst [vmem:[#allocation2 + $0x60] sm:$0xff] %v324
    %478 = vst [vmem:[#allocation2 + $0x68] sm:$0xff] %v326
    %479 = vst [vmem:[#allocation2 + $0x70] sm:$0xff] %v437
    %480 = vst [vmem:[#allocation2 + $0x78] sm:$0xff] %v439
    %481 = vst [vmem:[#allocation2 + $0x80] sm:$0xff] %v330
    %482 = vst [vmem:[#allocation2 + $0x88] sm:$0xff] %v332
    %483 = vst [vmem:[#allocation2 + $0x90] sm:$0xff] %v443
    %484 = vst [vmem:[#allocation2 + $0x98] sm:$0xff] %v445
    %485 = vst [vmem:[#allocation2 + $0xa0] sm:$0xff] %v336
    %486 = vst [vmem:[#allocation2 + $0xa8] sm:$0xff] %v338
    %487 = vst [vmem:[#allocation2 + $0xb0] sm:$0xff] %v449
    %488 = vst [vmem:[#allocation2 + $0xb8] sm:$0xff] %v451
    %489 = vst [vmem:[#allocation2 + $0xc0] sm:$0xff] %v342
    %490 = vst [vmem:[#allocation2 + $0xc8] sm:$0xff] %v344
    %491 = vst [vmem:[#allocation2 + $0xd0] sm:$0xff] %v455
    %492 = vst [vmem:[#allocation2 + $0xd8] sm:$0xff] %v457
    %493 = vst [vmem:[#allocation2 + $0xe0] sm:$0xff] %v348
    %494 = vst [vmem:[#allocation2 + $0xe8] sm:$0xff] %v350
    %495 = vst [vmem:[#allocation2 + $0xf0] sm:$0xff] %v461
    %496 = vst [vmem:[#allocation2 + $0xf8] sm:$0xff] %v463
    %v497 = vld [vmem:[#allocation7] sm:$0xff]
    %v498 = vld [vmem:[#allocation7 + $0x8] sm:$0xff]
    %v499 = vld [vmem:[#allocation7 + $0x10] sm:$0xff]
    %v500 = vld [vmem:[#allocation7 + $0x18] sm:$0xff]
    %v501 = vld [vmem:[#allocation7 + $0x20] sm:$0xff]
    %v502 = vld [vmem:[#allocation7 + $0x28] sm:$0xff]
    %v503 = vld [vmem:[#allocation7 + $0x30] sm:$0xff]
    %v504 = vld [vmem:[#allocation7 + $0x38] sm:$0xff]
    %v505 = vld [vmem:[#allocation7 + $0x40] sm:$0xff]
    %v506 = vld [vmem:[#allocation7 + $0x48] sm:$0xff]
    %v507 = vld [vmem:[#allocation7 + $0x50] sm:$0xff]
    %v508 = vld [vmem:[#allocation7 + $0x58] sm:$0xff]
    %v509 = vld [vmem:[#allocation7 + $0x60] sm:$0xff]
    %v510 = vld [vmem:[#allocation7 + $0x68] sm:$0xff]
    %v511 = vld [vmem:[#allocation7 + $0x70] sm:$0xff]
    %v512 = vld [vmem:[#allocation7 + $0x78] sm:$0xff]
    %v513 = vld [vmem:[#allocation7 + $0x80] sm:$0xff]
    %v514 = vld [vmem:[#allocation7 + $0x88] sm:$0xff]
    %v515 = vld [vmem:[#allocation7 + $0x90] sm:$0xff]
    %v516 = vld [vmem:[#allocation7 + $0x98] sm:$0xff]
    %v517 = vld [vmem:[#allocation7 + $0xa0] sm:$0xff]
    %v518 = vld [vmem:[#allocation7 + $0xa8] sm:$0xff]
    %v519 = vld [vmem:[#allocation7 + $0xb0] sm:$0xff]
    %v520 = vld [vmem:[#allocation7 + $0xb8] sm:$0xff]
    %v521 = vld [vmem:[#allocation7 + $0xc0] sm:$0xff]
    %v522 = vld [vmem:[#allocation7 + $0xc8] sm:$0xff]
    %v523 = vld [vmem:[#allocation7 + $0xd0] sm:$0xff]
    %v524 = vld [vmem:[#allocation7 + $0xd8] sm:$0xff]
    %v525 = vld [vmem:[#allocation7 + $0xe0] sm:$0xff]
    %v526 = vld [vmem:[#allocation7 + $0xe8] sm:$0xff]
    %v527 = vld [vmem:[#allocation7 + $0xf0] sm:$0xff]
    %v528 = vld [vmem:[#allocation7 + $0xf8] sm:$0xff]
    %v529 = vld [vmem:[#allocation7 + $0x100] sm:$0xff]
    %v530 = vld [vmem:[#allocation7 + $0x108] sm:$0xff]
    %v531 = vld [vmem:[#allocation7 + $0x110] sm:$0xff]
    %v532 = vld [vmem:[#allocation7 + $0x118] sm:$0xff]
    %v533 = vld [vmem:[#allocation7 + $0x120] sm:$0xff]
    %v534 = vld [vmem:[#allocation7 + $0x128] sm:$0xff]
    %v535 = vld [vmem:[#allocation7 + $0x130] sm:$0xff]
    %v536 = vld [vmem:[#allocation7 + $0x138] sm:$0xff]
    %v537 = vld [vmem:[#allocation7 + $0x140] sm:$0xff]
    %v538 = vld [vmem:[#allocation7 + $0x148] sm:$0xff]
    %v539 = vld [vmem:[#allocation7 + $0x150] sm:$0xff]
    %v540 = vld [vmem:[#allocation7 + $0x158] sm:$0xff]
    %v541 = vld [vmem:[#allocation7 + $0x160] sm:$0xff]
    %v542 = vld [vmem:[#allocation7 + $0x168] sm:$0xff]
    %v543 = vld [vmem:[#allocation7 + $0x170] sm:$0xff]
    %v544 = vld [vmem:[#allocation7 + $0x178] sm:$0xff]
    %v545 = vld [vmem:[#allocation7 + $0x180] sm:$0xff]
    %v546 = vld [vmem:[#allocation7 + $0x188] sm:$0xff]
    %v547 = vld [vmem:[#allocation7 + $0x190] sm:$0xff]
    %v548 = vld [vmem:[#allocation7 + $0x198] sm:$0xff]
    %v549 = vld [vmem:[#allocation7 + $0x1a0] sm:$0xff]
    %v550 = vld [vmem:[#allocation7 + $0x1a8] sm:$0xff]
    %v551 = vld [vmem:[#allocation7 + $0x1b0] sm:$0xff]
    %v552 = vld [vmem:[#allocation7 + $0x1b8] sm:$0xff]
    %v553 = vld [vmem:[#allocation7 + $0x1c0] sm:$0xff]
    %v554 = vld [vmem:[#allocation7 + $0x1c8] sm:$0xff]
    %v555 = vld [vmem:[#allocation7 + $0x1d0] sm:$0xff]
    %v556 = vld [vmem:[#allocation7 + $0x1d8] sm:$0xff]
    %v557 = vld [vmem:[#allocation7 + $0x1e0] sm:$0xff]
    %v558 = vld [vmem:[#allocation7 + $0x1e8] sm:$0xff]
    %v559 = vld [vmem:[#allocation7 + $0x1f0] sm:$0xff]
    %v560 = vld [vmem:[#allocation7 + $0x1f8] sm:$0xff]
    %v561 = vld [vmem:[%s5] sm:$0xf]
    %v563 = vlaneseq
    %v564 = vshrl.u32 %v563, 7
    %v565 = vsub.s32 0, %v564
    %v566 = vrot.slane %v561, %v565
    %v567 = vlaneseq
    %v568 = vshrl.u32 %v567, 7
    %v569 = vsub.s32 1, %v568
    %v570 = vrot.slane %v561, %v569
    %v571 = vlaneseq
    %v572 = vshrl.u32 %v571, 7
    %v573 = vsub.s32 2, %v572
    %v574 = vrot.slane %v561, %v573
    %v575 = vlaneseq
    %v576 = vshrl.u32 %v575, 7
    %v577 = vsub.s32 3, %v576
    %v578 = vrot.slane %v561, %v577
    %583 = vmatprep.subr.mxu0 %v498
    %584 = vmatpush1.msra.mxu0 %v497
    %585 = vmatprep.subr.mxu0 %v502
    %586 = vmatpush1.msra.mxu0 %v501
    %587 = vmatprep.subr.mxu0 %v506
    %588 = vmatpush1.msra.mxu0 %v505
    %589 = vmatprep.subr.mxu0 %v510
    %590 = vmatpush1.msra.mxu0 %v509
    %591 = vmatprep.subr.mxu0 %v514
    %592 = vmatpush1.msra.mxu0 %v513
    %593 = vmatprep.subr.mxu0 %v518
    %594 = vmatpush1.msra.mxu0 %v517
    %595 = vmatprep.subr.mxu0 %v522
    %596 = vmatpush1.msra.mxu0 %v521
    %597 = vmatprep.subr.mxu0 %v526
    %598 = vmatpush1.msra.mxu0 %v525
    %599 = vmatprep.subr.mxu0 %v530
    %600 = vmatpush1.msra.mxu0 %v529
    %601 = vmatprep.subr.mxu0 %v534
    %602 = vmatpush1.msra.mxu0 %v533
    %603 = vmatprep.subr.mxu0 %v538
    %604 = vmatpush1.msra.mxu0 %v537
    %605 = vmatprep.subr.mxu0 %v542
    %606 = vmatpush1.msra.mxu0 %v541
    %607 = vmatprep.subr.mxu0 %v546
    %608 = vmatpush1.msra.mxu0 %v545
    %609 = vmatprep.subr.mxu0 %v550
    %610 = vmatpush1.msra.mxu0 %v549
    %611 = vmatprep.subr.mxu0 %v554
    %612 = vmatpush1.msra.mxu0 %v553
    %613 = vmatprep.subr.mxu0 %v558
    %614 = vmatpush1.msra.mxu0 %v557
    %615 = vmatprep.subr.mxu0 0.0
    %616 = vmatpush1.msra.mxu0 0.0
    %617 = vmatprep.subr.mxu0 0.0
    %618 = vmatpush1.msra.mxu0 0.0
    %619 = vmatprep.subr.mxu0 0.0
    %620 = vmatpush1.msra.mxu0 0.0
    %621 = vmatprep.subr.mxu0 0.0
    %622 = vmatpush1.msra.mxu0 0.0
    %623 = vmatprep.subr.mxu0 0.0
    %624 = vmatpush1.msra.mxu0 0.0
    %625 = vmatprep.subr.mxu0 0.0
    %626 = vmatpush1.msra.mxu0 0.0
    %627 = vmatprep.subr.mxu0 0.0
    %628 = vmatpush1.msra.mxu0 0.0
    %629 = vmatprep.subr.mxu0 0.0
    %630 = vmatpush1.msra.mxu0 0.0
    %631 = vmatprep.subr.mxu0 0.0
    %632 = vmatpush1.msra.mxu0 0.0
    %633 = vmatprep.subr.mxu0 0.0
    %634 = vmatpush1.msra.mxu0 0.0
    %635 = vmatprep.subr.mxu0 0.0
    %636 = vmatpush1.msra.mxu0 0.0
    %637 = vmatprep.subr.mxu0 0.0
    %638 = vmatpush1.msra.mxu0 0.0
    %639 = vmatprep.subr.mxu0 0.0
    %640 = vmatpush1.msra.mxu0 0.0
    %641 = vmatprep.subr.mxu0 0.0
    %642 = vmatpush1.msra.mxu0 0.0
    %643 = vmatprep.subr.mxu0 0.0
    %644 = vmatpush1.msra.mxu0 0.0
    %645 = vmatprep.subr.mxu0 0.0
    %646 = vmatpush1.msra.mxu0 0.0
    %647 = vmatprep.mubr.f32.mxu0 0.0
    %648 = vmatmul.mubr.f32.gmra.mrb[0].mxu0 %v145
    %v649 = vpop.f32.mrb[0].mxu0
    %v650 = vadd.f32 %v566, %v649
    %v651 = vpop.f32.mrb[0].mxu0
    %v652 = vadd.f32 %v570, %v651
    %653 = vmatprep.mubr.f32.mxu0 0.0
    %654 = vmatmul.mubr.f32.gmra.mrb[0].mxu0 %v146
    %v655 = vpop.f32.mrb[0].mxu0
    %v656 = vadd.f32 %v566, %v655
    %v657 = vpop.f32.mrb[0].mxu0
    %v658 = vadd.f32 %v570, %v657
    %659 = vmatprep.mubr.f32.mxu0 0.0
    %660 = vmatmul.mubr.f32.gmra.mrb[0].mxu0 %v147
    %v661 = vpop.f32.mrb[0].mxu0
    %v662 = vadd.f32 %v566, %v661
    %v663 = vpop.f32.mrb[0].mxu0
    %v664 = vadd.f32 %v570, %v663
    %665 = vmatprep.mubr.f32.mxu0 0.0
    %666 = vmatmul.mubr.f32.gmra.mrb[0].mxu0 %v148
    %v667 = vpop.f32.mrb[0].mxu0
    %v668 = vadd.f32 %v566, %v667
    %v669 = vpop.f32.mrb[0].mxu0
    %v670 = vadd.f32 %v570, %v669
    %671 = vmatprep.mubr.f32.mxu0 0.0
    %672 = vmatmul.mubr.f32.gmra.mrb[0].mxu0 %v149
    %v673 = vpop.f32.mrb[0].mxu0
    %v674 = vadd.f32 %v566, %v673
    %v675 = vpop.f32.mrb[0].mxu0
    %v676 = vadd.f32 %v570, %v675
    %677 = vmatprep.mubr.f32.mxu0 0.0
    %678 = vmatmul.mubr.f32.gmra.mrb[0].mxu0 %v150
    %v679 = vpop.f32.mrb[0].mxu0
    %v680 = vadd.f32 %v566, %v679
    %v681 = vpop.f32.mrb[0].mxu0
    %v682 = vadd.f32 %v570, %v681
    %683 = vmatprep.mubr.f32.mxu0 0.0
    %684 = vmatmul.mubr.f32.gmra.mrb[0].mxu0 %v151
    %v685 = vpop.f32.mrb[0].mxu0
    %v686 = vadd.f32 %v566, %v685
    %v687 = vpop.f32.mrb[0].mxu0
    %v688 = vadd.f32 %v570, %v687
    %689 = vmatprep.mubr.f32.mxu0 0.0
    %690 = vmatmul.mubr.f32.gmra.mrb[0].mxu0 %v152
    %v691 = vpop.f32.mrb[0].mxu0
    %v692 = vadd.f32 %v566, %v691
    %v693 = vpop.f32.mrb[0].mxu0
    %v694 = vadd.f32 %v570, %v693
    %695 = vdwg.mxu0
    %696 = vmatprep.subr.mxu0 %v500
    %697 = vmatpush1.msra.mxu0 %v499
    %698 = vmatprep.subr.mxu0 %v504
    %699 = vmatpush1.msra.mxu0 %v503
    %700 = vmatprep.subr.mxu0 %v508
    %701 = vmatpush1.msra.mxu0 %v507
    %702 = vmatprep.subr.mxu0 %v512
    %703 = vmatpush1.msra.mxu0 %v511
    %704 = vmatprep.subr.mxu0 %v516
    %705 = vmatpush1.msra.mxu0 %v515
    %706 = vmatprep.subr.mxu0 %v520
    %707 = vmatpush1.msra.mxu0 %v519
    %708 = vmatprep.subr.mxu0 %v524
    %709 = vmatpush1.msra.mxu0 %v523
    %710 = vmatprep.subr.mxu0 %v528
    %711 = vmatpush1.msra.mxu0 %v527
    %712 = vmatprep.subr.mxu0 %v532
    %713 = vmatpush1.msra.mxu0 %v531
    %714 = vmatprep.subr.mxu0 %v536
    %715 = vmatpush1.msra.mxu0 %v535
    %716 = vmatprep.subr.mxu0 %v540
    %717 = vmatpush1.msra.mxu0 %v539
    %718 = vmatprep.subr.mxu0 %v544
    %719 = vmatpush1.msra.mxu0 %v543
    %720 = vmatprep.subr.mxu0 %v548
    %721 = vmatpush1.msra.mxu0 %v547
    %722 = vmatprep.subr.mxu0 %v552
    %723 = vmatpush1.msra.mxu0 %v551
    %724 = vmatprep.subr.mxu0 %v556
    %725 = vmatpush1.msra.mxu0 %v555
    %726 = vmatprep.subr.mxu0 %v560
    %727 = vmatpush1.msra.mxu0 %v559
    %728 = vmatprep.subr.mxu0 0.0
    %729 = vmatpush1.msra.mxu0 0.0
    %730 = vmatprep.subr.mxu0 0.0
    %731 = vmatpush1.msra.mxu0 0.0
    %732 = vmatprep.subr.mxu0 0.0
    %733 = vmatpush1.msra.mxu0 0.0
    %734 = vmatprep.subr.mxu0 0.0
    %735 = vmatpush1.msra.mxu0 0.0
    %736 = vmatprep.subr.mxu0 0.0
    %737 = vmatpush1.msra.mxu0 0.0
    %738 = vmatprep.subr.mxu0 0.0
    %739 = vmatpush1.msra.mxu0 0.0
    %740 = vmatprep.subr.mxu0 0.0
    %741 = vmatpush1.msra.mxu0 0.0
    %742 = vmatprep.subr.mxu0 0.0
    %743 = vmatpush1.msra.mxu0 0.0
    %744 = vmatprep.subr.mxu0 0.0
    %745 = vmatpush1.msra.mxu0 0.0
    %746 = vmatprep.subr.mxu0 0.0
    %747 = vmatpush1.msra.mxu0 0.0
    %748 = vmatprep.subr.mxu0 0.0
    %749 = vmatpush1.msra.mxu0 0.0
    %750 = vmatprep.subr.mxu0 0.0
    %751 = vmatpush1.msra.mxu0 0.0
    %752 = vmatprep.subr.mxu0 0.0
    %753 = vmatpush1.msra.mxu0 0.0
    %754 = vmatprep.subr.mxu0 0.0
    %755 = vmatpush1.msra.mxu0 0.0
    %756 = vmatprep.subr.mxu0 0.0
    %757 = vmatpush1.msra.mxu0 0.0
    %758 = vmatprep.subr.mxu0 0.0
    %759 = vmatpush1.msra.mxu0 0.0
    %760 = vmatprep.mubr.f32.mxu0 0.0
    %761 = vmatmul.mubr.f32.gmra.mrb[0].mxu0 %v145
    %v762 = vpop.f32.mrb[0].mxu0
    %v763 = vadd.f32 %v574, %v762
    %v764 = vpop.f32.mrb[0].mxu0
    %v765 = vadd.f32 %v578, %v764
    %766 = vmatprep.mubr.f32.mxu0 0.0
    %767 = vmatmul.mubr.f32.gmra.mrb[0].mxu0 %v146
    %v768 = vpop.f32.mrb[0].mxu0
    %v769 = vadd.f32 %v574, %v768
    %v770 = vpop.f32.mrb[0].mxu0
    %v771 = vadd.f32 %v578, %v770
    %772 = vmatprep.mubr.f32.mxu0 0.0
    %773 = vmatmul.mubr.f32.gmra.mrb[0].mxu0 %v147
    %v774 = vpop.f32.mrb[0].mxu0
    %v775 = vadd.f32 %v574, %v774
    %v776 = vpop.f32.mrb[0].mxu0
    %v777 = vadd.f32 %v578, %v776
    %778 = vmatprep.mubr.f32.mxu0 0.0
    %779 = vmatmul.mubr.f32.gmra.mrb[0].mxu0 %v148
    %v780 = vpop.f32.mrb[0].mxu0
    %v781 = vadd.f32 %v574, %v780
    %v782 = vpop.f32.mrb[0].mxu0
    %v783 = vadd.f32 %v578, %v782
    %784 = vmatprep.mubr.f32.mxu0 0.0
    %785 = vmatmul.mubr.f32.gmra.mrb[0].mxu0 %v149
    %v786 = vpop.f32.mrb[0].mxu0
    %v787 = vadd.f32 %v574, %v786
    %v788 = vpop.f32.mrb[0].mxu0
    %v789 = vadd.f32 %v578, %v788
    %790 = vmatprep.mubr.f32.mxu0 0.0
    %791 = vmatmul.mubr.f32.gmra.mrb[0].mxu0 %v150
    %v792 = vpop.f32.mrb[0].mxu0
    %v793 = vadd.f32 %v574, %v792
    %v794 = vpop.f32.mrb[0].mxu0
    %v795 = vadd.f32 %v578, %v794
    %796 = vmatprep.mubr.f32.mxu0 0.0
    %797 = vmatmul.mubr.f32.gmra.mrb[0].mxu0 %v151
    %v798 = vpop.f32.mrb[0].mxu0
    %v799 = vadd.f32 %v574, %v798
    %v800 = vpop.f32.mrb[0].mxu0
    %v801 = vadd.f32 %v578, %v800
    %802 = vmatprep.mubr.f32.mxu0 0.0
    %803 = vmatmul.mubr.f32.gmra.mrb[0].mxu0 %v152
    %v804 = vpop.f32.mrb[0].mxu0
    %v805 = vadd.f32 %v574, %v804
    %v806 = vpop.f32.mrb[0].mxu0
    %v807 = vadd.f32 %v578, %v806
    %808 = vdwg.mxu0
    %809 = vst [vmem:[#allocation3] sm:$0xff] %v650
    %810 = vst [vmem:[#allocation3 + $0x8] sm:$0xff] %v652
    %811 = vst [vmem:[#allocation3 + $0x10] sm:$0xff] %v763
    %812 = vst [vmem:[#allocation3 + $0x18] sm:$0xff] %v765
    %813 = vst [vmem:[#allocation3 + $0x20] sm:$0xff] %v656
    %814 = vst [vmem:[#allocation3 + $0x28] sm:$0xff] %v658
    %815 = vst [vmem:[#allocation3 + $0x30] sm:$0xff] %v769
    %816 = vst [vmem:[#allocation3 + $0x38] sm:$0xff] %v771
    %817 = vst [vmem:[#allocation3 + $0x40] sm:$0xff] %v662
    %818 = vst [vmem:[#allocation3 + $0x48] sm:$0xff] %v664
    %819 = vst [vmem:[#allocation3 + $0x50] sm:$0xff] %v775
    %820 = vst [vmem:[#allocation3 + $0x58] sm:$0xff] %v777
    %821 = vst [vmem:[#allocation3 + $0x60] sm:$0xff] %v668
    %822 = vst [vmem:[#allocation3 + $0x68] sm:$0xff] %v670
    %823 = vst [vmem:[#allocation3 + $0x70] sm:$0xff] %v781
    %824 = vst [vmem:[#allocation3 + $0x78] sm:$0xff] %v783
    %825 = vst [vmem:[#allocation3 + $0x80] sm:$0xff] %v674
    %826 = vst [vmem:[#allocation3 + $0x88] sm:$0xff] %v676
    %827 = vst [vmem:[#allocation3 + $0x90] sm:$0xff] %v787
    %828 = vst [vmem:[#allocation3 + $0x98] sm:$0xff] %v789
    %829 = vst [vmem:[#allocation3 + $0xa0] sm:$0xff] %v680
    %830 = vst [vmem:[#allocation3 + $0xa8] sm:$0xff] %v682
    %831 = vst [vmem:[#allocation3 + $0xb0] sm:$0xff] %v793
    %832 = vst [vmem:[#allocation3 + $0xb8] sm:$0xff] %v795
    %833 = vst [vmem:[#allocation3 + $0xc0] sm:$0xff] %v686
    %834 = vst [vmem:[#allocation3 + $0xc8] sm:$0xff] %v688
    %835 = vst [vmem:[#allocation3 + $0xd0] sm:$0xff] %v799
    %836 = vst [vmem:[#allocation3 + $0xd8] sm:$0xff] %v801
    %837 = vst [vmem:[#allocation3 + $0xe0] sm:$0xff] %v692
    %838 = vst [vmem:[#allocation3 + $0xe8] sm:$0xff] %v694
    %839 = vst [vmem:[#allocation3 + $0xf0] sm:$0xff] %v805
    %840 = vst [vmem:[#allocation3 + $0xf8] sm:$0xff] %v807
    %v841 = vld [vmem:[%s1] sm:$0xff]
    %v842 = vld [vmem:[%s8] sm:$0xff]
    %v843 = vld [vmem:[%s9] sm:$0xff]
    %s844 = scalar_lea.vmem %s8, 8
    %v845 = vld [vmem:[%s844] sm:$0xff]
    %s846 = scalar_lea.vmem %s9, 8
    %v847 = vld [vmem:[%s846] sm:$0xff]
    %vm848 = vcmp.gt.s32.totalorder %v841, 0
    %vm849 = vcmp.gt.s32.totalorder %v841, 7
    %v850 = vld [vmem:[#allocation2] sm:$0xff]
    %v851 = vld [vmem:[#allocation2 + $0x8] sm:$0xff]
    %v852 = vld [vmem:[#allocation2 + $0x10] sm:$0xff]
    %v853 = vld [vmem:[#allocation2 + $0x18] sm:$0xff]
    %v854 = vld [vmem:[#allocation9] sm:$0xff]
    %v855 = vld [vmem:[#allocation9 + $0x8] sm:$0xff]
    %v856 = vld [vmem:[#allocation9 + $0x10] sm:$0xff]
    %v857 = vld [vmem:[#allocation9 + $0x18] sm:$0xff]
    %v858 = vld [vmem:[#allocation9 + $0x20] sm:$0xff]
    %v859 = vld [vmem:[#allocation9 + $0x28] sm:$0xff]
    %v860 = vld [vmem:[#allocation9 + $0x30] sm:$0xff]
    %v861 = vld [vmem:[#allocation9 + $0x38] sm:$0xff]
    %v862 = vld [vmem:[#allocation9 + $0x40] sm:$0xff]
    %v863 = vld [vmem:[#allocation9 + $0x48] sm:$0xff]
    %v864 = vld [vmem:[#allocation9 + $0x50] sm:$0xff]
    %v865 = vld [vmem:[#allocation9 + $0x58] sm:$0xff]
    %v866 = vld [vmem:[#allocation9 + $0x60] sm:$0xff]
    %v867 = vld [vmem:[#allocation9 + $0x68] sm:$0xff]
    %v868 = vld [vmem:[#allocation9 + $0x70] sm:$0xff]
    %v869 = vld [vmem:[#allocation9 + $0x78] sm:$0xff]
    %v870 = vld [vmem:[#allocation9 + $0x80] sm:$0xff]
    %v871 = vld [vmem:[#allocation9 + $0x88] sm:$0xff]
    %v872 = vld [vmem:[#allocation9 + $0x90] sm:$0xff]
    %v873 = vld [vmem:[#allocation9 + $0x98] sm:$0xff]
    %v874 = vld [vmem:[#allocation9 + $0xa0] sm:$0xff]
    %v875 = vld [vmem:[#allocation9 + $0xa8] sm:$0xff]
    %v876 = vld [vmem:[#allocation9 + $0xb0] sm:$0xff]
    %v877 = vld [vmem:[#allocation9 + $0xb8] sm:$0xff]
    %v878 = vld [vmem:[#allocation9 + $0xc0] sm:$0xff]
    %v879 = vld [vmem:[#allocation9 + $0xc8] sm:$0xff]
    %v880 = vld [vmem:[#allocation9 + $0xd0] sm:$0xff]
    %v881 = vld [vmem:[#allocation9 + $0xd8] sm:$0xff]
    %v882 = vld [vmem:[#allocation9 + $0xe0] sm:$0xff]
    %v883 = vld [vmem:[#allocation9 + $0xe8] sm:$0xff]
    %v884 = vld [vmem:[#allocation9 + $0xf0] sm:$0xff]
    %v885 = vld [vmem:[#allocation9 + $0xf8] sm:$0xff]
    %v886 = vld [vmem:[#allocation9 + $0x100] sm:$0xff]
    %v887 = vld [vmem:[#allocation9 + $0x108] sm:$0xff]
    %v888 = vld [vmem:[#allocation9 + $0x110] sm:$0xff]
    %v889 = vld [vmem:[#allocation9 + $0x118] sm:$0xff]
    %v890 = vld [vmem:[#allocation9 + $0x120] sm:$0xff]
    %v891 = vld [vmem:[#allocation9 + $0x128] sm:$0xff]
    %v892 = vld [vmem:[#allocation9 + $0x130] sm:$0xff]
    %v893 = vld [vmem:[#allocation9 + $0x138] sm:$0xff]
    %v894 = vld [vmem:[#allocation9 + $0x140] sm:$0xff]
    %v895 = vld [vmem:[#allocation9 + $0x148] sm:$0xff]
    %v896 = vld [vmem:[#allocation9 + $0x150] sm:$0xff]
    %v897 = vld [vmem:[#allocation9 + $0x158] sm:$0xff]
    %v898 = vld [vmem:[#allocation9 + $0x160] sm:$0xff]
    %v899 = vld [vmem:[#allocation9 + $0x168] sm:$0xff]
    %v900 = vld [vmem:[#allocation9 + $0x170] sm:$0xff]
    %v901 = vld [vmem:[#allocation9 + $0x178] sm:$0xff]
    %v902 = vld [vmem:[#allocation9 + $0x180] sm:$0xff]
    %v903 = vld [vmem:[#allocation9 + $0x188] sm:$0xff]
    %v904 = vld [vmem:[#allocation9 + $0x190] sm:$0xff]
    %v905 = vld [vmem:[#allocation9 + $0x198] sm:$0xff]
    %v906 = vld [vmem:[#allocation9 + $0x1a0] sm:$0xff]
    %v907 = vld [vmem:[#allocation9 + $0x1a8] sm:$0xff]
    %v908 = vld [vmem:[#allocation9 + $0x1b0] sm:$0xff]
    %v909 = vld [vmem:[#allocation9 + $0x1b8] sm:$0xff]
    %v910 = vld [vmem:[#allocation9 + $0x1c0] sm:$0xff]
    %v911 = vld [vmem:[#allocation9 + $0x1c8] sm:$0xff]
    %v912 = vld [vmem:[#allocation9 + $0x1d0] sm:$0xff]
    %v913 = vld [vmem:[#allocation9 + $0x1d8] sm:$0xff]
    %v914 = vld [vmem:[#allocation9 + $0x1e0] sm:$0xff]
    %v915 = vld [vmem:[#allocation9 + $0x1e8] sm:$0xff]
    %v916 = vld [vmem:[#allocation9 + $0x1f0] sm:$0xff]
    %v917 = vld [vmem:[#allocation9 + $0x1f8] sm:$0xff]
    %918 = vmatprep.subr.mxu0 %v855
    %919 = vmatpush1.msra.mxu0 %v854
    %920 = vmatprep.subr.mxu0 %v859
    %921 = vmatpush1.msra.mxu0 %v858
    %922 = vmatprep.subr.mxu0 %v863
    %923 = vmatpush1.msra.mxu0 %v862
    %924 = vmatprep.subr.mxu0 %v867
    %925 = vmatpush1.msra.mxu0 %v866
    %926 = vmatprep.subr.mxu0 %v871
    %927 = vmatpush1.msra.mxu0 %v870
    %928 = vmatprep.subr.mxu0 %v875
    %929 = vmatpush1.msra.mxu0 %v874
    %930 = vmatprep.subr.mxu0 %v879
    %931 = vmatpush1.msra.mxu0 %v878
    %932 = vmatprep.subr.mxu0 %v883
    %933 = vmatpush1.msra.mxu0 %v882
    %934 = vmatprep.subr.mxu0 %v887
    %935 = vmatpush1.msra.mxu0 %v886
    %936 = vmatprep.subr.mxu0 %v891
    %937 = vmatpush1.msra.mxu0 %v890
    %938 = vmatprep.subr.mxu0 %v895
    %939 = vmatpush1.msra.mxu0 %v894
    %940 = vmatprep.subr.mxu0 %v899
    %941 = vmatpush1.msra.mxu0 %v898
    %942 = vmatprep.subr.mxu0 %v903
    %943 = vmatpush1.msra.mxu0 %v902
    %944 = vmatprep.subr.mxu0 %v907
    %945 = vmatpush1.msra.mxu0 %v906
    %946 = vmatprep.subr.mxu0 %v911
    %947 = vmatpush1.msra.mxu0 %v910
    %948 = vmatprep.subr.mxu0 %v915
    %949 = vmatpush1.msra.mxu0 %v914
    %950 = vmatprep.subr.mxu0 0.0
    %951 = vmatpush1.msra.mxu0 0.0
    %952 = vmatprep.subr.mxu0 0.0
    %953 = vmatpush1.msra.mxu0 0.0
    %954 = vmatprep.subr.mxu0 0.0
    %955 = vmatpush1.msra.mxu0 0.0
    %956 = vmatprep.subr.mxu0 0.0
    %957 = vmatpush1.msra.mxu0 0.0
    %958 = vmatprep.subr.mxu0 0.0
    %959 = vmatpush1.msra.mxu0 0.0
    %960 = vmatprep.subr.mxu0 0.0
    %961 = vmatpush1.msra.mxu0 0.0
    %962 = vmatprep.subr.mxu0 0.0
    %963 = vmatpush1.msra.mxu0 0.0
    %964 = vmatprep.subr.mxu0 0.0
    %965 = vmatpush1.msra.mxu0 0.0
    %966 = vmatprep.subr.mxu0 0.0
    %967 = vmatpush1.msra.mxu0 0.0
    %968 = vmatprep.subr.mxu0 0.0
    %969 = vmatpush1.msra.mxu0 0.0
    %970 = vmatprep.subr.mxu0 0.0
    %971 = vmatpush1.msra.mxu0 0.0
    %972 = vmatprep.subr.mxu0 0.0
    %973 = vmatpush1.msra.mxu0 0.0
    %974 = vmatprep.subr.mxu0 0.0
    %975 = vmatpush1.msra.mxu0 0.0
    %976 = vmatprep.subr.mxu0 0.0
    %977 = vmatpush1.msra.mxu0 0.0
    %978 = vmatprep.subr.mxu0 0.0
    %979 = vmatpush1.msra.mxu0 0.0
    %980 = vmatprep.subr.mxu0 0.0
    %981 = vmatpush1.msra.mxu0 0.0
    %982 = vmatprep.mubr.f32.mxu0 0.0
    %983 = vmatmul.mubr.f32.gmra.mrb[0].mxu0 %v842
    %v984 = vpop.f32.mrb[0].mxu0
    %v985 = vadd.f32 0.0, %v984
    %v986 = vpop.f32.mrb[0].mxu0
    %v987 = vadd.f32 0.0, %v986
    %988 = vdwg.mxu0
    %989 = vmatprep.subr.mxu0 %v857
    %990 = vmatpush1.msra.mxu0 %v856
    %991 = vmatprep.subr.mxu0 %v861
    %992 = vmatpush1.msra.mxu0 %v860
    %993 = vmatprep.subr.mxu0 %v865
    %994 = vmatpush1.msra.mxu0 %v864
    %995 = vmatprep.subr.mxu0 %v869
    %996 = vmatpush1.msra.mxu0 %v868
    %997 = vmatprep.subr.mxu0 %v873
    %998 = vmatpush1.msra.mxu0 %v872
    %999 = vmatprep.subr.mxu0 %v877
    %1000 = vmatpush1.msra.mxu0 %v876
    %1001 = vmatprep.subr.mxu0 %v881
    %1002 = vmatpush1.msra.mxu0 %v880
    %1003 = vmatprep.subr.mxu0 %v885
    %1004 = vmatpush1.msra.mxu0 %v884
    %1005 = vmatprep.subr.mxu0 %v889
    %1006 = vmatpush1.msra.mxu0 %v888
    %1007 = vmatprep.subr.mxu0 %v893
    %1008 = vmatpush1.msra.mxu0 %v892
    %1009 = vmatprep.subr.mxu0 %v897
    %1010 = vmatpush1.msra.mxu0 %v896
    %1011 = vmatprep.subr.mxu0 %v901
    %1012 = vmatpush1.msra.mxu0 %v900
    %1013 = vmatprep.subr.mxu0 %v905
    %1014 = vmatpush1.msra.mxu0 %v904
    %1015 = vmatprep.subr.mxu0 %v909
    %1016 = vmatpush1.msra.mxu0 %v908
    %1017 = vmatprep.subr.mxu0 %v913
    %1018 = vmatpush1.msra.mxu0 %v912
    %1019 = vmatprep.subr.mxu0 %v917
    %1020 = vmatpush1.msra.mxu0 %v916
    %1021 = vmatprep.subr.mxu0 0.0
    %1022 = vmatpush1.msra.mxu0 0.0
    %1023 = vmatprep.subr.mxu0 0.0
    %1024 = vmatpush1.msra.mxu0 0.0
    %1025 = vmatprep.subr.mxu0 0.0
    %1026 = vmatpush1.msra.mxu0 0.0
    %1027 = vmatprep.subr.mxu0 0.0
    %1028 = vmatpush1.msra.mxu0 0.0
    %1029 = vmatprep.subr.mxu0 0.0
    %1030 = vmatpush1.msra.mxu0 0.0
    %1031 = vmatprep.subr.mxu0 0.0
    %1032 = vmatpush1.msra.mxu0 0.0
    %1033 = vmatprep.subr.mxu0 0.0
    %1034 = vmatpush1.msra.mxu0 0.0
    %1035 = vmatprep.subr.mxu0 0.0
    %1036 = vmatpush1.msra.mxu0 0.0
    %1037 = vmatprep.subr.mxu0 0.0
    %1038 = vmatpush1.msra.mxu0 0.0
    %1039 = vmatprep.subr.mxu0 0.0
    %1040 = vmatpush1.msra.mxu0 0.0
    %1041 = vmatprep.subr.mxu0 0.0
    %1042 = vmatpush1.msra.mxu0 0.0
    %1043 = vmatprep.subr.mxu0 0.0
    %1044 = vmatpush1.msra.mxu0 0.0
    %1045 = vmatprep.subr.mxu0 0.0
    %1046 = vmatpush1.msra.mxu0 0.0
    %1047 = vmatprep.subr.mxu0 0.0
    %1048 = vmatpush1.msra.mxu0 0.0
    %1049 = vmatprep.subr.mxu0 0.0
    %1050 = vmatpush1.msra.mxu0 0.0
    %1051 = vmatprep.subr.mxu0 0.0
    %1052 = vmatpush1.msra.mxu0 0.0
    %1053 = vmatprep.mubr.f32.mxu0 0.0
    %1054 = vmatmul.mubr.f32.gmra.mrb[0].mxu0 %v842
    %v1055 = vpop.f32.mrb[0].mxu0
    %v1056 = vadd.f32 0.0, %v1055
    %v1057 = vpop.f32.mrb[0].mxu0
    %v1058 = vadd.f32 0.0, %v1057
    %1059 = vdwg.mxu0
    %v1060 = vadd.f32 %v850, %v985
    %v1061 = vadd.f32 %v851, %v987
    %v1062 = vadd.f32 %v852, %v1056
    %v1063 = vadd.f32 %v853, %v1058
    %v1064 = vxor.u32 %v1060, 2147483648
    %v1065 = vmul.f32 %v1064, 1.442695
    %v1066 = vpow.pop %v1065
    %v1067 = vadd.f32 %v1066, 1.0
    %v1068 = vrcp.pop %v1067
    %v1069 = vmul.f32 1.0, %v1068
    %v1070 = vxor.u32 %v1061, 2147483648
    %v1071 = vmul.f32 %v1070, 1.442695
    %v1072 = vpow.pop %v1071
    %v1073 = vadd.f32 %v1072, 1.0
    %v1074 = vrcp.pop %v1073
    %v1075 = vmul.f32 1.0, %v1074
    %v1076 = vtanh.pop %v1062
    %v1077 = vxor.u32 %v1063, 2147483648
    %v1078 = vmul.f32 %v1077, 1.442695
    %v1079 = vpow.pop %v1078
    %v1080 = vadd.f32 %v1079, 1.0
    %v1081 = vrcp.pop %v1080
    %v1082 = vmul.f32 1.0, %v1081
    %v1083 = vmul.f32 %v1075, %v843
    %v1084 = vmul.f32 %v1069, %v1076
    %v1085 = vadd.f32 %v1083, %v1084
    %v1086 = vtanh.pop %v1085
    %v1087 = vmul.f32 %v1082, %v1086
    %v1088 = vsel %vm848, 1, 0
    %1089 = vset.pattern.permute.xlu0 0
    %1090 = vperm.xlu0 %1089, %v1088
    %v1091 = vpop.permute.xlu0 %1090
    %vm1092 = vcmp.eq.s32.totalorder %v1091, 1
    %v1093 = vsel %vm1092, %v1087, %v842
    %v1094 = vsel %vm1092, %v1085, %v843
    %v1095 = vsel %vm1092, %v1087, 0.0
    %1096 = vst [vmem:[#allocation12] sm:$0xff] %v1095
    %v1097 = vld [vmem:[#allocation3 + $0xe0] sm:$0xff]
    %v1098 = vld [vmem:[#allocation3 + $0xe8] sm:$0xff]
    %v1099 = vld [vmem:[#allocation3 + $0xf0] sm:$0xff]
    %v1100 = vld [vmem:[#allocation3 + $0xf8] sm:$0xff]
    %v1101 = vld [vmem:[#allocation10] sm:$0xff]
    %v1102 = vld [vmem:[#allocation10 + $0x8] sm:$0xff]
    %v1103 = vld [vmem:[#allocation10 + $0x10] sm:$0xff]
    %v1104 = vld [vmem:[#allocation10 + $0x18] sm:$0xff]
    %v1105 = vld [vmem:[#allocation10 + $0x20] sm:$0xff]
    %v1106 = vld [vmem:[#allocation10 + $0x28] sm:$0xff]
    %v1107 = vld [vmem:[#allocation10 + $0x30] sm:$0xff]
    %v1108 = vld [vmem:[#allocation10 + $0x38] sm:$0xff]
    %v1109 = vld [vmem:[#allocation10 + $0x40] sm:$0xff]
    %v1110 = vld [vmem:[#allocation10 + $0x48] sm:$0xff]
    %v1111 = vld [vmem:[#allocation10 + $0x50] sm:$0xff]
    %v1112 = vld [vmem:[#allocation10 + $0x58] sm:$0xff]
    %v1113 = vld [vmem:[#allocation10 + $0x60] sm:$0xff]
    %v1114 = vld [vmem:[#allocation10 + $0x68] sm:$0xff]
    %v1115 = vld [vmem:[#allocation10 + $0x70] sm:$0xff]
    %v1116 = vld [vmem:[#allocation10 + $0x78] sm:$0xff]
    %v1117 = vld [vmem:[#allocation10 + $0x80] sm:$0xff]
    %v1118 = vld [vmem:[#allocation10 + $0x88] sm:$0xff]
    %v1119 = vld [vmem:[#allocation10 + $0x90] sm:$0xff]
    %v1120 = vld [vmem:[#allocation10 + $0x98] sm:$0xff]
    %v1121 = vld [vmem:[#allocation10 + $0xa0] sm:$0xff]
    %v1122 = vld [vmem:[#allocation10 + $0xa8] sm:$0xff]
    %v1123 = vld [vmem:[#allocation10 + $0xb0] sm:$0xff]
    %v1124 = vld [vmem:[#allocation10 + $0xb8] sm:$0xff]
    %v1125 = vld [vmem:[#allocation10 + $0xc0] sm:$0xff]
    %v1126 = vld [vmem:[#allocation10 + $0xc8] sm:$0xff]
    %v1127 = vld [vmem:[#allocation10 + $0xd0] sm:$0xff]
    %v1128 = vld [vmem:[#allocation10 + $0xd8] sm:$0xff]
    %v1129 = vld [vmem:[#allocation10 + $0xe0] sm:$0xff]
    %v1130 = vld [vmem:[#allocation10 + $0xe8] sm:$0xff]
    %v1131 = vld [vmem:[#allocation10 + $0xf0] sm:$0xff]
    %v1132 = vld [vmem:[#allocation10 + $0xf8] sm:$0xff]
    %v1133 = vld [vmem:[#allocation10 + $0x100] sm:$0xff]
    %v1134 = vld [vmem:[#allocation10 + $0x108] sm:$0xff]
    %v1135 = vld [vmem:[#allocation10 + $0x110] sm:$0xff]
    %v1136 = vld [vmem:[#allocation10 + $0x118] sm:$0xff]
    %v1137 = vld [vmem:[#allocation10 + $0x120] sm:$0xff]
    %v1138 = vld [vmem:[#allocation10 + $0x128] sm:$0xff]
    %v1139 = vld [vmem:[#allocation10 + $0x130] sm:$0xff]
    %v1140 = vld [vmem:[#allocation10 + $0x138] sm:$0xff]
    %v1141 = vld [vmem:[#allocation10 + $0x140] sm:$0xff]
    %v1142 = vld [vmem:[#allocation10 + $0x148] sm:$0xff]
    %v1143 = vld [vmem:[#allocation10 + $0x150] sm:$0xff]
    %v1144 = vld [vmem:[#allocation10 + $0x158] sm:$0xff]
    %v1145 = vld [vmem:[#allocation10 + $0x160] sm:$0xff]
    %v1146 = vld [vmem:[#allocation10 + $0x168] sm:$0xff]
    %v1147 = vld [vmem:[#allocation10 + $0x170] sm:$0xff]
    %v1148 = vld [vmem:[#allocation10 + $0x178] sm:$0xff]
    %v1149 = vld [vmem:[#allocation10 + $0x180] sm:$0xff]
    %v1150 = vld [vmem:[#allocation10 + $0x188] sm:$0xff]
    %v1151 = vld [vmem:[#allocation10 + $0x190] sm:$0xff]
    %v1152 = vld [vmem:[#allocation10 + $0x198] sm:$0xff]
    %v1153 = vld [vmem:[#allocation10 + $0x1a0] sm:$0xff]
    %v1154 = vld [vmem:[#allocation10 + $0x1a8] sm:$0xff]
    %v1155 = vld [vmem:[#allocation10 + $0x1b0] sm:$0xff]
    %v1156 = vld [vmem:[#allocation10 + $0x1b8] sm:$0xff]
    %v1157 = vld [vmem:[#allocation10 + $0x1c0] sm:$0xff]
    %v1158 = vld [vmem:[#allocation10 + $0x1c8] sm:$0xff]
    %v1159 = vld [vmem:[#allocation10 + $0x1d0] sm:$0xff]
    %v1160 = vld [vmem:[#allocation10 + $0x1d8] sm:$0xff]
    %v1161 = vld [vmem:[#allocation10 + $0x1e0] sm:$0xff]
    %v1162 = vld [vmem:[#allocation10 + $0x1e8] sm:$0xff]
    %v1163 = vld [vmem:[#allocation10 + $0x1f0] sm:$0xff]
    %v1164 = vld [vmem:[#allocation10 + $0x1f8] sm:$0xff]
    %1165 = vmatprep.subr.mxu0 %v1102
    %1166 = vmatpush1.msra.mxu0 %v1101
    %1167 = vmatprep.subr.mxu0 %v1106
    %1168 = vmatpush1.msra.mxu0 %v1105
    %1169 = vmatprep.subr.mxu0 %v1110
    %1170 = vmatpush1.msra.mxu0 %v1109
    %1171 = vmatprep.subr.mxu0 %v1114
    %1172 = vmatpush1.msra.mxu0 %v1113
    %1173 = vmatprep.subr.mxu0 %v1118
    %1174 = vmatpush1.msra.mxu0 %v1117
    %1175 = vmatprep.subr.mxu0 %v1122
    %1176 = vmatpush1.msra.mxu0 %v1121
    %1177 = vmatprep.subr.mxu0 %v1126
    %1178 = vmatpush1.msra.mxu0 %v1125
    %1179 = vmatprep.subr.mxu0 %v1130
    %1180 = vmatpush1.msra.mxu0 %v1129
    %1181 = vmatprep.subr.mxu0 %v1134
    %1182 = vmatpush1.msra.mxu0 %v1133
    %1183 = vmatprep.subr.mxu0 %v1138
    %1184 = vmatpush1.msra.mxu0 %v1137
    %1185 = vmatprep.subr.mxu0 %v1142
    %1186 = vmatpush1.msra.mxu0 %v1141
    %1187 = vmatprep.subr.mxu0 %v1146
    %1188 = vmatpush1.msra.mxu0 %v1145
    %1189 = vmatprep.subr.mxu0 %v1150
    %1190 = vmatpush1.msra.mxu0 %v1149
    %1191 = vmatprep.subr.mxu0 %v1154
    %1192 = vmatpush1.msra.mxu0 %v1153
    %1193 = vmatprep.subr.mxu0 %v1158
    %1194 = vmatpush1.msra.mxu0 %v1157
    %1195 = vmatprep.subr.mxu0 %v1162
    %1196 = vmatpush1.msra.mxu0 %v1161
    %1197 = vmatprep.subr.mxu0 0.0
    %1198 = vmatpush1.msra.mxu0 0.0
    %1199 = vmatprep.subr.mxu0 0.0
    %1200 = vmatpush1.msra.mxu0 0.0
    %1201 = vmatprep.subr.mxu0 0.0
    %1202 = vmatpush1.msra.mxu0 0.0
    %1203 = vmatprep.subr.mxu0 0.0
    %1204 = vmatpush1.msra.mxu0 0.0
    %1205 = vmatprep.subr.mxu0 0.0
    %1206 = vmatpush1.msra.mxu0 0.0
    %1207 = vmatprep.subr.mxu0 0.0
    %1208 = vmatpush1.msra.mxu0 0.0
    %1209 = vmatprep.subr.mxu0 0.0
    %1210 = vmatpush1.msra.mxu0 0.0
    %1211 = vmatprep.subr.mxu0 0.0
    %1212 = vmatpush1.msra.mxu0 0.0
    %1213 = vmatprep.subr.mxu0 0.0
    %1214 = vmatpush1.msra.mxu0 0.0
    %1215 = vmatprep.subr.mxu0 0.0
    %1216 = vmatpush1.msra.mxu0 0.0
    %1217 = vmatprep.subr.mxu0 0.0
    %1218 = vmatpush1.msra.mxu0 0.0
    %1219 = vmatprep.subr.mxu0 0.0
    %1220 = vmatpush1.msra.mxu0 0.0
    %1221 = vmatprep.subr.mxu0 0.0
    %1222 = vmatpush1.msra.mxu0 0.0
    %1223 = vmatprep.subr.mxu0 0.0
    %1224 = vmatpush1.msra.mxu0 0.0
    %1225 = vmatprep.subr.mxu0 0.0
    %1226 = vmatpush1.msra.mxu0 0.0
    %1227 = vmatprep.subr.mxu0 0.0
    %1228 = vmatpush1.msra.mxu0 0.0
    %1229 = vmatprep.mubr.f32.mxu0 0.0
    %1230 = vmatmul.mubr.f32.gmra.mrb[0].mxu0 %v845
    %v1231 = vpop.f32.mrb[0].mxu0
    %v1232 = vadd.f32 0.0, %v1231
    %v1233 = vpop.f32.mrb[0].mxu0
    %v1234 = vadd.f32 0.0, %v1233
    %1235 = vdwg.mxu0
    %1236 = vmatprep.subr.mxu0 %v1104
    %1237 = vmatpush1.msra.mxu0 %v1103
    %1238 = vmatprep.subr.mxu0 %v1108
    %1239 = vmatpush1.msra.mxu0 %v1107
    %1240 = vmatprep.subr.mxu0 %v1112
    %1241 = vmatpush1.msra.mxu0 %v1111
    %1242 = vmatprep.subr.mxu0 %v1116
    %1243 = vmatpush1.msra.mxu0 %v1115
    %1244 = vmatprep.subr.mxu0 %v1120
    %1245 = vmatpush1.msra.mxu0 %v1119
    %1246 = vmatprep.subr.mxu0 %v1124
    %1247 = vmatpush1.msra.mxu0 %v1123
    %1248 = vmatprep.subr.mxu0 %v1128
    %1249 = vmatpush1.msra.mxu0 %v1127
    %1250 = vmatprep.subr.mxu0 %v1132
    %1251 = vmatpush1.msra.mxu0 %v1131
    %1252 = vmatprep.subr.mxu0 %v1136
    %1253 = vmatpush1.msra.mxu0 %v1135
    %1254 = vmatprep.subr.mxu0 %v1140
    %1255 = vmatpush1.msra.mxu0 %v1139
    %1256 = vmatprep.subr.mxu0 %v1144
    %1257 = vmatpush1.msra.mxu0 %v1143
    %1258 = vmatprep.subr.mxu0 %v1148
    %1259 = vmatpush1.msra.mxu0 %v1147
    %1260 = vmatprep.subr.mxu0 %v1152
    %1261 = vmatpush1.msra.mxu0 %v1151
    %1262 = vmatprep.subr.mxu0 %v1156
    %1263 = vmatpush1.msra.mxu0 %v1155
    %1264 = vmatprep.subr.mxu0 %v1160
    %1265 = vmatpush1.msra.mxu0 %v1159
    %1266 = vmatprep.subr.mxu0 %v1164
    %1267 = vmatpush1.msra.mxu0 %v1163
    %1268 = vmatprep.subr.mxu0 0.0
    %1269 = vmatpush1.msra.mxu0 0.0
    %1270 = vmatprep.subr.mxu0 0.0
    %1271 = vmatpush1.msra.mxu0 0.0
    %1272 = vmatprep.subr.mxu0 0.0
    %1273 = vmatpush1.msra.mxu0 0.0
    %1274 = vmatprep.subr.mxu0 0.0
    %1275 = vmatpush1.msra.mxu0 0.0
    %1276 = vmatprep.subr.mxu0 0.0
    %1277 = vmatpush1.msra.mxu0 0.0
    %1278 = vmatprep.subr.mxu0 0.0
    %1279 = vmatpush1.msra.mxu0 0.0
    %1280 = vmatprep.subr.mxu0 0.0
    %1281 = vmatpush1.msra.mxu0 0.0
    %1282 = vmatprep.subr.mxu0 0.0
    %1283 = vmatpush1.msra.mxu0 0.0
    %1284 = vmatprep.subr.mxu0 0.0
    %1285 = vmatpush1.msra.mxu0 0.0
    %1286 = vmatprep.subr.mxu0 0.0
    %1287 = vmatpush1.msra.mxu0 0.0
    %1288 = vmatprep.subr.mxu0 0.0
    %1289 = vmatpush1.msra.mxu0 0.0
    %1290 = vmatprep.subr.mxu0 0.0
    %1291 = vmatpush1.msra.mxu0 0.0
    %1292 = vmatprep.subr.mxu0 0.0
    %1293 = vmatpush1.msra.mxu0 0.0
    %1294 = vmatprep.subr.mxu0 0.0
    %1295 = vmatpush1.msra.mxu0 0.0
    %1296 = vmatprep.subr.mxu0 0.0
    %1297 = vmatpush1.msra.mxu0 0.0
    %1298 = vmatprep.subr.mxu0 0.0
    %1299 = vmatpush1.msra.mxu0 0.0
    %1300 = vmatprep.mubr.f32.mxu0 0.0
    %1301 = vmatmul.mubr.f32.gmra.mrb[0].mxu0 %v845
    %v1302 = vpop.f32.mrb[0].mxu0
    %v1303 = vadd.f32 0.0, %v1302
    %v1304 = vpop.f32.mrb[0].mxu0
    %v1305 = vadd.f32 0.0, %v1304
    %1306 = vdwg.mxu0
    %v1307 = vadd.f32 %v1097, %v1232
    %v1308 = vadd.f32 %v1098, %v1234
    %v1309 = vadd.f32 %v1099, %v1303
    %v1310 = vadd.f32 %v1100, %v1305
    %v1311 = vxor.u32 %v1307, 2147483648
    %v1312 = vmul.f32 %v1311, 1.442695
    %v1313 = vpow.pop %v1312
    %v1314 = vadd.f32 %v1313, 1.0
    %v1315 = vrcp.pop %v1314
    %v1316 = vmul.f32 1.0, %v1315
    %v1317 = vxor.u32 %v1308, 2147483648
    %v1318 = vmul.f32 %v1317, 1.442695
    %v1319 = vpow.pop %v1318
    %v1320 = vadd.f32 %v1319, 1.0
    %v1321 = vrcp.pop %v1320
    %v1322 = vmul.f32 1.0, %v1321
    %v1323 = vtanh.pop %v1309
    %v1324 = vxor.u32 %v1310, 2147483648
    %v1325 = vmul.f32 %v1324, 1.442695
    %v1326 = vpow.pop %v1325
    %v1327 = vadd.f32 %v1326, 1.0
    %v1328 = vrcp.pop %v1327
    %v1329 = vmul.f32 1.0, %v1328
    %v1330 = vmul.f32 %v1322, %v847
    %v1331 = vmul.f32 %v1316, %v1323
    %v1332 = vadd.f32 %v1330, %v1331
    %v1333 = vtanh.pop %v1332
    %v1334 = vmul.f32 %v1329, %v1333
    %v1335 = vsel %vm849, 1, 0
    %1336 = vset.pattern.permute.xlu0 0
    %1337 = vperm.xlu0 %1336, %v1335
    %v1338 = vpop.permute.xlu0 %1337
    %vm1339 = vcmp.eq.s32.totalorder %v1338, 1
    %v1340 = vsel %vm1339, %v1334, %v845
    %v1341 = vsel %vm1339, %v1332, %v847
    %v1342 = vsel %vm1339, %v1334, 0.0
    %s1343 = scalar_lea.vmem [#allocation12], 112
    %1344 = vst [vmem:[%s1343 + $0x8] sm:$0xff] %v1342
    %vm1345 = vcmp.gt.s32.totalorder %v841, 1
    %vm1346 = vcmp.gt.s32.totalorder %v841, 6
    %v1347 = vld [vmem:[#allocation2 + $0x20] sm:$0xff]
    %v1348 = vld [vmem:[#allocation2 + $0x28] sm:$0xff]
    %v1349 = vld [vmem:[#allocation2 + $0x30] sm:$0xff]
    %v1350 = vld [vmem:[#allocation2 + $0x38] sm:$0xff]
    %v1351 = vld [vmem:[#allocation9] sm:$0xff]
    %v1352 = vld [vmem:[#allocation9 + $0x8] sm:$0xff]
    %v1353 = vld [vmem:[#allocation9 + $0x10] sm:$0xff]
    %v1354 = vld [vmem:[#allocation9 + $0x18] sm:$0xff]
    %v1355 = vld [vmem:[#allocation9 + $0x20] sm:$0xff]
    %v1356 = vld [vmem:[#allocation9 + $0x28] sm:$0xff]
    %v1357 = vld [vmem:[#allocation9 + $0x30] sm:$0xff]
    %v1358 = vld [vmem:[#allocation9 + $0x38] sm:$0xff]
    %v1359 = vld [vmem:[#allocation9 + $0x40] sm:$0xff]
    %v1360 = vld [vmem:[#allocation9 + $0x48] sm:$0xff]
    %v1361 = vld [vmem:[#allocation9 + $0x50] sm:$0xff]
    %v1362 = vld [vmem:[#allocation9 + $0x58] sm:$0xff]
    %v1363 = vld [vmem:[#allocation9 + $0x60] sm:$0xff]
    %v1364 = vld [vmem:[#allocation9 + $0x68] sm:$0xff]
    %v1365 = vld [vmem:[#allocation9 + $0x70] sm:$0xff]
    %v1366 = vld [vmem:[#allocation9 + $0x78] sm:$0xff]
    %v1367 = vld [vmem:[#allocation9 + $0x80] sm:$0xff]
    %v1368 = vld [vmem:[#allocation9 + $0x88] sm:$0xff]
    %v1369 = vld [vmem:[#allocation9 + $0x90] sm:$0xff]
    %v1370 = vld [vmem:[#allocation9 + $0x98] sm:$0xff]
    %v1371 = vld [vmem:[#allocation9 + $0xa0] sm:$0xff]
    %v1372 = vld [vmem:[#allocation9 + $0xa8] sm:$0xff]
    %v1373 = vld [vmem:[#allocation9 + $0xb0] sm:$0xff]
    %v1374 = vld [vmem:[#allocation9 + $0xb8] sm:$0xff]
    %v1375 = vld [vmem:[#allocation9 + $0xc0] sm:$0xff]
    %v1376 = vld [vmem:[#allocation9 + $0xc8] sm:$0xff]
    %v1377 = vld [vmem:[#allocation9 + $0xd0] sm:$0xff]
    %v1378 = vld [vmem:[#allocation9 + $0xd8] sm:$0xff]
    %v1379 = vld [vmem:[#allocation9 + $0xe0] sm:$0xff]
    %v1380 = vld [vmem:[#allocation9 + $0xe8] sm:$0xff]
    %v1381 = vld [vmem:[#allocation9 + $0xf0] sm:$0xff]
    %v1382 = vld [vmem:[#allocation9 + $0xf8] sm:$0xff]
    %v1383 = vld [vmem:[#allocation9 + $0x100] sm:$0xff]
    %v1384 = vld [vmem:[#allocation9 + $0x108] sm:$0xff]
    %v1385 = vld [vmem:[#allocation9 + $0x110] sm:$0xff]
    %v1386 = vld [vmem:[#allocation9 + $0x118] sm:$0xff]
    %v1387 = vld [vmem:[#allocation9 + $0x120] sm:$0xff]
    %v1388 = vld [vmem:[#allocation9 + $0x128] sm:$0xff]
    %v1389 = vld [vmem:[#allocation9 + $0x130] sm:$0xff]
    %v1390 = vld [vmem:[#allocation9 + $0x138] sm:$0xff]
    %v1391 = vld [vmem:[#allocation9 + $0x140] sm:$0xff]
    %v1392 = vld [vmem:[#allocation9 + $0x148] sm:$0xff]
    %v1393 = vld [vmem:[#allocation9 + $0x150] sm:$0xff]
    %v1394 = vld [vmem:[#allocation9 + $0x158] sm:$0xff]
    %v1395 = vld [vmem:[#allocation9 + $0x160] sm:$0xff]
    %v1396 = vld [vmem:[#allocation9 + $0x168] sm:$0xff]
    %v1397 = vld [vmem:[#allocation9 + $0x170] sm:$0xff]
    %v1398 = vld [vmem:[#allocation9 + $0x178] sm:$0xff]
    %v1399 = vld [vmem:[#allocation9 + $0x180] sm:$0xff]
    %v1400 = vld [vmem:[#allocation9 + $0x188] sm:$0xff]
    %v1401 = vld [vmem:[#allocation9 + $0x190] sm:$0xff]
    %v1402 = vld [vmem:[#allocation9 + $0x198] sm:$0xff]
    %v1403 = vld [vmem:[#allocation9 + $0x1a0] sm:$0xff]
    %v1404 = vld [vmem:[#allocation9 + $0x1a8] sm:$0xff]
    %v1405 = vld [vmem:[#allocation9 + $0x1b0] sm:$0xff]
    %v1406 = vld [vmem:[#allocation9 + $0x1b8] sm:$0xff]
    %v1407 = vld [vmem:[#allocation9 + $0x1c0] sm:$0xff]
    %v1408 = vld [vmem:[#allocation9 + $0x1c8] sm:$0xff]
    %v1409 = vld [vmem:[#allocation9 + $0x1d0] sm:$0xff]
    %v1410 = vld [vmem:[#allocation9 + $0x1d8] sm:$0xff]
    %v1411 = vld [vmem:[#allocation9 + $0x1e0] sm:$0xff]
    %v1412 = vld [vmem:[#allocation9 + $0x1e8] sm:$0xff]
    %v1413 = vld [vmem:[#allocation9 + $0x1f0] sm:$0xff]
    %v1414 = vld [vmem:[#allocation9 + $0x1f8] sm:$0xff]
    %1415 = vmatprep.subr.mxu0 %v1352
    %1416 = vmatpush1.msra.mxu0 %v1351
    %1417 = vmatprep.subr.mxu0 %v1356
    %1418 = vmatpush1.msra.mxu0 %v1355
    %1419 = vmatprep.subr.mxu0 %v1360
    %1420 = vmatpush1.msra.mxu0 %v1359
    %1421 = vmatprep.subr.mxu0 %v1364
    %1422 = vmatpush1.msra.mxu0 %v1363
    %1423 = vmatprep.subr.mxu0 %v1368
    %1424 = vmatpush1.msra.mxu0 %v1367
    %1425 = vmatprep.subr.mxu0 %v1372
    %1426 = vmatpush1.msra.mxu0 %v1371
    %1427 = vmatprep.subr.mxu0 %v1376
    %1428 = vmatpush1.msra.mxu0 %v1375
    %1429 = vmatprep.subr.mxu0 %v1380
    %1430 = vmatpush1.msra.mxu0 %v1379
    %1431 = vmatprep.subr.mxu0 %v1384
    %1432 = vmatpush1.msra.mxu0 %v1383
    %1433 = vmatprep.subr.mxu0 %v1388
    %1434 = vmatpush1.msra.mxu0 %v1387
    %1435 = vmatprep.subr.mxu0 %v1392
    %1436 = vmatpush1.msra.mxu0 %v1391
    %1437 = vmatprep.subr.mxu0 %v1396
    %1438 = vmatpush1.msra.mxu0 %v1395
    %1439 = vmatprep.subr.mxu0 %v1400
    %1440 = vmatpush1.msra.mxu0 %v1399
    %1441 = vmatprep.subr.mxu0 %v1404
    %1442 = vmatpush1.msra.mxu0 %v1403
    %1443 = vmatprep.subr.mxu0 %v1408
    %1444 = vmatpush1.msra.mxu0 %v1407
    %1445 = vmatprep.subr.mxu0 %v1412
    %1446 = vmatpush1.msra.mxu0 %v1411
    %1447 = vmatprep.subr.mxu0 0.0
    %1448 = vmatpush1.msra.mxu0 0.0
    %1449 = vmatprep.subr.mxu0 0.0
    %1450 = vmatpush1.msra.mxu0 0.0
    %1451 = vmatprep.subr.mxu0 0.0
    %1452 = vmatpush1.msra.mxu0 0.0
    %1453 = vmatprep.subr.mxu0 0.0
    %1454 = vmatpush1.msra.mxu0 0.0
    %1455 = vmatprep.subr.mxu0 0.0
    %1456 = vmatpush1.msra.mxu0 0.0
    %1457 = vmatprep.subr.mxu0 0.0
    %1458 = vmatpush1.msra.mxu0 0.0
    %1459 = vmatprep.subr.mxu0 0.0
    %1460 = vmatpush1.msra.mxu0 0.0
    %1461 = vmatprep.subr.mxu0 0.0
    %1462 = vmatpush1.msra.mxu0 0.0
    %1463 = vmatprep.subr.mxu0 0.0
    %1464 = vmatpush1.msra.mxu0 0.0
    %1465 = vmatprep.subr.mxu0 0.0
    %1466 = vmatpush1.msra.mxu0 0.0
    %1467 = vmatprep.subr.mxu0 0.0
    %1468 = vmatpush1.msra.mxu0 0.0
    %1469 = vmatprep.subr.mxu0 0.0
    %1470 = vmatpush1.msra.mxu0 0.0
    %1471 = vmatprep.subr.mxu0 0.0
    %1472 = vmatpush1.msra.mxu0 0.0
    %1473 = vmatprep.subr.mxu0 0.0
    %1474 = vmatpush1.msra.mxu0 0.0
    %1475 = vmatprep.subr.mxu0 0.0
    %1476 = vmatpush1.msra.mxu0 0.0
    %1477 = vmatprep.subr.mxu0 0.0
    %1478 = vmatpush1.msra.mxu0 0.0
    %1479 = vmatprep.mubr.f32.mxu0 0.0
    %1480 = vmatmul.mubr.f32.gmra.mrb[0].mxu0 %v1093
    %v1481 = vpop.f32.mrb[0].mxu0
    %v1482 = vadd.f32 0.0, %v1481
    %v1483 = vpop.f32.mrb[0].mxu0
    %v1484 = vadd.f32 0.0, %v1483
    %1485 = vdwg.mxu0
    %1486 = vmatprep.subr.mxu0 %v1354
    %1487 = vmatpush1.msra.mxu0 %v1353
    %1488 = vmatprep.subr.mxu0 %v1358
    %1489 = vmatpush1.msra.mxu0 %v1357
    %1490 = vmatprep.subr.mxu0 %v1362
    %1491 = vmatpush1.msra.mxu0 %v1361
    %1492 = vmatprep.subr.mxu0 %v1366
    %1493 = vmatpush1.msra.mxu0 %v1365
    %1494 = vmatprep.subr.mxu0 %v1370
    %1495 = vmatpush1.msra.mxu0 %v1369
    %1496 = vmatprep.subr.mxu0 %v1374
    %1497 = vmatpush1.msra.mxu0 %v1373
    %1498 = vmatprep.subr.mxu0 %v1378
    %1499 = vmatpush1.msra.mxu0 %v1377
    %1500 = vmatprep.subr.mxu0 %v1382
    %1501 = vmatpush1.msra.mxu0 %v1381
    %1502 = vmatprep.subr.mxu0 %v1386
    %1503 = vmatpush1.msra.mxu0 %v1385
    %1504 = vmatprep.subr.mxu0 %v1390
    %1505 = vmatpush1.msra.mxu0 %v1389
    %1506 = vmatprep.subr.mxu0 %v1394
    %1507 = vmatpush1.msra.mxu0 %v1393
    %1508 = vmatprep.subr.mxu0 %v1398
    %1509 = vmatpush1.msra.mxu0 %v1397
    %1510 = vmatprep.subr.mxu0 %v1402
    %1511 = vmatpush1.msra.mxu0 %v1401
    %1512 = vmatprep.subr.mxu0 %v1406
    %1513 = vmatpush1.msra.mxu0 %v1405
    %1514 = vmatprep.subr.mxu0 %v1410
    %1515 = vmatpush1.msra.mxu0 %v1409
    %1516 = vmatprep.subr.mxu0 %v1414
    %1517 = vmatpush1.msra.mxu0 %v1413
    %1518 = vmatprep.subr.mxu0 0.0
    %1519 = vmatpush1.msra.mxu0 0.0
    %1520 = vmatprep.subr.mxu0 0.0
    %1521 = vmatpush1.msra.mxu0 0.0
    %1522 = vmatprep.subr.mxu0 0.0
    %1523 = vmatpush1.msra.mxu0 0.0
    %1524 = vmatprep.subr.mxu0 0.0
    %1525 = vmatpush1.msra.mxu0 0.0
    %1526 = vmatprep.subr.mxu0 0.0
    %1527 = vmatpush1.msra.mxu0 0.0
    %1528 = vmatprep.subr.mxu0 0.0
    %1529 = vmatpush1.msra.mxu0 0.0
    %1530 = vmatprep.subr.mxu0 0.0
    %1531 = vmatpush1.msra.mxu0 0.0
    %1532 = vmatprep.subr.mxu0 0.0
    %1533 = vmatpush1.msra.mxu0 0.0
    %1534 = vmatprep.subr.mxu0 0.0
    %1535 = vmatpush1.msra.mxu0 0.0
    %1536 = vmatprep.subr.mxu0 0.0
    %1537 = vmatpush1.msra.mxu0 0.0
    %1538 = vmatprep.subr.mxu0 0.0
    %1539 = vmatpush1.msra.mxu0 0.0
    %1540 = vmatprep.subr.mxu0 0.0
    %1541 = vmatpush1.msra.mxu0 0.0
    %1542 = vmatprep.subr.mxu0 0.0
    %1543 = vmatpush1.msra.mxu0 0.0
    %1544 = vmatprep.subr.mxu0 0.0
    %1545 = vmatpush1.msra.mxu0 0.0
    %1546 = vmatprep.subr.mxu0 0.0
    %1547 = vmatpush1.msra.mxu0 0.0
    %1548 = vmatprep.subr.mxu0 0.0
    %1549 = vmatpush1.msra.mxu0 0.0
    %1550 = vmatprep.mubr.f32.mxu0 0.0
    %1551 = vmatmul.mubr.f32.gmra.mrb[0].mxu0 %v1093
    %v1552 = vpop.f32.mrb[0].mxu0
    %v1553 = vadd.f32 0.0, %v1552
    %v1554 = vpop.f32.mrb[0].mxu0
    %v1555 = vadd.f32 0.0, %v1554
    %1556 = vdwg.mxu0
    %v1557 = vadd.f32 %v1347, %v1482
    %v1558 = vadd.f32 %v1348, %v1484
    %v1559 = vadd.f32 %v1349, %v1553
    %v1560 = vadd.f32 %v1350, %v1555
    %v1561 = vxor.u32 %v1557, 2147483648
    %v1562 = vmul.f32 %v1561, 1.442695
    %v1563 = vpow.pop %v1562
    %v1564 = vadd.f32 %v1563, 1.0
    %v1565 = vrcp.pop %v1564
    %v1566 = vmul.f32 1.0, %v1565
    %v1567 = vxor.u32 %v1558, 2147483648
    %v1568 = vmul.f32 %v1567, 1.442695
    %v1569 = vpow.pop %v1568
    %v1570 = vadd.f32 %v1569, 1.0
    %v1571 = vrcp.pop %v1570
    %v1572 = vmul.f32 1.0, %v1571
    %v1573 = vtanh.pop %v1559
    %v1574 = vxor.u32 %v1560, 2147483648
    %v1575 = vmul.f32 %v1574, 1.442695
    %v1576 = vpow.pop %v1575
    %v1577 = vadd.f32 %v1576, 1.0
    %v1578 = vrcp.pop %v1577
    %v1579 = vmul.f32 1.0, %v1578
    %v1580 = vmul.f32 %v1572, %v1094
    %v1581 = vmul.f32 %v1566, %v1573
    %v1582 = vadd.f32 %v1580, %v1581
    %v1583 = vtanh.pop %v1582
    %v1584 = vmul.f32 %v1579, %v1583
    %v1585 = vsel %vm1345, 1, 0
    %1586 = vset.pattern.permute.xlu0 0
    %1587 = vperm.xlu0 %1586, %v1585
    %v1588 = vpop.permute.xlu0 %1587
    %vm1589 = vcmp.eq.s32.totalorder %v1588, 1
    %v1590 = vsel %vm1589, %v1584, %v1093
    %v1591 = vsel %vm1589, %v1582, %v1094
    %v1592 = vsel %vm1589, %v1584, 0.0
    %s1593 = scalar_lea.vmem [#allocation12], 16
    %1594 = vst [vmem:[%s1593] sm:$0xff] %v1592
    %v1595 = vld [vmem:[#allocation3 + $0xc0] sm:$0xff]
    %v1596 = vld [vmem:[#allocation3 + $0xc8] sm:$0xff]
    %v1597 = vld [vmem:[#allocation3 + $0xd0] sm:$0xff]
    %v1598 = vld [vmem:[#allocation3 + $0xd8] sm:$0xff]
    %v1599 = vld [vmem:[#allocation10] sm:$0xff]
    %v1600 = vld [vmem:[#allocation10 + $0x8] sm:$0xff]
    %v1601 = vld [vmem:[#allocation10 + $0x10] sm:$0xff]
    %v1602 = vld [vmem:[#allocation10 + $0x18] sm:$0xff]
    %v1603 = vld [vmem:[#allocation10 + $0x20] sm:$0xff]
    %v1604 = vld [vmem:[#allocation10 + $0x28] sm:$0xff]
    %v1605 = vld [vmem:[#allocation10 + $0x30] sm:$0xff]
    %v1606 = vld [vmem:[#allocation10 + $0x38] sm:$0xff]
    %v1607 = vld [vmem:[#allocation10 + $0x40] sm:$0xff]
    %v1608 = vld [vmem:[#allocation10 + $0x48] sm:$0xff]
    %v1609 = vld [vmem:[#allocation10 + $0x50] sm:$0xff]
    %v1610 = vld [vmem:[#allocation10 + $0x58] sm:$0xff]
    %v1611 = vld [vmem:[#allocation10 + $0x60] sm:$0xff]
    %v1612 = vld [vmem:[#allocation10 + $0x68] sm:$0xff]
    %v1613 = vld [vmem:[#allocation10 + $0x70] sm:$0xff]
    %v1614 = vld [vmem:[#allocation10 + $0x78] sm:$0xff]
    %v1615 = vld [vmem:[#allocation10 + $0x80] sm:$0xff]
    %v1616 = vld [vmem:[#allocation10 + $0x88] sm:$0xff]
    %v1617 = vld [vmem:[#allocation10 + $0x90] sm:$0xff]
    %v1618 = vld [vmem:[#allocation10 + $0x98] sm:$0xff]
    %v1619 = vld [vmem:[#allocation10 + $0xa0] sm:$0xff]
    %v1620 = vld [vmem:[#allocation10 + $0xa8] sm:$0xff]
    %v1621 = vld [vmem:[#allocation10 + $0xb0] sm:$0xff]
    %v1622 = vld [vmem:[#allocation10 + $0xb8] sm:$0xff]
    %v1623 = vld [vmem:[#allocation10 + $0xc0] sm:$0xff]
    %v1624 = vld [vmem:[#allocation10 + $0xc8] sm:$0xff]
    %v1625 = vld [vmem:[#allocation10 + $0xd0] sm:$0xff]
    %v1626 = vld [vmem:[#allocation10 + $0xd8] sm:$0xff]
    %v1627 = vld [vmem:[#allocation10 + $0xe0] sm:$0xff]
    %v1628 = vld [vmem:[#allocation10 + $0xe8] sm:$0xff]
    %v1629 = vld [vmem:[#allocation10 + $0xf0] sm:$0xff]
    %v1630 = vld [vmem:[#allocation10 + $0xf8] sm:$0xff]
    %v1631 = vld [vmem:[#allocation10 + $0x100] sm:$0xff]
    %v1632 = vld [vmem:[#allocation10 + $0x108] sm:$0xff]
    %v1633 = vld [vmem:[#allocation10 + $0x110] sm:$0xff]
    %v1634 = vld [vmem:[#allocation10 + $0x118] sm:$0xff]
    %v1635 = vld [vmem:[#allocation10 + $0x120] sm:$0xff]
    %v1636 = vld [vmem:[#allocation10 + $0x128] sm:$0xff]
    %v1637 = vld [vmem:[#allocation10 + $0x130] sm:$0xff]
    %v1638 = vld [vmem:[#allocation10 + $0x138] sm:$0xff]
    %v1639 = vld [vmem:[#allocation10 + $0x140] sm:$0xff]
    %v1640 = vld [vmem:[#allocation10 + $0x148] sm:$0xff]
    %v1641 = vld [vmem:[#allocation10 + $0x150] sm:$0xff]
    %v1642 = vld [vmem:[#allocation10 + $0x158] sm:$0xff]
    %v1643 = vld [vmem:[#allocation10 + $0x160] sm:$0xff]
    %v1644 = vld [vmem:[#allocation10 + $0x168] sm:$0xff]
    %v1645 = vld [vmem:[#allocation10 + $0x170] sm:$0xff]
    %v1646 = vld [vmem:[#allocation10 + $0x178] sm:$0xff]
    %v1647 = vld [vmem:[#allocation10 + $0x180] sm:$0xff]
    %v1648 = vld [vmem:[#allocation10 + $0x188] sm:$0xff]
    %v1649 = vld [vmem:[#allocation10 + $0x190] sm:$0xff]
    %v1650 = vld [vmem:[#allocation10 + $0x198] sm:$0xff]
    %v1651 = vld [vmem:[#allocation10 + $0x1a0] sm:$0xff]
    %v1652 = vld [vmem:[#allocation10 + $0x1a8] sm:$0xff]
    %v1653 = vld [vmem:[#allocation10 + $0x1b0] sm:$0xff]
    %v1654 = vld [vmem:[#allocation10 + $0x1b8] sm:$0xff]
    %v1655 = vld [vmem:[#allocation10 + $0x1c0] sm:$0xff]
    %v1656 = vld [vmem:[#allocation10 + $0x1c8] sm:$0xff]
    %v1657 = vld [vmem:[#allocation10 + $0x1d0] sm:$0xff]
    %v1658 = vld [vmem:[#allocation10 + $0x1d8] sm:$0xff]
    %v1659 = vld [vmem:[#allocation10 + $0x1e0] sm:$0xff]
    %v1660 = vld [vmem:[#allocation10 + $0x1e8] sm:$0xff]
    %v1661 = vld [vmem:[#allocation10 + $0x1f0] sm:$0xff]
    %v1662 = vld [vmem:[#allocation10 + $0x1f8] sm:$0xff]
    %1663 = vmatprep.subr.mxu0 %v1600
    %1664 = vmatpush1.msra.mxu0 %v1599
    %1665 = vmatprep.subr.mxu0 %v1604
    %1666 = vmatpush1.msra.mxu0 %v1603
    %1667 = vmatprep.subr.mxu0 %v1608
    %1668 = vmatpush1.msra.mxu0 %v1607
    %1669 = vmatprep.subr.mxu0 %v1612
    %1670 = vmatpush1.msra.mxu0 %v1611
    %1671 = vmatprep.subr.mxu0 %v1616
    %1672 = vmatpush1.msra.mxu0 %v1615
    %1673 = vmatprep.subr.mxu0 %v1620
    %1674 = vmatpush1.msra.mxu0 %v1619
    %1675 = vmatprep.subr.mxu0 %v1624
    %1676 = vmatpush1.msra.mxu0 %v1623
    %1677 = vmatprep.subr.mxu0 %v1628
    %1678 = vmatpush1.msra.mxu0 %v1627
    %1679 = vmatprep.subr.mxu0 %v1632
    %1680 = vmatpush1.msra.mxu0 %v1631
    %1681 = vmatprep.subr.mxu0 %v1636
    %1682 = vmatpush1.msra.mxu0 %v1635
    %1683 = vmatprep.subr.mxu0 %v1640
    %1684 = vmatpush1.msra.mxu0 %v1639
    %1685 = vmatprep.subr.mxu0 %v1644
    %1686 = vmatpush1.msra.mxu0 %v1643
    %1687 = vmatprep.subr.mxu0 %v1648
    %1688 = vmatpush1.msra.mxu0 %v1647
    %1689 = vmatprep.subr.mxu0 %v1652
    %1690 = vmatpush1.msra.mxu0 %v1651
    %1691 = vmatprep.subr.mxu0 %v1656
    %1692 = vmatpush1.msra.mxu0 %v1655
    %1693 = vmatprep.subr.mxu0 %v1660
    %1694 = vmatpush1.msra.mxu0 %v1659
    %1695 = vmatprep.subr.mxu0 0.0
    %1696 = vmatpush1.msra.mxu0 0.0
    %1697 = vmatprep.subr.mxu0 0.0
    %1698 = vmatpush1.msra.mxu0 0.0
    %1699 = vmatprep.subr.mxu0 0.0
    %1700 = vmatpush1.msra.mxu0 0.0
    %1701 = vmatprep.subr.mxu0 0.0
    %1702 = vmatpush1.msra.mxu0 0.0
    %1703 = vmatprep.subr.mxu0 0.0
    %1704 = vmatpush1.msra.mxu0 0.0
    %1705 = vmatprep.subr.mxu0 0.0
    %1706 = vmatpush1.msra.mxu0 0.0
    %1707 = vmatprep.subr.mxu0 0.0
    %1708 = vmatpush1.msra.mxu0 0.0
    %1709 = vmatprep.subr.mxu0 0.0
    %1710 = vmatpush1.msra.mxu0 0.0
    %1711 = vmatprep.subr.mxu0 0.0
    %1712 = vmatpush1.msra.mxu0 0.0
    %1713 = vmatprep.subr.mxu0 0.0
    %1714 = vmatpush1.msra.mxu0 0.0
    %1715 = vmatprep.subr.mxu0 0.0
    %1716 = vmatpush1.msra.mxu0 0.0
    %1717 = vmatprep.subr.mxu0 0.0
    %1718 = vmatpush1.msra.mxu0 0.0
    %1719 = vmatprep.subr.mxu0 0.0
    %1720 = vmatpush1.msra.mxu0 0.0
    %1721 = vmatprep.subr.mxu0 0.0
    %1722 = vmatpush1.msra.mxu0 0.0
    %1723 = vmatprep.subr.mxu0 0.0
    %1724 = vmatpush1.msra.mxu0 0.0
    %1725 = vmatprep.subr.mxu0 0.0
    %1726 = vmatpush1.msra.mxu0 0.0
    %1727 = vmatprep.mubr.f32.mxu0 0.0
    %1728 = vmatmul.mubr.f32.gmra.mrb[0].mxu0 %v1340
    %v1729 = vpop.f32.mrb[0].mxu0
    %v1730 = vadd.f32 0.0, %v1729
    %v1731 = vpop.f32.mrb[0].mxu0
    %v1732 = vadd.f32 0.0, %v1731
    %1733 = vdwg.mxu0
    %1734 = vmatprep.subr.mxu0 %v1602
    %1735 = vmatpush1.msra.mxu0 %v1601
    %1736 = vmatprep.subr.mxu0 %v1606
    %1737 = vmatpush1.msra.mxu0 %v1605
    %1738 = vmatprep.subr.mxu0 %v1610
    %1739 = vmatpush1.msra.mxu0 %v1609
    %1740 = vmatprep.subr.mxu0 %v1614
    %1741 = vmatpush1.msra.mxu0 %v1613
    %1742 = vmatprep.subr.mxu0 %v1618
    %1743 = vmatpush1.msra.mxu0 %v1617
    %1744 = vmatprep.subr.mxu0 %v1622
    %1745 = vmatpush1.msra.mxu0 %v1621
    %1746 = vmatprep.subr.mxu0 %v1626
    %1747 = vmatpush1.msra.mxu0 %v1625
    %1748 = vmatprep.subr.mxu0 %v1630
    %1749 = vmatpush1.msra.mxu0 %v1629
    %1750 = vmatprep.subr.mxu0 %v1634
    %1751 = vmatpush1.msra.mxu0 %v1633
    %1752 = vmatprep.subr.mxu0 %v1638
    %1753 = vmatpush1.msra.mxu0 %v1637
    %1754 = vmatprep.subr.mxu0 %v1642
    %1755 = vmatpush1.msra.mxu0 %v1641
    %1756 = vmatprep.subr.mxu0 %v1646
    %1757 = vmatpush1.msra.mxu0 %v1645
    %1758 = vmatprep.subr.mxu0 %v1650
    %1759 = vmatpush1.msra.mxu0 %v1649
    %1760 = vmatprep.subr.mxu0 %v1654
    %1761 = vmatpush1.msra.mxu0 %v1653
    %1762 = vmatprep.subr.mxu0 %v1658
    %1763 = vmatpush1.msra.mxu0 %v1657
    %1764 = vmatprep.subr.mxu0 %v1662
    %1765 = vmatpush1.msra.mxu0 %v1661
    %1766 = vmatprep.subr.mxu0 0.0
    %1767 = vmatpush1.msra.mxu0 0.0
    %1768 = vmatprep.subr.mxu0 0.0
    %1769 = vmatpush1.msra.mxu0 0.0
    %1770 = vmatprep.subr.mxu0 0.0
    %1771 = vmatpush1.msra.mxu0 0.0
    %1772 = vmatprep.subr.mxu0 0.0
    %1773 = vmatpush1.msra.mxu0 0.0
    %1774 = vmatprep.subr.mxu0 0.0
    %1775 = vmatpush1.msra.mxu0 0.0
    %1776 = vmatprep.subr.mxu0 0.0
    %1777 = vmatpush1.msra.mxu0 0.0
    %1778 = vmatprep.subr.mxu0 0.0
    %1779 = vmatpush1.msra.mxu0 0.0
    %1780 = vmatprep.subr.mxu0 0.0
    %1781 = vmatpush1.msra.mxu0 0.0
    %1782 = vmatprep.subr.mxu0 0.0
    %1783 = vmatpush1.msra.mxu0 0.0
    %1784 = vmatprep.subr.mxu0 0.0
    %1785 = vmatpush1.msra.mxu0 0.0
    %1786 = vmatprep.subr.mxu0 0.0
    %1787 = vmatpush1.msra.mxu0 0.0
    %1788 = vmatprep.subr.mxu0 0.0
    %1789 = vmatpush1.msra.mxu0 0.0
    %1790 = vmatprep.subr.mxu0 0.0
    %1791 = vmatpush1.msra.mxu0 0.0
    %1792 = vmatprep.subr.mxu0 0.0
    %1793 = vmatpush1.msra.mxu0 0.0
    %1794 = vmatprep.subr.mxu0 0.0
    %1795 = vmatpush1.msra.mxu0 0.0
    %1796 = vmatprep.subr.mxu0 0.0
    %1797 = vmatpush1.msra.mxu0 0.0
    %1798 = vmatprep.mubr.f32.mxu0 0.0
    %1799 = vmatmul.mubr.f32.gmra.mrb[0].mxu0 %v1340
    %v1800 = vpop.f32.mrb[0].mxu0
    %v1801 = vadd.f32 0.0, %v1800
    %v1802 = vpop.f32.mrb[0].mxu0
    %v1803 = vadd.f32 0.0, %v1802
    %1804 = vdwg.mxu0
    %v1805 = vadd.f32 %v1595, %v1730
    %v1806 = vadd.f32 %v1596, %v1732
    %v1807 = vadd.f32 %v1597, %v1801
    %v1808 = vadd.f32 %v1598, %v1803
    %v1809 = vxor.u32 %v1805, 2147483648
    %v1810 = vmul.f32 %v1809, 1.442695
    %v1811 = vpow.pop %v1810
    %v1812 = vadd.f32 %v1811, 1.0
    %v1813 = vrcp.pop %v1812
    %v1814 = vmul.f32 1.0, %v1813
    %v1815 = vxor.u32 %v1806, 2147483648
    %v1816 = vmul.f32 %v1815, 1.442695
    %v1817 = vpow.pop %v1816
    %v1818 = vadd.f32 %v1817, 1.0
    %v1819 = vrcp.pop %v1818
    %v1820 = vmul.f32 1.0, %v1819
    %v1821 = vtanh.pop %v1807
    %v1822 = vxor.u32 %v1808, 2147483648
    %v1823 = vmul.f32 %v1822, 1.442695
    %v1824 = vpow.pop %v1823
    %v1825 = vadd.f32 %v1824, 1.0
    %v1826 = vrcp.pop %v1825
    %v1827 = vmul.f32 1.0, %v1826
    %v1828 = vmul.f32 %v1820, %v1341
    %v1829 = vmul.f32 %v1814, %v1821
    %v1830 = vadd.f32 %v1828, %v1829
    %v1831 = vtanh.pop %v1830
    %v1832 = vmul.f32 %v1827, %v1831
    %v1833 = vsel %vm1346, 1, 0
    %1834 = vset.pattern.permute.xlu0 0
    %1835 = vperm.xlu0 %1834, %v1833
    %v1836 = vpop.permute.xlu0 %1835
    %vm1837 = vcmp.eq.s32.totalorder %v1836, 1
    %v1838 = vsel %vm1837, %v1832, %v1340
    %v1839 = vsel %vm1837, %v1830, %v1341
    %v1840 = vsel %vm1837, %v1832, 0.0
    %s1841 = scalar_lea.vmem [#allocation12], 96
    %1842 = vst [vmem:[%s1841 + $0x8] sm:$0xff] %v1840
    %vm1843 = vcmp.gt.s32.totalorder %v841, 2
    %vm1844 = vcmp.gt.s32.totalorder %v841, 5
    %v1845 = vld [vmem:[#allocation2 + $0x40] sm:$0xff]
    %v1846 = vld [vmem:[#allocation2 + $0x48] sm:$0xff]
    %v1847 = vld [vmem:[#allocation2 + $0x50] sm:$0xff]
    %v1848 = vld [vmem:[#allocation2 + $0x58] sm:$0xff]
    %v1849 = vld [vmem:[#allocation9] sm:$0xff]
    %v1850 = vld [vmem:[#allocation9 + $0x8] sm:$0xff]
    %v1851 = vld [vmem:[#allocation9 + $0x10] sm:$0xff]
    %v1852 = vld [vmem:[#allocation9 + $0x18] sm:$0xff]
    %v1853 = vld [vmem:[#allocation9 + $0x20] sm:$0xff]
    %v1854 = vld [vmem:[#allocation9 + $0x28] sm:$0xff]
    %v1855 = vld [vmem:[#allocation9 + $0x30] sm:$0xff]
    %v1856 = vld [vmem:[#allocation9 + $0x38] sm:$0xff]
    %v1857 = vld [vmem:[#allocation9 + $0x40] sm:$0xff]
    %v1858 = vld [vmem:[#allocation9 + $0x48] sm:$0xff]
    %v1859 = vld [vmem:[#allocation9 + $0x50] sm:$0xff]
    %v1860 = vld [vmem:[#allocation9 + $0x58] sm:$0xff]
    %v1861 = vld [vmem:[#allocation9 + $0x60] sm:$0xff]
    %v1862 = vld [vmem:[#allocation9 + $0x68] sm:$0xff]
    %v1863 = vld [vmem:[#allocation9 + $0x70] sm:$0xff]
    %v1864 = vld [vmem:[#allocation9 + $0x78] sm:$0xff]
    %v1865 = vld [vmem:[#allocation9 + $0x80] sm:$0xff]
    %v1866 = vld [vmem:[#allocation9 + $0x88] sm:$0xff]
    %v1867 = vld [vmem:[#allocation9 + $0x90] sm:$0xff]
    %v1868 = vld [vmem:[#allocation9 + $0x98] sm:$0xff]
    %v1869 = vld [vmem:[#allocation9 + $0xa0] sm:$0xff]
    %v1870 = vld [vmem:[#allocation9 + $0xa8] sm:$0xff]
    %v1871 = vld [vmem:[#allocation9 + $0xb0] sm:$0xff]
    %v1872 = vld [vmem:[#allocation9 + $0xb8] sm:$0xff]
    %v1873 = vld [vmem:[#allocation9 + $0xc0] sm:$0xff]
    %v1874 = vld [vmem:[#allocation9 + $0xc8] sm:$0xff]
    %v1875 = vld [vmem:[#allocation9 + $0xd0] sm:$0xff]
    %v1876 = vld [vmem:[#allocation9 + $0xd8] sm:$0xff]
    %v1877 = vld [vmem:[#allocation9 + $0xe0] sm:$0xff]
    %v1878 = vld [vmem:[#allocation9 + $0xe8] sm:$0xff]
    %v1879 = vld [vmem:[#allocation9 + $0xf0] sm:$0xff]
    %v1880 = vld [vmem:[#allocation9 + $0xf8] sm:$0xff]
    %v1881 = vld [vmem:[#allocation9 + $0x100] sm:$0xff]
    %v1882 = vld [vmem:[#allocation9 + $0x108] sm:$0xff]
    %v1883 = vld [vmem:[#allocation9 + $0x110] sm:$0xff]
    %v1884 = vld [vmem:[#allocation9 + $0x118] sm:$0xff]
    %v1885 = vld [vmem:[#allocation9 + $0x120] sm:$0xff]
    %v1886 = vld [vmem:[#allocation9 + $0x128] sm:$0xff]
    %v1887 = vld [vmem:[#allocation9 + $0x130] sm:$0xff]
    %v1888 = vld [vmem:[#allocation9 + $0x138] sm:$0xff]
    %v1889 = vld [vmem:[#allocation9 + $0x140] sm:$0xff]
    %v1890 = vld [vmem:[#allocation9 + $0x148] sm:$0xff]
    %v1891 = vld [vmem:[#allocation9 + $0x150] sm:$0xff]
    %v1892 = vld [vmem:[#allocation9 + $0x158] sm:$0xff]
    %v1893 = vld [vmem:[#allocation9 + $0x160] sm:$0xff]
    %v1894 = vld [vmem:[#allocation9 + $0x168] sm:$0xff]
    %v1895 = vld [vmem:[#allocation9 + $0x170] sm:$0xff]
    %v1896 = vld [vmem:[#allocation9 + $0x178] sm:$0xff]
    %v1897 = vld [vmem:[#allocation9 + $0x180] sm:$0xff]
    %v1898 = vld [vmem:[#allocation9 + $0x188] sm:$0xff]
    %v1899 = vld [vmem:[#allocation9 + $0x190] sm:$0xff]
    %v1900 = vld [vmem:[#allocation9 + $0x198] sm:$0xff]
    %v1901 = vld [vmem:[#allocation9 + $0x1a0] sm:$0xff]
    %v1902 = vld [vmem:[#allocation9 + $0x1a8] sm:$0xff]
    %v1903 = vld [vmem:[#allocation9 + $0x1b0] sm:$0xff]
    %v1904 = vld [vmem:[#allocation9 + $0x1b8] sm:$0xff]
    %v1905 = vld [vmem:[#allocation9 + $0x1c0] sm:$0xff]
    %v1906 = vld [vmem:[#allocation9 + $0x1c8] sm:$0xff]
    %v1907 = vld [vmem:[#allocation9 + $0x1d0] sm:$0xff]
    %v1908 = vld [vmem:[#allocation9 + $0x1d8] sm:$0xff]
    %v1909 = vld [vmem:[#allocation9 + $0x1e0] sm:$0xff]
    %v1910 = vld [vmem:[#allocation9 + $0x1e8] sm:$0xff]
    %v1911 = vld [vmem:[#allocation9 + $0x1f0] sm:$0xff]
    %v1912 = vld [vmem:[#allocation9 + $0x1f8] sm:$0xff]
    %1913 = vmatprep.subr.mxu0 %v1850
    %1914 = vmatpush1.msra.mxu0 %v1849
    %1915 = vmatprep.subr.mxu0 %v1854
    %1916 = vmatpush1.msra.mxu0 %v1853
    %1917 = vmatprep.subr.mxu0 %v1858
    %1918 = vmatpush1.msra.mxu0 %v1857
    %1919 = vmatprep.subr.mxu0 %v1862
    %1920 = vmatpush1.msra.mxu0 %v1861
    %1921 = vmatprep.subr.mxu0 %v1866
    %1922 = vmatpush1.msra.mxu0 %v1865
    %1923 = vmatprep.subr.mxu0 %v1870
    %1924 = vmatpush1.msra.mxu0 %v1869
    %1925 = vmatprep.subr.mxu0 %v1874
    %1926 = vmatpush1.msra.mxu0 %v1873
    %1927 = vmatprep.subr.mxu0 %v1878
    %1928 = vmatpush1.msra.mxu0 %v1877
    %1929 = vmatprep.subr.mxu0 %v1882
    %1930 = vmatpush1.msra.mxu0 %v1881
    %1931 = vmatprep.subr.mxu0 %v1886
    %1932 = vmatpush1.msra.mxu0 %v1885
    %1933 = vmatprep.subr.mxu0 %v1890
    %1934 = vmatpush1.msra.mxu0 %v1889
    %1935 = vmatprep.subr.mxu0 %v1894
    %1936 = vmatpush1.msra.mxu0 %v1893
    %1937 = vmatprep.subr.mxu0 %v1898
    %1938 = vmatpush1.msra.mxu0 %v1897
    %1939 = vmatprep.subr.mxu0 %v1902
    %1940 = vmatpush1.msra.mxu0 %v1901
    %1941 = vmatprep.subr.mxu0 %v1906
    %1942 = vmatpush1.msra.mxu0 %v1905
    %1943 = vmatprep.subr.mxu0 %v1910
    %1944 = vmatpush1.msra.mxu0 %v1909
    %1945 = vmatprep.subr.mxu0 0.0
    %1946 = vmatpush1.msra.mxu0 0.0
    %1947 = vmatprep.subr.mxu0 0.0
    %1948 = vmatpush1.msra.mxu0 0.0
    %1949 = vmatprep.subr.mxu0 0.0
    %1950 = vmatpush1.msra.mxu0 0.0
    %1951 = vmatprep.subr.mxu0 0.0
    %1952 = vmatpush1.msra.mxu0 0.0
    %1953 = vmatprep.subr.mxu0 0.0
    %1954 = vmatpush1.msra.mxu0 0.0
    %1955 = vmatprep.subr.mxu0 0.0
    %1956 = vmatpush1.msra.mxu0 0.0
    %1957 = vmatprep.subr.mxu0 0.0
    %1958 = vmatpush1.msra.mxu0 0.0
    %1959 = vmatprep.subr.mxu0 0.0
    %1960 = vmatpush1.msra.mxu0 0.0
    %1961 = vmatprep.subr.mxu0 0.0
    %1962 = vmatpush1.msra.mxu0 0.0
    %1963 = vmatprep.subr.mxu0 0.0
    %1964 = vmatpush1.msra.mxu0 0.0
    %1965 = vmatprep.subr.mxu0 0.0
    %1966 = vmatpush1.msra.mxu0 0.0
    %1967 = vmatprep.subr.mxu0 0.0
    %1968 = vmatpush1.msra.mxu0 0.0
    %1969 = vmatprep.subr.mxu0 0.0
    %1970 = vmatpush1.msra.mxu0 0.0
    %1971 = vmatprep.subr.mxu0 0.0
    %1972 = vmatpush1.msra.mxu0 0.0
    %1973 = vmatprep.subr.mxu0 0.0
    %1974 = vmatpush1.msra.mxu0 0.0
    %1975 = vmatprep.subr.mxu0 0.0
    %1976 = vmatpush1.msra.mxu0 0.0
    %1977 = vmatprep.mubr.f32.mxu0 0.0
    %1978 = vmatmul.mubr.f32.gmra.mrb[0].mxu0 %v1590
    %v1979 = vpop.f32.mrb[0].mxu0
    %v1980 = vadd.f32 0.0, %v1979
    %v1981 = vpop.f32.mrb[0].mxu0
    %v1982 = vadd.f32 0.0, %v1981
    %1983 = vdwg.mxu0
    %1984 = vmatprep.subr.mxu0 %v1852
    %1985 = vmatpush1.msra.mxu0 %v1851
    %1986 = vmatprep.subr.mxu0 %v1856
    %1987 = vmatpush1.msra.mxu0 %v1855
    %1988 = vmatprep.subr.mxu0 %v1860
    %1989 = vmatpush1.msra.mxu0 %v1859
    %1990 = vmatprep.subr.mxu0 %v1864
    %1991 = vmatpush1.msra.mxu0 %v1863
    %1992 = vmatprep.subr.mxu0 %v1868
    %1993 = vmatpush1.msra.mxu0 %v1867
    %1994 = vmatprep.subr.mxu0 %v1872
    %1995 = vmatpush1.msra.mxu0 %v1871
    %1996 = vmatprep.subr.mxu0 %v1876
    %1997 = vmatpush1.msra.mxu0 %v1875
    %1998 = vmatprep.subr.mxu0 %v1880
    %1999 = vmatpush1.msra.mxu0 %v1879
    %2000 = vmatprep.subr.mxu0 %v1884
    %2001 = vmatpush1.msra.mxu0 %v1883
    %2002 = vmatprep.subr.mxu0 %v1888
    %2003 = vmatpush1.msra.mxu0 %v1887
    %2004 = vmatprep.subr.mxu0 %v1892
    %2005 = vmatpush1.msra.mxu0 %v1891
    %2006 = vmatprep.subr.mxu0 %v1896
    %2007 = vmatpush1.msra.mxu0 %v1895
    %2008 = vmatprep.subr.mxu0 %v1900
    %2009 = vmatpush1.msra.mxu0 %v1899
    %2010 = vmatprep.subr.mxu0 %v1904
    %2011 = vmatpush1.msra.mxu0 %v1903
    %2012 = vmatprep.subr.mxu0 %v1908
    %2013 = vmatpush1.msra.mxu0 %v1907
    %2014 = vmatprep.subr.mxu0 %v1912
    %2015 = vmatpush1.msra.mxu0 %v1911
    %2016 = vmatprep.subr.mxu0 0.0
    %2017 = vmatpush1.msra.mxu0 0.0
    %2018 = vmatprep.subr.mxu0 0.0
    %2019 = vmatpush1.msra.mxu0 0.0
    %2020 = vmatprep.subr.mxu0 0.0
    %2021 = vmatpush1.msra.mxu0 0.0
    %2022 = vmatprep.subr.mxu0 0.0
    %2023 = vmatpush1.msra.mxu0 0.0
    %2024 = vmatprep.subr.mxu0 0.0
    %2025 = vmatpush1.msra.mxu0 0.0
    %2026 = vmatprep.subr.mxu0 0.0
    %2027 = vmatpush1.msra.mxu0 0.0
    %2028 = vmatprep.subr.mxu0 0.0
    %2029 = vmatpush1.msra.mxu0 0.0
    %2030 = vmatprep.subr.mxu0 0.0
    %2031 = vmatpush1.msra.mxu0 0.0
    %2032 = vmatprep.subr.mxu0 0.0
    %2033 = vmatpush1.msra.mxu0 0.0
    %2034 = vmatprep.subr.mxu0 0.0
    %2035 = vmatpush1.msra.mxu0 0.0
    %2036 = vmatprep.subr.mxu0 0.0
    %2037 = vmatpush1.msra.mxu0 0.0
    %2038 = vmatprep.subr.mxu0 0.0
    %2039 = vmatpush1.msra.mxu0 0.0
    %2040 = vmatprep.subr.mxu0 0.0
    %2041 = vmatpush1.msra.mxu0 0.0
    %2042 = vmatprep.subr.mxu0 0.0
    %2043 = vmatpush1.msra.mxu0 0.0
    %2044 = vmatprep.subr.mxu0 0.0
    %2045 = vmatpush1.msra.mxu0 0.0
    %2046 = vmatprep.subr.mxu0 0.0
    %2047 = vmatpush1.msra.mxu0 0.0
    %2048 = vmatprep.mubr.f32.mxu0 0.0
    %2049 = vmatmul.mubr.f32.gmra.mrb[0].mxu0 %v1590
    %v2050 = vpop.f32.mrb[0].mxu0
    %v2051 = vadd.f32 0.0, %v2050
    %v2052 = vpop.f32.mrb[0].mxu0
    %v2053 = vadd.f32 0.0, %v2052
    %2054 = vdwg.mxu0
    %v2055 = vadd.f32 %v1845, %v1980
    %v2056 = vadd.f32 %v1846, %v1982
    %v2057 = vadd.f32 %v1847, %v2051
    %v2058 = vadd.f32 %v1848, %v2053
    %v2059 = vxor.u32 %v2055, 2147483648
    %v2060 = vmul.f32 %v2059, 1.442695
    %v2061 = vpow.pop %v2060
    %v2062 = vadd.f32 %v2061, 1.0
    %v2063 = vrcp.pop %v2062
    %v2064 = vmul.f32 1.0, %v2063
    %v2065 = vxor.u32 %v2056, 2147483648
    %v2066 = vmul.f32 %v2065, 1.442695
    %v2067 = vpow.pop %v2066
    %v2068 = vadd.f32 %v2067, 1.0
    %v2069 = vrcp.pop %v2068
    %v2070 = vmul.f32 1.0, %v2069
    %v2071 = vtanh.pop %v2057
    %v2072 = vxor.u32 %v2058, 2147483648
    %v2073 = vmul.f32 %v2072, 1.442695
    %v2074 = vpow.pop %v2073
    %v2075 = vadd.f32 %v2074, 1.0
    %v2076 = vrcp.pop %v2075
    %v2077 = vmul.f32 1.0, %v2076
    %v2078 = vmul.f32 %v2070, %v1591
    %v2079 = vmul.f32 %v2064, %v2071
    %v2080 = vadd.f32 %v2078, %v2079
    %v2081 = vtanh.pop %v2080
    %v2082 = vmul.f32 %v2077, %v2081
    %v2083 = vsel %vm1843, 1, 0
    %2084 = vset.pattern.permute.xlu0 0
    %2085 = vperm.xlu0 %2084, %v2083
    %v2086 = vpop.permute.xlu0 %2085
    %vm2087 = vcmp.eq.s32.totalorder %v2086, 1
    %v2088 = vsel %vm2087, %v2082, %v1590
    %v2089 = vsel %vm2087, %v2080, %v1591
    %v2090 = vsel %vm2087, %v2082, 0.0
    %s2091 = scalar_lea.vmem [#allocation12], 32
    %2092 = vst [vmem:[%s2091] sm:$0xff] %v2090
    %v2093 = vld [vmem:[#allocation3 + $0xa0] sm:$0xff]
    %v2094 = vld [vmem:[#allocation3 + $0xa8] sm:$0xff]
    %v2095 = vld [vmem:[#allocation3 + $0xb0] sm:$0xff]
    %v2096 = vld [vmem:[#allocation3 + $0xb8] sm:$0xff]
    %v2097 = vld [vmem:[#allocation10] sm:$0xff]
    %v2098 = vld [vmem:[#allocation10 + $0x8] sm:$0xff]
    %v2099 = vld [vmem:[#allocation10 + $0x10] sm:$0xff]
    %v2100 = vld [vmem:[#allocation10 + $0x18] sm:$0xff]
    %v2101 = vld [vmem:[#allocation10 + $0x20] sm:$0xff]
    %v2102 = vld [vmem:[#allocation10 + $0x28] sm:$0xff]
    %v2103 = vld [vmem:[#allocation10 + $0x30] sm:$0xff]
    %v2104 = vld [vmem:[#allocation10 + $0x38] sm:$0xff]
    %v2105 = vld [vmem:[#allocation10 + $0x40] sm:$0xff]
    %v2106 = vld [vmem:[#allocation10 + $0x48] sm:$0xff]
    %v2107 = vld [vmem:[#allocation10 + $0x50] sm:$0xff]
    %v2108 = vld [vmem:[#allocation10 + $0x58] sm:$0xff]
    %v2109 = vld [vmem:[#allocation10 + $0x60] sm:$0xff]
    %v2110 = vld [vmem:[#allocation10 + $0x68] sm:$0xff]
    %v2111 = vld [vmem:[#allocation10 + $0x70] sm:$0xff]
    %v2112 = vld [vmem:[#allocation10 + $0x78] sm:$0xff]
    %v2113 = vld [vmem:[#allocation10 + $0x80] sm:$0xff]
    %v2114 = vld [vmem:[#allocation10 + $0x88] sm:$0xff]
    %v2115 = vld [vmem:[#allocation10 + $0x90] sm:$0xff]
    %v2116 = vld [vmem:[#allocation10 + $0x98] sm:$0xff]
    %v2117 = vld [vmem:[#allocation10 + $0xa0] sm:$0xff]
    %v2118 = vld [vmem:[#allocation10 + $0xa8] sm:$0xff]
    %v2119 = vld [vmem:[#allocation10 + $0xb0] sm:$0xff]
    %v2120 = vld [vmem:[#allocation10 + $0xb8] sm:$0xff]
    %v2121 = vld [vmem:[#allocation10 + $0xc0] sm:$0xff]
    %v2122 = vld [vmem:[#allocation10 + $0xc8] sm:$0xff]
    %v2123 = vld [vmem:[#allocation10 + $0xd0] sm:$0xff]
    %v2124 = vld [vmem:[#allocation10 + $0xd8] sm:$0xff]
    %v2125 = vld [vmem:[#allocation10 + $0xe0] sm:$0xff]
    %v2126 = vld [vmem:[#allocation10 + $0xe8] sm:$0xff]
    %v2127 = vld [vmem:[#allocation10 + $0xf0] sm:$0xff]
    %v2128 = vld [vmem:[#allocation10 + $0xf8] sm:$0xff]
    %v2129 = vld [vmem:[#allocation10 + $0x100] sm:$0xff]
    %v2130 = vld [vmem:[#allocation10 + $0x108] sm:$0xff]
    %v2131 = vld [vmem:[#allocation10 + $0x110] sm:$0xff]
    %v2132 = vld [vmem:[#allocation10 + $0x118] sm:$0xff]
    %v2133 = vld [vmem:[#allocation10 + $0x120] sm:$0xff]
    %v2134 = vld [vmem:[#allocation10 + $0x128] sm:$0xff]
    %v2135 = vld [vmem:[#allocation10 + $0x130] sm:$0xff]
    %v2136 = vld [vmem:[#allocation10 + $0x138] sm:$0xff]
    %v2137 = vld [vmem:[#allocation10 + $0x140] sm:$0xff]
    %v2138 = vld [vmem:[#allocation10 + $0x148] sm:$0xff]
    %v2139 = vld [vmem:[#allocation10 + $0x150] sm:$0xff]
    %v2140 = vld [vmem:[#allocation10 + $0x158] sm:$0xff]
    %v2141 = vld [vmem:[#allocation10 + $0x160] sm:$0xff]
    %v2142 = vld [vmem:[#allocation10 + $0x168] sm:$0xff]
    %v2143 = vld [vmem:[#allocation10 + $0x170] sm:$0xff]
    %v2144 = vld [vmem:[#allocation10 + $0x178] sm:$0xff]
    %v2145 = vld [vmem:[#allocation10 + $0x180] sm:$0xff]
    %v2146 = vld [vmem:[#allocation10 + $0x188] sm:$0xff]
    %v2147 = vld [vmem:[#allocation10 + $0x190] sm:$0xff]
    %v2148 = vld [vmem:[#allocation10 + $0x198] sm:$0xff]
    %v2149 = vld [vmem:[#allocation10 + $0x1a0] sm:$0xff]
    %v2150 = vld [vmem:[#allocation10 + $0x1a8] sm:$0xff]
    %v2151 = vld [vmem:[#allocation10 + $0x1b0] sm:$0xff]
    %v2152 = vld [vmem:[#allocation10 + $0x1b8] sm:$0xff]
    %v2153 = vld [vmem:[#allocation10 + $0x1c0] sm:$0xff]
    %v2154 = vld [vmem:[#allocation10 + $0x1c8] sm:$0xff]
    %v2155 = vld [vmem:[#allocation10 + $0x1d0] sm:$0xff]
    %v2156 = vld [vmem:[#allocation10 + $0x1d8] sm:$0xff]
    %v2157 = vld [vmem:[#allocation10 + $0x1e0] sm:$0xff]
    %v2158 = vld [vmem:[#allocation10 + $0x1e8] sm:$0xff]
    %v2159 = vld [vmem:[#allocation10 + $0x1f0] sm:$0xff]
    %v2160 = vld [vmem:[#allocation10 + $0x1f8] sm:$0xff]
    %2161 = vmatprep.subr.mxu0 %v2098
    %2162 = vmatpush1.msra.mxu0 %v2097
    %2163 = vmatprep.subr.mxu0 %v2102
    %2164 = vmatpush1.msra.mxu0 %v2101
    %2165 = vmatprep.subr.mxu0 %v2106
    %2166 = vmatpush1.msra.mxu0 %v2105
    %2167 = vmatprep.subr.mxu0 %v2110
    %2168 = vmatpush1.msra.mxu0 %v2109
    %2169 = vmatprep.subr.mxu0 %v2114
    %2170 = vmatpush1.msra.mxu0 %v2113
    %2171 = vmatprep.subr.mxu0 %v2118
    %2172 = vmatpush1.msra.mxu0 %v2117
    %2173 = vmatprep.subr.mxu0 %v2122
    %2174 = vmatpush1.msra.mxu0 %v2121
    %2175 = vmatprep.subr.mxu0 %v2126
    %2176 = vmatpush1.msra.mxu0 %v2125
    %2177 = vmatprep.subr.mxu0 %v2130
    %2178 = vmatpush1.msra.mxu0 %v2129
    %2179 = vmatprep.subr.mxu0 %v2134
    %2180 = vmatpush1.msra.mxu0 %v2133
    %2181 = vmatprep.subr.mxu0 %v2138
    %2182 = vmatpush1.msra.mxu0 %v2137
    %2183 = vmatprep.subr.mxu0 %v2142
    %2184 = vmatpush1.msra.mxu0 %v2141
    %2185 = vmatprep.subr.mxu0 %v2146
    %2186 = vmatpush1.msra.mxu0 %v2145
    %2187 = vmatprep.subr.mxu0 %v2150
    %2188 = vmatpush1.msra.mxu0 %v2149
    %2189 = vmatprep.subr.mxu0 %v2154
    %2190 = vmatpush1.msra.mxu0 %v2153
    %2191 = vmatprep.subr.mxu0 %v2158
    %2192 = vmatpush1.msra.mxu0 %v2157
    %2193 = vmatprep.subr.mxu0 0.0
    %2194 = vmatpush1.msra.mxu0 0.0
    %2195 = vmatprep.subr.mxu0 0.0
    %2196 = vmatpush1.msra.mxu0 0.0
    %2197 = vmatprep.subr.mxu0 0.0
    %2198 = vmatpush1.msra.mxu0 0.0
    %2199 = vmatprep.subr.mxu0 0.0
    %2200 = vmatpush1.msra.mxu0 0.0
    %2201 = vmatprep.subr.mxu0 0.0
    %2202 = vmatpush1.msra.mxu0 0.0
    %2203 = vmatprep.subr.mxu0 0.0
    %2204 = vmatpush1.msra.mxu0 0.0
    %2205 = vmatprep.subr.mxu0 0.0
    %2206 = vmatpush1.msra.mxu0 0.0
    %2207 = vmatprep.subr.mxu0 0.0
    %2208 = vmatpush1.msra.mxu0 0.0
    %2209 = vmatprep.subr.mxu0 0.0
    %2210 = vmatpush1.msra.mxu0 0.0
    %2211 = vmatprep.subr.mxu0 0.0
    %2212 = vmatpush1.msra.mxu0 0.0
    %2213 = vmatprep.subr.mxu0 0.0
    %2214 = vmatpush1.msra.mxu0 0.0
    %2215 = vmatprep.subr.mxu0 0.0
    %2216 = vmatpush1.msra.mxu0 0.0
    %2217 = vmatprep.subr.mxu0 0.0
    %2218 = vmatpush1.msra.mxu0 0.0
    %2219 = vmatprep.subr.mxu0 0.0
    %2220 = vmatpush1.msra.mxu0 0.0
    %2221 = vmatprep.subr.mxu0 0.0
    %2222 = vmatpush1.msra.mxu0 0.0
    %2223 = vmatprep.subr.mxu0 0.0
    %2224 = vmatpush1.msra.mxu0 0.0
    %2225 = vmatprep.mubr.f32.mxu0 0.0
    %2226 = vmatmul.mubr.f32.gmra.mrb[0].mxu0 %v1838
    %v2227 = vpop.f32.mrb[0].mxu0
    %v2228 = vadd.f32 0.0, %v2227
    %v2229 = vpop.f32.mrb[0].mxu0
    %v2230 = vadd.f32 0.0, %v2229
    %2231 = vdwg.mxu0
    %2232 = vmatprep.subr.mxu0 %v2100
    %2233 = vmatpush1.msra.mxu0 %v2099
    %2234 = vmatprep.subr.mxu0 %v2104
    %2235 = vmatpush1.msra.mxu0 %v2103
    %2236 = vmatprep.subr.mxu0 %v2108
    %2237 = vmatpush1.msra.mxu0 %v2107
    %2238 = vmatprep.subr.mxu0 %v2112
    %2239 = vmatpush1.msra.mxu0 %v2111
    %2240 = vmatprep.subr.mxu0 %v2116
    %2241 = vmatpush1.msra.mxu0 %v2115
    %2242 = vmatprep.subr.mxu0 %v2120
    %2243 = vmatpush1.msra.mxu0 %v2119
    %2244 = vmatprep.subr.mxu0 %v2124
    %2245 = vmatpush1.msra.mxu0 %v2123
    %2246 = vmatprep.subr.mxu0 %v2128
    %2247 = vmatpush1.msra.mxu0 %v2127
    %2248 = vmatprep.subr.mxu0 %v2132
    %2249 = vmatpush1.msra.mxu0 %v2131
    %2250 = vmatprep.subr.mxu0 %v2136
    %2251 = vmatpush1.msra.mxu0 %v2135
    %2252 = vmatprep.subr.mxu0 %v2140
    %2253 = vmatpush1.msra.mxu0 %v2139
    %2254 = vmatprep.subr.mxu0 %v2144
    %2255 = vmatpush1.msra.mxu0 %v2143
    %2256 = vmatprep.subr.mxu0 %v2148
    %2257 = vmatpush1.msra.mxu0 %v2147
    %2258 = vmatprep.subr.mxu0 %v2152
    %2259 = vmatpush1.msra.mxu0 %v2151
    %2260 = vmatprep.subr.mxu0 %v2156
    %2261 = vmatpush1.msra.mxu0 %v2155
    %2262 = vmatprep.subr.mxu0 %v2160
    %2263 = vmatpush1.msra.mxu0 %v2159
    %2264 = vmatprep.subr.mxu0 0.0
    %2265 = vmatpush1.msra.mxu0 0.0
    %2266 = vmatprep.subr.mxu0 0.0
    %2267 = vmatpush1.msra.mxu0 0.0
    %2268 = vmatprep.subr.mxu0 0.0
    %2269 = vmatpush1.msra.mxu0 0.0
    %2270 = vmatprep.subr.mxu0 0.0
    %2271 = vmatpush1.msra.mxu0 0.0
    %2272 = vmatprep.subr.mxu0 0.0
    %2273 = vmatpush1.msra.mxu0 0.0
    %2274 = vmatprep.subr.mxu0 0.0
    %2275 = vmatpush1.msra.mxu0 0.0
    %2276 = vmatprep.subr.mxu0 0.0
    %2277 = vmatpush1.msra.mxu0 0.0
    %2278 = vmatprep.subr.mxu0 0.0
    %2279 = vmatpush1.msra.mxu0 0.0
    %2280 = vmatprep.subr.mxu0 0.0
    %2281 = vmatpush1.msra.mxu0 0.0
    %2282 = vmatprep.subr.mxu0 0.0
    %2283 = vmatpush1.msra.mxu0 0.0
    %2284 = vmatprep.subr.mxu0 0.0
    %2285 = vmatpush1.msra.mxu0 0.0
    %2286 = vmatprep.subr.mxu0 0.0
    %2287 = vmatpush1.msra.mxu0 0.0
    %2288 = vmatprep.subr.mxu0 0.0
    %2289 = vmatpush1.msra.mxu0 0.0
    %2290 = vmatprep.subr.mxu0 0.0
    %2291 = vmatpush1.msra.mxu0 0.0
    %2292 = vmatprep.subr.mxu0 0.0
    %2293 = vmatpush1.msra.mxu0 0.0
    %2294 = vmatprep.subr.mxu0 0.0
    %2295 = vmatpush1.msra.mxu0 0.0
    %2296 = vmatprep.mubr.f32.mxu0 0.0
    %2297 = vmatmul.mubr.f32.gmra.mrb[0].mxu0 %v1838
    %v2298 = vpop.f32.mrb[0].mxu0
    %v2299 = vadd.f32 0.0, %v2298
    %v2300 = vpop.f32.mrb[0].mxu0
    %v2301 = vadd.f32 0.0, %v2300
    %2302 = vdwg.mxu0
    %v2303 = vadd.f32 %v2093, %v2228
    %v2304 = vadd.f32 %v2094, %v2230
    %v2305 = vadd.f32 %v2095, %v2299
    %v2306 = vadd.f32 %v2096, %v2301
    %v2307 = vxor.u32 %v2303, 2147483648
    %v2308 = vmul.f32 %v2307, 1.442695
    %v2309 = vpow.pop %v2308
    %v2310 = vadd.f32 %v2309, 1.0
    %v2311 = vrcp.pop %v2310
    %v2312 = vmul.f32 1.0, %v2311
    %v2313 = vxor.u32 %v2304, 2147483648
    %v2314 = vmul.f32 %v2313, 1.442695
    %v2315 = vpow.pop %v2314
    %v2316 = vadd.f32 %v2315, 1.0
    %v2317 = vrcp.pop %v2316
    %v2318 = vmul.f32 1.0, %v2317
    %v2319 = vtanh.pop %v2305
    %v2320 = vxor.u32 %v2306, 2147483648
    %v2321 = vmul.f32 %v2320, 1.442695
    %v2322 = vpow.pop %v2321
    %v2323 = vadd.f32 %v2322, 1.0
    %v2324 = vrcp.pop %v2323
    %v2325 = vmul.f32 1.0, %v2324
    %v2326 = vmul.f32 %v2318, %v1839
    %v2327 = vmul.f32 %v2312, %v2319
    %v2328 = vadd.f32 %v2326, %v2327
    %v2329 = vtanh.pop %v2328
    %v2330 = vmul.f32 %v2325, %v2329
    %v2331 = vsel %vm1844, 1, 0
    %2332 = vset.pattern.permute.xlu0 0
    %2333 = vperm.xlu0 %2332, %v2331
    %v2334 = vpop.permute.xlu0 %2333
    %vm2335 = vcmp.eq.s32.totalorder %v2334, 1
    %v2336 = vsel %vm2335, %v2330, %v1838
    %v2337 = vsel %vm2335, %v2328, %v1839
    %v2338 = vsel %vm2335, %v2330, 0.0
    %s2339 = scalar_lea.vmem [#allocation12], 80
    %2340 = vst [vmem:[%s2339 + $0x8] sm:$0xff] %v2338
    %vm2341 = vcmp.gt.s32.totalorder %v841, 3
    %vm2342 = vcmp.gt.s32.totalorder %v841, 4
    %v2343 = vld [vmem:[#allocation2 + $0x60] sm:$0xff]
    %v2344 = vld [vmem:[#allocation2 + $0x68] sm:$0xff]
    %v2345 = vld [vmem:[#allocation2 + $0x70] sm:$0xff]
    %v2346 = vld [vmem:[#allocation2 + $0x78] sm:$0xff]
    %v2347 = vld [vmem:[#allocation9] sm:$0xff]
    %v2348 = vld [vmem:[#allocation9 + $0x8] sm:$0xff]
    %v2349 = vld [vmem:[#allocation9 + $0x10] sm:$0xff]
    %v2350 = vld [vmem:[#allocation9 + $0x18] sm:$0xff]
    %v2351 = vld [vmem:[#allocation9 + $0x20] sm:$0xff]
    %v2352 = vld [vmem:[#allocation9 + $0x28] sm:$0xff]
    %v2353 = vld [vmem:[#allocation9 + $0x30] sm:$0xff]
    %v2354 = vld [vmem:[#allocation9 + $0x38] sm:$0xff]
    %v2355 = vld [vmem:[#allocation9 + $0x40] sm:$0xff]
    %v2356 = vld [vmem:[#allocation9 + $0x48] sm:$0xff]
    %v2357 = vld [vmem:[#allocation9 + $0x50] sm:$0xff]
    %v2358 = vld [vmem:[#allocation9 + $0x58] sm:$0xff]
    %v2359 = vld [vmem:[#allocation9 + $0x60] sm:$0xff]
    %v2360 = vld [vmem:[#allocation9 + $0x68] sm:$0xff]
    %v2361 = vld [vmem:[#allocation9 + $0x70] sm:$0xff]
    %v2362 = vld [vmem:[#allocation9 + $0x78] sm:$0xff]
    %v2363 = vld [vmem:[#allocation9 + $0x80] sm:$0xff]
    %v2364 = vld [vmem:[#allocation9 + $0x88] sm:$0xff]
    %v2365 = vld [vmem:[#allocation9 + $0x90] sm:$0xff]
    %v2366 = vld [vmem:[#allocation9 + $0x98] sm:$0xff]
    %v2367 = vld [vmem:[#allocation9 + $0xa0] sm:$0xff]
    %v2368 = vld [vmem:[#allocation9 + $0xa8] sm:$0xff]
    %v2369 = vld [vmem:[#allocation9 + $0xb0] sm:$0xff]
    %v2370 = vld [vmem:[#allocation9 + $0xb8] sm:$0xff]
    %v2371 = vld [vmem:[#allocation9 + $0xc0] sm:$0xff]
    %v2372 = vld [vmem:[#allocation9 + $0xc8] sm:$0xff]
    %v2373 = vld [vmem:[#allocation9 + $0xd0] sm:$0xff]
    %v2374 = vld [vmem:[#allocation9 + $0xd8] sm:$0xff]
    %v2375 = vld [vmem:[#allocation9 + $0xe0] sm:$0xff]
    %v2376 = vld [vmem:[#allocation9 + $0xe8] sm:$0xff]
    %v2377 = vld [vmem:[#allocation9 + $0xf0] sm:$0xff]
    %v2378 = vld [vmem:[#allocation9 + $0xf8] sm:$0xff]
    %v2379 = vld [vmem:[#allocation9 + $0x100] sm:$0xff]
    %v2380 = vld [vmem:[#allocation9 + $0x108] sm:$0xff]
    %v2381 = vld [vmem:[#allocation9 + $0x110] sm:$0xff]
    %v2382 = vld [vmem:[#allocation9 + $0x118] sm:$0xff]
    %v2383 = vld [vmem:[#allocation9 + $0x120] sm:$0xff]
    %v2384 = vld [vmem:[#allocation9 + $0x128] sm:$0xff]
    %v2385 = vld [vmem:[#allocation9 + $0x130] sm:$0xff]
    %v2386 = vld [vmem:[#allocation9 + $0x138] sm:$0xff]
    %v2387 = vld [vmem:[#allocation9 + $0x140] sm:$0xff]
    %v2388 = vld [vmem:[#allocation9 + $0x148] sm:$0xff]
    %v2389 = vld [vmem:[#allocation9 + $0x150] sm:$0xff]
    %v2390 = vld [vmem:[#allocation9 + $0x158] sm:$0xff]
    %v2391 = vld [vmem:[#allocation9 + $0x160] sm:$0xff]
    %v2392 = vld [vmem:[#allocation9 + $0x168] sm:$0xff]
    %v2393 = vld [vmem:[#allocation9 + $0x170] sm:$0xff]
    %v2394 = vld [vmem:[#allocation9 + $0x178] sm:$0xff]
    %v2395 = vld [vmem:[#allocation9 + $0x180] sm:$0xff]
    %v2396 = vld [vmem:[#allocation9 + $0x188] sm:$0xff]
    %v2397 = vld [vmem:[#allocation9 + $0x190] sm:$0xff]
    %v2398 = vld [vmem:[#allocation9 + $0x198] sm:$0xff]
    %v2399 = vld [vmem:[#allocation9 + $0x1a0] sm:$0xff]
    %v2400 = vld [vmem:[#allocation9 + $0x1a8] sm:$0xff]
    %v2401 = vld [vmem:[#allocation9 + $0x1b0] sm:$0xff]
    %v2402 = vld [vmem:[#allocation9 + $0x1b8] sm:$0xff]
    %v2403 = vld [vmem:[#allocation9 + $0x1c0] sm:$0xff]
    %v2404 = vld [vmem:[#allocation9 + $0x1c8] sm:$0xff]
    %v2405 = vld [vmem:[#allocation9 + $0x1d0] sm:$0xff]
    %v2406 = vld [vmem:[#allocation9 + $0x1d8] sm:$0xff]
    %v2407 = vld [vmem:[#allocation9 + $0x1e0] sm:$0xff]
    %v2408 = vld [vmem:[#allocation9 + $0x1e8] sm:$0xff]
    %v2409 = vld [vmem:[#allocation9 + $0x1f0] sm:$0xff]
    %v2410 = vld [vmem:[#allocation9 + $0x1f8] sm:$0xff]
    %2411 = vmatprep.subr.mxu0 %v2348
    %2412 = vmatpush1.msra.mxu0 %v2347
    %2413 = vmatprep.subr.mxu0 %v2352
    %2414 = vmatpush1.msra.mxu0 %v2351
    %2415 = vmatprep.subr.mxu0 %v2356
    %2416 = vmatpush1.msra.mxu0 %v2355
    %2417 = vmatprep.subr.mxu0 %v2360
    %2418 = vmatpush1.msra.mxu0 %v2359
    %2419 = vmatprep.subr.mxu0 %v2364
    %2420 = vmatpush1.msra.mxu0 %v2363
    %2421 = vmatprep.subr.mxu0 %v2368
    %2422 = vmatpush1.msra.mxu0 %v2367
    %2423 = vmatprep.subr.mxu0 %v2372
    %2424 = vmatpush1.msra.mxu0 %v2371
    %2425 = vmatprep.subr.mxu0 %v2376
    %2426 = vmatpush1.msra.mxu0 %v2375
    %2427 = vmatprep.subr.mxu0 %v2380
    %2428 = vmatpush1.msra.mxu0 %v2379
    %2429 = vmatprep.subr.mxu0 %v2384
    %2430 = vmatpush1.msra.mxu0 %v2383
    %2431 = vmatprep.subr.mxu0 %v2388
    %2432 = vmatpush1.msra.mxu0 %v2387
    %2433 = vmatprep.subr.mxu0 %v2392
    %2434 = vmatpush1.msra.mxu0 %v2391
    %2435 = vmatprep.subr.mxu0 %v2396
    %2436 = vmatpush1.msra.mxu0 %v2395
    %2437 = vmatprep.subr.mxu0 %v2400
    %2438 = vmatpush1.msra.mxu0 %v2399
    %2439 = vmatprep.subr.mxu0 %v2404
    %2440 = vmatpush1.msra.mxu0 %v2403
    %2441 = vmatprep.subr.mxu0 %v2408
    %2442 = vmatpush1.msra.mxu0 %v2407
    %2443 = vmatprep.subr.mxu0 0.0
    %2444 = vmatpush1.msra.mxu0 0.0
    %2445 = vmatprep.subr.mxu0 0.0
    %2446 = vmatpush1.msra.mxu0 0.0
    %2447 = vmatprep.subr.mxu0 0.0
    %2448 = vmatpush1.msra.mxu0 0.0
    %2449 = vmatprep.subr.mxu0 0.0
    %2450 = vmatpush1.msra.mxu0 0.0
    %2451 = vmatprep.subr.mxu0 0.0
    %2452 = vmatpush1.msra.mxu0 0.0
    %2453 = vmatprep.subr.mxu0 0.0
    %2454 = vmatpush1.msra.mxu0 0.0
    %2455 = vmatprep.subr.mxu0 0.0
    %2456 = vmatpush1.msra.mxu0 0.0
    %2457 = vmatprep.subr.mxu0 0.0
    %2458 = vmatpush1.msra.mxu0 0.0
    %2459 = vmatprep.subr.mxu0 0.0
    %2460 = vmatpush1.msra.mxu0 0.0
    %2461 = vmatprep.subr.mxu0 0.0
    %2462 = vmatpush1.msra.mxu0 0.0
    %2463 = vmatprep.subr.mxu0 0.0
    %2464 = vmatpush1.msra.mxu0 0.0
    %2465 = vmatprep.subr.mxu0 0.0
    %2466 = vmatpush1.msra.mxu0 0.0
    %2467 = vmatprep.subr.mxu0 0.0
    %2468 = vmatpush1.msra.mxu0 0.0
    %2469 = vmatprep.subr.mxu0 0.0
    %2470 = vmatpush1.msra.mxu0 0.0
    %2471 = vmatprep.subr.mxu0 0.0
    %2472 = vmatpush1.msra.mxu0 0.0
    %2473 = vmatprep.subr.mxu0 0.0
    %2474 = vmatpush1.msra.mxu0 0.0
    %2475 = vmatprep.mubr.f32.mxu0 0.0
    %2476 = vmatmul.mubr.f32.gmra.mrb[0].mxu0 %v2088
    %v2477 = vpop.f32.mrb[0].mxu0
    %v2478 = vadd.f32 0.0, %v2477
    %v2479 = vpop.f32.mrb[0].mxu0
    %v2480 = vadd.f32 0.0, %v2479
    %2481 = vdwg.mxu0
    %2482 = vmatprep.subr.mxu0 %v2350
    %2483 = vmatpush1.msra.mxu0 %v2349
    %2484 = vmatprep.subr.mxu0 %v2354
    %2485 = vmatpush1.msra.mxu0 %v2353
    %2486 = vmatprep.subr.mxu0 %v2358
    %2487 = vmatpush1.msra.mxu0 %v2357
    %2488 = vmatprep.subr.mxu0 %v2362
    %2489 = vmatpush1.msra.mxu0 %v2361
    %2490 = vmatprep.subr.mxu0 %v2366
    %2491 = vmatpush1.msra.mxu0 %v2365
    %2492 = vmatprep.subr.mxu0 %v2370
    %2493 = vmatpush1.msra.mxu0 %v2369
    %2494 = vmatprep.subr.mxu0 %v2374
    %2495 = vmatpush1.msra.mxu0 %v2373
    %2496 = vmatprep.subr.mxu0 %v2378
    %2497 = vmatpush1.msra.mxu0 %v2377
    %2498 = vmatprep.subr.mxu0 %v2382
    %2499 = vmatpush1.msra.mxu0 %v2381
    %2500 = vmatprep.subr.mxu0 %v2386
    %2501 = vmatpush1.msra.mxu0 %v2385
    %2502 = vmatprep.subr.mxu0 %v2390
    %2503 = vmatpush1.msra.mxu0 %v2389
    %2504 = vmatprep.subr.mxu0 %v2394
    %2505 = vmatpush1.msra.mxu0 %v2393
    %2506 = vmatprep.subr.mxu0 %v2398
    %2507 = vmatpush1.msra.mxu0 %v2397
    %2508 = vmatprep.subr.mxu0 %v2402
    %2509 = vmatpush1.msra.mxu0 %v2401
    %2510 = vmatprep.subr.mxu0 %v2406
    %2511 = vmatpush1.msra.mxu0 %v2405
    %2512 = vmatprep.subr.mxu0 %v2410
    %2513 = vmatpush1.msra.mxu0 %v2409
    %2514 = vmatprep.subr.mxu0 0.0
    %2515 = vmatpush1.msra.mxu0 0.0
    %2516 = vmatprep.subr.mxu0 0.0
    %2517 = vmatpush1.msra.mxu0 0.0
    %2518 = vmatprep.subr.mxu0 0.0
    %2519 = vmatpush1.msra.mxu0 0.0
    %2520 = vmatprep.subr.mxu0 0.0
    %2521 = vmatpush1.msra.mxu0 0.0
    %2522 = vmatprep.subr.mxu0 0.0
    %2523 = vmatpush1.msra.mxu0 0.0
    %2524 = vmatprep.subr.mxu0 0.0
    %2525 = vmatpush1.msra.mxu0 0.0
    %2526 = vmatprep.subr.mxu0 0.0
    %2527 = vmatpush1.msra.mxu0 0.0
    %2528 = vmatprep.subr.mxu0 0.0
    %2529 = vmatpush1.msra.mxu0 0.0
    %2530 = vmatprep.subr.mxu0 0.0
    %2531 = vmatpush1.msra.mxu0 0.0
    %2532 = vmatprep.subr.mxu0 0.0
    %2533 = vmatpush1.msra.mxu0 0.0
    %2534 = vmatprep.subr.mxu0 0.0
    %2535 = vmatpush1.msra.mxu0 0.0
    %2536 = vmatprep.subr.mxu0 0.0
    %2537 = vmatpush1.msra.mxu0 0.0
    %2538 = vmatprep.subr.mxu0 0.0
    %2539 = vmatpush1.msra.mxu0 0.0
    %2540 = vmatprep.subr.mxu0 0.0
    %2541 = vmatpush1.msra.mxu0 0.0
    %2542 = vmatprep.subr.mxu0 0.0
    %2543 = vmatpush1.msra.mxu0 0.0
    %2544 = vmatprep.subr.mxu0 0.0
    %2545 = vmatpush1.msra.mxu0 0.0
    %2546 = vmatprep.mubr.f32.mxu0 0.0
    %2547 = vmatmul.mubr.f32.gmra.mrb[0].mxu0 %v2088
    %v2548 = vpop.f32.mrb[0].mxu0
    %v2549 = vadd.f32 0.0, %v2548
    %v2550 = vpop.f32.mrb[0].mxu0
    %v2551 = vadd.f32 0.0, %v2550
    %2552 = vdwg.mxu0
    %v2553 = vadd.f32 %v2343, %v2478
    %v2554 = vadd.f32 %v2344, %v2480
    %v2555 = vadd.f32 %v2345, %v2549
    %v2556 = vadd.f32 %v2346, %v2551
    %v2557 = vxor.u32 %v2553, 2147483648
    %v2558 = vmul.f32 %v2557, 1.442695
    %v2559 = vpow.pop %v2558
    %v2560 = vadd.f32 %v2559, 1.0
    %v2561 = vrcp.pop %v2560
    %v2562 = vmul.f32 1.0, %v2561
    %v2563 = vxor.u32 %v2554, 2147483648
    %v2564 = vmul.f32 %v2563, 1.442695
    %v2565 = vpow.pop %v2564
    %v2566 = vadd.f32 %v2565, 1.0
    %v2567 = vrcp.pop %v2566
    %v2568 = vmul.f32 1.0, %v2567
    %v2569 = vtanh.pop %v2555
    %v2570 = vxor.u32 %v2556, 2147483648
    %v2571 = vmul.f32 %v2570, 1.442695
    %v2572 = vpow.pop %v2571
    %v2573 = vadd.f32 %v2572, 1.0
    %v2574 = vrcp.pop %v2573
    %v2575 = vmul.f32 1.0, %v2574
    %v2576 = vmul.f32 %v2568, %v2089
    %v2577 = vmul.f32 %v2562, %v2569
    %v2578 = vadd.f32 %v2576, %v2577
    %v2579 = vtanh.pop %v2578
    %v2580 = vmul.f32 %v2575, %v2579
    %v2581 = vsel %vm2341, 1, 0
    %2582 = vset.pattern.permute.xlu0 0
    %2583 = vperm.xlu0 %2582, %v2581
    %v2584 = vpop.permute.xlu0 %2583
    %vm2585 = vcmp.eq.s32.totalorder %v2584, 1
    %v2586 = vsel %vm2585, %v2580, %v2088
    %v2587 = vsel %vm2585, %v2578, %v2089
    %v2588 = vsel %vm2585, %v2580, 0.0
    %s2589 = scalar_lea.vmem [#allocation12], 48
    %2590 = vst [vmem:[%s2589] sm:$0xff] %v2588
    %v2591 = vld [vmem:[#allocation3 + $0x80] sm:$0xff]
    %v2592 = vld [vmem:[#allocation3 + $0x88] sm:$0xff]
    %v2593 = vld [vmem:[#allocation3 + $0x90] sm:$0xff]
    %v2594 = vld [vmem:[#allocation3 + $0x98] sm:$0xff]
    %v2595 = vld [vmem:[#allocation10] sm:$0xff]
    %v2596 = vld [vmem:[#allocation10 + $0x8] sm:$0xff]
    %v2597 = vld [vmem:[#allocation10 + $0x10] sm:$0xff]
    %v2598 = vld [vmem:[#allocation10 + $0x18] sm:$0xff]
    %v2599 = vld [vmem:[#allocation10 + $0x20] sm:$0xff]
    %v2600 = vld [vmem:[#allocation10 + $0x28] sm:$0xff]
    %v2601 = vld [vmem:[#allocation10 + $0x30] sm:$0xff]
    %v2602 = vld [vmem:[#allocation10 + $0x38] sm:$0xff]
    %v2603 = vld [vmem:[#allocation10 + $0x40] sm:$0xff]
    %v2604 = vld [vmem:[#allocation10 + $0x48] sm:$0xff]
    %v2605 = vld [vmem:[#allocation10 + $0x50] sm:$0xff]
    %v2606 = vld [vmem:[#allocation10 + $0x58] sm:$0xff]
    %v2607 = vld [vmem:[#allocation10 + $0x60] sm:$0xff]
    %v2608 = vld [vmem:[#allocation10 + $0x68] sm:$0xff]
    %v2609 = vld [vmem:[#allocation10 + $0x70] sm:$0xff]
    %v2610 = vld [vmem:[#allocation10 + $0x78] sm:$0xff]
    %v2611 = vld [vmem:[#allocation10 + $0x80] sm:$0xff]
    %v2612 = vld [vmem:[#allocation10 + $0x88] sm:$0xff]
    %v2613 = vld [vmem:[#allocation10 + $0x90] sm:$0xff]
    %v2614 = vld [vmem:[#allocation10 + $0x98] sm:$0xff]
    %v2615 = vld [vmem:[#allocation10 + $0xa0] sm:$0xff]
    %v2616 = vld [vmem:[#allocation10 + $0xa8] sm:$0xff]
    %v2617 = vld [vmem:[#allocation10 + $0xb0] sm:$0xff]
    %v2618 = vld [vmem:[#allocation10 + $0xb8] sm:$0xff]
    %v2619 = vld [vmem:[#allocation10 + $0xc0] sm:$0xff]
    %v2620 = vld [vmem:[#allocation10 + $0xc8] sm:$0xff]
    %v2621 = vld [vmem:[#allocation10 + $0xd0] sm:$0xff]
    %v2622 = vld [vmem:[#allocation10 + $0xd8] sm:$0xff]
    %v2623 = vld [vmem:[#allocation10 + $0xe0] sm:$0xff]
    %v2624 = vld [vmem:[#allocation10 + $0xe8] sm:$0xff]
    %v2625 = vld [vmem:[#allocation10 + $0xf0] sm:$0xff]
    %v2626 = vld [vmem:[#allocation10 + $0xf8] sm:$0xff]
    %v2627 = vld [vmem:[#allocation10 + $0x100] sm:$0xff]
    %v2628 = vld [vmem:[#allocation10 + $0x108] sm:$0xff]
    %v2629 = vld [vmem:[#allocation10 + $0x110] sm:$0xff]
    %v2630 = vld [vmem:[#allocation10 + $0x118] sm:$0xff]
    %v2631 = vld [vmem:[#allocation10 + $0x120] sm:$0xff]
    %v2632 = vld [vmem:[#allocation10 + $0x128] sm:$0xff]
    %v2633 = vld [vmem:[#allocation10 + $0x130] sm:$0xff]
    %v2634 = vld [vmem:[#allocation10 + $0x138] sm:$0xff]
    %v2635 = vld [vmem:[#allocation10 + $0x140] sm:$0xff]
    %v2636 = vld [vmem:[#allocation10 + $0x148] sm:$0xff]
    %v2637 = vld [vmem:[#allocation10 + $0x150] sm:$0xff]
    %v2638 = vld [vmem:[#allocation10 + $0x158] sm:$0xff]
    %v2639 = vld [vmem:[#allocation10 + $0x160] sm:$0xff]
    %v2640 = vld [vmem:[#allocation10 + $0x168] sm:$0xff]
    %v2641 = vld [vmem:[#allocation10 + $0x170] sm:$0xff]
    %v2642 = vld [vmem:[#allocation10 + $0x178] sm:$0xff]
    %v2643 = vld [vmem:[#allocation10 + $0x180] sm:$0xff]
    %v2644 = vld [vmem:[#allocation10 + $0x188] sm:$0xff]
    %v2645 = vld [vmem:[#allocation10 + $0x190] sm:$0xff]
    %v2646 = vld [vmem:[#allocation10 + $0x198] sm:$0xff]
    %v2647 = vld [vmem:[#allocation10 + $0x1a0] sm:$0xff]
    %v2648 = vld [vmem:[#allocation10 + $0x1a8] sm:$0xff]
    %v2649 = vld [vmem:[#allocation10 + $0x1b0] sm:$0xff]
    %v2650 = vld [vmem:[#allocation10 + $0x1b8] sm:$0xff]
    %v2651 = vld [vmem:[#allocation10 + $0x1c0] sm:$0xff]
    %v2652 = vld [vmem:[#allocation10 + $0x1c8] sm:$0xff]
    %v2653 = vld [vmem:[#allocation10 + $0x1d0] sm:$0xff]
    %v2654 = vld [vmem:[#allocation10 + $0x1d8] sm:$0xff]
    %v2655 = vld [vmem:[#allocation10 + $0x1e0] sm:$0xff]
    %v2656 = vld [vmem:[#allocation10 + $0x1e8] sm:$0xff]
    %v2657 = vld [vmem:[#allocation10 + $0x1f0] sm:$0xff]
    %v2658 = vld [vmem:[#allocation10 + $0x1f8] sm:$0xff]
    %2659 = vmatprep.subr.mxu0 %v2596
    %2660 = vmatpush1.msra.mxu0 %v2595
    %2661 = vmatprep.subr.mxu0 %v2600
    %2662 = vmatpush1.msra.mxu0 %v2599
    %2663 = vmatprep.subr.mxu0 %v2604
    %2664 = vmatpush1.msra.mxu0 %v2603
    %2665 = vmatprep.subr.mxu0 %v2608
    %2666 = vmatpush1.msra.mxu0 %v2607
    %2667 = vmatprep.subr.mxu0 %v2612
    %2668 = vmatpush1.msra.mxu0 %v2611
    %2669 = vmatprep.subr.mxu0 %v2616
    %2670 = vmatpush1.msra.mxu0 %v2615
    %2671 = vmatprep.subr.mxu0 %v2620
    %2672 = vmatpush1.msra.mxu0 %v2619
    %2673 = vmatprep.subr.mxu0 %v2624
    %2674 = vmatpush1.msra.mxu0 %v2623
    %2675 = vmatprep.subr.mxu0 %v2628
    %2676 = vmatpush1.msra.mxu0 %v2627
    %2677 = vmatprep.subr.mxu0 %v2632
    %2678 = vmatpush1.msra.mxu0 %v2631
    %2679 = vmatprep.subr.mxu0 %v2636
    %2680 = vmatpush1.msra.mxu0 %v2635
    %2681 = vmatprep.subr.mxu0 %v2640
    %2682 = vmatpush1.msra.mxu0 %v2639
    %2683 = vmatprep.subr.mxu0 %v2644
    %2684 = vmatpush1.msra.mxu0 %v2643
    %2685 = vmatprep.subr.mxu0 %v2648
    %2686 = vmatpush1.msra.mxu0 %v2647
    %2687 = vmatprep.subr.mxu0 %v2652
    %2688 = vmatpush1.msra.mxu0 %v2651
    %2689 = vmatprep.subr.mxu0 %v2656
    %2690 = vmatpush1.msra.mxu0 %v2655
    %2691 = vmatprep.subr.mxu0 0.0
    %2692 = vmatpush1.msra.mxu0 0.0
    %2693 = vmatprep.subr.mxu0 0.0
    %2694 = vmatpush1.msra.mxu0 0.0
    %2695 = vmatprep.subr.mxu0 0.0
    %2696 = vmatpush1.msra.mxu0 0.0
    %2697 = vmatprep.subr.mxu0 0.0
    %2698 = vmatpush1.msra.mxu0 0.0
    %2699 = vmatprep.subr.mxu0 0.0
    %2700 = vmatpush1.msra.mxu0 0.0
    %2701 = vmatprep.subr.mxu0 0.0
    %2702 = vmatpush1.msra.mxu0 0.0
    %2703 = vmatprep.subr.mxu0 0.0
    %2704 = vmatpush1.msra.mxu0 0.0
    %2705 = vmatprep.subr.mxu0 0.0
    %2706 = vmatpush1.msra.mxu0 0.0
    %2707 = vmatprep.subr.mxu0 0.0
    %2708 = vmatpush1.msra.mxu0 0.0
    %2709 = vmatprep.subr.mxu0 0.0
    %2710 = vmatpush1.msra.mxu0 0.0
    %2711 = vmatprep.subr.mxu0 0.0
    %2712 = vmatpush1.msra.mxu0 0.0
    %2713 = vmatprep.subr.mxu0 0.0
    %2714 = vmatpush1.msra.mxu0 0.0
    %2715 = vmatprep.subr.mxu0 0.0
    %2716 = vmatpush1.msra.mxu0 0.0
    %2717 = vmatprep.subr.mxu0 0.0
    %2718 = vmatpush1.msra.mxu0 0.0
    %2719 = vmatprep.subr.mxu0 0.0
    %2720 = vmatpush1.msra.mxu0 0.0
    %2721 = vmatprep.subr.mxu0 0.0
    %2722 = vmatpush1.msra.mxu0 0.0
    %2723 = vmatprep.mubr.f32.mxu0 0.0
    %2724 = vmatmul.mubr.f32.gmra.mrb[0].mxu0 %v2336
    %v2725 = vpop.f32.mrb[0].mxu0
    %v2726 = vadd.f32 0.0, %v2725
    %v2727 = vpop.f32.mrb[0].mxu0
    %v2728 = vadd.f32 0.0, %v2727
    %2729 = vdwg.mxu0
    %2730 = vmatprep.subr.mxu0 %v2598
    %2731 = vmatpush1.msra.mxu0 %v2597
    %2732 = vmatprep.subr.mxu0 %v2602
    %2733 = vmatpush1.msra.mxu0 %v2601
    %2734 = vmatprep.subr.mxu0 %v2606
    %2735 = vmatpush1.msra.mxu0 %v2605
    %2736 = vmatprep.subr.mxu0 %v2610
    %2737 = vmatpush1.msra.mxu0 %v2609
    %2738 = vmatprep.subr.mxu0 %v2614
    %2739 = vmatpush1.msra.mxu0 %v2613
    %2740 = vmatprep.subr.mxu0 %v2618
    %2741 = vmatpush1.msra.mxu0 %v2617
    %2742 = vmatprep.subr.mxu0 %v2622
    %2743 = vmatpush1.msra.mxu0 %v2621
    %2744 = vmatprep.subr.mxu0 %v2626
    %2745 = vmatpush1.msra.mxu0 %v2625
    %2746 = vmatprep.subr.mxu0 %v2630
    %2747 = vmatpush1.msra.mxu0 %v2629
    %2748 = vmatprep.subr.mxu0 %v2634
    %2749 = vmatpush1.msra.mxu0 %v2633
    %2750 = vmatprep.subr.mxu0 %v2638
    %2751 = vmatpush1.msra.mxu0 %v2637
    %2752 = vmatprep.subr.mxu0 %v2642
    %2753 = vmatpush1.msra.mxu0 %v2641
    %2754 = vmatprep.subr.mxu0 %v2646
    %2755 = vmatpush1.msra.mxu0 %v2645
    %2756 = vmatprep.subr.mxu0 %v2650
    %2757 = vmatpush1.msra.mxu0 %v2649
    %2758 = vmatprep.subr.mxu0 %v2654
    %2759 = vmatpush1.msra.mxu0 %v2653
    %2760 = vmatprep.subr.mxu0 %v2658
    %2761 = vmatpush1.msra.mxu0 %v2657
    %2762 = vmatprep.subr.mxu0 0.0
    %2763 = vmatpush1.msra.mxu0 0.0
    %2764 = vmatprep.subr.mxu0 0.0
    %2765 = vmatpush1.msra.mxu0 0.0
    %2766 = vmatprep.subr.mxu0 0.0
    %2767 = vmatpush1.msra.mxu0 0.0
    %2768 = vmatprep.subr.mxu0 0.0
    %2769 = vmatpush1.msra.mxu0 0.0
    %2770 = vmatprep.subr.mxu0 0.0
    %2771 = vmatpush1.msra.mxu0 0.0
    %2772 = vmatprep.subr.mxu0 0.0
    %2773 = vmatpush1.msra.mxu0 0.0
    %2774 = vmatprep.subr.mxu0 0.0
    %2775 = vmatpush1.msra.mxu0 0.0
    %2776 = vmatprep.subr.mxu0 0.0
    %2777 = vmatpush1.msra.mxu0 0.0
    %2778 = vmatprep.subr.mxu0 0.0
    %2779 = vmatpush1.msra.mxu0 0.0
    %2780 = vmatprep.subr.mxu0 0.0
    %2781 = vmatpush1.msra.mxu0 0.0
    %2782 = vmatprep.subr.mxu0 0.0
    %2783 = vmatpush1.msra.mxu0 0.0
    %2784 = vmatprep.subr.mxu0 0.0
    %2785 = vmatpush1.msra.mxu0 0.0
    %2786 = vmatprep.subr.mxu0 0.0
    %2787 = vmatpush1.msra.mxu0 0.0
    %2788 = vmatprep.subr.mxu0 0.0
    %2789 = vmatpush1.msra.mxu0 0.0
    %2790 = vmatprep.subr.mxu0 0.0
    %2791 = vmatpush1.msra.mxu0 0.0
    %2792 = vmatprep.subr.mxu0 0.0
    %2793 = vmatpush1.msra.mxu0 0.0
    %2794 = vmatprep.mubr.f32.mxu0 0.0
    %2795 = vmatmul.mubr.f32.gmra.mrb[0].mxu0 %v2336
    %v2796 = vpop.f32.mrb[0].mxu0
    %v2797 = vadd.f32 0.0, %v2796
    %v2798 = vpop.f32.mrb[0].mxu0
    %v2799 = vadd.f32 0.0, %v2798
    %2800 = vdwg.mxu0
    %v2801 = vadd.f32 %v2591, %v2726
    %v2802 = vadd.f32 %v2592, %v2728
    %v2803 = vadd.f32 %v2593, %v2797
    %v2804 = vadd.f32 %v2594, %v2799
    %v2805 = vxor.u32 %v2801, 2147483648
    %v2806 = vmul.f32 %v2805, 1.442695
    %v2807 = vpow.pop %v2806
    %v2808 = vadd.f32 %v2807, 1.0
    %v2809 = vrcp.pop %v2808
    %v2810 = vmul.f32 1.0, %v2809
    %v2811 = vxor.u32 %v2802, 2147483648
    %v2812 = vmul.f32 %v2811, 1.442695
    %v2813 = vpow.pop %v2812
    %v2814 = vadd.f32 %v2813, 1.0
    %v2815 = vrcp.pop %v2814
    %v2816 = vmul.f32 1.0, %v2815
    %v2817 = vtanh.pop %v2803
    %v2818 = vxor.u32 %v2804, 2147483648
    %v2819 = vmul.f32 %v2818, 1.442695
    %v2820 = vpow.pop %v2819
    %v2821 = vadd.f32 %v2820, 1.0
    %v2822 = vrcp.pop %v2821
    %v2823 = vmul.f32 1.0, %v2822
    %v2824 = vmul.f32 %v2816, %v2337
    %v2825 = vmul.f32 %v2810, %v2817
    %v2826 = vadd.f32 %v2824, %v2825
    %v2827 = vtanh.pop %v2826
    %v2828 = vmul.f32 %v2823, %v2827
    %v2829 = vsel %vm2342, 1, 0
    %2830 = vset.pattern.permute.xlu0 0
    %2831 = vperm.xlu0 %2830, %v2829
    %v2832 = vpop.permute.xlu0 %2831
    %vm2833 = vcmp.eq.s32.totalorder %v2832, 1
    %v2834 = vsel %vm2833, %v2828, %v2336
    %v2835 = vsel %vm2833, %v2826, %v2337
    %v2836 = vsel %vm2833, %v2828, 0.0
    %s2837 = scalar_lea.vmem [#allocation12], 64
    %2838 = vst [vmem:[%s2837 + $0x8] sm:$0xff] %v2836
    %v2839 = vld [vmem:[#allocation2 + $0x80] sm:$0xff]
    %v2840 = vld [vmem:[#allocation2 + $0x88] sm:$0xff]
    %v2841 = vld [vmem:[#allocation2 + $0x90] sm:$0xff]
    %v2842 = vld [vmem:[#allocation2 + $0x98] sm:$0xff]
    %v2843 = vld [vmem:[#allocation9] sm:$0xff]
    %v2844 = vld [vmem:[#allocation9 + $0x8] sm:$0xff]
    %v2845 = vld [vmem:[#allocation9 + $0x10] sm:$0xff]
    %v2846 = vld [vmem:[#allocation9 + $0x18] sm:$0xff]
    %v2847 = vld [vmem:[#allocation9 + $0x20] sm:$0xff]
    %v2848 = vld [vmem:[#allocation9 + $0x28] sm:$0xff]
    %v2849 = vld [vmem:[#allocation9 + $0x30] sm:$0xff]
    %v2850 = vld [vmem:[#allocation9 + $0x38] sm:$0xff]
    %v2851 = vld [vmem:[#allocation9 + $0x40] sm:$0xff]
    %v2852 = vld [vmem:[#allocation9 + $0x48] sm:$0xff]
    %v2853 = vld [vmem:[#allocation9 + $0x50] sm:$0xff]
    %v2854 = vld [vmem:[#allocation9 + $0x58] sm:$0xff]
    %v2855 = vld [vmem:[#allocation9 + $0x60] sm:$0xff]
    %v2856 = vld [vmem:[#allocation9 + $0x68] sm:$0xff]
    %v2857 = vld [vmem:[#allocation9 + $0x70] sm:$0xff]
    %v2858 = vld [vmem:[#allocation9 + $0x78] sm:$0xff]
    %v2859 = vld [vmem:[#allocation9 + $0x80] sm:$0xff]
    %v2860 = vld [vmem:[#allocation9 + $0x88] sm:$0xff]
    %v2861 = vld [vmem:[#allocation9 + $0x90] sm:$0xff]
    %v2862 = vld [vmem:[#allocation9 + $0x98] sm:$0xff]
    %v2863 = vld [vmem:[#allocation9 + $0xa0] sm:$0xff]
    %v2864 = vld [vmem:[#allocation9 + $0xa8] sm:$0xff]
    %v2865 = vld [vmem:[#allocation9 + $0xb0] sm:$0xff]
    %v2866 = vld [vmem:[#allocation9 + $0xb8] sm:$0xff]
    %v2867 = vld [vmem:[#allocation9 + $0xc0] sm:$0xff]
    %v2868 = vld [vmem:[#allocation9 + $0xc8] sm:$0xff]
    %v2869 = vld [vmem:[#allocation9 + $0xd0] sm:$0xff]
    %v2870 = vld [vmem:[#allocation9 + $0xd8] sm:$0xff]
    %v2871 = vld [vmem:[#allocation9 + $0xe0] sm:$0xff]
    %v2872 = vld [vmem:[#allocation9 + $0xe8] sm:$0xff]
    %v2873 = vld [vmem:[#allocation9 + $0xf0] sm:$0xff]
    %v2874 = vld [vmem:[#allocation9 + $0xf8] sm:$0xff]
    %v2875 = vld [vmem:[#allocation9 + $0x100] sm:$0xff]
    %v2876 = vld [vmem:[#allocation9 + $0x108] sm:$0xff]
    %v2877 = vld [vmem:[#allocation9 + $0x110] sm:$0xff]
    %v2878 = vld [vmem:[#allocation9 + $0x118] sm:$0xff]
    %v2879 = vld [vmem:[#allocation9 + $0x120] sm:$0xff]
    %v2880 = vld [vmem:[#allocation9 + $0x128] sm:$0xff]
    %v2881 = vld [vmem:[#allocation9 + $0x130] sm:$0xff]
    %v2882 = vld [vmem:[#allocation9 + $0x138] sm:$0xff]
    %v2883 = vld [vmem:[#allocation9 + $0x140] sm:$0xff]
    %v2884 = vld [vmem:[#allocation9 + $0x148] sm:$0xff]
    %v2885 = vld [vmem:[#allocation9 + $0x150] sm:$0xff]
    %v2886 = vld [vmem:[#allocation9 + $0x158] sm:$0xff]
    %v2887 = vld [vmem:[#allocation9 + $0x160] sm:$0xff]
    %v2888 = vld [vmem:[#allocation9 + $0x168] sm:$0xff]
    %v2889 = vld [vmem:[#allocation9 + $0x170] sm:$0xff]
    %v2890 = vld [vmem:[#allocation9 + $0x178] sm:$0xff]
    %v2891 = vld [vmem:[#allocation9 + $0x180] sm:$0xff]
    %v2892 = vld [vmem:[#allocation9 + $0x188] sm:$0xff]
    %v2893 = vld [vmem:[#allocation9 + $0x190] sm:$0xff]
    %v2894 = vld [vmem:[#allocation9 + $0x198] sm:$0xff]
    %v2895 = vld [vmem:[#allocation9 + $0x1a0] sm:$0xff]
    %v2896 = vld [vmem:[#allocation9 + $0x1a8] sm:$0xff]
    %v2897 = vld [vmem:[#allocation9 + $0x1b0] sm:$0xff]
    %v2898 = vld [vmem:[#allocation9 + $0x1b8] sm:$0xff]
    %v2899 = vld [vmem:[#allocation9 + $0x1c0] sm:$0xff]
    %v2900 = vld [vmem:[#allocation9 + $0x1c8] sm:$0xff]
    %v2901 = vld [vmem:[#allocation9 + $0x1d0] sm:$0xff]
    %v2902 = vld [vmem:[#allocation9 + $0x1d8] sm:$0xff]
    %v2903 = vld [vmem:[#allocation9 + $0x1e0] sm:$0xff]
    %v2904 = vld [vmem:[#allocation9 + $0x1e8] sm:$0xff]
    %v2905 = vld [vmem:[#allocation9 + $0x1f0] sm:$0xff]
    %v2906 = vld [vmem:[#allocation9 + $0x1f8] sm:$0xff]
    %2907 = vmatprep.subr.mxu0 %v2844
    %2908 = vmatpush1.msra.mxu0 %v2843
    %2909 = vmatprep.subr.mxu0 %v2848
    %2910 = vmatpush1.msra.mxu0 %v2847
    %2911 = vmatprep.subr.mxu0 %v2852
    %2912 = vmatpush1.msra.mxu0 %v2851
    %2913 = vmatprep.subr.mxu0 %v2856
    %2914 = vmatpush1.msra.mxu0 %v2855
    %2915 = vmatprep.subr.mxu0 %v2860
    %2916 = vmatpush1.msra.mxu0 %v2859
    %2917 = vmatprep.subr.mxu0 %v2864
    %2918 = vmatpush1.msra.mxu0 %v2863
    %2919 = vmatprep.subr.mxu0 %v2868
    %2920 = vmatpush1.msra.mxu0 %v2867
    %2921 = vmatprep.subr.mxu0 %v2872
    %2922 = vmatpush1.msra.mxu0 %v2871
    %2923 = vmatprep.subr.mxu0 %v2876
    %2924 = vmatpush1.msra.mxu0 %v2875
    %2925 = vmatprep.subr.mxu0 %v2880
    %2926 = vmatpush1.msra.mxu0 %v2879
    %2927 = vmatprep.subr.mxu0 %v2884
    %2928 = vmatpush1.msra.mxu0 %v2883
    %2929 = vmatprep.subr.mxu0 %v2888
    %2930 = vmatpush1.msra.mxu0 %v2887
    %2931 = vmatprep.subr.mxu0 %v2892
    %2932 = vmatpush1.msra.mxu0 %v2891
    %2933 = vmatprep.subr.mxu0 %v2896
    %2934 = vmatpush1.msra.mxu0 %v2895
    %2935 = vmatprep.subr.mxu0 %v2900
    %2936 = vmatpush1.msra.mxu0 %v2899
    %2937 = vmatprep.subr.mxu0 %v2904
    %2938 = vmatpush1.msra.mxu0 %v2903
    %2939 = vmatprep.subr.mxu0 0.0
    %2940 = vmatpush1.msra.mxu0 0.0
    %2941 = vmatprep.subr.mxu0 0.0
    %2942 = vmatpush1.msra.mxu0 0.0
    %2943 = vmatprep.subr.mxu0 0.0
    %2944 = vmatpush1.msra.mxu0 0.0
    %2945 = vmatprep.subr.mxu0 0.0
    %2946 = vmatpush1.msra.mxu0 0.0
    %2947 = vmatprep.subr.mxu0 0.0
    %2948 = vmatpush1.msra.mxu0 0.0
    %2949 = vmatprep.subr.mxu0 0.0
    %2950 = vmatpush1.msra.mxu0 0.0
    %2951 = vmatprep.subr.mxu0 0.0
    %2952 = vmatpush1.msra.mxu0 0.0
    %2953 = vmatprep.subr.mxu0 0.0
    %2954 = vmatpush1.msra.mxu0 0.0
    %2955 = vmatprep.subr.mxu0 0.0
    %2956 = vmatpush1.msra.mxu0 0.0
    %2957 = vmatprep.subr.mxu0 0.0
    %2958 = vmatpush1.msra.mxu0 0.0
    %2959 = vmatprep.subr.mxu0 0.0
    %2960 = vmatpush1.msra.mxu0 0.0
    %2961 = vmatprep.subr.mxu0 0.0
    %2962 = vmatpush1.msra.mxu0 0.0
    %2963 = vmatprep.subr.mxu0 0.0
    %2964 = vmatpush1.msra.mxu0 0.0
    %2965 = vmatprep.subr.mxu0 0.0
    %2966 = vmatpush1.msra.mxu0 0.0
    %2967 = vmatprep.subr.mxu0 0.0
    %2968 = vmatpush1.msra.mxu0 0.0
    %2969 = vmatprep.subr.mxu0 0.0
    %2970 = vmatpush1.msra.mxu0 0.0
    %2971 = vmatprep.mubr.f32.mxu0 0.0
    %2972 = vmatmul.mubr.f32.gmra.mrb[0].mxu0 %v2586
    %v2973 = vpop.f32.mrb[0].mxu0
    %v2974 = vadd.f32 0.0, %v2973
    %v2975 = vpop.f32.mrb[0].mxu0
    %v2976 = vadd.f32 0.0, %v2975
    %2977 = vdwg.mxu0
    %2978 = vmatprep.subr.mxu0 %v2846
    %2979 = vmatpush1.msra.mxu0 %v2845
    %2980 = vmatprep.subr.mxu0 %v2850
    %2981 = vmatpush1.msra.mxu0 %v2849
    %2982 = vmatprep.subr.mxu0 %v2854
    %2983 = vmatpush1.msra.mxu0 %v2853
    %2984 = vmatprep.subr.mxu0 %v2858
    %2985 = vmatpush1.msra.mxu0 %v2857
    %2986 = vmatprep.subr.mxu0 %v2862
    %2987 = vmatpush1.msra.mxu0 %v2861
    %2988 = vmatprep.subr.mxu0 %v2866
    %2989 = vmatpush1.msra.mxu0 %v2865
    %2990 = vmatprep.subr.mxu0 %v2870
    %2991 = vmatpush1.msra.mxu0 %v2869
    %2992 = vmatprep.subr.mxu0 %v2874
    %2993 = vmatpush1.msra.mxu0 %v2873
    %2994 = vmatprep.subr.mxu0 %v2878
    %2995 = vmatpush1.msra.mxu0 %v2877
    %2996 = vmatprep.subr.mxu0 %v2882
    %2997 = vmatpush1.msra.mxu0 %v2881
    %2998 = vmatprep.subr.mxu0 %v2886
    %2999 = vmatpush1.msra.mxu0 %v2885
    %3000 = vmatprep.subr.mxu0 %v2890
    %3001 = vmatpush1.msra.mxu0 %v2889
    %3002 = vmatprep.subr.mxu0 %v2894
    %3003 = vmatpush1.msra.mxu0 %v2893
    %3004 = vmatprep.subr.mxu0 %v2898
    %3005 = vmatpush1.msra.mxu0 %v2897
    %3006 = vmatprep.subr.mxu0 %v2902
    %3007 = vmatpush1.msra.mxu0 %v2901
    %3008 = vmatprep.subr.mxu0 %v2906
    %3009 = vmatpush1.msra.mxu0 %v2905
    %3010 = vmatprep.subr.mxu0 0.0
    %3011 = vmatpush1.msra.mxu0 0.0
    %3012 = vmatprep.subr.mxu0 0.0
    %3013 = vmatpush1.msra.mxu0 0.0
    %3014 = vmatprep.subr.mxu0 0.0
    %3015 = vmatpush1.msra.mxu0 0.0
    %3016 = vmatprep.subr.mxu0 0.0
    %3017 = vmatpush1.msra.mxu0 0.0
    %3018 = vmatprep.subr.mxu0 0.0
    %3019 = vmatpush1.msra.mxu0 0.0
    %3020 = vmatprep.subr.mxu0 0.0
    %3021 = vmatpush1.msra.mxu0 0.0
    %3022 = vmatprep.subr.mxu0 0.0
    %3023 = vmatpush1.msra.mxu0 0.0
    %3024 = vmatprep.subr.mxu0 0.0
    %3025 = vmatpush1.msra.mxu0 0.0
    %3026 = vmatprep.subr.mxu0 0.0
    %3027 = vmatpush1.msra.mxu0 0.0
    %3028 = vmatprep.subr.mxu0 0.0
    %3029 = vmatpush1.msra.mxu0 0.0
    %3030 = vmatprep.subr.mxu0 0.0
    %3031 = vmatpush1.msra.mxu0 0.0
    %3032 = vmatprep.subr.mxu0 0.0
    %3033 = vmatpush1.msra.mxu0 0.0
    %3034 = vmatprep.subr.mxu0 0.0
    %3035 = vmatpush1.msra.mxu0 0.0
    %3036 = vmatprep.subr.mxu0 0.0
    %3037 = vmatpush1.msra.mxu0 0.0
    %3038 = vmatprep.subr.mxu0 0.0
    %3039 = vmatpush1.msra.mxu0 0.0
    %3040 = vmatprep.subr.mxu0 0.0
    %3041 = vmatpush1.msra.mxu0 0.0
    %3042 = vmatprep.mubr.f32.mxu0 0.0
    %3043 = vmatmul.mubr.f32.gmra.mrb[0].mxu0 %v2586
    %v3044 = vpop.f32.mrb[0].mxu0
    %v3045 = vadd.f32 0.0, %v3044
    %v3046 = vpop.f32.mrb[0].mxu0
    %v3047 = vadd.f32 0.0, %v3046
    %3048 = vdwg.mxu0
    %v3049 = vadd.f32 %v2839, %v2974
    %v3050 = vadd.f32 %v2840, %v2976
    %v3051 = vadd.f32 %v2841, %v3045
    %v3052 = vadd.f32 %v2842, %v3047
    %v3053 = vxor.u32 %v3049, 2147483648
    %v3054 = vmul.f32 %v3053, 1.442695
    %v3055 = vpow.pop %v3054
    %v3056 = vadd.f32 %v3055, 1.0
    %v3057 = vrcp.pop %v3056
    %v3058 = vmul.f32 1.0, %v3057
    %v3059 = vxor.u32 %v3050, 2147483648
    %v3060 = vmul.f32 %v3059, 1.442695
    %v3061 = vpow.pop %v3060
    %v3062 = vadd.f32 %v3061, 1.0
    %v3063 = vrcp.pop %v3062
    %v3064 = vmul.f32 1.0, %v3063
    %v3065 = vtanh.pop %v3051
    %v3066 = vxor.u32 %v3052, 2147483648
    %v3067 = vmul.f32 %v3066, 1.442695
    %v3068 = vpow.pop %v3067
    %v3069 = vadd.f32 %v3068, 1.0
    %v3070 = vrcp.pop %v3069
    %v3071 = vmul.f32 1.0, %v3070
    %v3072 = vmul.f32 %v3064, %v2587
    %v3073 = vmul.f32 %v3058, %v3065
    %v3074 = vadd.f32 %v3072, %v3073
    %v3075 = vtanh.pop %v3074
    %v3076 = vmul.f32 %v3071, %v3075
    %v3077 = vsel %vm2833, %v3076, %v2586
    %v3078 = vsel %vm2833, %v3074, %v2587
    %v3079 = vsel %vm2833, %v3076, 0.0
    %3080 = vst [vmem:[%s2837] sm:$0xff] %v3079
    %v3081 = vld [vmem:[#allocation3 + $0x60] sm:$0xff]
    %v3082 = vld [vmem:[#allocation3 + $0x68] sm:$0xff]
    %v3083 = vld [vmem:[#allocation3 + $0x70] sm:$0xff]
    %v3084 = vld [vmem:[#allocation3 + $0x78] sm:$0xff]
    %v3085 = vld [vmem:[#allocation10] sm:$0xff]
    %v3086 = vld [vmem:[#allocation10 + $0x8] sm:$0xff]
    %v3087 = vld [vmem:[#allocation10 + $0x10] sm:$0xff]
    %v3088 = vld [vmem:[#allocation10 + $0x18] sm:$0xff]
    %v3089 = vld [vmem:[#allocation10 + $0x20] sm:$0xff]
    %v3090 = vld [vmem:[#allocation10 + $0x28] sm:$0xff]
    %v3091 = vld [vmem:[#allocation10 + $0x30] sm:$0xff]
    %v3092 = vld [vmem:[#allocation10 + $0x38] sm:$0xff]
    %v3093 = vld [vmem:[#allocation10 + $0x40] sm:$0xff]
    %v3094 = vld [vmem:[#allocation10 + $0x48] sm:$0xff]
    %v3095 = vld [vmem:[#allocation10 + $0x50] sm:$0xff]
    %v3096 = vld [vmem:[#allocation10 + $0x58] sm:$0xff]
    %v3097 = vld [vmem:[#allocation10 + $0x60] sm:$0xff]
    %v3098 = vld [vmem:[#allocation10 + $0x68] sm:$0xff]
    %v3099 = vld [vmem:[#allocation10 + $0x70] sm:$0xff]
    %v3100 = vld [vmem:[#allocation10 + $0x78] sm:$0xff]
    %v3101 = vld [vmem:[#allocation10 + $0x80] sm:$0xff]
    %v3102 = vld [vmem:[#allocation10 + $0x88] sm:$0xff]
    %v3103 = vld [vmem:[#allocation10 + $0x90] sm:$0xff]
    %v3104 = vld [vmem:[#allocation10 + $0x98] sm:$0xff]
    %v3105 = vld [vmem:[#allocation10 + $0xa0] sm:$0xff]
    %v3106 = vld [vmem:[#allocation10 + $0xa8] sm:$0xff]
    %v3107 = vld [vmem:[#allocation10 + $0xb0] sm:$0xff]
    %v3108 = vld [vmem:[#allocation10 + $0xb8] sm:$0xff]
    %v3109 = vld [vmem:[#allocation10 + $0xc0] sm:$0xff]
    %v3110 = vld [vmem:[#allocation10 + $0xc8] sm:$0xff]
    %v3111 = vld [vmem:[#allocation10 + $0xd0] sm:$0xff]
    %v3112 = vld [vmem:[#allocation10 + $0xd8] sm:$0xff]
    %v3113 = vld [vmem:[#allocation10 + $0xe0] sm:$0xff]
    %v3114 = vld [vmem:[#allocation10 + $0xe8] sm:$0xff]
    %v3115 = vld [vmem:[#allocation10 + $0xf0] sm:$0xff]
    %v3116 = vld [vmem:[#allocation10 + $0xf8] sm:$0xff]
    %v3117 = vld [vmem:[#allocation10 + $0x100] sm:$0xff]
    %v3118 = vld [vmem:[#allocation10 + $0x108] sm:$0xff]
    %v3119 = vld [vmem:[#allocation10 + $0x110] sm:$0xff]
    %v3120 = vld [vmem:[#allocation10 + $0x118] sm:$0xff]
    %v3121 = vld [vmem:[#allocation10 + $0x120] sm:$0xff]
    %v3122 = vld [vmem:[#allocation10 + $0x128] sm:$0xff]
    %v3123 = vld [vmem:[#allocation10 + $0x130] sm:$0xff]
    %v3124 = vld [vmem:[#allocation10 + $0x138] sm:$0xff]
    %v3125 = vld [vmem:[#allocation10 + $0x140] sm:$0xff]
    %v3126 = vld [vmem:[#allocation10 + $0x148] sm:$0xff]
    %v3127 = vld [vmem:[#allocation10 + $0x150] sm:$0xff]
    %v3128 = vld [vmem:[#allocation10 + $0x158] sm:$0xff]
    %v3129 = vld [vmem:[#allocation10 + $0x160] sm:$0xff]
    %v3130 = vld [vmem:[#allocation10 + $0x168] sm:$0xff]
    %v3131 = vld [vmem:[#allocation10 + $0x170] sm:$0xff]
    %v3132 = vld [vmem:[#allocation10 + $0x178] sm:$0xff]
    %v3133 = vld [vmem:[#allocation10 + $0x180] sm:$0xff]
    %v3134 = vld [vmem:[#allocation10 + $0x188] sm:$0xff]
    %v3135 = vld [vmem:[#allocation10 + $0x190] sm:$0xff]
    %v3136 = vld [vmem:[#allocation10 + $0x198] sm:$0xff]
    %v3137 = vld [vmem:[#allocation10 + $0x1a0] sm:$0xff]
    %v3138 = vld [vmem:[#allocation10 + $0x1a8] sm:$0xff]
    %v3139 = vld [vmem:[#allocation10 + $0x1b0] sm:$0xff]
    %v3140 = vld [vmem:[#allocation10 + $0x1b8] sm:$0xff]
    %v3141 = vld [vmem:[#allocation10 + $0x1c0] sm:$0xff]
    %v3142 = vld [vmem:[#allocation10 + $0x1c8] sm:$0xff]
    %v3143 = vld [vmem:[#allocation10 + $0x1d0] sm:$0xff]
    %v3144 = vld [vmem:[#allocation10 + $0x1d8] sm:$0xff]
    %v3145 = vld [vmem:[#allocation10 + $0x1e0] sm:$0xff]
    %v3146 = vld [vmem:[#allocation10 + $0x1e8] sm:$0xff]
    %v3147 = vld [vmem:[#allocation10 + $0x1f0] sm:$0xff]
    %v3148 = vld [vmem:[#allocation10 + $0x1f8] sm:$0xff]
    %3149 = vmatprep.subr.mxu0 %v3086
    %3150 = vmatpush1.msra.mxu0 %v3085
    %3151 = vmatprep.subr.mxu0 %v3090
    %3152 = vmatpush1.msra.mxu0 %v3089
    %3153 = vmatprep.subr.mxu0 %v3094
    %3154 = vmatpush1.msra.mxu0 %v3093
    %3155 = vmatprep.subr.mxu0 %v3098
    %3156 = vmatpush1.msra.mxu0 %v3097
    %3157 = vmatprep.subr.mxu0 %v3102
    %3158 = vmatpush1.msra.mxu0 %v3101
    %3159 = vmatprep.subr.mxu0 %v3106
    %3160 = vmatpush1.msra.mxu0 %v3105
    %3161 = vmatprep.subr.mxu0 %v3110
    %3162 = vmatpush1.msra.mxu0 %v3109
    %3163 = vmatprep.subr.mxu0 %v3114
    %3164 = vmatpush1.msra.mxu0 %v3113
    %3165 = vmatprep.subr.mxu0 %v3118
    %3166 = vmatpush1.msra.mxu0 %v3117
    %3167 = vmatprep.subr.mxu0 %v3122
    %3168 = vmatpush1.msra.mxu0 %v3121
    %3169 = vmatprep.subr.mxu0 %v3126
    %3170 = vmatpush1.msra.mxu0 %v3125
    %3171 = vmatprep.subr.mxu0 %v3130
    %3172 = vmatpush1.msra.mxu0 %v3129
    %3173 = vmatprep.subr.mxu0 %v3134
    %3174 = vmatpush1.msra.mxu0 %v3133
    %3175 = vmatprep.subr.mxu0 %v3138
    %3176 = vmatpush1.msra.mxu0 %v3137
    %3177 = vmatprep.subr.mxu0 %v3142
    %3178 = vmatpush1.msra.mxu0 %v3141
    %3179 = vmatprep.subr.mxu0 %v3146
    %3180 = vmatpush1.msra.mxu0 %v3145
    %3181 = vmatprep.subr.mxu0 0.0
    %3182 = vmatpush1.msra.mxu0 0.0
    %3183 = vmatprep.subr.mxu0 0.0
    %3184 = vmatpush1.msra.mxu0 0.0
    %3185 = vmatprep.subr.mxu0 0.0
    %3186 = vmatpush1.msra.mxu0 0.0
    %3187 = vmatprep.subr.mxu0 0.0
    %3188 = vmatpush1.msra.mxu0 0.0
    %3189 = vmatprep.subr.mxu0 0.0
    %3190 = vmatpush1.msra.mxu0 0.0
    %3191 = vmatprep.subr.mxu0 0.0
    %3192 = vmatpush1.msra.mxu0 0.0
    %3193 = vmatprep.subr.mxu0 0.0
    %3194 = vmatpush1.msra.mxu0 0.0
    %3195 = vmatprep.subr.mxu0 0.0
    %3196 = vmatpush1.msra.mxu0 0.0
    %3197 = vmatprep.subr.mxu0 0.0
    %3198 = vmatpush1.msra.mxu0 0.0
    %3199 = vmatprep.subr.mxu0 0.0
    %3200 = vmatpush1.msra.mxu0 0.0
    %3201 = vmatprep.subr.mxu0 0.0
    %3202 = vmatpush1.msra.mxu0 0.0
    %3203 = vmatprep.subr.mxu0 0.0
    %3204 = vmatpush1.msra.mxu0 0.0
    %3205 = vmatprep.subr.mxu0 0.0
    %3206 = vmatpush1.msra.mxu0 0.0
    %3207 = vmatprep.subr.mxu0 0.0
    %3208 = vmatpush1.msra.mxu0 0.0
    %3209 = vmatprep.subr.mxu0 0.0
    %3210 = vmatpush1.msra.mxu0 0.0
    %3211 = vmatprep.subr.mxu0 0.0
    %3212 = vmatpush1.msra.mxu0 0.0
    %3213 = vmatprep.mubr.f32.mxu0 0.0
    %3214 = vmatmul.mubr.f32.gmra.mrb[0].mxu0 %v2834
    %v3215 = vpop.f32.mrb[0].mxu0
    %v3216 = vadd.f32 0.0, %v3215
    %v3217 = vpop.f32.mrb[0].mxu0
    %v3218 = vadd.f32 0.0, %v3217
    %3219 = vdwg.mxu0
    %3220 = vmatprep.subr.mxu0 %v3088
    %3221 = vmatpush1.msra.mxu0 %v3087
    %3222 = vmatprep.subr.mxu0 %v3092
    %3223 = vmatpush1.msra.mxu0 %v3091
    %3224 = vmatprep.subr.mxu0 %v3096
    %3225 = vmatpush1.msra.mxu0 %v3095
    %3226 = vmatprep.subr.mxu0 %v3100
    %3227 = vmatpush1.msra.mxu0 %v3099
    %3228 = vmatprep.subr.mxu0 %v3104
    %3229 = vmatpush1.msra.mxu0 %v3103
    %3230 = vmatprep.subr.mxu0 %v3108
    %3231 = vmatpush1.msra.mxu0 %v3107
    %3232 = vmatprep.subr.mxu0 %v3112
    %3233 = vmatpush1.msra.mxu0 %v3111
    %3234 = vmatprep.subr.mxu0 %v3116
    %3235 = vmatpush1.msra.mxu0 %v3115
    %3236 = vmatprep.subr.mxu0 %v3120
    %3237 = vmatpush1.msra.mxu0 %v3119
    %3238 = vmatprep.subr.mxu0 %v3124
    %3239 = vmatpush1.msra.mxu0 %v3123
    %3240 = vmatprep.subr.mxu0 %v3128
    %3241 = vmatpush1.msra.mxu0 %v3127
    %3242 = vmatprep.subr.mxu0 %v3132
    %3243 = vmatpush1.msra.mxu0 %v3131
    %3244 = vmatprep.subr.mxu0 %v3136
    %3245 = vmatpush1.msra.mxu0 %v3135
    %3246 = vmatprep.subr.mxu0 %v3140
    %3247 = vmatpush1.msra.mxu0 %v3139
    %3248 = vmatprep.subr.mxu0 %v3144
    %3249 = vmatpush1.msra.mxu0 %v3143
    %3250 = vmatprep.subr.mxu0 %v3148
    %3251 = vmatpush1.msra.mxu0 %v3147
    %3252 = vmatprep.subr.mxu0 0.0
    %3253 = vmatpush1.msra.mxu0 0.0
    %3254 = vmatprep.subr.mxu0 0.0
    %3255 = vmatpush1.msra.mxu0 0.0
    %3256 = vmatprep.subr.mxu0 0.0
    %3257 = vmatpush1.msra.mxu0 0.0
    %3258 = vmatprep.subr.mxu0 0.0
    %3259 = vmatpush1.msra.mxu0 0.0
    %3260 = vmatprep.subr.mxu0 0.0
    %3261 = vmatpush1.msra.mxu0 0.0
    %3262 = vmatprep.subr.mxu0 0.0
    %3263 = vmatpush1.msra.mxu0 0.0
    %3264 = vmatprep.subr.mxu0 0.0
    %3265 = vmatpush1.msra.mxu0 0.0
    %3266 = vmatprep.subr.mxu0 0.0
    %3267 = vmatpush1.msra.mxu0 0.0
    %3268 = vmatprep.subr.mxu0 0.0
    %3269 = vmatpush1.msra.mxu0 0.0
    %3270 = vmatprep.subr.mxu0 0.0
    %3271 = vmatpush1.msra.mxu0 0.0
    %3272 = vmatprep.subr.mxu0 0.0
    %3273 = vmatpush1.msra.mxu0 0.0
    %3274 = vmatprep.subr.mxu0 0.0
    %3275 = vmatpush1.msra.mxu0 0.0
    %3276 = vmatprep.subr.mxu0 0.0
    %3277 = vmatpush1.msra.mxu0 0.0
    %3278 = vmatprep.subr.mxu0 0.0
    %3279 = vmatpush1.msra.mxu0 0.0
    %3280 = vmatprep.subr.mxu0 0.0
    %3281 = vmatpush1.msra.mxu0 0.0
    %3282 = vmatprep.subr.mxu0 0.0
    %3283 = vmatpush1.msra.mxu0 0.0
    %3284 = vmatprep.mubr.f32.mxu0 0.0
    %3285 = vmatmul.mubr.f32.gmra.mrb[0].mxu0 %v2834
    %v3286 = vpop.f32.mrb[0].mxu0
    %v3287 = vadd.f32 0.0, %v3286
    %v3288 = vpop.f32.mrb[0].mxu0
    %v3289 = vadd.f32 0.0, %v3288
    %3290 = vdwg.mxu0
    %v3291 = vadd.f32 %v3081, %v3216
    %v3292 = vadd.f32 %v3082, %v3218
    %v3293 = vadd.f32 %v3083, %v3287
    %v3294 = vadd.f32 %v3084, %v3289
    %v3295 = vxor.u32 %v3291, 2147483648
    %v3296 = vmul.f32 %v3295, 1.442695
    %v3297 = vpow.pop %v3296
    %v3298 = vadd.f32 %v3297, 1.0
    %v3299 = vrcp.pop %v3298
    %v3300 = vmul.f32 1.0, %v3299
    %v3301 = vxor.u32 %v3292, 2147483648
    %v3302 = vmul.f32 %v3301, 1.442695
    %v3303 = vpow.pop %v3302
    %v3304 = vadd.f32 %v3303, 1.0
    %v3305 = vrcp.pop %v3304
    %v3306 = vmul.f32 1.0, %v3305
    %v3307 = vtanh.pop %v3293
    %v3308 = vxor.u32 %v3294, 2147483648
    %v3309 = vmul.f32 %v3308, 1.442695
    %v3310 = vpow.pop %v3309
    %v3311 = vadd.f32 %v3310, 1.0
    %v3312 = vrcp.pop %v3311
    %v3313 = vmul.f32 1.0, %v3312
    %v3314 = vmul.f32 %v3306, %v2835
    %v3315 = vmul.f32 %v3300, %v3307
    %v3316 = vadd.f32 %v3314, %v3315
    %v3317 = vtanh.pop %v3316
    %v3318 = vmul.f32 %v3313, %v3317
    %v3319 = vsel %vm2585, %v3318, %v2834
    %v3320 = vsel %vm2585, %v3316, %v2835
    %v3321 = vsel %vm2585, %v3318, 0.0
    %3322 = vst [vmem:[%s2589 + $0x8] sm:$0xff] %v3321
    %v3323 = vld [vmem:[#allocation2 + $0xa0] sm:$0xff]
    %v3324 = vld [vmem:[#allocation2 + $0xa8] sm:$0xff]
    %v3325 = vld [vmem:[#allocation2 + $0xb0] sm:$0xff]
    %v3326 = vld [vmem:[#allocation2 + $0xb8] sm:$0xff]
    %v3327 = vld [vmem:[#allocation9] sm:$0xff]
    %v3328 = vld [vmem:[#allocation9 + $0x8] sm:$0xff]
    %v3329 = vld [vmem:[#allocation9 + $0x10] sm:$0xff]
    %v3330 = vld [vmem:[#allocation9 + $0x18] sm:$0xff]
    %v3331 = vld [vmem:[#allocation9 + $0x20] sm:$0xff]
    %v3332 = vld [vmem:[#allocation9 + $0x28] sm:$0xff]
    %v3333 = vld [vmem:[#allocation9 + $0x30] sm:$0xff]
    %v3334 = vld [vmem:[#allocation9 + $0x38] sm:$0xff]
    %v3335 = vld [vmem:[#allocation9 + $0x40] sm:$0xff]
    %v3336 = vld [vmem:[#allocation9 + $0x48] sm:$0xff]
    %v3337 = vld [vmem:[#allocation9 + $0x50] sm:$0xff]
    %v3338 = vld [vmem:[#allocation9 + $0x58] sm:$0xff]
    %v3339 = vld [vmem:[#allocation9 + $0x60] sm:$0xff]
    %v3340 = vld [vmem:[#allocation9 + $0x68] sm:$0xff]
    %v3341 = vld [vmem:[#allocation9 + $0x70] sm:$0xff]
    %v3342 = vld [vmem:[#allocation9 + $0x78] sm:$0xff]
    %v3343 = vld [vmem:[#allocation9 + $0x80] sm:$0xff]
    %v3344 = vld [vmem:[#allocation9 + $0x88] sm:$0xff]
    %v3345 = vld [vmem:[#allocation9 + $0x90] sm:$0xff]
    %v3346 = vld [vmem:[#allocation9 + $0x98] sm:$0xff]
    %v3347 = vld [vmem:[#allocation9 + $0xa0] sm:$0xff]
    %v3348 = vld [vmem:[#allocation9 + $0xa8] sm:$0xff]
    %v3349 = vld [vmem:[#allocation9 + $0xb0] sm:$0xff]
    %v3350 = vld [vmem:[#allocation9 + $0xb8] sm:$0xff]
    %v3351 = vld [vmem:[#allocation9 + $0xc0] sm:$0xff]
    %v3352 = vld [vmem:[#allocation9 + $0xc8] sm:$0xff]
    %v3353 = vld [vmem:[#allocation9 + $0xd0] sm:$0xff]
    %v3354 = vld [vmem:[#allocation9 + $0xd8] sm:$0xff]
    %v3355 = vld [vmem:[#allocation9 + $0xe0] sm:$0xff]
    %v3356 = vld [vmem:[#allocation9 + $0xe8] sm:$0xff]
    %v3357 = vld [vmem:[#allocation9 + $0xf0] sm:$0xff]
    %v3358 = vld [vmem:[#allocation9 + $0xf8] sm:$0xff]
    %v3359 = vld [vmem:[#allocation9 + $0x100] sm:$0xff]
    %v3360 = vld [vmem:[#allocation9 + $0x108] sm:$0xff]
    %v3361 = vld [vmem:[#allocation9 + $0x110] sm:$0xff]
    %v3362 = vld [vmem:[#allocation9 + $0x118] sm:$0xff]
    %v3363 = vld [vmem:[#allocation9 + $0x120] sm:$0xff]
    %v3364 = vld [vmem:[#allocation9 + $0x128] sm:$0xff]
    %v3365 = vld [vmem:[#allocation9 + $0x130] sm:$0xff]
    %v3366 = vld [vmem:[#allocation9 + $0x138] sm:$0xff]
    %v3367 = vld [vmem:[#allocation9 + $0x140] sm:$0xff]
    %v3368 = vld [vmem:[#allocation9 + $0x148] sm:$0xff]
    %v3369 = vld [vmem:[#allocation9 + $0x150] sm:$0xff]
    %v3370 = vld [vmem:[#allocation9 + $0x158] sm:$0xff]
    %v3371 = vld [vmem:[#allocation9 + $0x160] sm:$0xff]
    %v3372 = vld [vmem:[#allocation9 + $0x168] sm:$0xff]
    %v3373 = vld [vmem:[#allocation9 + $0x170] sm:$0xff]
    %v3374 = vld [vmem:[#allocation9 + $0x178] sm:$0xff]
    %v3375 = vld [vmem:[#allocation9 + $0x180] sm:$0xff]
    %v3376 = vld [vmem:[#allocation9 + $0x188] sm:$0xff]
    %v3377 = vld [vmem:[#allocation9 + $0x190] sm:$0xff]
    %v3378 = vld [vmem:[#allocation9 + $0x198] sm:$0xff]
    %v3379 = vld [vmem:[#allocation9 + $0x1a0] sm:$0xff]
    %v3380 = vld [vmem:[#allocation9 + $0x1a8] sm:$0xff]
    %v3381 = vld [vmem:[#allocation9 + $0x1b0] sm:$0xff]
    %v3382 = vld [vmem:[#allocation9 + $0x1b8] sm:$0xff]
    %v3383 = vld [vmem:[#allocation9 + $0x1c0] sm:$0xff]
    %v3384 = vld [vmem:[#allocation9 + $0x1c8] sm:$0xff]
    %v3385 = vld [vmem:[#allocation9 + $0x1d0] sm:$0xff]
    %v3386 = vld [vmem:[#allocation9 + $0x1d8] sm:$0xff]
    %v3387 = vld [vmem:[#allocation9 + $0x1e0] sm:$0xff]
    %v3388 = vld [vmem:[#allocation9 + $0x1e8] sm:$0xff]
    %v3389 = vld [vmem:[#allocation9 + $0x1f0] sm:$0xff]
    %v3390 = vld [vmem:[#allocation9 + $0x1f8] sm:$0xff]
    %3391 = vmatprep.subr.mxu0 %v3328
    %3392 = vmatpush1.msra.mxu0 %v3327
    %3393 = vmatprep.subr.mxu0 %v3332
    %3394 = vmatpush1.msra.mxu0 %v3331
    %3395 = vmatprep.subr.mxu0 %v3336
    %3396 = vmatpush1.msra.mxu0 %v3335
    %3397 = vmatprep.subr.mxu0 %v3340
    %3398 = vmatpush1.msra.mxu0 %v3339
    %3399 = vmatprep.subr.mxu0 %v3344
    %3400 = vmatpush1.msra.mxu0 %v3343
    %3401 = vmatprep.subr.mxu0 %v3348
    %3402 = vmatpush1.msra.mxu0 %v3347
    %3403 = vmatprep.subr.mxu0 %v3352
    %3404 = vmatpush1.msra.mxu0 %v3351
    %3405 = vmatprep.subr.mxu0 %v3356
    %3406 = vmatpush1.msra.mxu0 %v3355
    %3407 = vmatprep.subr.mxu0 %v3360
    %3408 = vmatpush1.msra.mxu0 %v3359
    %3409 = vmatprep.subr.mxu0 %v3364
    %3410 = vmatpush1.msra.mxu0 %v3363
    %3411 = vmatprep.subr.mxu0 %v3368
    %3412 = vmatpush1.msra.mxu0 %v3367
    %3413 = vmatprep.subr.mxu0 %v3372
    %3414 = vmatpush1.msra.mxu0 %v3371
    %3415 = vmatprep.subr.mxu0 %v3376
    %3416 = vmatpush1.msra.mxu0 %v3375
    %3417 = vmatprep.subr.mxu0 %v3380
    %3418 = vmatpush1.msra.mxu0 %v3379
    %3419 = vmatprep.subr.mxu0 %v3384
    %3420 = vmatpush1.msra.mxu0 %v3383
    %3421 = vmatprep.subr.mxu0 %v3388
    %3422 = vmatpush1.msra.mxu0 %v3387
    %3423 = vmatprep.subr.mxu0 0.0
    %3424 = vmatpush1.msra.mxu0 0.0
    %3425 = vmatprep.subr.mxu0 0.0
    %3426 = vmatpush1.msra.mxu0 0.0
    %3427 = vmatprep.subr.mxu0 0.0
    %3428 = vmatpush1.msra.mxu0 0.0
    %3429 = vmatprep.subr.mxu0 0.0
    %3430 = vmatpush1.msra.mxu0 0.0
    %3431 = vmatprep.subr.mxu0 0.0
    %3432 = vmatpush1.msra.mxu0 0.0
    %3433 = vmatprep.subr.mxu0 0.0
    %3434 = vmatpush1.msra.mxu0 0.0
    %3435 = vmatprep.subr.mxu0 0.0
    %3436 = vmatpush1.msra.mxu0 0.0
    %3437 = vmatprep.subr.mxu0 0.0
    %3438 = vmatpush1.msra.mxu0 0.0
    %3439 = vmatprep.subr.mxu0 0.0
    %3440 = vmatpush1.msra.mxu0 0.0
    %3441 = vmatprep.subr.mxu0 0.0
    %3442 = vmatpush1.msra.mxu0 0.0
    %3443 = vmatprep.subr.mxu0 0.0
    %3444 = vmatpush1.msra.mxu0 0.0
    %3445 = vmatprep.subr.mxu0 0.0
    %3446 = vmatpush1.msra.mxu0 0.0
    %3447 = vmatprep.subr.mxu0 0.0
    %3448 = vmatpush1.msra.mxu0 0.0
    %3449 = vmatprep.subr.mxu0 0.0
    %3450 = vmatpush1.msra.mxu0 0.0
    %3451 = vmatprep.subr.mxu0 0.0
    %3452 = vmatpush1.msra.mxu0 0.0
    %3453 = vmatprep.subr.mxu0 0.0
    %3454 = vmatpush1.msra.mxu0 0.0
    %3455 = vmatprep.mubr.f32.mxu0 0.0
    %3456 = vmatmul.mubr.f32.gmra.mrb[0].mxu0 %v3077
    %v3457 = vpop.f32.mrb[0].mxu0
    %v3458 = vadd.f32 0.0, %v3457
    %v3459 = vpop.f32.mrb[0].mxu0
    %v3460 = vadd.f32 0.0, %v3459
    %3461 = vdwg.mxu0
    %3462 = vmatprep.subr.mxu0 %v3330
    %3463 = vmatpush1.msra.mxu0 %v3329
    %3464 = vmatprep.subr.mxu0 %v3334
    %3465 = vmatpush1.msra.mxu0 %v3333
    %3466 = vmatprep.subr.mxu0 %v3338
    %3467 = vmatpush1.msra.mxu0 %v3337
    %3468 = vmatprep.subr.mxu0 %v3342
    %3469 = vmatpush1.msra.mxu0 %v3341
    %3470 = vmatprep.subr.mxu0 %v3346
    %3471 = vmatpush1.msra.mxu0 %v3345
    %3472 = vmatprep.subr.mxu0 %v3350
    %3473 = vmatpush1.msra.mxu0 %v3349
    %3474 = vmatprep.subr.mxu0 %v3354
    %3475 = vmatpush1.msra.mxu0 %v3353
    %3476 = vmatprep.subr.mxu0 %v3358
    %3477 = vmatpush1.msra.mxu0 %v3357
    %3478 = vmatprep.subr.mxu0 %v3362
    %3479 = vmatpush1.msra.mxu0 %v3361
    %3480 = vmatprep.subr.mxu0 %v3366
    %3481 = vmatpush1.msra.mxu0 %v3365
    %3482 = vmatprep.subr.mxu0 %v3370
    %3483 = vmatpush1.msra.mxu0 %v3369
    %3484 = vmatprep.subr.mxu0 %v3374
    %3485 = vmatpush1.msra.mxu0 %v3373
    %3486 = vmatprep.subr.mxu0 %v3378
    %3487 = vmatpush1.msra.mxu0 %v3377
    %3488 = vmatprep.subr.mxu0 %v3382
    %3489 = vmatpush1.msra.mxu0 %v3381
    %3490 = vmatprep.subr.mxu0 %v3386
    %3491 = vmatpush1.msra.mxu0 %v3385
    %3492 = vmatprep.subr.mxu0 %v3390
    %3493 = vmatpush1.msra.mxu0 %v3389
    %3494 = vmatprep.subr.mxu0 0.0
    %3495 = vmatpush1.msra.mxu0 0.0
    %3496 = vmatprep.subr.mxu0 0.0
    %3497 = vmatpush1.msra.mxu0 0.0
    %3498 = vmatprep.subr.mxu0 0.0
    %3499 = vmatpush1.msra.mxu0 0.0
    %3500 = vmatprep.subr.mxu0 0.0
    %3501 = vmatpush1.msra.mxu0 0.0
    %3502 = vmatprep.subr.mxu0 0.0
    %3503 = vmatpush1.msra.mxu0 0.0
    %3504 = vmatprep.subr.mxu0 0.0
    %3505 = vmatpush1.msra.mxu0 0.0
    %3506 = vmatprep.subr.mxu0 0.0
    %3507 = vmatpush1.msra.mxu0 0.0
    %3508 = vmatprep.subr.mxu0 0.0
    %3509 = vmatpush1.msra.mxu0 0.0
    %3510 = vmatprep.subr.mxu0 0.0
    %3511 = vmatpush1.msra.mxu0 0.0
    %3512 = vmatprep.subr.mxu0 0.0
    %3513 = vmatpush1.msra.mxu0 0.0
    %3514 = vmatprep.subr.mxu0 0.0
    %3515 = vmatpush1.msra.mxu0 0.0
    %3516 = vmatprep.subr.mxu0 0.0
    %3517 = vmatpush1.msra.mxu0 0.0
    %3518 = vmatprep.subr.mxu0 0.0
    %3519 = vmatpush1.msra.mxu0 0.0
    %3520 = vmatprep.subr.mxu0 0.0
    %3521 = vmatpush1.msra.mxu0 0.0
    %3522 = vmatprep.subr.mxu0 0.0
    %3523 = vmatpush1.msra.mxu0 0.0
    %3524 = vmatprep.subr.mxu0 0.0
    %3525 = vmatpush1.msra.mxu0 0.0
    %3526 = vmatprep.mubr.f32.mxu0 0.0
    %3527 = vmatmul.mubr.f32.gmra.mrb[0].mxu0 %v3077
    %v3528 = vpop.f32.mrb[0].mxu0
    %v3529 = vadd.f32 0.0, %v3528
    %v3530 = vpop.f32.mrb[0].mxu0
    %v3531 = vadd.f32 0.0, %v3530
    %3532 = vdwg.mxu0
    %v3533 = vadd.f32 %v3323, %v3458
    %v3534 = vadd.f32 %v3324, %v3460
    %v3535 = vadd.f32 %v3325, %v3529
    %v3536 = vadd.f32 %v3326, %v3531
    %v3537 = vxor.u32 %v3533, 2147483648
    %v3538 = vmul.f32 %v3537, 1.442695
    %v3539 = vpow.pop %v3538
    %v3540 = vadd.f32 %v3539, 1.0
    %v3541 = vrcp.pop %v3540
    %v3542 = vmul.f32 1.0, %v3541
    %v3543 = vxor.u32 %v3534, 2147483648
    %v3544 = vmul.f32 %v3543, 1.442695
    %v3545 = vpow.pop %v3544
    %v3546 = vadd.f32 %v3545, 1.0
    %v3547 = vrcp.pop %v3546
    %v3548 = vmul.f32 1.0, %v3547
    %v3549 = vtanh.pop %v3535
    %v3550 = vxor.u32 %v3536, 2147483648
    %v3551 = vmul.f32 %v3550, 1.442695
    %v3552 = vpow.pop %v3551
    %v3553 = vadd.f32 %v3552, 1.0
    %v3554 = vrcp.pop %v3553
    %v3555 = vmul.f32 1.0, %v3554
    %v3556 = vmul.f32 %v3548, %v3078
    %v3557 = vmul.f32 %v3542, %v3549
    %v3558 = vadd.f32 %v3556, %v3557
    %v3559 = vtanh.pop %v3558
    %v3560 = vmul.f32 %v3555, %v3559
    %v3561 = vsel %vm2335, %v3560, %v3077
    %v3562 = vsel %vm2335, %v3558, %v3078
    %v3563 = vsel %vm2335, %v3560, 0.0
    %3564 = vst [vmem:[%s2339] sm:$0xff] %v3563
    %v3565 = vld [vmem:[#allocation3 + $0x40] sm:$0xff]
    %v3566 = vld [vmem:[#allocation3 + $0x48] sm:$0xff]
    %v3567 = vld [vmem:[#allocation3 + $0x50] sm:$0xff]
    %v3568 = vld [vmem:[#allocation3 + $0x58] sm:$0xff]
    %v3569 = vld [vmem:[#allocation10] sm:$0xff]
    %v3570 = vld [vmem:[#allocation10 + $0x8] sm:$0xff]
    %v3571 = vld [vmem:[#allocation10 + $0x10] sm:$0xff]
    %v3572 = vld [vmem:[#allocation10 + $0x18] sm:$0xff]
    %v3573 = vld [vmem:[#allocation10 + $0x20] sm:$0xff]
    %v3574 = vld [vmem:[#allocation10 + $0x28] sm:$0xff]
    %v3575 = vld [vmem:[#allocation10 + $0x30] sm:$0xff]
    %v3576 = vld [vmem:[#allocation10 + $0x38] sm:$0xff]
    %v3577 = vld [vmem:[#allocation10 + $0x40] sm:$0xff]
    %v3578 = vld [vmem:[#allocation10 + $0x48] sm:$0xff]
    %v3579 = vld [vmem:[#allocation10 + $0x50] sm:$0xff]
    %v3580 = vld [vmem:[#allocation10 + $0x58] sm:$0xff]
    %v3581 = vld [vmem:[#allocation10 + $0x60] sm:$0xff]
    %v3582 = vld [vmem:[#allocation10 + $0x68] sm:$0xff]
    %v3583 = vld [vmem:[#allocation10 + $0x70] sm:$0xff]
    %v3584 = vld [vmem:[#allocation10 + $0x78] sm:$0xff]
    %v3585 = vld [vmem:[#allocation10 + $0x80] sm:$0xff]
    %v3586 = vld [vmem:[#allocation10 + $0x88] sm:$0xff]
    %v3587 = vld [vmem:[#allocation10 + $0x90] sm:$0xff]
    %v3588 = vld [vmem:[#allocation10 + $0x98] sm:$0xff]
    %v3589 = vld [vmem:[#allocation10 + $0xa0] sm:$0xff]
    %v3590 = vld [vmem:[#allocation10 + $0xa8] sm:$0xff]
    %v3591 = vld [vmem:[#allocation10 + $0xb0] sm:$0xff]
    %v3592 = vld [vmem:[#allocation10 + $0xb8] sm:$0xff]
    %v3593 = vld [vmem:[#allocation10 + $0xc0] sm:$0xff]
    %v3594 = vld [vmem:[#allocation10 + $0xc8] sm:$0xff]
    %v3595 = vld [vmem:[#allocation10 + $0xd0] sm:$0xff]
    %v3596 = vld [vmem:[#allocation10 + $0xd8] sm:$0xff]
    %v3597 = vld [vmem:[#allocation10 + $0xe0] sm:$0xff]
    %v3598 = vld [vmem:[#allocation10 + $0xe8] sm:$0xff]
    %v3599 = vld [vmem:[#allocation10 + $0xf0] sm:$0xff]
    %v3600 = vld [vmem:[#allocation10 + $0xf8] sm:$0xff]
    %v3601 = vld [vmem:[#allocation10 + $0x100] sm:$0xff]
    %v3602 = vld [vmem:[#allocation10 + $0x108] sm:$0xff]
    %v3603 = vld [vmem:[#allocation10 + $0x110] sm:$0xff]
    %v3604 = vld [vmem:[#allocation10 + $0x118] sm:$0xff]
    %v3605 = vld [vmem:[#allocation10 + $0x120] sm:$0xff]
    %v3606 = vld [vmem:[#allocation10 + $0x128] sm:$0xff]
    %v3607 = vld [vmem:[#allocation10 + $0x130] sm:$0xff]
    %v3608 = vld [vmem:[#allocation10 + $0x138] sm:$0xff]
    %v3609 = vld [vmem:[#allocation10 + $0x140] sm:$0xff]
    %v3610 = vld [vmem:[#allocation10 + $0x148] sm:$0xff]
    %v3611 = vld [vmem:[#allocation10 + $0x150] sm:$0xff]
    %v3612 = vld [vmem:[#allocation10 + $0x158] sm:$0xff]
    %v3613 = vld [vmem:[#allocation10 + $0x160] sm:$0xff]
    %v3614 = vld [vmem:[#allocation10 + $0x168] sm:$0xff]
    %v3615 = vld [vmem:[#allocation10 + $0x170] sm:$0xff]
    %v3616 = vld [vmem:[#allocation10 + $0x178] sm:$0xff]
    %v3617 = vld [vmem:[#allocation10 + $0x180] sm:$0xff]
    %v3618 = vld [vmem:[#allocation10 + $0x188] sm:$0xff]
    %v3619 = vld [vmem:[#allocation10 + $0x190] sm:$0xff]
    %v3620 = vld [vmem:[#allocation10 + $0x198] sm:$0xff]
    %v3621 = vld [vmem:[#allocation10 + $0x1a0] sm:$0xff]
    %v3622 = vld [vmem:[#allocation10 + $0x1a8] sm:$0xff]
    %v3623 = vld [vmem:[#allocation10 + $0x1b0] sm:$0xff]
    %v3624 = vld [vmem:[#allocation10 + $0x1b8] sm:$0xff]
    %v3625 = vld [vmem:[#allocation10 + $0x1c0] sm:$0xff]
    %v3626 = vld [vmem:[#allocation10 + $0x1c8] sm:$0xff]
    %v3627 = vld [vmem:[#allocation10 + $0x1d0] sm:$0xff]
    %v3628 = vld [vmem:[#allocation10 + $0x1d8] sm:$0xff]
    %v3629 = vld [vmem:[#allocation10 + $0x1e0] sm:$0xff]
    %v3630 = vld [vmem:[#allocation10 + $0x1e8] sm:$0xff]
    %v3631 = vld [vmem:[#allocation10 + $0x1f0] sm:$0xff]
    %v3632 = vld [vmem:[#allocation10 + $0x1f8] sm:$0xff]
    %3633 = vmatprep.subr.mxu0 %v3570
    %3634 = vmatpush1.msra.mxu0 %v3569
    %3635 = vmatprep.subr.mxu0 %v3574
    %3636 = vmatpush1.msra.mxu0 %v3573
    %3637 = vmatprep.subr.mxu0 %v3578
    %3638 = vmatpush1.msra.mxu0 %v3577
    %3639 = vmatprep.subr.mxu0 %v3582
    %3640 = vmatpush1.msra.mxu0 %v3581
    %3641 = vmatprep.subr.mxu0 %v3586
    %3642 = vmatpush1.msra.mxu0 %v3585
    %3643 = vmatprep.subr.mxu0 %v3590
    %3644 = vmatpush1.msra.mxu0 %v3589
    %3645 = vmatprep.subr.mxu0 %v3594
    %3646 = vmatpush1.msra.mxu0 %v3593
    %3647 = vmatprep.subr.mxu0 %v3598
    %3648 = vmatpush1.msra.mxu0 %v3597
    %3649 = vmatprep.subr.mxu0 %v3602
    %3650 = vmatpush1.msra.mxu0 %v3601
    %3651 = vmatprep.subr.mxu0 %v3606
    %3652 = vmatpush1.msra.mxu0 %v3605
    %3653 = vmatprep.subr.mxu0 %v3610
    %3654 = vmatpush1.msra.mxu0 %v3609
    %3655 = vmatprep.subr.mxu0 %v3614
    %3656 = vmatpush1.msra.mxu0 %v3613
    %3657 = vmatprep.subr.mxu0 %v3618
    %3658 = vmatpush1.msra.mxu0 %v3617
    %3659 = vmatprep.subr.mxu0 %v3622
    %3660 = vmatpush1.msra.mxu0 %v3621
    %3661 = vmatprep.subr.mxu0 %v3626
    %3662 = vmatpush1.msra.mxu0 %v3625
    %3663 = vmatprep.subr.mxu0 %v3630
    %3664 = vmatpush1.msra.mxu0 %v3629
    %3665 = vmatprep.subr.mxu0 0.0
    %3666 = vmatpush1.msra.mxu0 0.0
    %3667 = vmatprep.subr.mxu0 0.0
    %3668 = vmatpush1.msra.mxu0 0.0
    %3669 = vmatprep.subr.mxu0 0.0
    %3670 = vmatpush1.msra.mxu0 0.0
    %3671 = vmatprep.subr.mxu0 0.0
    %3672 = vmatpush1.msra.mxu0 0.0
    %3673 = vmatprep.subr.mxu0 0.0
    %3674 = vmatpush1.msra.mxu0 0.0
    %3675 = vmatprep.subr.mxu0 0.0
    %3676 = vmatpush1.msra.mxu0 0.0
    %3677 = vmatprep.subr.mxu0 0.0
    %3678 = vmatpush1.msra.mxu0 0.0
    %3679 = vmatprep.subr.mxu0 0.0
    %3680 = vmatpush1.msra.mxu0 0.0
    %3681 = vmatprep.subr.mxu0 0.0
    %3682 = vmatpush1.msra.mxu0 0.0
    %3683 = vmatprep.subr.mxu0 0.0
    %3684 = vmatpush1.msra.mxu0 0.0
    %3685 = vmatprep.subr.mxu0 0.0
    %3686 = vmatpush1.msra.mxu0 0.0
    %3687 = vmatprep.subr.mxu0 0.0
    %3688 = vmatpush1.msra.mxu0 0.0
    %3689 = vmatprep.subr.mxu0 0.0
    %3690 = vmatpush1.msra.mxu0 0.0
    %3691 = vmatprep.subr.mxu0 0.0
    %3692 = vmatpush1.msra.mxu0 0.0
    %3693 = vmatprep.subr.mxu0 0.0
    %3694 = vmatpush1.msra.mxu0 0.0
    %3695 = vmatprep.subr.mxu0 0.0
    %3696 = vmatpush1.msra.mxu0 0.0
    %3697 = vmatprep.mubr.f32.mxu0 0.0
    %3698 = vmatmul.mubr.f32.gmra.mrb[0].mxu0 %v3319
    %v3699 = vpop.f32.mrb[0].mxu0
    %v3700 = vadd.f32 0.0, %v3699
    %v3701 = vpop.f32.mrb[0].mxu0
    %v3702 = vadd.f32 0.0, %v3701
    %3703 = vdwg.mxu0
    %3704 = vmatprep.subr.mxu0 %v3572
    %3705 = vmatpush1.msra.mxu0 %v3571
    %3706 = vmatprep.subr.mxu0 %v3576
    %3707 = vmatpush1.msra.mxu0 %v3575
    %3708 = vmatprep.subr.mxu0 %v3580
    %3709 = vmatpush1.msra.mxu0 %v3579
    %3710 = vmatprep.subr.mxu0 %v3584
    %3711 = vmatpush1.msra.mxu0 %v3583
    %3712 = vmatprep.subr.mxu0 %v3588
    %3713 = vmatpush1.msra.mxu0 %v3587
    %3714 = vmatprep.subr.mxu0 %v3592
    %3715 = vmatpush1.msra.mxu0 %v3591
    %3716 = vmatprep.subr.mxu0 %v3596
    %3717 = vmatpush1.msra.mxu0 %v3595
    %3718 = vmatprep.subr.mxu0 %v3600
    %3719 = vmatpush1.msra.mxu0 %v3599
    %3720 = vmatprep.subr.mxu0 %v3604
    %3721 = vmatpush1.msra.mxu0 %v3603
    %3722 = vmatprep.subr.mxu0 %v3608
    %3723 = vmatpush1.msra.mxu0 %v3607
    %3724 = vmatprep.subr.mxu0 %v3612
    %3725 = vmatpush1.msra.mxu0 %v3611
    %3726 = vmatprep.subr.mxu0 %v3616
    %3727 = vmatpush1.msra.mxu0 %v3615
    %3728 = vmatprep.subr.mxu0 %v3620
    %3729 = vmatpush1.msra.mxu0 %v3619
    %3730 = vmatprep.subr.mxu0 %v3624
    %3731 = vmatpush1.msra.mxu0 %v3623
    %3732 = vmatprep.subr.mxu0 %v3628
    %3733 = vmatpush1.msra.mxu0 %v3627
    %3734 = vmatprep.subr.mxu0 %v3632
    %3735 = vmatpush1.msra.mxu0 %v3631
    %3736 = vmatprep.subr.mxu0 0.0
    %3737 = vmatpush1.msra.mxu0 0.0
    %3738 = vmatprep.subr.mxu0 0.0
    %3739 = vmatpush1.msra.mxu0 0.0
    %3740 = vmatprep.subr.mxu0 0.0
    %3741 = vmatpush1.msra.mxu0 0.0
    %3742 = vmatprep.subr.mxu0 0.0
    %3743 = vmatpush1.msra.mxu0 0.0
    %3744 = vmatprep.subr.mxu0 0.0
    %3745 = vmatpush1.msra.mxu0 0.0
    %3746 = vmatprep.subr.mxu0 0.0
    %3747 = vmatpush1.msra.mxu0 0.0
    %3748 = vmatprep.subr.mxu0 0.0
    %3749 = vmatpush1.msra.mxu0 0.0
    %3750 = vmatprep.subr.mxu0 0.0
    %3751 = vmatpush1.msra.mxu0 0.0
    %3752 = vmatprep.subr.mxu0 0.0
    %3753 = vmatpush1.msra.mxu0 0.0
    %3754 = vmatprep.subr.mxu0 0.0
    %3755 = vmatpush1.msra.mxu0 0.0
    %3756 = vmatprep.subr.mxu0 0.0
    %3757 = vmatpush1.msra.mxu0 0.0
    %3758 = vmatprep.subr.mxu0 0.0
    %3759 = vmatpush1.msra.mxu0 0.0
    %3760 = vmatprep.subr.mxu0 0.0
    %3761 = vmatpush1.msra.mxu0 0.0
    %3762 = vmatprep.subr.mxu0 0.0
    %3763 = vmatpush1.msra.mxu0 0.0
    %3764 = vmatprep.subr.mxu0 0.0
    %3765 = vmatpush1.msra.mxu0 0.0
    %3766 = vmatprep.subr.mxu0 0.0
    %3767 = vmatpush1.msra.mxu0 0.0
    %3768 = vmatprep.mubr.f32.mxu0 0.0
    %3769 = vmatmul.mubr.f32.gmra.mrb[0].mxu0 %v3319
    %v3770 = vpop.f32.mrb[0].mxu0
    %v3771 = vadd.f32 0.0, %v3770
    %v3772 = vpop.f32.mrb[0].mxu0
    %v3773 = vadd.f32 0.0, %v3772
    %3774 = vdwg.mxu0
    %v3775 = vadd.f32 %v3565, %v3700
    %v3776 = vadd.f32 %v3566, %v3702
    %v3777 = vadd.f32 %v3567, %v3771
    %v3778 = vadd.f32 %v3568, %v3773
    %v3779 = vxor.u32 %v3775, 2147483648
    %v3780 = vmul.f32 %v3779, 1.442695
    %v3781 = vpow.pop %v3780
    %v3782 = vadd.f32 %v3781, 1.0
    %v3783 = vrcp.pop %v3782
    %v3784 = vmul.f32 1.0, %v3783
    %v3785 = vxor.u32 %v3776, 2147483648
    %v3786 = vmul.f32 %v3785, 1.442695
    %v3787 = vpow.pop %v3786
    %v3788 = vadd.f32 %v3787, 1.0
    %v3789 = vrcp.pop %v3788
    %v3790 = vmul.f32 1.0, %v3789
    %v3791 = vtanh.pop %v3777
    %v3792 = vxor.u32 %v3778, 2147483648
    %v3793 = vmul.f32 %v3792, 1.442695
    %v3794 = vpow.pop %v3793
    %v3795 = vadd.f32 %v3794, 1.0
    %v3796 = vrcp.pop %v3795
    %v3797 = vmul.f32 1.0, %v3796
    %v3798 = vmul.f32 %v3790, %v3320
    %v3799 = vmul.f32 %v3784, %v3791
    %v3800 = vadd.f32 %v3798, %v3799
    %v3801 = vtanh.pop %v3800
    %v3802 = vmul.f32 %v3797, %v3801
    %v3803 = vsel %vm2087, %v3802, %v3319
    %v3804 = vsel %vm2087, %v3800, %v3320
    %v3805 = vsel %vm2087, %v3802, 0.0
    %3806 = vst [vmem:[%s2091 + $0x8] sm:$0xff] %v3805
    %v3807 = vld [vmem:[#allocation2 + $0xc0] sm:$0xff]
    %v3808 = vld [vmem:[#allocation2 + $0xc8] sm:$0xff]
    %v3809 = vld [vmem:[#allocation2 + $0xd0] sm:$0xff]
    %v3810 = vld [vmem:[#allocation2 + $0xd8] sm:$0xff]
    %v3811 = vld [vmem:[#allocation9] sm:$0xff]
    %v3812 = vld [vmem:[#allocation9 + $0x8] sm:$0xff]
    %v3813 = vld [vmem:[#allocation9 + $0x10] sm:$0xff]
    %v3814 = vld [vmem:[#allocation9 + $0x18] sm:$0xff]
    %v3815 = vld [vmem:[#allocation9 + $0x20] sm:$0xff]
    %v3816 = vld [vmem:[#allocation9 + $0x28] sm:$0xff]
    %v3817 = vld [vmem:[#allocation9 + $0x30] sm:$0xff]
    %v3818 = vld [vmem:[#allocation9 + $0x38] sm:$0xff]
    %v3819 = vld [vmem:[#allocation9 + $0x40] sm:$0xff]
    %v3820 = vld [vmem:[#allocation9 + $0x48] sm:$0xff]
    %v3821 = vld [vmem:[#allocation9 + $0x50] sm:$0xff]
    %v3822 = vld [vmem:[#allocation9 + $0x58] sm:$0xff]
    %v3823 = vld [vmem:[#allocation9 + $0x60] sm:$0xff]
    %v3824 = vld [vmem:[#allocation9 + $0x68] sm:$0xff]
    %v3825 = vld [vmem:[#allocation9 + $0x70] sm:$0xff]
    %v3826 = vld [vmem:[#allocation9 + $0x78] sm:$0xff]
    %v3827 = vld [vmem:[#allocation9 + $0x80] sm:$0xff]
    %v3828 = vld [vmem:[#allocation9 + $0x88] sm:$0xff]
    %v3829 = vld [vmem:[#allocation9 + $0x90] sm:$0xff]
    %v3830 = vld [vmem:[#allocation9 + $0x98] sm:$0xff]
    %v3831 = vld [vmem:[#allocation9 + $0xa0] sm:$0xff]
    %v3832 = vld [vmem:[#allocation9 + $0xa8] sm:$0xff]
    %v3833 = vld [vmem:[#allocation9 + $0xb0] sm:$0xff]
    %v3834 = vld [vmem:[#allocation9 + $0xb8] sm:$0xff]
    %v3835 = vld [vmem:[#allocation9 + $0xc0] sm:$0xff]
    %v3836 = vld [vmem:[#allocation9 + $0xc8] sm:$0xff]
    %v3837 = vld [vmem:[#allocation9 + $0xd0] sm:$0xff]
    %v3838 = vld [vmem:[#allocation9 + $0xd8] sm:$0xff]
    %v3839 = vld [vmem:[#allocation9 + $0xe0] sm:$0xff]
    %v3840 = vld [vmem:[#allocation9 + $0xe8] sm:$0xff]
    %v3841 = vld [vmem:[#allocation9 + $0xf0] sm:$0xff]
    %v3842 = vld [vmem:[#allocation9 + $0xf8] sm:$0xff]
    %v3843 = vld [vmem:[#allocation9 + $0x100] sm:$0xff]
    %v3844 = vld [vmem:[#allocation9 + $0x108] sm:$0xff]
    %v3845 = vld [vmem:[#allocation9 + $0x110] sm:$0xff]
    %v3846 = vld [vmem:[#allocation9 + $0x118] sm:$0xff]
    %v3847 = vld [vmem:[#allocation9 + $0x120] sm:$0xff]
    %v3848 = vld [vmem:[#allocation9 + $0x128] sm:$0xff]
    %v3849 = vld [vmem:[#allocation9 + $0x130] sm:$0xff]
    %v3850 = vld [vmem:[#allocation9 + $0x138] sm:$0xff]
    %v3851 = vld [vmem:[#allocation9 + $0x140] sm:$0xff]
    %v3852 = vld [vmem:[#allocation9 + $0x148] sm:$0xff]
    %v3853 = vld [vmem:[#allocation9 + $0x150] sm:$0xff]
    %v3854 = vld [vmem:[#allocation9 + $0x158] sm:$0xff]
    %v3855 = vld [vmem:[#allocation9 + $0x160] sm:$0xff]
    %v3856 = vld [vmem:[#allocation9 + $0x168] sm:$0xff]
    %v3857 = vld [vmem:[#allocation9 + $0x170] sm:$0xff]
    %v3858 = vld [vmem:[#allocation9 + $0x178] sm:$0xff]
    %v3859 = vld [vmem:[#allocation9 + $0x180] sm:$0xff]
    %v3860 = vld [vmem:[#allocation9 + $0x188] sm:$0xff]
    %v3861 = vld [vmem:[#allocation9 + $0x190] sm:$0xff]
    %v3862 = vld [vmem:[#allocation9 + $0x198] sm:$0xff]
    %v3863 = vld [vmem:[#allocation9 + $0x1a0] sm:$0xff]
    %v3864 = vld [vmem:[#allocation9 + $0x1a8] sm:$0xff]
    %v3865 = vld [vmem:[#allocation9 + $0x1b0] sm:$0xff]
    %v3866 = vld [vmem:[#allocation9 + $0x1b8] sm:$0xff]
    %v3867 = vld [vmem:[#allocation9 + $0x1c0] sm:$0xff]
    %v3868 = vld [vmem:[#allocation9 + $0x1c8] sm:$0xff]
    %v3869 = vld [vmem:[#allocation9 + $0x1d0] sm:$0xff]
    %v3870 = vld [vmem:[#allocation9 + $0x1d8] sm:$0xff]
    %v3871 = vld [vmem:[#allocation9 + $0x1e0] sm:$0xff]
    %v3872 = vld [vmem:[#allocation9 + $0x1e8] sm:$0xff]
    %v3873 = vld [vmem:[#allocation9 + $0x1f0] sm:$0xff]
    %v3874 = vld [vmem:[#allocation9 + $0x1f8] sm:$0xff]
    %3875 = vmatprep.subr.mxu0 %v3812
    %3876 = vmatpush1.msra.mxu0 %v3811
    %3877 = vmatprep.subr.mxu0 %v3816
    %3878 = vmatpush1.msra.mxu0 %v3815
    %3879 = vmatprep.subr.mxu0 %v3820
    %3880 = vmatpush1.msra.mxu0 %v3819
    %3881 = vmatprep.subr.mxu0 %v3824
    %3882 = vmatpush1.msra.mxu0 %v3823
    %3883 = vmatprep.subr.mxu0 %v3828
    %3884 = vmatpush1.msra.mxu0 %v3827
    %3885 = vmatprep.subr.mxu0 %v3832
    %3886 = vmatpush1.msra.mxu0 %v3831
    %3887 = vmatprep.subr.mxu0 %v3836
    %3888 = vmatpush1.msra.mxu0 %v3835
    %3889 = vmatprep.subr.mxu0 %v3840
    %3890 = vmatpush1.msra.mxu0 %v3839
    %3891 = vmatprep.subr.mxu0 %v3844
    %3892 = vmatpush1.msra.mxu0 %v3843
    %3893 = vmatprep.subr.mxu0 %v3848
    %3894 = vmatpush1.msra.mxu0 %v3847
    %3895 = vmatprep.subr.mxu0 %v3852
    %3896 = vmatpush1.msra.mxu0 %v3851
    %3897 = vmatprep.subr.mxu0 %v3856
    %3898 = vmatpush1.msra.mxu0 %v3855
    %3899 = vmatprep.subr.mxu0 %v3860
    %3900 = vmatpush1.msra.mxu0 %v3859
    %3901 = vmatprep.subr.mxu0 %v3864
    %3902 = vmatpush1.msra.mxu0 %v3863
    %3903 = vmatprep.subr.mxu0 %v3868
    %3904 = vmatpush1.msra.mxu0 %v3867
    %3905 = vmatprep.subr.mxu0 %v3872
    %3906 = vmatpush1.msra.mxu0 %v3871
    %3907 = vmatprep.subr.mxu0 0.0
    %3908 = vmatpush1.msra.mxu0 0.0
    %3909 = vmatprep.subr.mxu0 0.0
    %3910 = vmatpush1.msra.mxu0 0.0
    %3911 = vmatprep.subr.mxu0 0.0
    %3912 = vmatpush1.msra.mxu0 0.0
    %3913 = vmatprep.subr.mxu0 0.0
    %3914 = vmatpush1.msra.mxu0 0.0
    %3915 = vmatprep.subr.mxu0 0.0
    %3916 = vmatpush1.msra.mxu0 0.0
    %3917 = vmatprep.subr.mxu0 0.0
    %3918 = vmatpush1.msra.mxu0 0.0
    %3919 = vmatprep.subr.mxu0 0.0
    %3920 = vmatpush1.msra.mxu0 0.0
    %3921 = vmatprep.subr.mxu0 0.0
    %3922 = vmatpush1.msra.mxu0 0.0
    %3923 = vmatprep.subr.mxu0 0.0
    %3924 = vmatpush1.msra.mxu0 0.0
    %3925 = vmatprep.subr.mxu0 0.0
    %3926 = vmatpush1.msra.mxu0 0.0
    %3927 = vmatprep.subr.mxu0 0.0
    %3928 = vmatpush1.msra.mxu0 0.0
    %3929 = vmatprep.subr.mxu0 0.0
    %3930 = vmatpush1.msra.mxu0 0.0
    %3931 = vmatprep.subr.mxu0 0.0
    %3932 = vmatpush1.msra.mxu0 0.0
    %3933 = vmatprep.subr.mxu0 0.0
    %3934 = vmatpush1.msra.mxu0 0.0
    %3935 = vmatprep.subr.mxu0 0.0
    %3936 = vmatpush1.msra.mxu0 0.0
    %3937 = vmatprep.subr.mxu0 0.0
    %3938 = vmatpush1.msra.mxu0 0.0
    %3939 = vmatprep.mubr.f32.mxu0 0.0
    %3940 = vmatmul.mubr.f32.gmra.mrb[0].mxu0 %v3561
    %v3941 = vpop.f32.mrb[0].mxu0
    %v3942 = vadd.f32 0.0, %v3941
    %v3943 = vpop.f32.mrb[0].mxu0
    %v3944 = vadd.f32 0.0, %v3943
    %3945 = vdwg.mxu0
    %3946 = vmatprep.subr.mxu0 %v3814
    %3947 = vmatpush1.msra.mxu0 %v3813
    %3948 = vmatprep.subr.mxu0 %v3818
    %3949 = vmatpush1.msra.mxu0 %v3817
    %3950 = vmatprep.subr.mxu0 %v3822
    %3951 = vmatpush1.msra.mxu0 %v3821
    %3952 = vmatprep.subr.mxu0 %v3826
    %3953 = vmatpush1.msra.mxu0 %v3825
    %3954 = vmatprep.subr.mxu0 %v3830
    %3955 = vmatpush1.msra.mxu0 %v3829
    %3956 = vmatprep.subr.mxu0 %v3834
    %3957 = vmatpush1.msra.mxu0 %v3833
    %3958 = vmatprep.subr.mxu0 %v3838
    %3959 = vmatpush1.msra.mxu0 %v3837
    %3960 = vmatprep.subr.mxu0 %v3842
    %3961 = vmatpush1.msra.mxu0 %v3841
    %3962 = vmatprep.subr.mxu0 %v3846
    %3963 = vmatpush1.msra.mxu0 %v3845
    %3964 = vmatprep.subr.mxu0 %v3850
    %3965 = vmatpush1.msra.mxu0 %v3849
    %3966 = vmatprep.subr.mxu0 %v3854
    %3967 = vmatpush1.msra.mxu0 %v3853
    %3968 = vmatprep.subr.mxu0 %v3858
    %3969 = vmatpush1.msra.mxu0 %v3857
    %3970 = vmatprep.subr.mxu0 %v3862
    %3971 = vmatpush1.msra.mxu0 %v3861
    %3972 = vmatprep.subr.mxu0 %v3866
    %3973 = vmatpush1.msra.mxu0 %v3865
    %3974 = vmatprep.subr.mxu0 %v3870
    %3975 = vmatpush1.msra.mxu0 %v3869
    %3976 = vmatprep.subr.mxu0 %v3874
    %3977 = vmatpush1.msra.mxu0 %v3873
    %3978 = vmatprep.subr.mxu0 0.0
    %3979 = vmatpush1.msra.mxu0 0.0
    %3980 = vmatprep.subr.mxu0 0.0
    %3981 = vmatpush1.msra.mxu0 0.0
    %3982 = vmatprep.subr.mxu0 0.0
    %3983 = vmatpush1.msra.mxu0 0.0
    %3984 = vmatprep.subr.mxu0 0.0
    %3985 = vmatpush1.msra.mxu0 0.0
    %3986 = vmatprep.subr.mxu0 0.0
    %3987 = vmatpush1.msra.mxu0 0.0
    %3988 = vmatprep.subr.mxu0 0.0
    %3989 = vmatpush1.msra.mxu0 0.0
    %3990 = vmatprep.subr.mxu0 0.0
    %3991 = vmatpush1.msra.mxu0 0.0
    %3992 = vmatprep.subr.mxu0 0.0
    %3993 = vmatpush1.msra.mxu0 0.0
    %3994 = vmatprep.subr.mxu0 0.0
    %3995 = vmatpush1.msra.mxu0 0.0
    %3996 = vmatprep.subr.mxu0 0.0
    %3997 = vmatpush1.msra.mxu0 0.0
    %3998 = vmatprep.subr.mxu0 0.0
    %3999 = vmatpush1.msra.mxu0 0.0
    %4000 = vmatprep.subr.mxu0 0.0
    %4001 = vmatpush1.msra.mxu0 0.0
    %4002 = vmatprep.subr.mxu0 0.0
    %4003 = vmatpush1.msra.mxu0 0.0
    %4004 = vmatprep.subr.mxu0 0.0
    %4005 = vmatpush1.msra.mxu0 0.0
    %4006 = vmatprep.subr.mxu0 0.0
    %4007 = vmatpush1.msra.mxu0 0.0
    %4008 = vmatprep.subr.mxu0 0.0
    %4009 = vmatpush1.msra.mxu0 0.0
    %4010 = vmatprep.mubr.f32.mxu0 0.0
    %4011 = vmatmul.mubr.f32.gmra.mrb[0].mxu0 %v3561
    %v4012 = vpop.f32.mrb[0].mxu0
    %v4013 = vadd.f32 0.0, %v4012
    %v4014 = vpop.f32.mrb[0].mxu0
    %v4015 = vadd.f32 0.0, %v4014
    %4016 = vdwg.mxu0
    %v4017 = vadd.f32 %v3807, %v3942
    %v4018 = vadd.f32 %v3808, %v3944
    %v4019 = vadd.f32 %v3809, %v4013
    %v4020 = vadd.f32 %v3810, %v4015
    %v4021 = vxor.u32 %v4017, 2147483648
    %v4022 = vmul.f32 %v4021, 1.442695
    %v4023 = vpow.pop %v4022
    %v4024 = vadd.f32 %v4023, 1.0
    %v4025 = vrcp.pop %v4024
    %v4026 = vmul.f32 1.0, %v4025
    %v4027 = vxor.u32 %v4018, 2147483648
    %v4028 = vmul.f32 %v4027, 1.442695
    %v4029 = vpow.pop %v4028
    %v4030 = vadd.f32 %v4029, 1.0
    %v4031 = vrcp.pop %v4030
    %v4032 = vmul.f32 1.0, %v4031
    %v4033 = vtanh.pop %v4019
    %v4034 = vxor.u32 %v4020, 2147483648
    %v4035 = vmul.f32 %v4034, 1.442695
    %v4036 = vpow.pop %v4035
    %v4037 = vadd.f32 %v4036, 1.0
    %v4038 = vrcp.pop %v4037
    %v4039 = vmul.f32 1.0, %v4038
    %v4040 = vmul.f32 %v4032, %v3562
    %v4041 = vmul.f32 %v4026, %v4033
    %v4042 = vadd.f32 %v4040, %v4041
    %v4043 = vtanh.pop %v4042
    %v4044 = vmul.f32 %v4039, %v4043
    %v4045 = vsel %vm1837, %v4044, %v3561
    %v4046 = vsel %vm1837, %v4042, %v3562
    %v4047 = vsel %vm1837, %v4044, 0.0
    %4048 = vst [vmem:[%s1841] sm:$0xff] %v4047
    %v4049 = vld [vmem:[#allocation3 + $0x20] sm:$0xff]
    %v4050 = vld [vmem:[#allocation3 + $0x28] sm:$0xff]
    %v4051 = vld [vmem:[#allocation3 + $0x30] sm:$0xff]
    %v4052 = vld [vmem:[#allocation3 + $0x38] sm:$0xff]
    %v4053 = vld [vmem:[#allocation10] sm:$0xff]
    %v4054 = vld [vmem:[#allocation10 + $0x8] sm:$0xff]
    %v4055 = vld [vmem:[#allocation10 + $0x10] sm:$0xff]
    %v4056 = vld [vmem:[#allocation10 + $0x18] sm:$0xff]
    %v4057 = vld [vmem:[#allocation10 + $0x20] sm:$0xff]
    %v4058 = vld [vmem:[#allocation10 + $0x28] sm:$0xff]
    %v4059 = vld [vmem:[#allocation10 + $0x30] sm:$0xff]
    %v4060 = vld [vmem:[#allocation10 + $0x38] sm:$0xff]
    %v4061 = vld [vmem:[#allocation10 + $0x40] sm:$0xff]
    %v4062 = vld [vmem:[#allocation10 + $0x48] sm:$0xff]
    %v4063 = vld [vmem:[#allocation10 + $0x50] sm:$0xff]
    %v4064 = vld [vmem:[#allocation10 + $0x58] sm:$0xff]
    %v4065 = vld [vmem:[#allocation10 + $0x60] sm:$0xff]
    %v4066 = vld [vmem:[#allocation10 + $0x68] sm:$0xff]
    %v4067 = vld [vmem:[#allocation10 + $0x70] sm:$0xff]
    %v4068 = vld [vmem:[#allocation10 + $0x78] sm:$0xff]
    %v4069 = vld [vmem:[#allocation10 + $0x80] sm:$0xff]
    %v4070 = vld [vmem:[#allocation10 + $0x88] sm:$0xff]
    %v4071 = vld [vmem:[#allocation10 + $0x90] sm:$0xff]
    %v4072 = vld [vmem:[#allocation10 + $0x98] sm:$0xff]
    %v4073 = vld [vmem:[#allocation10 + $0xa0] sm:$0xff]
    %v4074 = vld [vmem:[#allocation10 + $0xa8] sm:$0xff]
    %v4075 = vld [vmem:[#allocation10 + $0xb0] sm:$0xff]
    %v4076 = vld [vmem:[#allocation10 + $0xb8] sm:$0xff]
    %v4077 = vld [vmem:[#allocation10 + $0xc0] sm:$0xff]
    %v4078 = vld [vmem:[#allocation10 + $0xc8] sm:$0xff]
    %v4079 = vld [vmem:[#allocation10 + $0xd0] sm:$0xff]
    %v4080 = vld [vmem:[#allocation10 + $0xd8] sm:$0xff]
    %v4081 = vld [vmem:[#allocation10 + $0xe0] sm:$0xff]
    %v4082 = vld [vmem:[#allocation10 + $0xe8] sm:$0xff]
    %v4083 = vld [vmem:[#allocation10 + $0xf0] sm:$0xff]
    %v4084 = vld [vmem:[#allocation10 + $0xf8] sm:$0xff]
    %v4085 = vld [vmem:[#allocation10 + $0x100] sm:$0xff]
    %v4086 = vld [vmem:[#allocation10 + $0x108] sm:$0xff]
    %v4087 = vld [vmem:[#allocation10 + $0x110] sm:$0xff]
    %v4088 = vld [vmem:[#allocation10 + $0x118] sm:$0xff]
    %v4089 = vld [vmem:[#allocation10 + $0x120] sm:$0xff]
    %v4090 = vld [vmem:[#allocation10 + $0x128] sm:$0xff]
    %v4091 = vld [vmem:[#allocation10 + $0x130] sm:$0xff]
    %v4092 = vld [vmem:[#allocation10 + $0x138] sm:$0xff]
    %v4093 = vld [vmem:[#allocation10 + $0x140] sm:$0xff]
    %v4094 = vld [vmem:[#allocation10 + $0x148] sm:$0xff]
    %v4095 = vld [vmem:[#allocation10 + $0x150] sm:$0xff]
    %v4096 = vld [vmem:[#allocation10 + $0x158] sm:$0xff]
    %v4097 = vld [vmem:[#allocation10 + $0x160] sm:$0xff]
    %v4098 = vld [vmem:[#allocation10 + $0x168] sm:$0xff]
    %v4099 = vld [vmem:[#allocation10 + $0x170] sm:$0xff]
    %v4100 = vld [vmem:[#allocation10 + $0x178] sm:$0xff]
    %v4101 = vld [vmem:[#allocation10 + $0x180] sm:$0xff]
    %v4102 = vld [vmem:[#allocation10 + $0x188] sm:$0xff]
    %v4103 = vld [vmem:[#allocation10 + $0x190] sm:$0xff]
    %v4104 = vld [vmem:[#allocation10 + $0x198] sm:$0xff]
    %v4105 = vld [vmem:[#allocation10 + $0x1a0] sm:$0xff]
    %v4106 = vld [vmem:[#allocation10 + $0x1a8] sm:$0xff]
    %v4107 = vld [vmem:[#allocation10 + $0x1b0] sm:$0xff]
    %v4108 = vld [vmem:[#allocation10 + $0x1b8] sm:$0xff]
    %v4109 = vld [vmem:[#allocation10 + $0x1c0] sm:$0xff]
    %v4110 = vld [vmem:[#allocation10 + $0x1c8] sm:$0xff]
    %v4111 = vld [vmem:[#allocation10 + $0x1d0] sm:$0xff]
    %v4112 = vld [vmem:[#allocation10 + $0x1d8] sm:$0xff]
    %v4113 = vld [vmem:[#allocation10 + $0x1e0] sm:$0xff]
    %v4114 = vld [vmem:[#allocation10 + $0x1e8] sm:$0xff]
    %v4115 = vld [vmem:[#allocation10 + $0x1f0] sm:$0xff]
    %v4116 = vld [vmem:[#allocation10 + $0x1f8] sm:$0xff]
    %4117 = vmatprep.subr.mxu0 %v4054
    %4118 = vmatpush1.msra.mxu0 %v4053
    %4119 = vmatprep.subr.mxu0 %v4058
    %4120 = vmatpush1.msra.mxu0 %v4057
    %4121 = vmatprep.subr.mxu0 %v4062
    %4122 = vmatpush1.msra.mxu0 %v4061
    %4123 = vmatprep.subr.mxu0 %v4066
    %4124 = vmatpush1.msra.mxu0 %v4065
    %4125 = vmatprep.subr.mxu0 %v4070
    %4126 = vmatpush1.msra.mxu0 %v4069
    %4127 = vmatprep.subr.mxu0 %v4074
    %4128 = vmatpush1.msra.mxu0 %v4073
    %4129 = vmatprep.subr.mxu0 %v4078
    %4130 = vmatpush1.msra.mxu0 %v4077
    %4131 = vmatprep.subr.mxu0 %v4082
    %4132 = vmatpush1.msra.mxu0 %v4081
    %4133 = vmatprep.subr.mxu0 %v4086
    %4134 = vmatpush1.msra.mxu0 %v4085
    %4135 = vmatprep.subr.mxu0 %v4090
    %4136 = vmatpush1.msra.mxu0 %v4089
    %4137 = vmatprep.subr.mxu0 %v4094
    %4138 = vmatpush1.msra.mxu0 %v4093
    %4139 = vmatprep.subr.mxu0 %v4098
    %4140 = vmatpush1.msra.mxu0 %v4097
    %4141 = vmatprep.subr.mxu0 %v4102
    %4142 = vmatpush1.msra.mxu0 %v4101
    %4143 = vmatprep.subr.mxu0 %v4106
    %4144 = vmatpush1.msra.mxu0 %v4105
    %4145 = vmatprep.subr.mxu0 %v4110
    %4146 = vmatpush1.msra.mxu0 %v4109
    %4147 = vmatprep.subr.mxu0 %v4114
    %4148 = vmatpush1.msra.mxu0 %v4113
    %4149 = vmatprep.subr.mxu0 0.0
    %4150 = vmatpush1.msra.mxu0 0.0
    %4151 = vmatprep.subr.mxu0 0.0
    %4152 = vmatpush1.msra.mxu0 0.0
    %4153 = vmatprep.subr.mxu0 0.0
    %4154 = vmatpush1.msra.mxu0 0.0
    %4155 = vmatprep.subr.mxu0 0.0
    %4156 = vmatpush1.msra.mxu0 0.0
    %4157 = vmatprep.subr.mxu0 0.0
    %4158 = vmatpush1.msra.mxu0 0.0
    %4159 = vmatprep.subr.mxu0 0.0
    %4160 = vmatpush1.msra.mxu0 0.0
    %4161 = vmatprep.subr.mxu0 0.0
    %4162 = vmatpush1.msra.mxu0 0.0
    %4163 = vmatprep.subr.mxu0 0.0
    %4164 = vmatpush1.msra.mxu0 0.0
    %4165 = vmatprep.subr.mxu0 0.0
    %4166 = vmatpush1.msra.mxu0 0.0
    %4167 = vmatprep.subr.mxu0 0.0
    %4168 = vmatpush1.msra.mxu0 0.0
    %4169 = vmatprep.subr.mxu0 0.0
    %4170 = vmatpush1.msra.mxu0 0.0
    %4171 = vmatprep.subr.mxu0 0.0
    %4172 = vmatpush1.msra.mxu0 0.0
    %4173 = vmatprep.subr.mxu0 0.0
    %4174 = vmatpush1.msra.mxu0 0.0
    %4175 = vmatprep.subr.mxu0 0.0
    %4176 = vmatpush1.msra.mxu0 0.0
    %4177 = vmatprep.subr.mxu0 0.0
    %4178 = vmatpush1.msra.mxu0 0.0
    %4179 = vmatprep.subr.mxu0 0.0
    %4180 = vmatpush1.msra.mxu0 0.0
    %4181 = vmatprep.mubr.f32.mxu0 0.0
    %4182 = vmatmul.mubr.f32.gmra.mrb[0].mxu0 %v3803
    %v4183 = vpop.f32.mrb[0].mxu0
    %v4184 = vadd.f32 0.0, %v4183
    %v4185 = vpop.f32.mrb[0].mxu0
    %v4186 = vadd.f32 0.0, %v4185
    %4187 = vdwg.mxu0
    %4188 = vmatprep.subr.mxu0 %v4056
    %4189 = vmatpush1.msra.mxu0 %v4055
    %4190 = vmatprep.subr.mxu0 %v4060
    %4191 = vmatpush1.msra.mxu0 %v4059
    %4192 = vmatprep.subr.mxu0 %v4064
    %4193 = vmatpush1.msra.mxu0 %v4063
    %4194 = vmatprep.subr.mxu0 %v4068
    %4195 = vmatpush1.msra.mxu0 %v4067
    %4196 = vmatprep.subr.mxu0 %v4072
    %4197 = vmatpush1.msra.mxu0 %v4071
    %4198 = vmatprep.subr.mxu0 %v4076
    %4199 = vmatpush1.msra.mxu0 %v4075
    %4200 = vmatprep.subr.mxu0 %v4080
    %4201 = vmatpush1.msra.mxu0 %v4079
    %4202 = vmatprep.subr.mxu0 %v4084
    %4203 = vmatpush1.msra.mxu0 %v4083
    %4204 = vmatprep.subr.mxu0 %v4088
    %4205 = vmatpush1.msra.mxu0 %v4087
    %4206 = vmatprep.subr.mxu0 %v4092
    %4207 = vmatpush1.msra.mxu0 %v4091
    %4208 = vmatprep.subr.mxu0 %v4096
    %4209 = vmatpush1.msra.mxu0 %v4095
    %4210 = vmatprep.subr.mxu0 %v4100
    %4211 = vmatpush1.msra.mxu0 %v4099
    %4212 = vmatprep.subr.mxu0 %v4104
    %4213 = vmatpush1.msra.mxu0 %v4103
    %4214 = vmatprep.subr.mxu0 %v4108
    %4215 = vmatpush1.msra.mxu0 %v4107
    %4216 = vmatprep.subr.mxu0 %v4112
    %4217 = vmatpush1.msra.mxu0 %v4111
    %4218 = vmatprep.subr.mxu0 %v4116
    %4219 = vmatpush1.msra.mxu0 %v4115
    %4220 = vmatprep.subr.mxu0 0.0
    %4221 = vmatpush1.msra.mxu0 0.0
    %4222 = vmatprep.subr.mxu0 0.0
    %4223 = vmatpush1.msra.mxu0 0.0
    %4224 = vmatprep.subr.mxu0 0.0
    %4225 = vmatpush1.msra.mxu0 0.0
    %4226 = vmatprep.subr.mxu0 0.0
    %4227 = vmatpush1.msra.mxu0 0.0
    %4228 = vmatprep.subr.mxu0 0.0
    %4229 = vmatpush1.msra.mxu0 0.0
    %4230 = vmatprep.subr.mxu0 0.0
    %4231 = vmatpush1.msra.mxu0 0.0
    %4232 = vmatprep.subr.mxu0 0.0
    %4233 = vmatpush1.msra.mxu0 0.0
    %4234 = vmatprep.subr.mxu0 0.0
    %4235 = vmatpush1.msra.mxu0 0.0
    %4236 = vmatprep.subr.mxu0 0.0
    %4237 = vmatpush1.msra.mxu0 0.0
    %4238 = vmatprep.subr.mxu0 0.0
    %4239 = vmatpush1.msra.mxu0 0.0
    %4240 = vmatprep.subr.mxu0 0.0
    %4241 = vmatpush1.msra.mxu0 0.0
    %4242 = vmatprep.subr.mxu0 0.0
    %4243 = vmatpush1.msra.mxu0 0.0
    %4244 = vmatprep.subr.mxu0 0.0
    %4245 = vmatpush1.msra.mxu0 0.0
    %4246 = vmatprep.subr.mxu0 0.0
    %4247 = vmatpush1.msra.mxu0 0.0
    %4248 = vmatprep.subr.mxu0 0.0
    %4249 = vmatpush1.msra.mxu0 0.0
    %4250 = vmatprep.subr.mxu0 0.0
    %4251 = vmatpush1.msra.mxu0 0.0
    %4252 = vmatprep.mubr.f32.mxu0 0.0
    %4253 = vmatmul.mubr.f32.gmra.mrb[0].mxu0 %v3803
    %v4254 = vpop.f32.mrb[0].mxu0
    %v4255 = vadd.f32 0.0, %v4254
    %v4256 = vpop.f32.mrb[0].mxu0
    %v4257 = vadd.f32 0.0, %v4256
    %4258 = vdwg.mxu0
    %v4259 = vadd.f32 %v4049, %v4184
    %v4260 = vadd.f32 %v4050, %v4186
    %v4261 = vadd.f32 %v4051, %v4255
    %v4262 = vadd.f32 %v4052, %v4257
    %v4263 = vxor.u32 %v4259, 2147483648
    %v4264 = vmul.f32 %v4263, 1.442695
    %v4265 = vpow.pop %v4264
    %v4266 = vadd.f32 %v4265, 1.0
    %v4267 = vrcp.pop %v4266
    %v4268 = vmul.f32 1.0, %v4267
    %v4269 = vxor.u32 %v4260, 2147483648
    %v4270 = vmul.f32 %v4269, 1.442695
    %v4271 = vpow.pop %v4270
    %v4272 = vadd.f32 %v4271, 1.0
    %v4273 = vrcp.pop %v4272
    %v4274 = vmul.f32 1.0, %v4273
    %v4275 = vtanh.pop %v4261
    %v4276 = vxor.u32 %v4262, 2147483648
    %v4277 = vmul.f32 %v4276, 1.442695
    %v4278 = vpow.pop %v4277
    %v4279 = vadd.f32 %v4278, 1.0
    %v4280 = vrcp.pop %v4279
    %v4281 = vmul.f32 1.0, %v4280
    %v4282 = vmul.f32 %v4274, %v3804
    %v4283 = vmul.f32 %v4268, %v4275
    %v4284 = vadd.f32 %v4282, %v4283
    %v4285 = vtanh.pop %v4284
    %v4286 = vmul.f32 %v4281, %v4285
    %v4287 = vsel %vm1589, %v4286, %v3803
    %v4288 = vsel %vm1589, %v4284, %v3804
    %v4289 = vsel %vm1589, %v4286, 0.0
    %4290 = vst [vmem:[%s1593 + $0x8] sm:$0xff] %v4289
    %v4291 = vld [vmem:[#allocation2 + $0xe0] sm:$0xff]
    %v4292 = vld [vmem:[#allocation2 + $0xe8] sm:$0xff]
    %v4293 = vld [vmem:[#allocation2 + $0xf0] sm:$0xff]
    %v4294 = vld [vmem:[#allocation2 + $0xf8] sm:$0xff]
    %v4295 = vld [vmem:[#allocation9] sm:$0xff]
    %v4296 = vld [vmem:[#allocation9 + $0x8] sm:$0xff]
    %v4297 = vld [vmem:[#allocation9 + $0x10] sm:$0xff]
    %v4298 = vld [vmem:[#allocation9 + $0x18] sm:$0xff]
    %v4299 = vld [vmem:[#allocation9 + $0x20] sm:$0xff]
    %v4300 = vld [vmem:[#allocation9 + $0x28] sm:$0xff]
    %v4301 = vld [vmem:[#allocation9 + $0x30] sm:$0xff]
    %v4302 = vld [vmem:[#allocation9 + $0x38] sm:$0xff]
    %v4303 = vld [vmem:[#allocation9 + $0x40] sm:$0xff]
    %v4304 = vld [vmem:[#allocation9 + $0x48] sm:$0xff]
    %v4305 = vld [vmem:[#allocation9 + $0x50] sm:$0xff]
    %v4306 = vld [vmem:[#allocation9 + $0x58] sm:$0xff]
    %v4307 = vld [vmem:[#allocation9 + $0x60] sm:$0xff]
    %v4308 = vld [vmem:[#allocation9 + $0x68] sm:$0xff]
    %v4309 = vld [vmem:[#allocation9 + $0x70] sm:$0xff]
    %v4310 = vld [vmem:[#allocation9 + $0x78] sm:$0xff]
    %v4311 = vld [vmem:[#allocation9 + $0x80] sm:$0xff]
    %v4312 = vld [vmem:[#allocation9 + $0x88] sm:$0xff]
    %v4313 = vld [vmem:[#allocation9 + $0x90] sm:$0xff]
    %v4314 = vld [vmem:[#allocation9 + $0x98] sm:$0xff]
    %v4315 = vld [vmem:[#allocation9 + $0xa0] sm:$0xff]
    %v4316 = vld [vmem:[#allocation9 + $0xa8] sm:$0xff]
    %v4317 = vld [vmem:[#allocation9 + $0xb0] sm:$0xff]
    %v4318 = vld [vmem:[#allocation9 + $0xb8] sm:$0xff]
    %v4319 = vld [vmem:[#allocation9 + $0xc0] sm:$0xff]
    %v4320 = vld [vmem:[#allocation9 + $0xc8] sm:$0xff]
    %v4321 = vld [vmem:[#allocation9 + $0xd0] sm:$0xff]
    %v4322 = vld [vmem:[#allocation9 + $0xd8] sm:$0xff]
    %v4323 = vld [vmem:[#allocation9 + $0xe0] sm:$0xff]
    %v4324 = vld [vmem:[#allocation9 + $0xe8] sm:$0xff]
    %v4325 = vld [vmem:[#allocation9 + $0xf0] sm:$0xff]
    %v4326 = vld [vmem:[#allocation9 + $0xf8] sm:$0xff]
    %v4327 = vld [vmem:[#allocation9 + $0x100] sm:$0xff]
    %v4328 = vld [vmem:[#allocation9 + $0x108] sm:$0xff]
    %v4329 = vld [vmem:[#allocation9 + $0x110] sm:$0xff]
    %v4330 = vld [vmem:[#allocation9 + $0x118] sm:$0xff]
    %v4331 = vld [vmem:[#allocation9 + $0x120] sm:$0xff]
    %v4332 = vld [vmem:[#allocation9 + $0x128] sm:$0xff]
    %v4333 = vld [vmem:[#allocation9 + $0x130] sm:$0xff]
    %v4334 = vld [vmem:[#allocation9 + $0x138] sm:$0xff]
    %v4335 = vld [vmem:[#allocation9 + $0x140] sm:$0xff]
    %v4336 = vld [vmem:[#allocation9 + $0x148] sm:$0xff]
    %v4337 = vld [vmem:[#allocation9 + $0x150] sm:$0xff]
    %v4338 = vld [vmem:[#allocation9 + $0x158] sm:$0xff]
    %v4339 = vld [vmem:[#allocation9 + $0x160] sm:$0xff]
    %v4340 = vld [vmem:[#allocation9 + $0x168] sm:$0xff]
    %v4341 = vld [vmem:[#allocation9 + $0x170] sm:$0xff]
    %v4342 = vld [vmem:[#allocation9 + $0x178] sm:$0xff]
    %v4343 = vld [vmem:[#allocation9 + $0x180] sm:$0xff]
    %v4344 = vld [vmem:[#allocation9 + $0x188] sm:$0xff]
    %v4345 = vld [vmem:[#allocation9 + $0x190] sm:$0xff]
    %v4346 = vld [vmem:[#allocation9 + $0x198] sm:$0xff]
    %v4347 = vld [vmem:[#allocation9 + $0x1a0] sm:$0xff]
    %v4348 = vld [vmem:[#allocation9 + $0x1a8] sm:$0xff]
    %v4349 = vld [vmem:[#allocation9 + $0x1b0] sm:$0xff]
    %v4350 = vld [vmem:[#allocation9 + $0x1b8] sm:$0xff]
    %v4351 = vld [vmem:[#allocation9 + $0x1c0] sm:$0xff]
    %v4352 = vld [vmem:[#allocation9 + $0x1c8] sm:$0xff]
    %v4353 = vld [vmem:[#allocation9 + $0x1d0] sm:$0xff]
    %v4354 = vld [vmem:[#allocation9 + $0x1d8] sm:$0xff]
    %v4355 = vld [vmem:[#allocation9 + $0x1e0] sm:$0xff]
    %v4356 = vld [vmem:[#allocation9 + $0x1e8] sm:$0xff]
    %v4357 = vld [vmem:[#allocation9 + $0x1f0] sm:$0xff]
    %v4358 = vld [vmem:[#allocation9 + $0x1f8] sm:$0xff]
    %4359 = vmatprep.subr.mxu0 %v4296
    %4360 = vmatpush1.msra.mxu0 %v4295
    %4361 = vmatprep.subr.mxu0 %v4300
    %4362 = vmatpush1.msra.mxu0 %v4299
    %4363 = vmatprep.subr.mxu0 %v4304
    %4364 = vmatpush1.msra.mxu0 %v4303
    %4365 = vmatprep.subr.mxu0 %v4308
    %4366 = vmatpush1.msra.mxu0 %v4307
    %4367 = vmatprep.subr.mxu0 %v4312
    %4368 = vmatpush1.msra.mxu0 %v4311
    %4369 = vmatprep.subr.mxu0 %v4316
    %4370 = vmatpush1.msra.mxu0 %v4315
    %4371 = vmatprep.subr.mxu0 %v4320
    %4372 = vmatpush1.msra.mxu0 %v4319
    %4373 = vmatprep.subr.mxu0 %v4324
    %4374 = vmatpush1.msra.mxu0 %v4323
    %4375 = vmatprep.subr.mxu0 %v4328
    %4376 = vmatpush1.msra.mxu0 %v4327
    %4377 = vmatprep.subr.mxu0 %v4332
    %4378 = vmatpush1.msra.mxu0 %v4331
    %4379 = vmatprep.subr.mxu0 %v4336
    %4380 = vmatpush1.msra.mxu0 %v4335
    %4381 = vmatprep.subr.mxu0 %v4340
    %4382 = vmatpush1.msra.mxu0 %v4339
    %4383 = vmatprep.subr.mxu0 %v4344
    %4384 = vmatpush1.msra.mxu0 %v4343
    %4385 = vmatprep.subr.mxu0 %v4348
    %4386 = vmatpush1.msra.mxu0 %v4347
    %4387 = vmatprep.subr.mxu0 %v4352
    %4388 = vmatpush1.msra.mxu0 %v4351
    %4389 = vmatprep.subr.mxu0 %v4356
    %4390 = vmatpush1.msra.mxu0 %v4355
    %4391 = vmatprep.subr.mxu0 0.0
    %4392 = vmatpush1.msra.mxu0 0.0
    %4393 = vmatprep.subr.mxu0 0.0
    %4394 = vmatpush1.msra.mxu0 0.0
    %4395 = vmatprep.subr.mxu0 0.0
    %4396 = vmatpush1.msra.mxu0 0.0
    %4397 = vmatprep.subr.mxu0 0.0
    %4398 = vmatpush1.msra.mxu0 0.0
    %4399 = vmatprep.subr.mxu0 0.0
    %4400 = vmatpush1.msra.mxu0 0.0
    %4401 = vmatprep.subr.mxu0 0.0
    %4402 = vmatpush1.msra.mxu0 0.0
    %4403 = vmatprep.subr.mxu0 0.0
    %4404 = vmatpush1.msra.mxu0 0.0
    %4405 = vmatprep.subr.mxu0 0.0
    %4406 = vmatpush1.msra.mxu0 0.0
    %4407 = vmatprep.subr.mxu0 0.0
    %4408 = vmatpush1.msra.mxu0 0.0
    %4409 = vmatprep.subr.mxu0 0.0
    %4410 = vmatpush1.msra.mxu0 0.0
    %4411 = vmatprep.subr.mxu0 0.0
    %4412 = vmatpush1.msra.mxu0 0.0
    %4413 = vmatprep.subr.mxu0 0.0
    %4414 = vmatpush1.msra.mxu0 0.0
    %4415 = vmatprep.subr.mxu0 0.0
    %4416 = vmatpush1.msra.mxu0 0.0
    %4417 = vmatprep.subr.mxu0 0.0
    %4418 = vmatpush1.msra.mxu0 0.0
    %4419 = vmatprep.subr.mxu0 0.0
    %4420 = vmatpush1.msra.mxu0 0.0
    %4421 = vmatprep.subr.mxu0 0.0
    %4422 = vmatpush1.msra.mxu0 0.0
    %4423 = vmatprep.mubr.f32.mxu0 0.0
    %4424 = vmatmul.mubr.f32.gmra.mrb[0].mxu0 %v4045
    %v4425 = vpop.f32.mrb[0].mxu0
    %v4426 = vadd.f32 0.0, %v4425
    %v4427 = vpop.f32.mrb[0].mxu0
    %v4428 = vadd.f32 0.0, %v4427
    %4429 = vdwg.mxu0
    %4430 = vmatprep.subr.mxu0 %v4298
    %4431 = vmatpush1.msra.mxu0 %v4297
    %4432 = vmatprep.subr.mxu0 %v4302
    %4433 = vmatpush1.msra.mxu0 %v4301
    %4434 = vmatprep.subr.mxu0 %v4306
    %4435 = vmatpush1.msra.mxu0 %v4305
    %4436 = vmatprep.subr.mxu0 %v4310
    %4437 = vmatpush1.msra.mxu0 %v4309
    %4438 = vmatprep.subr.mxu0 %v4314
    %4439 = vmatpush1.msra.mxu0 %v4313
    %4440 = vmatprep.subr.mxu0 %v4318
    %4441 = vmatpush1.msra.mxu0 %v4317
    %4442 = vmatprep.subr.mxu0 %v4322
    %4443 = vmatpush1.msra.mxu0 %v4321
    %4444 = vmatprep.subr.mxu0 %v4326
    %4445 = vmatpush1.msra.mxu0 %v4325
    %4446 = vmatprep.subr.mxu0 %v4330
    %4447 = vmatpush1.msra.mxu0 %v4329
    %4448 = vmatprep.subr.mxu0 %v4334
    %4449 = vmatpush1.msra.mxu0 %v4333
    %4450 = vmatprep.subr.mxu0 %v4338
    %4451 = vmatpush1.msra.mxu0 %v4337
    %4452 = vmatprep.subr.mxu0 %v4342
    %4453 = vmatpush1.msra.mxu0 %v4341
    %4454 = vmatprep.subr.mxu0 %v4346
    %4455 = vmatpush1.msra.mxu0 %v4345
    %4456 = vmatprep.subr.mxu0 %v4350
    %4457 = vmatpush1.msra.mxu0 %v4349
    %4458 = vmatprep.subr.mxu0 %v4354
    %4459 = vmatpush1.msra.mxu0 %v4353
    %4460 = vmatprep.subr.mxu0 %v4358
    %4461 = vmatpush1.msra.mxu0 %v4357
    %4462 = vmatprep.subr.mxu0 0.0
    %4463 = vmatpush1.msra.mxu0 0.0
    %4464 = vmatprep.subr.mxu0 0.0
    %4465 = vmatpush1.msra.mxu0 0.0
    %4466 = vmatprep.subr.mxu0 0.0
    %4467 = vmatpush1.msra.mxu0 0.0
    %4468 = vmatprep.subr.mxu0 0.0
    %4469 = vmatpush1.msra.mxu0 0.0
    %4470 = vmatprep.subr.mxu0 0.0
    %4471 = vmatpush1.msra.mxu0 0.0
    %4472 = vmatprep.subr.mxu0 0.0
    %4473 = vmatpush1.msra.mxu0 0.0
    %4474 = vmatprep.subr.mxu0 0.0
    %4475 = vmatpush1.msra.mxu0 0.0
    %4476 = vmatprep.subr.mxu0 0.0
    %4477 = vmatpush1.msra.mxu0 0.0
    %4478 = vmatprep.subr.mxu0 0.0
    %4479 = vmatpush1.msra.mxu0 0.0
    %4480 = vmatprep.subr.mxu0 0.0
    %4481 = vmatpush1.msra.mxu0 0.0
    %4482 = vmatprep.subr.mxu0 0.0
    %4483 = vmatpush1.msra.mxu0 0.0
    %4484 = vmatprep.subr.mxu0 0.0
    %4485 = vmatpush1.msra.mxu0 0.0
    %4486 = vmatprep.subr.mxu0 0.0
    %4487 = vmatpush1.msra.mxu0 0.0
    %4488 = vmatprep.subr.mxu0 0.0
    %4489 = vmatpush1.msra.mxu0 0.0
    %4490 = vmatprep.subr.mxu0 0.0
    %4491 = vmatpush1.msra.mxu0 0.0
    %4492 = vmatprep.subr.mxu0 0.0
    %4493 = vmatpush1.msra.mxu0 0.0
    %4494 = vmatprep.mubr.f32.mxu0 0.0
    %4495 = vmatmul.mubr.f32.gmra.mrb[0].mxu0 %v4045
    %v4496 = vpop.f32.mrb[0].mxu0
    %v4497 = vadd.f32 0.0, %v4496
    %v4498 = vpop.f32.mrb[0].mxu0
    %v4499 = vadd.f32 0.0, %v4498
    %4500 = vdwg.mxu0
    %v4501 = vadd.f32 %v4291, %v4426
    %v4502 = vadd.f32 %v4292, %v4428
    %v4503 = vadd.f32 %v4293, %v4497
    %v4504 = vadd.f32 %v4294, %v4499
    %v4505 = vxor.u32 %v4501, 2147483648
    %v4506 = vmul.f32 %v4505, 1.442695
    %v4507 = vpow.pop %v4506
    %v4508 = vadd.f32 %v4507, 1.0
    %v4509 = vrcp.pop %v4508
    %v4510 = vmul.f32 1.0, %v4509
    %v4511 = vxor.u32 %v4502, 2147483648
    %v4512 = vmul.f32 %v4511, 1.442695
    %v4513 = vpow.pop %v4512
    %v4514 = vadd.f32 %v4513, 1.0
    %v4515 = vrcp.pop %v4514
    %v4516 = vmul.f32 1.0, %v4515
    %v4517 = vtanh.pop %v4503
    %v4518 = vxor.u32 %v4504, 2147483648
    %v4519 = vmul.f32 %v4518, 1.442695
    %v4520 = vpow.pop %v4519
    %v4521 = vadd.f32 %v4520, 1.0
    %v4522 = vrcp.pop %v4521
    %v4523 = vmul.f32 1.0, %v4522
    %v4524 = vmul.f32 %v4516, %v4046
    %v4525 = vmul.f32 %v4510, %v4517
    %v4526 = vadd.f32 %v4524, %v4525
    %v4527 = vtanh.pop %v4526
    %v4528 = vmul.f32 %v4523, %v4527
    %v4529 = vsel %vm1339, %v4528, %v4045
    %v4530 = vsel %vm1339, %v4526, %v4046
    %v4531 = vsel %vm1339, %v4528, 0.0
    %4532 = vst [vmem:[%s1343] sm:$0xff] %v4531
    %v4533 = vld [vmem:[#allocation3] sm:$0xff]
    %v4534 = vld [vmem:[#allocation3 + $0x8] sm:$0xff]
    %v4535 = vld [vmem:[#allocation3 + $0x10] sm:$0xff]
    %v4536 = vld [vmem:[#allocation3 + $0x18] sm:$0xff]
    %v4537 = vld [vmem:[#allocation10] sm:$0xff]
    %v4538 = vld [vmem:[#allocation10 + $0x8] sm:$0xff]
    %v4539 = vld [vmem:[#allocation10 + $0x10] sm:$0xff]
    %v4540 = vld [vmem:[#allocation10 + $0x18] sm:$0xff]
    %v4541 = vld [vmem:[#allocation10 + $0x20] sm:$0xff]
    %v4542 = vld [vmem:[#allocation10 + $0x28] sm:$0xff]
    %v4543 = vld [vmem:[#allocation10 + $0x30] sm:$0xff]
    %v4544 = vld [vmem:[#allocation10 + $0x38] sm:$0xff]
    %v4545 = vld [vmem:[#allocation10 + $0x40] sm:$0xff]
    %v4546 = vld [vmem:[#allocation10 + $0x48] sm:$0xff]
    %v4547 = vld [vmem:[#allocation10 + $0x50] sm:$0xff]
    %v4548 = vld [vmem:[#allocation10 + $0x58] sm:$0xff]
    %v4549 = vld [vmem:[#allocation10 + $0x60] sm:$0xff]
    %v4550 = vld [vmem:[#allocation10 + $0x68] sm:$0xff]
    %v4551 = vld [vmem:[#allocation10 + $0x70] sm:$0xff]
    %v4552 = vld [vmem:[#allocation10 + $0x78] sm:$0xff]
    %v4553 = vld [vmem:[#allocation10 + $0x80] sm:$0xff]
    %v4554 = vld [vmem:[#allocation10 + $0x88] sm:$0xff]
    %v4555 = vld [vmem:[#allocation10 + $0x90] sm:$0xff]
    %v4556 = vld [vmem:[#allocation10 + $0x98] sm:$0xff]
    %v4557 = vld [vmem:[#allocation10 + $0xa0] sm:$0xff]
    %v4558 = vld [vmem:[#allocation10 + $0xa8] sm:$0xff]
    %v4559 = vld [vmem:[#allocation10 + $0xb0] sm:$0xff]
    %v4560 = vld [vmem:[#allocation10 + $0xb8] sm:$0xff]
    %v4561 = vld [vmem:[#allocation10 + $0xc0] sm:$0xff]
    %v4562 = vld [vmem:[#allocation10 + $0xc8] sm:$0xff]
    %v4563 = vld [vmem:[#allocation10 + $0xd0] sm:$0xff]
    %v4564 = vld [vmem:[#allocation10 + $0xd8] sm:$0xff]
    %v4565 = vld [vmem:[#allocation10 + $0xe0] sm:$0xff]
    %v4566 = vld [vmem:[#allocation10 + $0xe8] sm:$0xff]
    %v4567 = vld [vmem:[#allocation10 + $0xf0] sm:$0xff]
    %v4568 = vld [vmem:[#allocation10 + $0xf8] sm:$0xff]
    %v4569 = vld [vmem:[#allocation10 + $0x100] sm:$0xff]
    %v4570 = vld [vmem:[#allocation10 + $0x108] sm:$0xff]
    %v4571 = vld [vmem:[#allocation10 + $0x110] sm:$0xff]
    %v4572 = vld [vmem:[#allocation10 + $0x118] sm:$0xff]
    %v4573 = vld [vmem:[#allocation10 + $0x120] sm:$0xff]
    %v4574 = vld [vmem:[#allocation10 + $0x128] sm:$0xff]
    %v4575 = vld [vmem:[#allocation10 + $0x130] sm:$0xff]
    %v4576 = vld [vmem:[#allocation10 + $0x138] sm:$0xff]
    %v4577 = vld [vmem:[#allocation10 + $0x140] sm:$0xff]
    %v4578 = vld [vmem:[#allocation10 + $0x148] sm:$0xff]
    %v4579 = vld [vmem:[#allocation10 + $0x150] sm:$0xff]
    %v4580 = vld [vmem:[#allocation10 + $0x158] sm:$0xff]
    %v4581 = vld [vmem:[#allocation10 + $0x160] sm:$0xff]
    %v4582 = vld [vmem:[#allocation10 + $0x168] sm:$0xff]
    %v4583 = vld [vmem:[#allocation10 + $0x170] sm:$0xff]
    %v4584 = vld [vmem:[#allocation10 + $0x178] sm:$0xff]
    %v4585 = vld [vmem:[#allocation10 + $0x180] sm:$0xff]
    %v4586 = vld [vmem:[#allocation10 + $0x188] sm:$0xff]
    %v4587 = vld [vmem:[#allocation10 + $0x190] sm:$0xff]
    %v4588 = vld [vmem:[#allocation10 + $0x198] sm:$0xff]
    %v4589 = vld [vmem:[#allocation10 + $0x1a0] sm:$0xff]
    %v4590 = vld [vmem:[#allocation10 + $0x1a8] sm:$0xff]
    %v4591 = vld [vmem:[#allocation10 + $0x1b0] sm:$0xff]
    %v4592 = vld [vmem:[#allocation10 + $0x1b8] sm:$0xff]
    %v4593 = vld [vmem:[#allocation10 + $0x1c0] sm:$0xff]
    %v4594 = vld [vmem:[#allocation10 + $0x1c8] sm:$0xff]
    %v4595 = vld [vmem:[#allocation10 + $0x1d0] sm:$0xff]
    %v4596 = vld [vmem:[#allocation10 + $0x1d8] sm:$0xff]
    %v4597 = vld [vmem:[#allocation10 + $0x1e0] sm:$0xff]
    %v4598 = vld [vmem:[#allocation10 + $0x1e8] sm:$0xff]
    %v4599 = vld [vmem:[#allocation10 + $0x1f0] sm:$0xff]
    %v4600 = vld [vmem:[#allocation10 + $0x1f8] sm:$0xff]
    %4601 = vmatprep.subr.mxu0 %v4538
    %4602 = vmatpush1.msra.mxu0 %v4537
    %4603 = vmatprep.subr.mxu0 %v4542
    %4604 = vmatpush1.msra.mxu0 %v4541
    %4605 = vmatprep.subr.mxu0 %v4546
    %4606 = vmatpush1.msra.mxu0 %v4545
    %4607 = vmatprep.subr.mxu0 %v4550
    %4608 = vmatpush1.msra.mxu0 %v4549
    %4609 = vmatprep.subr.mxu0 %v4554
    %4610 = vmatpush1.msra.mxu0 %v4553
    %4611 = vmatprep.subr.mxu0 %v4558
    %4612 = vmatpush1.msra.mxu0 %v4557
    %4613 = vmatprep.subr.mxu0 %v4562
    %4614 = vmatpush1.msra.mxu0 %v4561
    %4615 = vmatprep.subr.mxu0 %v4566
    %4616 = vmatpush1.msra.mxu0 %v4565
    %4617 = vmatprep.subr.mxu0 %v4570
    %4618 = vmatpush1.msra.mxu0 %v4569
    %4619 = vmatprep.subr.mxu0 %v4574
    %4620 = vmatpush1.msra.mxu0 %v4573
    %4621 = vmatprep.subr.mxu0 %v4578
    %4622 = vmatpush1.msra.mxu0 %v4577
    %4623 = vmatprep.subr.mxu0 %v4582
    %4624 = vmatpush1.msra.mxu0 %v4581
    %4625 = vmatprep.subr.mxu0 %v4586
    %4626 = vmatpush1.msra.mxu0 %v4585
    %4627 = vmatprep.subr.mxu0 %v4590
    %4628 = vmatpush1.msra.mxu0 %v4589
    %4629 = vmatprep.subr.mxu0 %v4594
    %4630 = vmatpush1.msra.mxu0 %v4593
    %4631 = vmatprep.subr.mxu0 %v4598
    %4632 = vmatpush1.msra.mxu0 %v4597
    %4633 = vmatprep.subr.mxu0 0.0
    %4634 = vmatpush1.msra.mxu0 0.0
    %4635 = vmatprep.subr.mxu0 0.0
    %4636 = vmatpush1.msra.mxu0 0.0
    %4637 = vmatprep.subr.mxu0 0.0
    %4638 = vmatpush1.msra.mxu0 0.0
    %4639 = vmatprep.subr.mxu0 0.0
    %4640 = vmatpush1.msra.mxu0 0.0
    %4641 = vmatprep.subr.mxu0 0.0
    %4642 = vmatpush1.msra.mxu0 0.0
    %4643 = vmatprep.subr.mxu0 0.0
    %4644 = vmatpush1.msra.mxu0 0.0
    %4645 = vmatprep.subr.mxu0 0.0
    %4646 = vmatpush1.msra.mxu0 0.0
    %4647 = vmatprep.subr.mxu0 0.0
    %4648 = vmatpush1.msra.mxu0 0.0
    %4649 = vmatprep.subr.mxu0 0.0
    %4650 = vmatpush1.msra.mxu0 0.0
    %4651 = vmatprep.subr.mxu0 0.0
    %4652 = vmatpush1.msra.mxu0 0.0
    %4653 = vmatprep.subr.mxu0 0.0
    %4654 = vmatpush1.msra.mxu0 0.0
    %4655 = vmatprep.subr.mxu0 0.0
    %4656 = vmatpush1.msra.mxu0 0.0
    %4657 = vmatprep.subr.mxu0 0.0
    %4658 = vmatpush1.msra.mxu0 0.0
    %4659 = vmatprep.subr.mxu0 0.0
    %4660 = vmatpush1.msra.mxu0 0.0
    %4661 = vmatprep.subr.mxu0 0.0
    %4662 = vmatpush1.msra.mxu0 0.0
    %4663 = vmatprep.subr.mxu0 0.0
    %4664 = vmatpush1.msra.mxu0 0.0
    %4665 = vmatprep.mubr.f32.mxu0 0.0
    %4666 = vmatmul.mubr.f32.gmra.mrb[0].mxu0 %v4287
    %v4667 = vpop.f32.mrb[0].mxu0
    %v4668 = vadd.f32 0.0, %v4667
    %v4669 = vpop.f32.mrb[0].mxu0
    %v4670 = vadd.f32 0.0, %v4669
    %4671 = vdwg.mxu0
    %4672 = vmatprep.subr.mxu0 %v4540
    %4673 = vmatpush1.msra.mxu0 %v4539
    %4674 = vmatprep.subr.mxu0 %v4544
    %4675 = vmatpush1.msra.mxu0 %v4543
    %4676 = vmatprep.subr.mxu0 %v4548
    %4677 = vmatpush1.msra.mxu0 %v4547
    %4678 = vmatprep.subr.mxu0 %v4552
    %4679 = vmatpush1.msra.mxu0 %v4551
    %4680 = vmatprep.subr.mxu0 %v4556
    %4681 = vmatpush1.msra.mxu0 %v4555
    %4682 = vmatprep.subr.mxu0 %v4560
    %4683 = vmatpush1.msra.mxu0 %v4559
    %4684 = vmatprep.subr.mxu0 %v4564
    %4685 = vmatpush1.msra.mxu0 %v4563
    %4686 = vmatprep.subr.mxu0 %v4568
    %4687 = vmatpush1.msra.mxu0 %v4567
    %4688 = vmatprep.subr.mxu0 %v4572
    %4689 = vmatpush1.msra.mxu0 %v4571
    %4690 = vmatprep.subr.mxu0 %v4576
    %4691 = vmatpush1.msra.mxu0 %v4575
    %4692 = vmatprep.subr.mxu0 %v4580
    %4693 = vmatpush1.msra.mxu0 %v4579
    %4694 = vmatprep.subr.mxu0 %v4584
    %4695 = vmatpush1.msra.mxu0 %v4583
    %4696 = vmatprep.subr.mxu0 %v4588
    %4697 = vmatpush1.msra.mxu0 %v4587
    %4698 = vmatprep.subr.mxu0 %v4592
    %4699 = vmatpush1.msra.mxu0 %v4591
    %4700 = vmatprep.subr.mxu0 %v4596
    %4701 = vmatpush1.msra.mxu0 %v4595
    %4702 = vmatprep.subr.mxu0 %v4600
    %4703 = vmatpush1.msra.mxu0 %v4599
    %4704 = vmatprep.subr.mxu0 0.0
    %4705 = vmatpush1.msra.mxu0 0.0
    %4706 = vmatprep.subr.mxu0 0.0
    %4707 = vmatpush1.msra.mxu0 0.0
    %4708 = vmatprep.subr.mxu0 0.0
    %4709 = vmatpush1.msra.mxu0 0.0
    %4710 = vmatprep.subr.mxu0 0.0
    %4711 = vmatpush1.msra.mxu0 0.0
    %4712 = vmatprep.subr.mxu0 0.0
    %4713 = vmatpush1.msra.mxu0 0.0
    %4714 = vmatprep.subr.mxu0 0.0
    %4715 = vmatpush1.msra.mxu0 0.0
    %4716 = vmatprep.subr.mxu0 0.0
    %4717 = vmatpush1.msra.mxu0 0.0
    %4718 = vmatprep.subr.mxu0 0.0
    %4719 = vmatpush1.msra.mxu0 0.0
    %4720 = vmatprep.subr.mxu0 0.0
    %4721 = vmatpush1.msra.mxu0 0.0
    %4722 = vmatprep.subr.mxu0 0.0
    %4723 = vmatpush1.msra.mxu0 0.0
    %4724 = vmatprep.subr.mxu0 0.0
    %4725 = vmatpush1.msra.mxu0 0.0
    %4726 = vmatprep.subr.mxu0 0.0
    %4727 = vmatpush1.msra.mxu0 0.0
    %4728 = vmatprep.subr.mxu0 0.0
    %4729 = vmatpush1.msra.mxu0 0.0
    %4730 = vmatprep.subr.mxu0 0.0
    %4731 = vmatpush1.msra.mxu0 0.0
    %4732 = vmatprep.subr.mxu0 0.0
    %4733 = vmatpush1.msra.mxu0 0.0
    %4734 = vmatprep.subr.mxu0 0.0
    %4735 = vmatpush1.msra.mxu0 0.0
    %4736 = vmatprep.mubr.f32.mxu0 0.0
    %4737 = vmatmul.mubr.f32.gmra.mrb[0].mxu0 %v4287
    %v4738 = vpop.f32.mrb[0].mxu0
    %v4739 = vadd.f32 0.0, %v4738
    %v4740 = vpop.f32.mrb[0].mxu0
    %v4741 = vadd.f32 0.0, %v4740
    %4742 = vdwg.mxu0
    %v4743 = vadd.f32 %v4533, %v4668
    %v4744 = vadd.f32 %v4534, %v4670
    %v4745 = vadd.f32 %v4535, %v4739
    %v4746 = vadd.f32 %v4536, %v4741
    %v4747 = vxor.u32 %v4743, 2147483648
    %v4748 = vmul.f32 %v4747, 1.442695
    %v4749 = vpow.pop %v4748
    %v4750 = vadd.f32 %v4749, 1.0
    %v4751 = vrcp.pop %v4750
    %v4752 = vmul.f32 1.0, %v4751
    %v4753 = vxor.u32 %v4744, 2147483648
    %v4754 = vmul.f32 %v4753, 1.442695
    %v4755 = vpow.pop %v4754
    %v4756 = vadd.f32 %v4755, 1.0
    %v4757 = vrcp.pop %v4756
    %v4758 = vmul.f32 1.0, %v4757
    %v4759 = vtanh.pop %v4745
    %v4760 = vxor.u32 %v4746, 2147483648
    %v4761 = vmul.f32 %v4760, 1.442695
    %v4762 = vpow.pop %v4761
    %v4763 = vadd.f32 %v4762, 1.0
    %v4764 = vrcp.pop %v4763
    %v4765 = vmul.f32 1.0, %v4764
    %v4766 = vmul.f32 %v4758, %v4288
    %v4767 = vmul.f32 %v4752, %v4759
    %v4768 = vadd.f32 %v4766, %v4767
    %v4769 = vtanh.pop %v4768
    %v4770 = vmul.f32 %v4765, %v4769
    %v4771 = vsel %vm1092, %v4770, %v4287
    %v4772 = vsel %vm1092, %v4768, %v4288
    %v4773 = vsel %vm1092, %v4770, 0.0
    %4774 = vst [vmem:[#allocation12 + $0x8] sm:$0xff] %v4773
    %4775 = vst [vmem:[#allocation13] sm:$0xff] %v4529
    %s4776 = scalar_lea.vmem [#allocation13], 8
    %4777 = vst [vmem:[%s4776] sm:$0xff] %v4771
    %4778 = vst [vmem:[#allocation15] sm:$0xff] %v4530
    %s4779 = scalar_lea.vmem [#allocation15], 8
    %4780 = vst [vmem:[%s4779] sm:$0xff] %v4772
    // Predicated region
    $region58: #{tpu_custom_call.1} parent=1 // pred_check
      _
    $region59: #{tpu_custom_call.1} parent=1 // pred_check_branch
      %4782 = sbr.rel (0) target = $region61
    $region60: #{tpu_custom_call.1} parent=1 // pred_region
      %s4784 = ssub.s32 2048, 2048
      %4785 = vsyncadd [#allocation6], %s4784
      %s4786 = sshll.u32 [#allocation12], 4
      %s4787 = int_to_ptr.vmem [resolvable:$true] %s4786
      %4792 = dma.vmem_to_hbm [thread:$0]  %s4787, 2048, %s10, [#allocation6], 256, 256, 16
    $region61: #{tpu_custom_call.1} parent=1 // pred_fallthru
      _
    // Predicated region
    $region62: #{tpu_custom_call.1} parent=1 // pred_check
      _
    $region63: #{tpu_custom_call.1} parent=1 // pred_check_branch
      %4794 = sbr.rel (0) target = $region65
    $region64: #{tpu_custom_call.1} parent=1 // pred_region
      %s4796 = ssub.s32 256, 256
      %4797 = vsyncadd [#allocation14], %s4796
      %s4798 = sshll.u32 [#allocation13], 4
      %s4799 = int_to_ptr.vmem [resolvable:$true] %s4798
      %4804 = dma.vmem_to_hbm [thread:$0]  %s4799, 256, %s11, [#allocation14], 128, 128, 8
    $region65: #{tpu_custom_call.1} parent=1 // pred_fallthru
      _
    // Predicated region
    $region66: #{tpu_custom_call.1} parent=1 // pred_check
      _
    $region67: #{tpu_custom_call.1} parent=1 // pred_check_branch
      %4806 = sbr.rel (0) target = $region69
    $region68: #{tpu_custom_call.1} parent=1 // pred_region
      %s4808 = ssub.s32 256, 256
      %4809 = vsyncadd [#allocation14], %s4808
      %s4810 = sshll.u32 [#allocation15], 4
      %s4811 = int_to_ptr.vmem [resolvable:$true] %s4810
      %4816 = dma.vmem_to_hbm [thread:$0]  %s4811, 256, %s12, [#allocation14], 128, 128, 8
    $region69: #{tpu_custom_call.1} parent=1 // pred_fallthru
      _
    // Predicated region
    $region70: #{tpu_custom_call.1} parent=1 // pred_check
      _
    $region71: #{tpu_custom_call.1} parent=1 // pred_check_branch
      %4818 = sbr.rel (0) target = $region73
    $region72: #{tpu_custom_call.1} parent=1 // pred_region
      %4819 = dma.done [#allocation6], 2048
    $region73: #{tpu_custom_call.1} parent=1 // pred_fallthru
      _
    // Predicated region
    $region74: #{tpu_custom_call.1} parent=1 // pred_check
      _
    $region75: #{tpu_custom_call.1} parent=1 // pred_check_branch
      %4821 = sbr.rel (0) target = $region77
    $region76: #{tpu_custom_call.1} parent=1 // pred_region
      %4822 = dma.done [#allocation14], 256
    $region77: #{tpu_custom_call.1} parent=1 // pred_fallthru
      _
    // Predicated region
    $region78: #{tpu_custom_call.1} parent=1 // pred_check
      _
    $region79: #{tpu_custom_call.1} parent=1 // pred_check_branch
      %4824 = sbr.rel (0) target = $region81
    $region80: #{tpu_custom_call.1} parent=1 // pred_region
      %4825 = dma.done [#allocation14], 256
    $region81: #{tpu_custom_call.1} parent=1 // pred_fallthru
      _
    %4826 = vsyncpa [#allocation5], 1
    %4827 = vsyncpa [#allocation8], 1
    %4828 = vsyncpa [#allocation11], 1
    %4829 = vsyncpa [#allocation6], 1
    %4830 = vsyncpa [#allocation14], 1

</llo_original>
